<compile_context>
chip_gen: v7x
topology: tpu7x:2x2x1
jax: 0.10.0
libtpu: 0.0.40
codegen_flags: <defaults>
</compile_context>

<pallas_src>
import functools
import math

import numpy as np
import jax
import jax.numpy as jnp
from jax import lax
from jax.experimental import pallas as pl
from jax.experimental.pallas import tpu as pltpu


# ----------------------------------------------------------------- constants ---

def gaussian_weights(kernel_size, sigma):
    # NOTE: keeps the widely-copied GaussianSmoothing quirk (effective variance 2*sigma^2),
    # which the speechBCI reference implementation inherits.
    x = np.arange(kernel_size, dtype=np.float64)
    mean = (kernel_size - 1) / 2.0
    w = (1.0 / (sigma * math.sqrt(2.0 * math.pi))) * np.exp(-(((x - mean) / (2.0 * sigma)) ** 2))
    return w / w.sum()


def make_smooth_matrix(T, ksize, sigma):
    """(T, T) banded Toeplitz matrix S so that S @ x == depthwise conv1d(x, gauss, padding='same')."""
    w = gaussian_weights(ksize, sigma)
    left = (ksize - 1) // 2                      # torch 'same' pad for even kernel: left=9, right=10
    S = np.zeros((T, T), dtype=np.float32)
    for t in range(T):
        for k in range(ksize):
            u = t + k - left
            if 0 <= u < T:
                S[t, u] += w[k]
    return jnp.asarray(S)


def make_selection_matrices(T, L, K, stride):
    """(K, L, T) 0/1 matrices so that (S[k] @ y)[l, :] == y[l*stride + k, :]."""
    S = np.zeros((K, L, T), dtype=np.float32)
    for k in range(K):
        for l in range(L):
            S[k, l, l * stride + k] = 1.0
    return jnp.asarray(S)


# -------------------------------------------------------------- fused kernel ---

def _gru_decoder_kernel(x_ref, smooth_ref, sel_ref, win_t_ref, bin_ref,
                        wih0_ref, whh0_ref, bx0_ref, bhn0_ref,
                        wihr_ref, whhr_ref, bxr_ref, bhnr_ref,
                        wfc_ref, bfc_ref,
                        out_ref,
                        xg_scr, hseq_scr,
                        *, n_layers, kernel_len, seq_len, hidden):
    H, L, K = hidden, seq_len, kernel_len
    f32 = jnp.float32

    # 1) Gaussian smoothing along time as a single MXU matmul (zero 'same' padding baked in).
    x = x_ref[0]                                                             # (T, C)
    sm = jnp.dot(smooth_ref[...], x, preferred_element_type=f32)             # (T, C)

    # 2) input Linear + Softsign.
    y = jnp.dot(sm, win_t_ref[...], preferred_element_type=f32) + bin_ref[...]
    y = y / (1.0 + jnp.abs(y))                                               # (T, C)

    # 3) Unfold + layer-0 W_ih folded into K selection matmuls (all MXU, no gather/transpose).
    acc = jnp.zeros((L, 3 * H), f32)
    for k in range(K):                                                       # static unroll
        rows = jnp.dot(sel_ref[k], y, preferred_element_type=f32)            # (L, C): y[k::stride]
        acc = acc + jnp.dot(rows, wih0_ref[k], preferred_element_type=f32)   # (L, 3H)
    xg_scr[...] = acc + bx0_ref[...]            # bias = b_ih + [b_hr, b_hz, 0]

    # 4) stacked GRU layers.  Time recurrence fully unrolled with STATIC offsets (constant
    #    VMEM addresses, full LLO-scheduler visibility over the whole serial chain).
    def run_layer(whh_t, bhn):
        h = jnp.zeros((1, H), f32)
        for t in range(L):                                                   # static unroll
            xgt = xg_scr[pl.ds(t, 1), :]                                     # (1, 3H) static load
            hh = jnp.dot(h, whh_t, preferred_element_type=f32)               # (1, 3H)
            rz = jax.nn.sigmoid(xgt[:, 0:2 * H] + hh[:, 0:2 * H])            # fused r|z gates
            r = rz[:, 0:H]
            z = rz[:, H:2 * H]
            n = jnp.tanh(xgt[:, 2 * H:3 * H] + r * (hh[:, 2 * H:3 * H] + bhn))
            h = (1.0 - z) * n + z * h
            hseq_scr[pl.ds(t, 1), :] = h                                     # static store

    run_layer(whh0_ref[...], bhn0_ref[...])
    for l in range(1, n_layers):                                             # static unroll over layers
        hprev = hseq_scr[...]                                                # (L, H)
        xg_scr[...] = (jnp.dot(hprev, wihr_ref[l - 1], preferred_element_type=f32)
                       + bxr_ref[l - 1])
        run_layer(whhr_ref[l - 1], bhnr_ref[l - 1])

    # 5) fc_decoder_out: single (L, H) x (H, NC) matmul + one whole-block store.
    logits = jnp.dot(hseq_scr[...], wfc_ref[...], preferred_element_type=f32) + bfc_ref[...]
    out_ref[0] = logits.astype(out_ref.dtype)


# ------------------------------------------------------------------- wrapper ---

def prepare_fused_params(params, *, C, K, H, n_layers):
    """Fold torch-layout params into the fused-kernel layout."""
    g0 = params["gru"][0]

    def fold_bias(bih, bhh):
        # b_ih + [b_hr, b_hz, 0]; b_hn must stay inside r * (W_hn h + b_hn).
        return bih + jnp.concatenate([bhh[:, :2 * H], jnp.zeros((1, H), bhh.dtype)], axis=1)

    fused = {
        "win_t": params["w_in_t"],
        "bin": params["b_in"],
        # torch Unfold feature ordering is c*K + k  ->  reshape to (K, C, 3H)
        "wih0": jnp.transpose(g0["wih_t"].reshape(C, K, 3 * H), (1, 0, 2)),
        "whh0": g0["whh_t"],
        "bx0": fold_bias(g0["bih"], g0["bhh"]),
        "bhn0": g0["bhh"][:, 2 * H:],
        "wfc": params["w_fc_t"],
        "bfc": params["b_fc"],
    }
    if n_layers > 1:
        rest = params["gru"][1:n_layers]
        fused["wihr"] = jnp.stack([p["wih_t"] for p in rest])
        fused["whhr"] = jnp.stack([p["whh_t"] for p in rest])
        fused["bxr"] = jnp.stack([fold_bias(p["bih"], p["bhh"]) for p in rest])
        fused["bhnr"] = jnp.stack([p["bhh"][:, 2 * H:] for p in rest])
    else:  # dummy (unused) stacks so the kernel signature stays fixed
        fused["wihr"] = jnp.zeros((1, H, 3 * H), jnp.float32)
        fused["whhr"] = jnp.zeros((1, H, 3 * H), jnp.float32)
        fused["bxr"] = jnp.zeros((1, 1, 3 * H), jnp.float32)
        fused["bhnr"] = jnp.zeros((1, 1, H), jnp.float32)
    return fused


def gru_decoder_forward(x, params, *, kernel_len, stride_len,
                        gauss_width, gauss_ksize, layer_dim, hidden_dim):
    B, T, C = x.shape
    K, H = kernel_len, hidden_dim
    L = (T - K) // stride_len + 1
    NC = params["w_fc_t"].shape[1]

    smooth = make_smooth_matrix(T, gauss_ksize, gauss_width)
    sel = make_selection_matrices(T, L, K, stride_len)
    fp = prepare_fused_params(params, C=C, K=K, H=H, n_layers=layer_dim)
    NR = fp["wihr"].shape[0]

    kernel = functools.partial(_gru_decoder_kernel, n_layers=layer_dim,
                               kernel_len=K, seq_len=L, hidden=H)

    def rep(shape):  # full-array block, same block every grid step (weights / constants)
        n = len(shape)
        return pl.BlockSpec(shape, lambda b, _n=n: (0,) * _n)

    in_specs = [
        pl.BlockSpec((1, T, C), lambda b: (b, 0, 0)),     # x
        rep((T, T)),                                      # smooth (Toeplitz)
        rep((K, L, T)),                                   # selection matrices
        rep((C, C)),                                      # W_in^T
        rep((1, C)),                                      # b_in
        rep((K, C, 3 * H)),                               # layer-0 W_ih folded
        rep((H, 3 * H)),                                  # layer-0 W_hh^T (r|z|n)
        rep((1, 3 * H)),                                  # layer-0 folded x-gate bias
        rep((1, H)),                                      # layer-0 b_hn
        rep((NR, H, 3 * H)),                              # layers 1.. W_ih^T
        rep((NR, H, 3 * H)),                              # layers 1.. W_hh^T
        rep((NR, 1, 3 * H)),                              # layers 1.. folded x-gate bias
        rep((NR, 1, H)),                                  # layers 1.. b_hn
        rep((H, NC)),                                     # W_fc^T
        rep((1, NC)),                                     # b_fc
    ]

    return pl.pallas_call(
        kernel,
        out_shape=jax.ShapeDtypeStruct((B, L, NC), jnp.float32),
        grid=(B,),
        in_specs=in_specs,
        out_specs=pl.BlockSpec((1, L, NC), lambda b: (b, 0, 0)),
        scratch_shapes=[pltpu.VMEM((L, 3 * H), jnp.float32),   # per-layer x-gates
                        pltpu.VMEM((L, H), jnp.float32)],      # per-layer hidden sequence
        compiler_params=pltpu.CompilerParams(
            dimension_semantics=("parallel",),   # batch axis: shards across TCs on v7x/megacore
        ),
    )(x, smooth, sel, fp["win_t"], fp["bin"],
      fp["wih0"], fp["whh0"], fp["bx0"], fp["bhn0"],
      fp["wihr"], fp["whhr"], fp["bxr"], fp["bhnr"],
      fp["wfc"], fp["bfc"])


# -------------------------------------------------------------------- params ---

def init_params(key, C, K, H, n_layers, n_classes):
    params = {}
    key, k1, k2 = jax.random.split(key, 3)
    # input_layer: W (+ identity, as in the module), stored transposed (in, out)
    params["w_in_t"] = (0.05 * jax.random.normal(k1, (C, C), jnp.float32)
                        + jnp.eye(C, dtype=jnp.float32))
    params["b_in"] = 0.01 * jax.random.normal(k2, (1, C), jnp.float32)

    params["gru"] = []
    for l in range(n_layers):
        d_in = C * K if l == 0 else H
        key, ka, kb, kc, kd = jax.random.split(key, 5)
        s_ih = 1.0 / math.sqrt(d_in)
        s_hh = 1.0 / math.sqrt(H)
        params["gru"].append({
            "wih_t": s_ih * jax.random.normal(ka, (d_in, 3 * H), jnp.float32),  # == weight_ih_l{l}.T
            "bih":   0.01 * jax.random.normal(kb, (1, 3 * H), jnp.float32),
            "whh_t": s_hh * jax.random.normal(kc, (H, 3 * H), jnp.float32),     # == weight_hh_l{l}.T
            "bhh":   0.01 * jax.random.normal(kd, (1, 3 * H), jnp.float32),
        })

    key, k3, k4 = jax.random.split(key, 3)
    params["w_fc_t"] = (1.0 / math.sqrt(H)) * jax.random.normal(k3, (H, n_classes), jnp.float32)
    params["b_fc"] = 0.01 * jax.random.normal(k4, (1, n_classes), jnp.float32)
    return params


# ---------------------------------------------------- pure-JAX reference check ---

def reference_forward(x, params, *, kernel_len, stride_len,
                      gauss_width, gauss_ksize, layer_dim, hidden_dim):
    B, T, C = x.shape
    K, H = kernel_len, hidden_dim
    L = (T - K) // stride_len + 1
    hp = lax.Precision.HIGHEST

    w = gaussian_weights(gauss_ksize, gauss_width)
    left = (gauss_ksize - 1) // 2
    right = (gauss_ksize - 1) - left
    xpad = jnp.pad(x, ((0, 0), (left, right), (0, 0)))
    sm = sum(float(w[k]) * xpad[:, k:k + T, :] for k in range(gauss_ksize))

    y = jnp.dot(sm, params["w_in_t"], precision=hp) + params["b_in"]
    y = y / (1.0 + jnp.abs(y))

    idx = jnp.arange(L)[:, None] * stride_len + jnp.arange(K)[None, :]
    win = y[:, idx, :]                                                   # (B, L, K, C)
    h_in = jnp.transpose(win, (0, 1, 3, 2)).reshape(B, L, C * K)

    for l in range(layer_dim):
        p = params["gru"][l]
        xg = jnp.dot(h_in, p["wih_t"], precision=hp) + p["bih"]          # (B, L, 3H)

        def step(h, xg_t, whh_t=p["whh_t"], bhh=p["bhh"]):
            hh = jnp.dot(h, whh_t, precision=hp) + bhh
            r = jax.nn.sigmoid(xg_t[:, :H] + hh[:, :H])
            z = jax.nn.sigmoid(xg_t[:, H:2 * H] + hh[:, H:2 * H])
            n = jnp.tanh(xg_t[:, 2 * H:] + r * hh[:, 2 * H:])
            h_new = (1.0 - z) * n + z * h
            return h_new, h_new

        _, hs = lax.scan(step, jnp.zeros((B, H), jnp.float32),
                         jnp.transpose(xg, (1, 0, 2)))
        h_in = jnp.transpose(hs, (1, 0, 2))

    return jnp.dot(h_in, params["w_fc_t"], precision=hp) + params["b_fc"]


# ---------------------------------------------------------------------- main ---

if __name__ == "__main__":
    neural_dim, n_classes, hidden_dim, layer_dim = 16, 8, 32, 2
    stride_len, kernel_len = 4, 14
    gauss_width, gauss_ksize = 2.0, 20      # sigma=2.0 (module default 0 is degenerate)
    B, T = 2, 50

    key = jax.random.PRNGKey(0)
    kx, kp = jax.random.split(key)
    x = jax.random.normal(kx, (B, T, neural_dim), dtype=jnp.float32)
    params = init_params(kp, neural_dim, kernel_len, hidden_dim, layer_dim, n_classes)

    out = gru_decoder_forward(
        x, params,
        kernel_len=kernel_len, stride_len=stride_len,
        gauss_width=gauss_width, gauss_ksize=gauss_ksize,
        layer_dim=layer_dim, hidden_dim=hidden_dim,
    )
    out = jax.block_until_ready(out)

    L = (T - kernel_len) // stride_len + 1
    assert out.shape == (B, L, n_classes), out.shape
    assert bool(jnp.all(jnp.isfinite(out)))

    ref = reference_forward(
        x, params,
        kernel_len=kernel_len, stride_len=stride_len,
        gauss_width=gauss_width, gauss_ksize=gauss_ksize,
        layer_dim=layer_dim, hidden_dim=hidden_dim,
    )
    maxdiff = float(jnp.max(jnp.abs(out - ref)))
    assert maxdiff < 1e-2, maxdiff

    print("KERNEL_OK")
</pallas_src>

<mosaic_0001>
module attributes {stable_mosaic.version = 11 : i64} {
  func.func @_gru_decoder_kernel(%arg0: i32, %arg1: memref<1x50x16xf32, #tpu.memory_space<vmem>>, %arg2: memref<50x50xf32, #tpu.memory_space<vmem>>, %arg3: memref<14x10x50xf32, #tpu.memory_space<vmem>>, %arg4: memref<16x16xf32, #tpu.memory_space<vmem>>, %arg5: memref<1x16xf32, #tpu.memory_space<vmem>>, %arg6: memref<14x16x96xf32, #tpu.memory_space<vmem>>, %arg7: memref<32x96xf32, #tpu.memory_space<vmem>>, %arg8: memref<1x96xf32, #tpu.memory_space<vmem>>, %arg9: memref<1x32xf32, #tpu.memory_space<vmem>>, %arg10: memref<1x32x96xf32, #tpu.memory_space<vmem>>, %arg11: memref<1x32x96xf32, #tpu.memory_space<vmem>>, %arg12: memref<1x1x96xf32, #tpu.memory_space<vmem>>, %arg13: memref<1x1x32xf32, #tpu.memory_space<vmem>>, %arg14: memref<32x8xf32, #tpu.memory_space<vmem>>, %arg15: memref<1x8xf32, #tpu.memory_space<vmem>>, %arg16: memref<1x10x8xf32, #tpu.memory_space<vmem>>, %arg17: memref<10x96xf32, #tpu.memory_space<vmem>>, %arg18: memref<10x32xf32, #tpu.memory_space<vmem>>) attributes {dimension_semantics = [#tpu.dimension_semantics<parallel>], iteration_bounds = array<i64: 2>, scalar_prefetch = 0 : i64, scratch_operands = 2 : i64, tpu.core_type = #tpu.core_type<tc>, window_params = [{transform_indices = @transform_0, window_bounds = array<i64: 1, 50, 16>}, {pipeline_mode = #tpu.pipeline_mode<synchronous>, transform_indices = @transform_1, window_bounds = array<i64: 50, 50>}, {pipeline_mode = #tpu.pipeline_mode<synchronous>, transform_indices = @transform_2, window_bounds = array<i64: 14, 10, 50>}, {pipeline_mode = #tpu.pipeline_mode<synchronous>, transform_indices = @transform_3, window_bounds = array<i64: 16, 16>}, {pipeline_mode = #tpu.pipeline_mode<synchronous>, transform_indices = @transform_4, window_bounds = array<i64: 1, 16>}, {pipeline_mode = #tpu.pipeline_mode<synchronous>, transform_indices = @transform_5, window_bounds = array<i64: 14, 16, 96>}, {pipeline_mode = #tpu.pipeline_mode<synchronous>, transform_indices = @transform_6, window_bounds = array<i64: 32, 96>}, {pipeline_mode = #tpu.pipeline_mode<synchronous>, transform_indices = @transform_7, window_bounds = array<i64: 1, 96>}, {pipeline_mode = #tpu.pipeline_mode<synchronous>, transform_indices = @transform_8, window_bounds = array<i64: 1, 32>}, {pipeline_mode = #tpu.pipeline_mode<synchronous>, transform_indices = @transform_9, window_bounds = array<i64: 1, 32, 96>}, {pipeline_mode = #tpu.pipeline_mode<synchronous>, transform_indices = @transform_10, window_bounds = array<i64: 1, 32, 96>}, {pipeline_mode = #tpu.pipeline_mode<synchronous>, transform_indices = @transform_11, window_bounds = array<i64: 1, 1, 96>}, {pipeline_mode = #tpu.pipeline_mode<synchronous>, transform_indices = @transform_12, window_bounds = array<i64: 1, 1, 32>}, {pipeline_mode = #tpu.pipeline_mode<synchronous>, transform_indices = @transform_13, window_bounds = array<i64: 32, 8>}, {pipeline_mode = #tpu.pipeline_mode<synchronous>, transform_indices = @transform_14, window_bounds = array<i64: 1, 8>}, {transform_indices = @transform_15, window_bounds = array<i64: 1, 10, 8>}]} {
    %c0 = arith.constant 0 : index
    %c0_0 = arith.constant 0 : index
    %c0_1 = arith.constant 0 : index
    %0 = vector.load %arg1[%c0, %c0_0, %c0_1] : memref<1x50x16xf32, #tpu.memory_space<vmem>>, vector<1x50x16xf32>
    %1 = vector.shape_cast %0 : vector<1x50x16xf32> to vector<50x16xf32>
    %c0_2 = arith.constant 0 : index
    %c0_3 = arith.constant 0 : index
    %2 = vector.load %arg2[%c0_2, %c0_3] : memref<50x50xf32, #tpu.memory_space<vmem>>, vector<50x50xf32>
    %cst = arith.constant dense<0.000000e+00> : vector<50x16xf32>
    %3 = tpu.matmul %2, %1, %cst {dimension_numbers = #tpu.dot_dimension_numbers<[1], [0], [0], [1], [0, 0, 1, 1], [], []>} : vector<50x50xf32>, vector<50x16xf32>, vector<50x16xf32> -> vector<50x16xf32>
    %c0_4 = arith.constant 0 : index
    %c0_5 = arith.constant 0 : index
    %4 = vector.load %arg4[%c0_4, %c0_5] : memref<16x16xf32, #tpu.memory_space<vmem>>, vector<16x16xf32>
    %cst_6 = arith.constant dense<0.000000e+00> : vector<50x16xf32>
    %5 = tpu.matmul %3, %4, %cst_6 {dimension_numbers = #tpu.dot_dimension_numbers<[1], [0], [0], [1], [0, 0, 1, 1], [], []>} : vector<50x16xf32>, vector<16x16xf32>, vector<50x16xf32> -> vector<50x16xf32>
    %c0_7 = arith.constant 0 : index
    %c0_8 = arith.constant 0 : index
    %6 = vector.load %arg5[%c0_7, %c0_8] : memref<1x16xf32, #tpu.memory_space<vmem>>, vector<1x16xf32>
    %7 = vector.broadcast %6 : vector<1x16xf32> to vector<50x16xf32>
    %8 = arith.addf %5, %7 : vector<50x16xf32>
    %9 = math.absf %8 : vector<50x16xf32>
    %cst_9 = arith.constant 1.000000e+00 : f32
    %10 = vector.broadcast %cst_9 : f32 to vector<50x16xf32>
    %11 = arith.addf %10, %9 : vector<50x16xf32>
    %12 = arith.divf %8, %11 : vector<50x16xf32>
    %cst_10 = arith.constant 0.000000e+00 : f32
    %13 = vector.broadcast %cst_10 : f32 to vector<10x96xf32>
    %c0_11 = arith.constant 0 : index
    %c0_12 = arith.constant 0 : index
    %c0_13 = arith.constant 0 : index
    %14 = vector.load %arg3[%c0_11, %c0_12, %c0_13] : memref<14x10x50xf32, #tpu.memory_space<vmem>>, vector<1x10x50xf32>
    %15 = vector.shape_cast %14 : vector<1x10x50xf32> to vector<10x50xf32>
    %cst_14 = arith.constant dense<0.000000e+00> : vector<10x16xf32>
    %16 = tpu.matmul %15, %12, %cst_14 {dimension_numbers = #tpu.dot_dimension_numbers<[1], [0], [0], [1], [0, 0, 1, 1], [], []>} : vector<10x50xf32>, vector<50x16xf32>, vector<10x16xf32> -> vector<10x16xf32>
    %c0_15 = arith.constant 0 : index
    %c0_16 = arith.constant 0 : index
    %c0_17 = arith.constant 0 : index
    %17 = vector.load %arg6[%c0_15, %c0_16, %c0_17] : memref<14x16x96xf32, #tpu.memory_space<vmem>>, vector<1x16x96xf32>
    %18 = vector.shape_cast %17 : vector<1x16x96xf32> to vector<16x96xf32>
    %cst_18 = arith.constant dense<0.000000e+00> : vector<10x96xf32>
    %19 = tpu.matmul %16, %18, %cst_18 {dimension_numbers = #tpu.dot_dimension_numbers<[1], [0], [0], [1], [0, 0, 1, 1], [], []>} : vector<10x16xf32>, vector<16x96xf32>, vector<10x96xf32> -> vector<10x96xf32>
    %20 = arith.addf %13, %19 : vector<10x96xf32>
    %c1 = arith.constant 1 : index
    %c0_19 = arith.constant 0 : index
    %c0_20 = arith.constant 0 : index
    %21 = vector.load %arg3[%c1, %c0_19, %c0_20] : memref<14x10x50xf32, #tpu.memory_space<vmem>>, vector<1x10x50xf32>
    %22 = vector.shape_cast %21 : vector<1x10x50xf32> to vector<10x50xf32>
    %cst_21 = arith.constant dense<0.000000e+00> : vector<10x16xf32>
    %23 = tpu.matmul %22, %12, %cst_21 {dimension_numbers = #tpu.dot_dimension_numbers<[1], [0], [0], [1], [0, 0, 1, 1], [], []>} : vector<10x50xf32>, vector<50x16xf32>, vector<10x16xf32> -> vector<10x16xf32>
    %c1_22 = arith.constant 1 : index
    %c0_23 = arith.constant 0 : index
    %c0_24 = arith.constant 0 : index
    %24 = vector.load %arg6[%c1_22, %c0_23, %c0_24] : memref<14x16x96xf32, #tpu.memory_space<vmem>>, vector<1x16x96xf32>
    %25 = vector.shape_cast %24 : vector<1x16x96xf32> to vector<16x96xf32>
    %cst_25 = arith.constant dense<0.000000e+00> : vector<10x96xf32>
    %26 = tpu.matmul %23, %25, %cst_25 {dimension_numbers = #tpu.dot_dimension_numbers<[1], [0], [0], [1], [0, 0, 1, 1], [], []>} : vector<10x16xf32>, vector<16x96xf32>, vector<10x96xf32> -> vector<10x96xf32>
    %27 = arith.addf %20, %26 : vector<10x96xf32>
    %c2 = arith.constant 2 : index
    %c0_26 = arith.constant 0 : index
    %c0_27 = arith.constant 0 : index
    %28 = vector.load %arg3[%c2, %c0_26, %c0_27] : memref<14x10x50xf32, #tpu.memory_space<vmem>>, vector<1x10x50xf32>
    %29 = vector.shape_cast %28 : vector<1x10x50xf32> to vector<10x50xf32>
    %cst_28 = arith.constant dense<0.000000e+00> : vector<10x16xf32>
    %30 = tpu.matmul %29, %12, %cst_28 {dimension_numbers = #tpu.dot_dimension_numbers<[1], [0], [0], [1], [0, 0, 1, 1], [], []>} : vector<10x50xf32>, vector<50x16xf32>, vector<10x16xf32> -> vector<10x16xf32>
    %c2_29 = arith.constant 2 : index
    %c0_30 = arith.constant 0 : index
    %c0_31 = arith.constant 0 : index
    %31 = vector.load %arg6[%c2_29, %c0_30, %c0_31] : memref<14x16x96xf32, #tpu.memory_space<vmem>>, vector<1x16x96xf32>
    %32 = vector.shape_cast %31 : vector<1x16x96xf32> to vector<16x96xf32>
    %cst_32 = arith.constant dense<0.000000e+00> : vector<10x96xf32>
    %33 = tpu.matmul %30, %32, %cst_32 {dimension_numbers = #tpu.dot_dimension_numbers<[1], [0], [0], [1], [0, 0, 1, 1], [], []>} : vector<10x16xf32>, vector<16x96xf32>, vector<10x96xf32> -> vector<10x96xf32>
    %34 = arith.addf %27, %33 : vector<10x96xf32>
    %c3 = arith.constant 3 : index
    %c0_33 = arith.constant 0 : index
    %c0_34 = arith.constant 0 : index
    %35 = vector.load %arg3[%c3, %c0_33, %c0_34] : memref<14x10x50xf32, #tpu.memory_space<vmem>>, vector<1x10x50xf32>
    %36 = vector.shape_cast %35 : vector<1x10x50xf32> to vector<10x50xf32>
    %cst_35 = arith.constant dense<0.000000e+00> : vector<10x16xf32>
    %37 = tpu.matmul %36, %12, %cst_35 {dimension_numbers = #tpu.dot_dimension_numbers<[1], [0], [0], [1], [0, 0, 1, 1], [], []>} : vector<10x50xf32>, vector<50x16xf32>, vector<10x16xf32> -> vector<10x16xf32>
    %c3_36 = arith.constant 3 : index
    %c0_37 = arith.constant 0 : index
    %c0_38 = arith.constant 0 : index
    %38 = vector.load %arg6[%c3_36, %c0_37, %c0_38] : memref<14x16x96xf32, #tpu.memory_space<vmem>>, vector<1x16x96xf32>
    %39 = vector.shape_cast %38 : vector<1x16x96xf32> to vector<16x96xf32>
    %cst_39 = arith.constant dense<0.000000e+00> : vector<10x96xf32>
    %40 = tpu.matmul %37, %39, %cst_39 {dimension_numbers = #tpu.dot_dimension_numbers<[1], [0], [0], [1], [0, 0, 1, 1], [], []>} : vector<10x16xf32>, vector<16x96xf32>, vector<10x96xf32> -> vector<10x96xf32>
    %41 = arith.addf %34, %40 : vector<10x96xf32>
    %c4 = arith.constant 4 : index
    %c0_40 = arith.constant 0 : index
    %c0_41 = arith.constant 0 : index
    %42 = vector.load %arg3[%c4, %c0_40, %c0_41] : memref<14x10x50xf32, #tpu.memory_space<vmem>>, vector<1x10x50xf32>
    %43 = vector.shape_cast %42 : vector<1x10x50xf32> to vector<10x50xf32>
    %cst_42 = arith.constant dense<0.000000e+00> : vector<10x16xf32>
    %44 = tpu.matmul %43, %12, %cst_42 {dimension_numbers = #tpu.dot_dimension_numbers<[1], [0], [0], [1], [0, 0, 1, 1], [], []>} : vector<10x50xf32>, vector<50x16xf32>, vector<10x16xf32> -> vector<10x16xf32>
    %c4_43 = arith.constant 4 : index
    %c0_44 = arith.constant 0 : index
    %c0_45 = arith.constant 0 : index
    %45 = vector.load %arg6[%c4_43, %c0_44, %c0_45] : memref<14x16x96xf32, #tpu.memory_space<vmem>>, vector<1x16x96xf32>
    %46 = vector.shape_cast %45 : vector<1x16x96xf32> to vector<16x96xf32>
    %cst_46 = arith.constant dense<0.000000e+00> : vector<10x96xf32>
    %47 = tpu.matmul %44, %46, %cst_46 {dimension_numbers = #tpu.dot_dimension_numbers<[1], [0], [0], [1], [0, 0, 1, 1], [], []>} : vector<10x16xf32>, vector<16x96xf32>, vector<10x96xf32> -> vector<10x96xf32>
    %48 = arith.addf %41, %47 : vector<10x96xf32>
    %c5 = arith.constant 5 : index
    %c0_47 = arith.constant 0 : index
    %c0_48 = arith.constant 0 : index
    %49 = vector.load %arg3[%c5, %c0_47, %c0_48] : memref<14x10x50xf32, #tpu.memory_space<vmem>>, vector<1x10x50xf32>
    %50 = vector.shape_cast %49 : vector<1x10x50xf32> to vector<10x50xf32>
    %cst_49 = arith.constant dense<0.000000e+00> : vector<10x16xf32>
    %51 = tpu.matmul %50, %12, %cst_49 {dimension_numbers = #tpu.dot_dimension_numbers<[1], [0], [0], [1], [0, 0, 1, 1], [], []>} : vector<10x50xf32>, vector<50x16xf32>, vector<10x16xf32> -> vector<10x16xf32>
    %c5_50 = arith.constant 5 : index
    %c0_51 = arith.constant 0 : index
    %c0_52 = arith.constant 0 : index
    %52 = vector.load %arg6[%c5_50, %c0_51, %c0_52] : memref<14x16x96xf32, #tpu.memory_space<vmem>>, vector<1x16x96xf32>
    %53 = vector.shape_cast %52 : vector<1x16x96xf32> to vector<16x96xf32>
    %cst_53 = arith.constant dense<0.000000e+00> : vector<10x96xf32>
    %54 = tpu.matmul %51, %53, %cst_53 {dimension_numbers = #tpu.dot_dimension_numbers<[1], [0], [0], [1], [0, 0, 1, 1], [], []>} : vector<10x16xf32>, vector<16x96xf32>, vector<10x96xf32> -> vector<10x96xf32>
    %55 = arith.addf %48, %54 : vector<10x96xf32>
    %c6 = arith.constant 6 : index
    %c0_54 = arith.constant 0 : index
    %c0_55 = arith.constant 0 : index
    %56 = vector.load %arg3[%c6, %c0_54, %c0_55] : memref<14x10x50xf32, #tpu.memory_space<vmem>>, vector<1x10x50xf32>
    %57 = vector.shape_cast %56 : vector<1x10x50xf32> to vector<10x50xf32>
    %cst_56 = arith.constant dense<0.000000e+00> : vector<10x16xf32>
    %58 = tpu.matmul %57, %12, %cst_56 {dimension_numbers = #tpu.dot_dimension_numbers<[1], [0], [0], [1], [0, 0, 1, 1], [], []>} : vector<10x50xf32>, vector<50x16xf32>, vector<10x16xf32> -> vector<10x16xf32>
    %c6_57 = arith.constant 6 : index
    %c0_58 = arith.constant 0 : index
    %c0_59 = arith.constant 0 : index
    %59 = vector.load %arg6[%c6_57, %c0_58, %c0_59] : memref<14x16x96xf32, #tpu.memory_space<vmem>>, vector<1x16x96xf32>
    %60 = vector.shape_cast %59 : vector<1x16x96xf32> to vector<16x96xf32>
    %cst_60 = arith.constant dense<0.000000e+00> : vector<10x96xf32>
    %61 = tpu.matmul %58, %60, %cst_60 {dimension_numbers = #tpu.dot_dimension_numbers<[1], [0], [0], [1], [0, 0, 1, 1], [], []>} : vector<10x16xf32>, vector<16x96xf32>, vector<10x96xf32> -> vector<10x96xf32>
    %62 = arith.addf %55, %61 : vector<10x96xf32>
    %c7 = arith.constant 7 : index
    %c0_61 = arith.constant 0 : index
    %c0_62 = arith.constant 0 : index
    %63 = vector.load %arg3[%c7, %c0_61, %c0_62] : memref<14x10x50xf32, #tpu.memory_space<vmem>>, vector<1x10x50xf32>
    %64 = vector.shape_cast %63 : vector<1x10x50xf32> to vector<10x50xf32>
    %cst_63 = arith.constant dense<0.000000e+00> : vector<10x16xf32>
    %65 = tpu.matmul %64, %12, %cst_63 {dimension_numbers = #tpu.dot_dimension_numbers<[1], [0], [0], [1], [0, 0, 1, 1], [], []>} : vector<10x50xf32>, vector<50x16xf32>, vector<10x16xf32> -> vector<10x16xf32>
    %c7_64 = arith.constant 7 : index
    %c0_65 = arith.constant 0 : index
    %c0_66 = arith.constant 0 : index
    %66 = vector.load %arg6[%c7_64, %c0_65, %c0_66] : memref<14x16x96xf32, #tpu.memory_space<vmem>>, vector<1x16x96xf32>
    %67 = vector.shape_cast %66 : vector<1x16x96xf32> to vector<16x96xf32>
    %cst_67 = arith.constant dense<0.000000e+00> : vector<10x96xf32>
    %68 = tpu.matmul %65, %67, %cst_67 {dimension_numbers = #tpu.dot_dimension_numbers<[1], [0], [0], [1], [0, 0, 1, 1], [], []>} : vector<10x16xf32>, vector<16x96xf32>, vector<10x96xf32> -> vector<10x96xf32>
    %69 = arith.addf %62, %68 : vector<10x96xf32>
    %c8 = arith.constant 8 : index
    %c0_68 = arith.constant 0 : index
    %c0_69 = arith.constant 0 : index
    %70 = vector.load %arg3[%c8, %c0_68, %c0_69] : memref<14x10x50xf32, #tpu.memory_space<vmem>>, vector<1x10x50xf32>
    %71 = vector.shape_cast %70 : vector<1x10x50xf32> to vector<10x50xf32>
    %cst_70 = arith.constant dense<0.000000e+00> : vector<10x16xf32>
    %72 = tpu.matmul %71, %12, %cst_70 {dimension_numbers = #tpu.dot_dimension_numbers<[1], [0], [0], [1], [0, 0, 1, 1], [], []>} : vector<10x50xf32>, vector<50x16xf32>, vector<10x16xf32> -> vector<10x16xf32>
    %c8_71 = arith.constant 8 : index
    %c0_72 = arith.constant 0 : index
    %c0_73 = arith.constant 0 : index
    %73 = vector.load %arg6[%c8_71, %c0_72, %c0_73] : memref<14x16x96xf32, #tpu.memory_space<vmem>>, vector<1x16x96xf32>
    %74 = vector.shape_cast %73 : vector<1x16x96xf32> to vector<16x96xf32>
    %cst_74 = arith.constant dense<0.000000e+00> : vector<10x96xf32>
    %75 = tpu.matmul %72, %74, %cst_74 {dimension_numbers = #tpu.dot_dimension_numbers<[1], [0], [0], [1], [0, 0, 1, 1], [], []>} : vector<10x16xf32>, vector<16x96xf32>, vector<10x96xf32> -> vector<10x96xf32>
    %76 = arith.addf %69, %75 : vector<10x96xf32>
    %c9 = arith.constant 9 : index
    %c0_75 = arith.constant 0 : index
    %c0_76 = arith.constant 0 : index
    %77 = vector.load %arg3[%c9, %c0_75, %c0_76] : memref<14x10x50xf32, #tpu.memory_space<vmem>>, vector<1x10x50xf32>
    %78 = vector.shape_cast %77 : vector<1x10x50xf32> to vector<10x50xf32>
    %cst_77 = arith.constant dense<0.000000e+00> : vector<10x16xf32>
    %79 = tpu.matmul %78, %12, %cst_77 {dimension_numbers = #tpu.dot_dimension_numbers<[1], [0], [0], [1], [0, 0, 1, 1], [], []>} : vector<10x50xf32>, vector<50x16xf32>, vector<10x16xf32> -> vector<10x16xf32>
    %c9_78 = arith.constant 9 : index
    %c0_79 = arith.constant 0 : index
    %c0_80 = arith.constant 0 : index
    %80 = vector.load %arg6[%c9_78, %c0_79, %c0_80] : memref<14x16x96xf32, #tpu.memory_space<vmem>>, vector<1x16x96xf32>
    %81 = vector.shape_cast %80 : vector<1x16x96xf32> to vector<16x96xf32>
    %cst_81 = arith.constant dense<0.000000e+00> : vector<10x96xf32>
    %82 = tpu.matmul %79, %81, %cst_81 {dimension_numbers = #tpu.dot_dimension_numbers<[1], [0], [0], [1], [0, 0, 1, 1], [], []>} : vector<10x16xf32>, vector<16x96xf32>, vector<10x96xf32> -> vector<10x96xf32>
    %83 = arith.addf %76, %82 : vector<10x96xf32>
    %c10 = arith.constant 10 : index
    %c0_82 = arith.constant 0 : index
    %c0_83 = arith.constant 0 : index
    %84 = vector.load %arg3[%c10, %c0_82, %c0_83] : memref<14x10x50xf32, #tpu.memory_space<vmem>>, vector<1x10x50xf32>
    %85 = vector.shape_cast %84 : vector<1x10x50xf32> to vector<10x50xf32>
    %cst_84 = arith.constant dense<0.000000e+00> : vector<10x16xf32>
    %86 = tpu.matmul %85, %12, %cst_84 {dimension_numbers = #tpu.dot_dimension_numbers<[1], [0], [0], [1], [0, 0, 1, 1], [], []>} : vector<10x50xf32>, vector<50x16xf32>, vector<10x16xf32> -> vector<10x16xf32>
    %c10_85 = arith.constant 10 : index
    %c0_86 = arith.constant 0 : index
    %c0_87 = arith.constant 0 : index
    %87 = vector.load %arg6[%c10_85, %c0_86, %c0_87] : memref<14x16x96xf32, #tpu.memory_space<vmem>>, vector<1x16x96xf32>
    %88 = vector.shape_cast %87 : vector<1x16x96xf32> to vector<16x96xf32>
    %cst_88 = arith.constant dense<0.000000e+00> : vector<10x96xf32>
    %89 = tpu.matmul %86, %88, %cst_88 {dimension_numbers = #tpu.dot_dimension_numbers<[1], [0], [0], [1], [0, 0, 1, 1], [], []>} : vector<10x16xf32>, vector<16x96xf32>, vector<10x96xf32> -> vector<10x96xf32>
    %90 = arith.addf %83, %89 : vector<10x96xf32>
    %c11 = arith.constant 11 : index
    %c0_89 = arith.constant 0 : index
    %c0_90 = arith.constant 0 : index
    %91 = vector.load %arg3[%c11, %c0_89, %c0_90] : memref<14x10x50xf32, #tpu.memory_space<vmem>>, vector<1x10x50xf32>
    %92 = vector.shape_cast %91 : vector<1x10x50xf32> to vector<10x50xf32>
    %cst_91 = arith.constant dense<0.000000e+00> : vector<10x16xf32>
    %93 = tpu.matmul %92, %12, %cst_91 {dimension_numbers = #tpu.dot_dimension_numbers<[1], [0], [0], [1], [0, 0, 1, 1], [], []>} : vector<10x50xf32>, vector<50x16xf32>, vector<10x16xf32> -> vector<10x16xf32>
    %c11_92 = arith.constant 11 : index
    %c0_93 = arith.constant 0 : index
    %c0_94 = arith.constant 0 : index
    %94 = vector.load %arg6[%c11_92, %c0_93, %c0_94] : memref<14x16x96xf32, #tpu.memory_space<vmem>>, vector<1x16x96xf32>
    %95 = vector.shape_cast %94 : vector<1x16x96xf32> to vector<16x96xf32>
    %cst_95 = arith.constant dense<0.000000e+00> : vector<10x96xf32>
    %96 = tpu.matmul %93, %95, %cst_95 {dimension_numbers = #tpu.dot_dimension_numbers<[1], [0], [0], [1], [0, 0, 1, 1], [], []>} : vector<10x16xf32>, vector<16x96xf32>, vector<10x96xf32> -> vector<10x96xf32>
    %97 = arith.addf %90, %96 : vector<10x96xf32>
    %c12 = arith.constant 12 : index
    %c0_96 = arith.constant 0 : index
    %c0_97 = arith.constant 0 : index
    %98 = vector.load %arg3[%c12, %c0_96, %c0_97] : memref<14x10x50xf32, #tpu.memory_space<vmem>>, vector<1x10x50xf32>
    %99 = vector.shape_cast %98 : vector<1x10x50xf32> to vector<10x50xf32>
    %cst_98 = arith.constant dense<0.000000e+00> : vector<10x16xf32>
    %100 = tpu.matmul %99, %12, %cst_98 {dimension_numbers = #tpu.dot_dimension_numbers<[1], [0], [0], [1], [0, 0, 1, 1], [], []>} : vector<10x50xf32>, vector<50x16xf32>, vector<10x16xf32> -> vector<10x16xf32>
    %c12_99 = arith.constant 12 : index
    %c0_100 = arith.constant 0 : index
    %c0_101 = arith.constant 0 : index
    %101 = vector.load %arg6[%c12_99, %c0_100, %c0_101] : memref<14x16x96xf32, #tpu.memory_space<vmem>>, vector<1x16x96xf32>
    %102 = vector.shape_cast %101 : vector<1x16x96xf32> to vector<16x96xf32>
    %cst_102 = arith.constant dense<0.000000e+00> : vector<10x96xf32>
    %103 = tpu.matmul %100, %102, %cst_102 {dimension_numbers = #tpu.dot_dimension_numbers<[1], [0], [0], [1], [0, 0, 1, 1], [], []>} : vector<10x16xf32>, vector<16x96xf32>, vector<10x96xf32> -> vector<10x96xf32>
    %104 = arith.addf %97, %103 : vector<10x96xf32>
    %c13 = arith.constant 13 : index
    %c0_103 = arith.constant 0 : index
    %c0_104 = arith.constant 0 : index
    %105 = vector.load %arg3[%c13, %c0_103, %c0_104] : memref<14x10x50xf32, #tpu.memory_space<vmem>>, vector<1x10x50xf32>
    %106 = vector.shape_cast %105 : vector<1x10x50xf32> to vector<10x50xf32>
    %cst_105 = arith.constant dense<0.000000e+00> : vector<10x16xf32>
    %107 = tpu.matmul %106, %12, %cst_105 {dimension_numbers = #tpu.dot_dimension_numbers<[1], [0], [0], [1], [0, 0, 1, 1], [], []>} : vector<10x50xf32>, vector<50x16xf32>, vector<10x16xf32> -> vector<10x16xf32>
    %c13_106 = arith.constant 13 : index
    %c0_107 = arith.constant 0 : index
    %c0_108 = arith.constant 0 : index
    %108 = vector.load %arg6[%c13_106, %c0_107, %c0_108] : memref<14x16x96xf32, #tpu.memory_space<vmem>>, vector<1x16x96xf32>
    %109 = vector.shape_cast %108 : vector<1x16x96xf32> to vector<16x96xf32>
    %cst_109 = arith.constant dense<0.000000e+00> : vector<10x96xf32>
    %110 = tpu.matmul %107, %109, %cst_109 {dimension_numbers = #tpu.dot_dimension_numbers<[1], [0], [0], [1], [0, 0, 1, 1], [], []>} : vector<10x16xf32>, vector<16x96xf32>, vector<10x96xf32> -> vector<10x96xf32>
    %111 = arith.addf %104, %110 : vector<10x96xf32>
    %c0_110 = arith.constant 0 : index
    %c0_111 = arith.constant 0 : index
    %112 = vector.load %arg8[%c0_110, %c0_111] : memref<1x96xf32, #tpu.memory_space<vmem>>, vector<1x96xf32>
    %113 = vector.broadcast %112 : vector<1x96xf32> to vector<10x96xf32>
    %114 = arith.addf %111, %113 : vector<10x96xf32>
    %c0_112 = arith.constant 0 : index
    %c0_113 = arith.constant 0 : index
    %115 = vector.load %arg17[%c0_112, %c0_113] : memref<10x96xf32, #tpu.memory_space<vmem>>, vector<10x96xf32>
    tpu.vector_store %arg17[%c0_112, %c0_113], %114 {strides = array<i32>} : memref<10x96xf32, #tpu.memory_space<vmem>>, vector<10x96xf32>,
    %c0_114 = arith.constant 0 : index
    %c0_115 = arith.constant 0 : index
    %116 = vector.load %arg7[%c0_114, %c0_115] : memref<32x96xf32, #tpu.memory_space<vmem>>, vector<32x96xf32>
    %c0_116 = arith.constant 0 : index
    %c0_117 = arith.constant 0 : index
    %117 = vector.load %arg9[%c0_116, %c0_117] : memref<1x32xf32, #tpu.memory_space<vmem>>, vector<1x32xf32>
    %cst_118 = arith.constant 0.000000e+00 : f32
    %118 = vector.broadcast %cst_118 : f32 to vector<1x32xf32>
    %c0_119 = arith.constant 0 : index
    %c0_120 = arith.constant 0 : index
    %119 = vector.load %arg17[%c0_119, %c0_120] : memref<10x96xf32, #tpu.memory_space<vmem>>, vector<1x96xf32>
    %cst_121 = arith.constant dense<0.000000e+00> : vector<1x96xf32>
    %120 = tpu.matmul %118, %116, %cst_121 {dimension_numbers = #tpu.dot_dimension_numbers<[1], [0], [0], [1], [0, 0, 1, 1], [], []>} : vector<1x32xf32>, vector<32x96xf32>, vector<1x96xf32> -> vector<1x96xf32>
    %121 = vector.extract_strided_slice %119 {offsets = [0, 0], sizes = [1, 64], strides = [1, 1]} : vector<1x96xf32> to vector<1x64xf32>
    %122 = vector.extract_strided_slice %120 {offsets = [0, 0], sizes = [1, 64], strides = [1, 1]} : vector<1x96xf32> to vector<1x64xf32>
    %123 = arith.addf %121, %122 : vector<1x64xf32>
    %124 = arith.negf %123 : vector<1x64xf32>
    %125 = math.exp %124 : vector<1x64xf32>
    %cst_122 = arith.constant 1.000000e+00 : f32
    %126 = vector.broadcast %cst_122 : f32 to vector<1x64xf32>
    %127 = arith.addf %126, %125 : vector<1x64xf32>
    %128 = arith.divf %126, %127 : vector<1x64xf32>
    %129 = vector.extract_strided_slice %128 {offsets = [0, 0], sizes = [1, 32], strides = [1, 1]} : vector<1x64xf32> to vector<1x32xf32>
    %130 = vector.extract_strided_slice %128 {offsets = [0, 32], sizes = [1, 32], strides = [1, 1]} : vector<1x64xf32> to vector<1x32xf32>
    %131 = vector.extract_strided_slice %119 {offsets = [0, 64], sizes = [1, 32], strides = [1, 1]} : vector<1x96xf32> to vector<1x32xf32>
    %132 = vector.extract_strided_slice %120 {offsets = [0, 64], sizes = [1, 32], strides = [1, 1]} : vector<1x96xf32> to vector<1x32xf32>
    %133 = arith.addf %132, %117 : vector<1x32xf32>
    %134 = arith.mulf %129, %133 : vector<1x32xf32>
    %135 = arith.addf %131, %134 : vector<1x32xf32>
    %136 = math.tanh %135 : vector<1x32xf32>
    %cst_123 = arith.constant 1.000000e+00 : f32
    %137 = vector.broadcast %cst_123 : f32 to vector<1x32xf32>
    %138 = arith.subf %137, %130 : vector<1x32xf32>
    %139 = arith.mulf %138, %136 : vector<1x32xf32>
    %140 = arith.mulf %130, %118 : vector<1x32xf32>
    %141 = arith.addf %139, %140 : vector<1x32xf32>
    %c0_124 = arith.constant 0 : index
    %c0_125 = arith.constant 0 : index
    %142 = vector.load %arg18[%c0_124, %c0_125] : memref<10x32xf32, #tpu.memory_space<vmem>>, vector<1x32xf32>
    tpu.vector_store %arg18[%c0_124, %c0_125], %141 {strides = array<i32>} : memref<10x32xf32, #tpu.memory_space<vmem>>, vector<1x32xf32>,
    %c1_126 = arith.constant 1 : index
    %c0_127 = arith.constant 0 : index
    %143 = vector.load %arg17[%c1_126, %c0_127] : memref<10x96xf32, #tpu.memory_space<vmem>>, vector<1x96xf32>
    %cst_128 = arith.constant dense<0.000000e+00> : vector<1x96xf32>
    %144 = tpu.matmul %141, %116, %cst_128 {dimension_numbers = #tpu.dot_dimension_numbers<[1], [0], [0], [1], [0, 0, 1, 1], [], []>} : vector<1x32xf32>, vector<32x96xf32>, vector<1x96xf32> -> vector<1x96xf32>
    %145 = vector.extract_strided_slice %143 {offsets = [0, 0], sizes = [1, 64], strides = [1, 1]} : vector<1x96xf32> to vector<1x64xf32>
    %146 = vector.extract_strided_slice %144 {offsets = [0, 0], sizes = [1, 64], strides = [1, 1]} : vector<1x96xf32> to vector<1x64xf32>
    %147 = arith.addf %145, %146 : vector<1x64xf32>
    %148 = arith.negf %147 : vector<1x64xf32>
    %149 = math.exp %148 : vector<1x64xf32>
    %cst_129 = arith.constant 1.000000e+00 : f32
    %150 = vector.broadcast %cst_129 : f32 to vector<1x64xf32>
    %151 = arith.addf %150, %149 : vector<1x64xf32>
    %152 = arith.divf %150, %151 : vector<1x64xf32>
    %153 = vector.extract_strided_slice %152 {offsets = [0, 0], sizes = [1, 32], strides = [1, 1]} : vector<1x64xf32> to vector<1x32xf32>
    %154 = vector.extract_strided_slice %152 {offsets = [0, 32], sizes = [1, 32], strides = [1, 1]} : vector<1x64xf32> to vector<1x32xf32>
    %155 = vector.extract_strided_slice %143 {offsets = [0, 64], sizes = [1, 32], strides = [1, 1]} : vector<1x96xf32> to vector<1x32xf32>
    %156 = vector.extract_strided_slice %144 {offsets = [0, 64], sizes = [1, 32], strides = [1, 1]} : vector<1x96xf32> to vector<1x32xf32>
    %157 = arith.addf %156, %117 : vector<1x32xf32>
    %158 = arith.mulf %153, %157 : vector<1x32xf32>
    %159 = arith.addf %155, %158 : vector<1x32xf32>
    %160 = math.tanh %159 : vector<1x32xf32>
    %cst_130 = arith.constant 1.000000e+00 : f32
    %161 = vector.broadcast %cst_130 : f32 to vector<1x32xf32>
    %162 = arith.subf %161, %154 : vector<1x32xf32>
    %163 = arith.mulf %162, %160 : vector<1x32xf32>
    %164 = arith.mulf %154, %141 : vector<1x32xf32>
    %165 = arith.addf %163, %164 : vector<1x32xf32>
    %c1_131 = arith.constant 1 : index
    %c0_132 = arith.constant 0 : index
    %166 = vector.load %arg18[%c1_131, %c0_132] : memref<10x32xf32, #tpu.memory_space<vmem>>, vector<1x32xf32>
    tpu.vector_store %arg18[%c1_131, %c0_132], %165 {strides = array<i32>} : memref<10x32xf32, #tpu.memory_space<vmem>>, vector<1x32xf32>,
    %c2_133 = arith.constant 2 : index
    %c0_134 = arith.constant 0 : index
    %167 = vector.load %arg17[%c2_133, %c0_134] : memref<10x96xf32, #tpu.memory_space<vmem>>, vector<1x96xf32>
    %cst_135 = arith.constant dense<0.000000e+00> : vector<1x96xf32>
    %168 = tpu.matmul %165, %116, %cst_135 {dimension_numbers = #tpu.dot_dimension_numbers<[1], [0], [0], [1], [0, 0, 1, 1], [], []>} : vector<1x32xf32>, vector<32x96xf32>, vector<1x96xf32> -> vector<1x96xf32>
    %169 = vector.extract_strided_slice %167 {offsets = [0, 0], sizes = [1, 64], strides = [1, 1]} : vector<1x96xf32> to vector<1x64xf32>
    %170 = vector.extract_strided_slice %168 {offsets = [0, 0], sizes = [1, 64], strides = [1, 1]} : vector<1x96xf32> to vector<1x64xf32>
    %171 = arith.addf %169, %170 : vector<1x64xf32>
    %172 = arith.negf %171 : vector<1x64xf32>
    %173 = math.exp %172 : vector<1x64xf32>
    %cst_136 = arith.constant 1.000000e+00 : f32
    %174 = vector.broadcast %cst_136 : f32 to vector<1x64xf32>
    %175 = arith.addf %174, %173 : vector<1x64xf32>
    %176 = arith.divf %174, %175 : vector<1x64xf32>
    %177 = vector.extract_strided_slice %176 {offsets = [0, 0], sizes = [1, 32], strides = [1, 1]} : vector<1x64xf32> to vector<1x32xf32>
    %178 = vector.extract_strided_slice %176 {offsets = [0, 32], sizes = [1, 32], strides = [1, 1]} : vector<1x64xf32> to vector<1x32xf32>
    %179 = vector.extract_strided_slice %167 {offsets = [0, 64], sizes = [1, 32], strides = [1, 1]} : vector<1x96xf32> to vector<1x32xf32>
    %180 = vector.extract_strided_slice %168 {offsets = [0, 64], sizes = [1, 32], strides = [1, 1]} : vector<1x96xf32> to vector<1x32xf32>
    %181 = arith.addf %180, %117 : vector<1x32xf32>
    %182 = arith.mulf %177, %181 : vector<1x32xf32>
    %183 = arith.addf %179, %182 : vector<1x32xf32>
    %184 = math.tanh %183 : vector<1x32xf32>
    %cst_137 = arith.constant 1.000000e+00 : f32
    %185 = vector.broadcast %cst_137 : f32 to vector<1x32xf32>
    %186 = arith.subf %185, %178 : vector<1x32xf32>
    %187 = arith.mulf %186, %184 : vector<1x32xf32>
    %188 = arith.mulf %178, %165 : vector<1x32xf32>
    %189 = arith.addf %187, %188 : vector<1x32xf32>
    %c2_138 = arith.constant 2 : index
    %c0_139 = arith.constant 0 : index
    %190 = vector.load %arg18[%c2_138, %c0_139] : memref<10x32xf32, #tpu.memory_space<vmem>>, vector<1x32xf32>
    tpu.vector_store %arg18[%c2_138, %c0_139], %189 {strides = array<i32>} : memref<10x32xf32, #tpu.memory_space<vmem>>, vector<1x32xf32>,
    %c3_140 = arith.constant 3 : index
    %c0_141 = arith.constant 0 : index
    %191 = vector.load %arg17[%c3_140, %c0_141] : memref<10x96xf32, #tpu.memory_space<vmem>>, vector<1x96xf32>
    %cst_142 = arith.constant dense<0.000000e+00> : vector<1x96xf32>
    %192 = tpu.matmul %189, %116, %cst_142 {dimension_numbers = #tpu.dot_dimension_numbers<[1], [0], [0], [1], [0, 0, 1, 1], [], []>} : vector<1x32xf32>, vector<32x96xf32>, vector<1x96xf32> -> vector<1x96xf32>
    %193 = vector.extract_strided_slice %191 {offsets = [0, 0], sizes = [1, 64], strides = [1, 1]} : vector<1x96xf32> to vector<1x64xf32>
    %194 = vector.extract_strided_slice %192 {offsets = [0, 0], sizes = [1, 64], strides = [1, 1]} : vector<1x96xf32> to vector<1x64xf32>
    %195 = arith.addf %193, %194 : vector<1x64xf32>
    %196 = arith.negf %195 : vector<1x64xf32>
    %197 = math.exp %196 : vector<1x64xf32>
    %cst_143 = arith.constant 1.000000e+00 : f32
    %198 = vector.broadcast %cst_143 : f32 to vector<1x64xf32>
    %199 = arith.addf %198, %197 : vector<1x64xf32>
    %200 = arith.divf %198, %199 : vector<1x64xf32>
    %201 = vector.extract_strided_slice %200 {offsets = [0, 0], sizes = [1, 32], strides = [1, 1]} : vector<1x64xf32> to vector<1x32xf32>
    %202 = vector.extract_strided_slice %200 {offsets = [0, 32], sizes = [1, 32], strides = [1, 1]} : vector<1x64xf32> to vector<1x32xf32>
    %203 = vector.extract_strided_slice %191 {offsets = [0, 64], sizes = [1, 32], strides = [1, 1]} : vector<1x96xf32> to vector<1x32xf32>
    %204 = vector.extract_strided_slice %192 {offsets = [0, 64], sizes = [1, 32], strides = [1, 1]} : vector<1x96xf32> to vector<1x32xf32>
    %205 = arith.addf %204, %117 : vector<1x32xf32>
    %206 = arith.mulf %201, %205 : vector<1x32xf32>
    %207 = arith.addf %203, %206 : vector<1x32xf32>
    %208 = math.tanh %207 : vector<1x32xf32>
    %cst_144 = arith.constant 1.000000e+00 : f32
    %209 = vector.broadcast %cst_144 : f32 to vector<1x32xf32>
    %210 = arith.subf %209, %202 : vector<1x32xf32>
    %211 = arith.mulf %210, %208 : vector<1x32xf32>
    %212 = arith.mulf %202, %189 : vector<1x32xf32>
    %213 = arith.addf %211, %212 : vector<1x32xf32>
    %c3_145 = arith.constant 3 : index
    %c0_146 = arith.constant 0 : index
    %214 = vector.load %arg18[%c3_145, %c0_146] : memref<10x32xf32, #tpu.memory_space<vmem>>, vector<1x32xf32>
    tpu.vector_store %arg18[%c3_145, %c0_146], %213 {strides = array<i32>} : memref<10x32xf32, #tpu.memory_space<vmem>>, vector<1x32xf32>,
    %c4_147 = arith.constant 4 : index
    %c0_148 = arith.constant 0 : index
    %215 = vector.load %arg17[%c4_147, %c0_148] : memref<10x96xf32, #tpu.memory_space<vmem>>, vector<1x96xf32>
    %cst_149 = arith.constant dense<0.000000e+00> : vector<1x96xf32>
    %216 = tpu.matmul %213, %116, %cst_149 {dimension_numbers = #tpu.dot_dimension_numbers<[1], [0], [0], [1], [0, 0, 1, 1], [], []>} : vector<1x32xf32>, vector<32x96xf32>, vector<1x96xf32> -> vector<1x96xf32>
    %217 = vector.extract_strided_slice %215 {offsets = [0, 0], sizes = [1, 64], strides = [1, 1]} : vector<1x96xf32> to vector<1x64xf32>
    %218 = vector.extract_strided_slice %216 {offsets = [0, 0], sizes = [1, 64], strides = [1, 1]} : vector<1x96xf32> to vector<1x64xf32>
    %219 = arith.addf %217, %218 : vector<1x64xf32>
    %220 = arith.negf %219 : vector<1x64xf32>
    %221 = math.exp %220 : vector<1x64xf32>
    %cst_150 = arith.constant 1.000000e+00 : f32
    %222 = vector.broadcast %cst_150 : f32 to vector<1x64xf32>
    %223 = arith.addf %222, %221 : vector<1x64xf32>
    %224 = arith.divf %222, %223 : vector<1x64xf32>
    %225 = vector.extract_strided_slice %224 {offsets = [0, 0], sizes = [1, 32], strides = [1, 1]} : vector<1x64xf32> to vector<1x32xf32>
    %226 = vector.extract_strided_slice %224 {offsets = [0, 32], sizes = [1, 32], strides = [1, 1]} : vector<1x64xf32> to vector<1x32xf32>
    %227 = vector.extract_strided_slice %215 {offsets = [0, 64], sizes = [1, 32], strides = [1, 1]} : vector<1x96xf32> to vector<1x32xf32>
    %228 = vector.extract_strided_slice %216 {offsets = [0, 64], sizes = [1, 32], strides = [1, 1]} : vector<1x96xf32> to vector<1x32xf32>
    %229 = arith.addf %228, %117 : vector<1x32xf32>
    %230 = arith.mulf %225, %229 : vector<1x32xf32>
    %231 = arith.addf %227, %230 : vector<1x32xf32>
    %232 = math.tanh %231 : vector<1x32xf32>
    %cst_151 = arith.constant 1.000000e+00 : f32
    %233 = vector.broadcast %cst_151 : f32 to vector<1x32xf32>
    %234 = arith.subf %233, %226 : vector<1x32xf32>
    %235 = arith.mulf %234, %232 : vector<1x32xf32>
    %236 = arith.mulf %226, %213 : vector<1x32xf32>
    %237 = arith.addf %235, %236 : vector<1x32xf32>
    %c4_152 = arith.constant 4 : index
    %c0_153 = arith.constant 0 : index
    %238 = vector.load %arg18[%c4_152, %c0_153] : memref<10x32xf32, #tpu.memory_space<vmem>>, vector<1x32xf32>
    tpu.vector_store %arg18[%c4_152, %c0_153], %237 {strides = array<i32>} : memref<10x32xf32, #tpu.memory_space<vmem>>, vector<1x32xf32>,
    %c5_154 = arith.constant 5 : index
    %c0_155 = arith.constant 0 : index
    %239 = vector.load %arg17[%c5_154, %c0_155] : memref<10x96xf32, #tpu.memory_space<vmem>>, vector<1x96xf32>
    %cst_156 = arith.constant dense<0.000000e+00> : vector<1x96xf32>
    %240 = tpu.matmul %237, %116, %cst_156 {dimension_numbers = #tpu.dot_dimension_numbers<[1], [0], [0], [1], [0, 0, 1, 1], [], []>} : vector<1x32xf32>, vector<32x96xf32>, vector<1x96xf32> -> vector<1x96xf32>
    %241 = vector.extract_strided_slice %239 {offsets = [0, 0], sizes = [1, 64], strides = [1, 1]} : vector<1x96xf32> to vector<1x64xf32>
    %242 = vector.extract_strided_slice %240 {offsets = [0, 0], sizes = [1, 64], strides = [1, 1]} : vector<1x96xf32> to vector<1x64xf32>
    %243 = arith.addf %241, %242 : vector<1x64xf32>
    %244 = arith.negf %243 : vector<1x64xf32>
    %245 = math.exp %244 : vector<1x64xf32>
    %cst_157 = arith.constant 1.000000e+00 : f32
    %246 = vector.broadcast %cst_157 : f32 to vector<1x64xf32>
    %247 = arith.addf %246, %245 : vector<1x64xf32>
    %248 = arith.divf %246, %247 : vector<1x64xf32>
    %249 = vector.extract_strided_slice %248 {offsets = [0, 0], sizes = [1, 32], strides = [1, 1]} : vector<1x64xf32> to vector<1x32xf32>
    %250 = vector.extract_strided_slice %248 {offsets = [0, 32], sizes = [1, 32], strides = [1, 1]} : vector<1x64xf32> to vector<1x32xf32>
    %251 = vector.extract_strided_slice %239 {offsets = [0, 64], sizes = [1, 32], strides = [1, 1]} : vector<1x96xf32> to vector<1x32xf32>
    %252 = vector.extract_strided_slice %240 {offsets = [0, 64], sizes = [1, 32], strides = [1, 1]} : vector<1x96xf32> to vector<1x32xf32>
    %253 = arith.addf %252, %117 : vector<1x32xf32>
    %254 = arith.mulf %249, %253 : vector<1x32xf32>
    %255 = arith.addf %251, %254 : vector<1x32xf32>
    %256 = math.tanh %255 : vector<1x32xf32>
    %cst_158 = arith.constant 1.000000e+00 : f32
    %257 = vector.broadcast %cst_158 : f32 to vector<1x32xf32>
    %258 = arith.subf %257, %250 : vector<1x32xf32>
    %259 = arith.mulf %258, %256 : vector<1x32xf32>
    %260 = arith.mulf %250, %237 : vector<1x32xf32>
    %261 = arith.addf %259, %260 : vector<1x32xf32>
    %c5_159 = arith.constant 5 : index
    %c0_160 = arith.constant 0 : index
    %262 = vector.load %arg18[%c5_159, %c0_160] : memref<10x32xf32, #tpu.memory_space<vmem>>, vector<1x32xf32>
    tpu.vector_store %arg18[%c5_159, %c0_160], %261 {strides = array<i32>} : memref<10x32xf32, #tpu.memory_space<vmem>>, vector<1x32xf32>,
    %c6_161 = arith.constant 6 : index
    %c0_162 = arith.constant 0 : index
    %263 = vector.load %arg17[%c6_161, %c0_162] : memref<10x96xf32, #tpu.memory_space<vmem>>, vector<1x96xf32>
    %cst_163 = arith.constant dense<0.000000e+00> : vector<1x96xf32>
    %264 = tpu.matmul %261, %116, %cst_163 {dimension_numbers = #tpu.dot_dimension_numbers<[1], [0], [0], [1], [0, 0, 1, 1], [], []>} : vector<1x32xf32>, vector<32x96xf32>, vector<1x96xf32> -> vector<1x96xf32>
    %265 = vector.extract_strided_slice %263 {offsets = [0, 0], sizes = [1, 64], strides = [1, 1]} : vector<1x96xf32> to vector<1x64xf32>
    %266 = vector.extract_strided_slice %264 {offsets = [0, 0], sizes = [1, 64], strides = [1, 1]} : vector<1x96xf32> to vector<1x64xf32>
    %267 = arith.addf %265, %266 : vector<1x64xf32>
    %268 = arith.negf %267 : vector<1x64xf32>
    %269 = math.exp %268 : vector<1x64xf32>
    %cst_164 = arith.constant 1.000000e+00 : f32
    %270 = vector.broadcast %cst_164 : f32 to vector<1x64xf32>
    %271 = arith.addf %270, %269 : vector<1x64xf32>
    %272 = arith.divf %270, %271 : vector<1x64xf32>
    %273 = vector.extract_strided_slice %272 {offsets = [0, 0], sizes = [1, 32], strides = [1, 1]} : vector<1x64xf32> to vector<1x32xf32>
    %274 = vector.extract_strided_slice %272 {offsets = [0, 32], sizes = [1, 32], strides = [1, 1]} : vector<1x64xf32> to vector<1x32xf32>
    %275 = vector.extract_strided_slice %263 {offsets = [0, 64], sizes = [1, 32], strides = [1, 1]} : vector<1x96xf32> to vector<1x32xf32>
    %276 = vector.extract_strided_slice %264 {offsets = [0, 64], sizes = [1, 32], strides = [1, 1]} : vector<1x96xf32> to vector<1x32xf32>
    %277 = arith.addf %276, %117 : vector<1x32xf32>
    %278 = arith.mulf %273, %277 : vector<1x32xf32>
    %279 = arith.addf %275, %278 : vector<1x32xf32>
    %280 = math.tanh %279 : vector<1x32xf32>
    %cst_165 = arith.constant 1.000000e+00 : f32
    %281 = vector.broadcast %cst_165 : f32 to vector<1x32xf32>
    %282 = arith.subf %281, %274 : vector<1x32xf32>
    %283 = arith.mulf %282, %280 : vector<1x32xf32>
    %284 = arith.mulf %274, %261 : vector<1x32xf32>
    %285 = arith.addf %283, %284 : vector<1x32xf32>
    %c6_166 = arith.constant 6 : index
    %c0_167 = arith.constant 0 : index
    %286 = vector.load %arg18[%c6_166, %c0_167] : memref<10x32xf32, #tpu.memory_space<vmem>>, vector<1x32xf32>
    tpu.vector_store %arg18[%c6_166, %c0_167], %285 {strides = array<i32>} : memref<10x32xf32, #tpu.memory_space<vmem>>, vector<1x32xf32>,
    %c7_168 = arith.constant 7 : index
    %c0_169 = arith.constant 0 : index
    %287 = vector.load %arg17[%c7_168, %c0_169] : memref<10x96xf32, #tpu.memory_space<vmem>>, vector<1x96xf32>
    %cst_170 = arith.constant dense<0.000000e+00> : vector<1x96xf32>
    %288 = tpu.matmul %285, %116, %cst_170 {dimension_numbers = #tpu.dot_dimension_numbers<[1], [0], [0], [1], [0, 0, 1, 1], [], []>} : vector<1x32xf32>, vector<32x96xf32>, vector<1x96xf32> -> vector<1x96xf32>
    %289 = vector.extract_strided_slice %287 {offsets = [0, 0], sizes = [1, 64], strides = [1, 1]} : vector<1x96xf32> to vector<1x64xf32>
    %290 = vector.extract_strided_slice %288 {offsets = [0, 0], sizes = [1, 64], strides = [1, 1]} : vector<1x96xf32> to vector<1x64xf32>
    %291 = arith.addf %289, %290 : vector<1x64xf32>
    %292 = arith.negf %291 : vector<1x64xf32>
    %293 = math.exp %292 : vector<1x64xf32>
    %cst_171 = arith.constant 1.000000e+00 : f32
    %294 = vector.broadcast %cst_171 : f32 to vector<1x64xf32>
    %295 = arith.addf %294, %293 : vector<1x64xf32>
    %296 = arith.divf %294, %295 : vector<1x64xf32>
    %297 = vector.extract_strided_slice %296 {offsets = [0, 0], sizes = [1, 32], strides = [1, 1]} : vector<1x64xf32> to vector<1x32xf32>
    %298 = vector.extract_strided_slice %296 {offsets = [0, 32], sizes = [1, 32], strides = [1, 1]} : vector<1x64xf32> to vector<1x32xf32>
    %299 = vector.extract_strided_slice %287 {offsets = [0, 64], sizes = [1, 32], strides = [1, 1]} : vector<1x96xf32> to vector<1x32xf32>
    %300 = vector.extract_strided_slice %288 {offsets = [0, 64], sizes = [1, 32], strides = [1, 1]} : vector<1x96xf32> to vector<1x32xf32>
    %301 = arith.addf %300, %117 : vector<1x32xf32>
    %302 = arith.mulf %297, %301 : vector<1x32xf32>
    %303 = arith.addf %299, %302 : vector<1x32xf32>
    %304 = math.tanh %303 : vector<1x32xf32>
    %cst_172 = arith.constant 1.000000e+00 : f32
    %305 = vector.broadcast %cst_172 : f32 to vector<1x32xf32>
    %306 = arith.subf %305, %298 : vector<1x32xf32>
    %307 = arith.mulf %306, %304 : vector<1x32xf32>
    %308 = arith.mulf %298, %285 : vector<1x32xf32>
    %309 = arith.addf %307, %308 : vector<1x32xf32>
    %c7_173 = arith.constant 7 : index
    %c0_174 = arith.constant 0 : index
    %310 = vector.load %arg18[%c7_173, %c0_174] : memref<10x32xf32, #tpu.memory_space<vmem>>, vector<1x32xf32>
    tpu.vector_store %arg18[%c7_173, %c0_174], %309 {strides = array<i32>} : memref<10x32xf32, #tpu.memory_space<vmem>>, vector<1x32xf32>,
    %c8_175 = arith.constant 8 : index
    %c0_176 = arith.constant 0 : index
    %311 = vector.load %arg17[%c8_175, %c0_176] : memref<10x96xf32, #tpu.memory_space<vmem>>, vector<1x96xf32>
    %cst_177 = arith.constant dense<0.000000e+00> : vector<1x96xf32>
    %312 = tpu.matmul %309, %116, %cst_177 {dimension_numbers = #tpu.dot_dimension_numbers<[1], [0], [0], [1], [0, 0, 1, 1], [], []>} : vector<1x32xf32>, vector<32x96xf32>, vector<1x96xf32> -> vector<1x96xf32>
    %313 = vector.extract_strided_slice %311 {offsets = [0, 0], sizes = [1, 64], strides = [1, 1]} : vector<1x96xf32> to vector<1x64xf32>
    %314 = vector.extract_strided_slice %312 {offsets = [0, 0], sizes = [1, 64], strides = [1, 1]} : vector<1x96xf32> to vector<1x64xf32>
    %315 = arith.addf %313, %314 : vector<1x64xf32>
    %316 = arith.negf %315 : vector<1x64xf32>
    %317 = math.exp %316 : vector<1x64xf32>
    %cst_178 = arith.constant 1.000000e+00 : f32
    %318 = vector.broadcast %cst_178 : f32 to vector<1x64xf32>
    %319 = arith.addf %318, %317 : vector<1x64xf32>
    %320 = arith.divf %318, %319 : vector<1x64xf32>
    %321 = vector.extract_strided_slice %320 {offsets = [0, 0], sizes = [1, 32], strides = [1, 1]} : vector<1x64xf32> to vector<1x32xf32>
    %322 = vector.extract_strided_slice %320 {offsets = [0, 32], sizes = [1, 32], strides = [1, 1]} : vector<1x64xf32> to vector<1x32xf32>
    %323 = vector.extract_strided_slice %311 {offsets = [0, 64], sizes = [1, 32], strides = [1, 1]} : vector<1x96xf32> to vector<1x32xf32>
    %324 = vector.extract_strided_slice %312 {offsets = [0, 64], sizes = [1, 32], strides = [1, 1]} : vector<1x96xf32> to vector<1x32xf32>
    %325 = arith.addf %324, %117 : vector<1x32xf32>
    %326 = arith.mulf %321, %325 : vector<1x32xf32>
    %327 = arith.addf %323, %326 : vector<1x32xf32>
    %328 = math.tanh %327 : vector<1x32xf32>
    %cst_179 = arith.constant 1.000000e+00 : f32
    %329 = vector.broadcast %cst_179 : f32 to vector<1x32xf32>
    %330 = arith.subf %329, %322 : vector<1x32xf32>
    %331 = arith.mulf %330, %328 : vector<1x32xf32>
    %332 = arith.mulf %322, %309 : vector<1x32xf32>
    %333 = arith.addf %331, %332 : vector<1x32xf32>
    %c8_180 = arith.constant 8 : index
    %c0_181 = arith.constant 0 : index
    %334 = vector.load %arg18[%c8_180, %c0_181] : memref<10x32xf32, #tpu.memory_space<vmem>>, vector<1x32xf32>
    tpu.vector_store %arg18[%c8_180, %c0_181], %333 {strides = array<i32>} : memref<10x32xf32, #tpu.memory_space<vmem>>, vector<1x32xf32>,
    %c9_182 = arith.constant 9 : index
    %c0_183 = arith.constant 0 : index
    %335 = vector.load %arg17[%c9_182, %c0_183] : memref<10x96xf32, #tpu.memory_space<vmem>>, vector<1x96xf32>
    %cst_184 = arith.constant dense<0.000000e+00> : vector<1x96xf32>
    %336 = tpu.matmul %333, %116, %cst_184 {dimension_numbers = #tpu.dot_dimension_numbers<[1], [0], [0], [1], [0, 0, 1, 1], [], []>} : vector<1x32xf32>, vector<32x96xf32>, vector<1x96xf32> -> vector<1x96xf32>
    %337 = vector.extract_strided_slice %335 {offsets = [0, 0], sizes = [1, 64], strides = [1, 1]} : vector<1x96xf32> to vector<1x64xf32>
    %338 = vector.extract_strided_slice %336 {offsets = [0, 0], sizes = [1, 64], strides = [1, 1]} : vector<1x96xf32> to vector<1x64xf32>
    %339 = arith.addf %337, %338 : vector<1x64xf32>
    %340 = arith.negf %339 : vector<1x64xf32>
    %341 = math.exp %340 : vector<1x64xf32>
    %cst_185 = arith.constant 1.000000e+00 : f32
    %342 = vector.broadcast %cst_185 : f32 to vector<1x64xf32>
    %343 = arith.addf %342, %341 : vector<1x64xf32>
    %344 = arith.divf %342, %343 : vector<1x64xf32>
    %345 = vector.extract_strided_slice %344 {offsets = [0, 0], sizes = [1, 32], strides = [1, 1]} : vector<1x64xf32> to vector<1x32xf32>
    %346 = vector.extract_strided_slice %344 {offsets = [0, 32], sizes = [1, 32], strides = [1, 1]} : vector<1x64xf32> to vector<1x32xf32>
    %347 = vector.extract_strided_slice %335 {offsets = [0, 64], sizes = [1, 32], strides = [1, 1]} : vector<1x96xf32> to vector<1x32xf32>
    %348 = vector.extract_strided_slice %336 {offsets = [0, 64], sizes = [1, 32], strides = [1, 1]} : vector<1x96xf32> to vector<1x32xf32>
    %349 = arith.addf %348, %117 : vector<1x32xf32>
    %350 = arith.mulf %345, %349 : vector<1x32xf32>
    %351 = arith.addf %347, %350 : vector<1x32xf32>
    %352 = math.tanh %351 : vector<1x32xf32>
    %cst_186 = arith.constant 1.000000e+00 : f32
    %353 = vector.broadcast %cst_186 : f32 to vector<1x32xf32>
    %354 = arith.subf %353, %346 : vector<1x32xf32>
    %355 = arith.mulf %354, %352 : vector<1x32xf32>
    %356 = arith.mulf %346, %333 : vector<1x32xf32>
    %357 = arith.addf %355, %356 : vector<1x32xf32>
    %c9_187 = arith.constant 9 : index
    %c0_188 = arith.constant 0 : index
    %358 = vector.load %arg18[%c9_187, %c0_188] : memref<10x32xf32, #tpu.memory_space<vmem>>, vector<1x32xf32>
    tpu.vector_store %arg18[%c9_187, %c0_188], %357 {strides = array<i32>} : memref<10x32xf32, #tpu.memory_space<vmem>>, vector<1x32xf32>,
    %c0_189 = arith.constant 0 : index
    %c0_190 = arith.constant 0 : index
    %359 = vector.load %arg18[%c0_189, %c0_190] : memref<10x32xf32, #tpu.memory_space<vmem>>, vector<10x32xf32>
    %c0_191 = arith.constant 0 : index
    %c0_192 = arith.constant 0 : index
    %c0_193 = arith.constant 0 : index
    %360 = vector.load %arg10[%c0_191, %c0_192, %c0_193] : memref<1x32x96xf32, #tpu.memory_space<vmem>>, vector<1x32x96xf32>
    %361 = vector.shape_cast %360 : vector<1x32x96xf32> to vector<32x96xf32>
    %cst_194 = arith.constant dense<0.000000e+00> : vector<10x96xf32>
    %362 = tpu.matmul %359, %361, %cst_194 {dimension_numbers = #tpu.dot_dimension_numbers<[1], [0], [0], [1], [0, 0, 1, 1], [], []>} : vector<10x32xf32>, vector<32x96xf32>, vector<10x96xf32> -> vector<10x96xf32>
    %c0_195 = arith.constant 0 : index
    %c0_196 = arith.constant 0 : index
    %c0_197 = arith.constant 0 : index
    %363 = vector.load %arg12[%c0_195, %c0_196, %c0_197] : memref<1x1x96xf32, #tpu.memory_space<vmem>>, vector<1x1x96xf32>
    %364 = vector.shape_cast %363 : vector<1x1x96xf32> to vector<1x96xf32>
    %365 = vector.broadcast %364 : vector<1x96xf32> to vector<10x96xf32>
    %366 = arith.addf %362, %365 : vector<10x96xf32>
    %c0_198 = arith.constant 0 : index
    %c0_199 = arith.constant 0 : index
    %367 = vector.load %arg17[%c0_198, %c0_199] : memref<10x96xf32, #tpu.memory_space<vmem>>, vector<10x96xf32>
    tpu.vector_store %arg17[%c0_198, %c0_199], %366 {strides = array<i32>} : memref<10x96xf32, #tpu.memory_space<vmem>>, vector<10x96xf32>,
    %c0_200 = arith.constant 0 : index
    %c0_201 = arith.constant 0 : index
    %c0_202 = arith.constant 0 : index
    %368 = vector.load %arg11[%c0_200, %c0_201, %c0_202] : memref<1x32x96xf32, #tpu.memory_space<vmem>>, vector<1x32x96xf32>
    %369 = vector.shape_cast %368 : vector<1x32x96xf32> to vector<32x96xf32>
    %c0_203 = arith.constant 0 : index
    %c0_204 = arith.constant 0 : index
    %c0_205 = arith.constant 0 : index
    %370 = vector.load %arg13[%c0_203, %c0_204, %c0_205] : memref<1x1x32xf32, #tpu.memory_space<vmem>>, vector<1x1x32xf32>
    %371 = vector.shape_cast %370 : vector<1x1x32xf32> to vector<1x32xf32>
    %cst_206 = arith.constant 0.000000e+00 : f32
    %372 = vector.broadcast %cst_206 : f32 to vector<1x32xf32>
    %c0_207 = arith.constant 0 : index
    %c0_208 = arith.constant 0 : index
    %373 = vector.load %arg17[%c0_207, %c0_208] : memref<10x96xf32, #tpu.memory_space<vmem>>, vector<1x96xf32>
    %cst_209 = arith.constant dense<0.000000e+00> : vector<1x96xf32>
    %374 = tpu.matmul %372, %369, %cst_209 {dimension_numbers = #tpu.dot_dimension_numbers<[1], [0], [0], [1], [0, 0, 1, 1], [], []>} : vector<1x32xf32>, vector<32x96xf32>, vector<1x96xf32> -> vector<1x96xf32>
    %375 = vector.extract_strided_slice %373 {offsets = [0, 0], sizes = [1, 64], strides = [1, 1]} : vector<1x96xf32> to vector<1x64xf32>
    %376 = vector.extract_strided_slice %374 {offsets = [0, 0], sizes = [1, 64], strides = [1, 1]} : vector<1x96xf32> to vector<1x64xf32>
    %377 = arith.addf %375, %376 : vector<1x64xf32>
    %378 = arith.negf %377 : vector<1x64xf32>
    %379 = math.exp %378 : vector<1x64xf32>
    %cst_210 = arith.constant 1.000000e+00 : f32
    %380 = vector.broadcast %cst_210 : f32 to vector<1x64xf32>
    %381 = arith.addf %380, %379 : vector<1x64xf32>
    %382 = arith.divf %380, %381 : vector<1x64xf32>
    %383 = vector.extract_strided_slice %382 {offsets = [0, 0], sizes = [1, 32], strides = [1, 1]} : vector<1x64xf32> to vector<1x32xf32>
    %384 = vector.extract_strided_slice %382 {offsets = [0, 32], sizes = [1, 32], strides = [1, 1]} : vector<1x64xf32> to vector<1x32xf32>
    %385 = vector.extract_strided_slice %373 {offsets = [0, 64], sizes = [1, 32], strides = [1, 1]} : vector<1x96xf32> to vector<1x32xf32>
    %386 = vector.extract_strided_slice %374 {offsets = [0, 64], sizes = [1, 32], strides = [1, 1]} : vector<1x96xf32> to vector<1x32xf32>
    %387 = arith.addf %386, %371 : vector<1x32xf32>
    %388 = arith.mulf %383, %387 : vector<1x32xf32>
    %389 = arith.addf %385, %388 : vector<1x32xf32>
    %390 = math.tanh %389 : vector<1x32xf32>
    %cst_211 = arith.constant 1.000000e+00 : f32
    %391 = vector.broadcast %cst_211 : f32 to vector<1x32xf32>
    %392 = arith.subf %391, %384 : vector<1x32xf32>
    %393 = arith.mulf %392, %390 : vector<1x32xf32>
    %394 = arith.mulf %384, %372 : vector<1x32xf32>
    %395 = arith.addf %393, %394 : vector<1x32xf32>
    %c0_212 = arith.constant 0 : index
    %c0_213 = arith.constant 0 : index
    %396 = vector.load %arg18[%c0_212, %c0_213] : memref<10x32xf32, #tpu.memory_space<vmem>>, vector<1x32xf32>
    tpu.vector_store %arg18[%c0_212, %c0_213], %395 {strides = array<i32>} : memref<10x32xf32, #tpu.memory_space<vmem>>, vector<1x32xf32>,
    %c1_214 = arith.constant 1 : index
    %c0_215 = arith.constant 0 : index
    %397 = vector.load %arg17[%c1_214, %c0_215] : memref<10x96xf32, #tpu.memory_space<vmem>>, vector<1x96xf32>
    %cst_216 = arith.constant dense<0.000000e+00> : vector<1x96xf32>
    %398 = tpu.matmul %395, %369, %cst_216 {dimension_numbers = #tpu.dot_dimension_numbers<[1], [0], [0], [1], [0, 0, 1, 1], [], []>} : vector<1x32xf32>, vector<32x96xf32>, vector<1x96xf32> -> vector<1x96xf32>
    %399 = vector.extract_strided_slice %397 {offsets = [0, 0], sizes = [1, 64], strides = [1, 1]} : vector<1x96xf32> to vector<1x64xf32>
    %400 = vector.extract_strided_slice %398 {offsets = [0, 0], sizes = [1, 64], strides = [1, 1]} : vector<1x96xf32> to vector<1x64xf32>
    %401 = arith.addf %399, %400 : vector<1x64xf32>
    %402 = arith.negf %401 : vector<1x64xf32>
    %403 = math.exp %402 : vector<1x64xf32>
    %cst_217 = arith.constant 1.000000e+00 : f32
    %404 = vector.broadcast %cst_217 : f32 to vector<1x64xf32>
    %405 = arith.addf %404, %403 : vector<1x64xf32>
    %406 = arith.divf %404, %405 : vector<1x64xf32>
    %407 = vector.extract_strided_slice %406 {offsets = [0, 0], sizes = [1, 32], strides = [1, 1]} : vector<1x64xf32> to vector<1x32xf32>
    %408 = vector.extract_strided_slice %406 {offsets = [0, 32], sizes = [1, 32], strides = [1, 1]} : vector<1x64xf32> to vector<1x32xf32>
    %409 = vector.extract_strided_slice %397 {offsets = [0, 64], sizes = [1, 32], strides = [1, 1]} : vector<1x96xf32> to vector<1x32xf32>
    %410 = vector.extract_strided_slice %398 {offsets = [0, 64], sizes = [1, 32], strides = [1, 1]} : vector<1x96xf32> to vector<1x32xf32>
    %411 = arith.addf %410, %371 : vector<1x32xf32>
    %412 = arith.mulf %407, %411 : vector<1x32xf32>
    %413 = arith.addf %409, %412 : vector<1x32xf32>
    %414 = math.tanh %413 : vector<1x32xf32>
    %cst_218 = arith.constant 1.000000e+00 : f32
    %415 = vector.broadcast %cst_218 : f32 to vector<1x32xf32>
    %416 = arith.subf %415, %408 : vector<1x32xf32>
    %417 = arith.mulf %416, %414 : vector<1x32xf32>
    %418 = arith.mulf %408, %395 : vector<1x32xf32>
    %419 = arith.addf %417, %418 : vector<1x32xf32>
    %c1_219 = arith.constant 1 : index
    %c0_220 = arith.constant 0 : index
    %420 = vector.load %arg18[%c1_219, %c0_220] : memref<10x32xf32, #tpu.memory_space<vmem>>, vector<1x32xf32>
    tpu.vector_store %arg18[%c1_219, %c0_220], %419 {strides = array<i32>} : memref<10x32xf32, #tpu.memory_space<vmem>>, vector<1x32xf32>,
    %c2_221 = arith.constant 2 : index
    %c0_222 = arith.constant 0 : index
    %421 = vector.load %arg17[%c2_221, %c0_222] : memref<10x96xf32, #tpu.memory_space<vmem>>, vector<1x96xf32>
    %cst_223 = arith.constant dense<0.000000e+00> : vector<1x96xf32>
    %422 = tpu.matmul %419, %369, %cst_223 {dimension_numbers = #tpu.dot_dimension_numbers<[1], [0], [0], [1], [0, 0, 1, 1], [], []>} : vector<1x32xf32>, vector<32x96xf32>, vector<1x96xf32> -> vector<1x96xf32>
    %423 = vector.extract_strided_slice %421 {offsets = [0, 0], sizes = [1, 64], strides = [1, 1]} : vector<1x96xf32> to vector<1x64xf32>
    %424 = vector.extract_strided_slice %422 {offsets = [0, 0], sizes = [1, 64], strides = [1, 1]} : vector<1x96xf32> to vector<1x64xf32>
    %425 = arith.addf %423, %424 : vector<1x64xf32>
    %426 = arith.negf %425 : vector<1x64xf32>
    %427 = math.exp %426 : vector<1x64xf32>
    %cst_224 = arith.constant 1.000000e+00 : f32
    %428 = vector.broadcast %cst_224 : f32 to vector<1x64xf32>
    %429 = arith.addf %428, %427 : vector<1x64xf32>
    %430 = arith.divf %428, %429 : vector<1x64xf32>
    %431 = vector.extract_strided_slice %430 {offsets = [0, 0], sizes = [1, 32], strides = [1, 1]} : vector<1x64xf32> to vector<1x32xf32>
    %432 = vector.extract_strided_slice %430 {offsets = [0, 32], sizes = [1, 32], strides = [1, 1]} : vector<1x64xf32> to vector<1x32xf32>
    %433 = vector.extract_strided_slice %421 {offsets = [0, 64], sizes = [1, 32], strides = [1, 1]} : vector<1x96xf32> to vector<1x32xf32>
    %434 = vector.extract_strided_slice %422 {offsets = [0, 64], sizes = [1, 32], strides = [1, 1]} : vector<1x96xf32> to vector<1x32xf32>
    %435 = arith.addf %434, %371 : vector<1x32xf32>
    %436 = arith.mulf %431, %435 : vector<1x32xf32>
    %437 = arith.addf %433, %436 : vector<1x32xf32>
    %438 = math.tanh %437 : vector<1x32xf32>
    %cst_225 = arith.constant 1.000000e+00 : f32
    %439 = vector.broadcast %cst_225 : f32 to vector<1x32xf32>
    %440 = arith.subf %439, %432 : vector<1x32xf32>
    %441 = arith.mulf %440, %438 : vector<1x32xf32>
    %442 = arith.mulf %432, %419 : vector<1x32xf32>
    %443 = arith.addf %441, %442 : vector<1x32xf32>
    %c2_226 = arith.constant 2 : index
    %c0_227 = arith.constant 0 : index
    %444 = vector.load %arg18[%c2_226, %c0_227] : memref<10x32xf32, #tpu.memory_space<vmem>>, vector<1x32xf32>
    tpu.vector_store %arg18[%c2_226, %c0_227], %443 {strides = array<i32>} : memref<10x32xf32, #tpu.memory_space<vmem>>, vector<1x32xf32>,
    %c3_228 = arith.constant 3 : index
    %c0_229 = arith.constant 0 : index
    %445 = vector.load %arg17[%c3_228, %c0_229] : memref<10x96xf32, #tpu.memory_space<vmem>>, vector<1x96xf32>
    %cst_230 = arith.constant dense<0.000000e+00> : vector<1x96xf32>
    %446 = tpu.matmul %443, %369, %cst_230 {dimension_numbers = #tpu.dot_dimension_numbers<[1], [0], [0], [1], [0, 0, 1, 1], [], []>} : vector<1x32xf32>, vector<32x96xf32>, vector<1x96xf32> -> vector<1x96xf32>
    %447 = vector.extract_strided_slice %445 {offsets = [0, 0], sizes = [1, 64], strides = [1, 1]} : vector<1x96xf32> to vector<1x64xf32>
    %448 = vector.extract_strided_slice %446 {offsets = [0, 0], sizes = [1, 64], strides = [1, 1]} : vector<1x96xf32> to vector<1x64xf32>
    %449 = arith.addf %447, %448 : vector<1x64xf32>
    %450 = arith.negf %449 : vector<1x64xf32>
    %451 = math.exp %450 : vector<1x64xf32>
    %cst_231 = arith.constant 1.000000e+00 : f32
    %452 = vector.broadcast %cst_231 : f32 to vector<1x64xf32>
    %453 = arith.addf %452, %451 : vector<1x64xf32>
    %454 = arith.divf %452, %453 : vector<1x64xf32>
    %455 = vector.extract_strided_slice %454 {offsets = [0, 0], sizes = [1, 32], strides = [1, 1]} : vector<1x64xf32> to vector<1x32xf32>
    %456 = vector.extract_strided_slice %454 {offsets = [0, 32], sizes = [1, 32], strides = [1, 1]} : vector<1x64xf32> to vector<1x32xf32>
    %457 = vector.extract_strided_slice %445 {offsets = [0, 64], sizes = [1, 32], strides = [1, 1]} : vector<1x96xf32> to vector<1x32xf32>
    %458 = vector.extract_strided_slice %446 {offsets = [0, 64], sizes = [1, 32], strides = [1, 1]} : vector<1x96xf32> to vector<1x32xf32>
    %459 = arith.addf %458, %371 : vector<1x32xf32>
    %460 = arith.mulf %455, %459 : vector<1x32xf32>
    %461 = arith.addf %457, %460 : vector<1x32xf32>
    %462 = math.tanh %461 : vector<1x32xf32>
    %cst_232 = arith.constant 1.000000e+00 : f32
    %463 = vector.broadcast %cst_232 : f32 to vector<1x32xf32>
    %464 = arith.subf %463, %456 : vector<1x32xf32>
    %465 = arith.mulf %464, %462 : vector<1x32xf32>
    %466 = arith.mulf %456, %443 : vector<1x32xf32>
    %467 = arith.addf %465, %466 : vector<1x32xf32>
    %c3_233 = arith.constant 3 : index
    %c0_234 = arith.constant 0 : index
    %468 = vector.load %arg18[%c3_233, %c0_234] : memref<10x32xf32, #tpu.memory_space<vmem>>, vector<1x32xf32>
    tpu.vector_store %arg18[%c3_233, %c0_234], %467 {strides = array<i32>} : memref<10x32xf32, #tpu.memory_space<vmem>>, vector<1x32xf32>,
    %c4_235 = arith.constant 4 : index
    %c0_236 = arith.constant 0 : index
    %469 = vector.load %arg17[%c4_235, %c0_236] : memref<10x96xf32, #tpu.memory_space<vmem>>, vector<1x96xf32>
    %cst_237 = arith.constant dense<0.000000e+00> : vector<1x96xf32>
    %470 = tpu.matmul %467, %369, %cst_237 {dimension_numbers = #tpu.dot_dimension_numbers<[1], [0], [0], [1], [0, 0, 1, 1], [], []>} : vector<1x32xf32>, vector<32x96xf32>, vector<1x96xf32> -> vector<1x96xf32>
    %471 = vector.extract_strided_slice %469 {offsets = [0, 0], sizes = [1, 64], strides = [1, 1]} : vector<1x96xf32> to vector<1x64xf32>
    %472 = vector.extract_strided_slice %470 {offsets = [0, 0], sizes = [1, 64], strides = [1, 1]} : vector<1x96xf32> to vector<1x64xf32>
    %473 = arith.addf %471, %472 : vector<1x64xf32>
    %474 = arith.negf %473 : vector<1x64xf32>
    %475 = math.exp %474 : vector<1x64xf32>
    %cst_238 = arith.constant 1.000000e+00 : f32
    %476 = vector.broadcast %cst_238 : f32 to vector<1x64xf32>
    %477 = arith.addf %476, %475 : vector<1x64xf32>
    %478 = arith.divf %476, %477 : vector<1x64xf32>
    %479 = vector.extract_strided_slice %478 {offsets = [0, 0], sizes = [1, 32], strides = [1, 1]} : vector<1x64xf32> to vector<1x32xf32>
    %480 = vector.extract_strided_slice %478 {offsets = [0, 32], sizes = [1, 32], strides = [1, 1]} : vector<1x64xf32> to vector<1x32xf32>
    %481 = vector.extract_strided_slice %469 {offsets = [0, 64], sizes = [1, 32], strides = [1, 1]} : vector<1x96xf32> to vector<1x32xf32>
    %482 = vector.extract_strided_slice %470 {offsets = [0, 64], sizes = [1, 32], strides = [1, 1]} : vector<1x96xf32> to vector<1x32xf32>
    %483 = arith.addf %482, %371 : vector<1x32xf32>
    %484 = arith.mulf %479, %483 : vector<1x32xf32>
    %485 = arith.addf %481, %484 : vector<1x32xf32>
    %486 = math.tanh %485 : vector<1x32xf32>
    %cst_239 = arith.constant 1.000000e+00 : f32
    %487 = vector.broadcast %cst_239 : f32 to vector<1x32xf32>
    %488 = arith.subf %487, %480 : vector<1x32xf32>
    %489 = arith.mulf %488, %486 : vector<1x32xf32>
    %490 = arith.mulf %480, %467 : vector<1x32xf32>
    %491 = arith.addf %489, %490 : vector<1x32xf32>
    %c4_240 = arith.constant 4 : index
    %c0_241 = arith.constant 0 : index
    %492 = vector.load %arg18[%c4_240, %c0_241] : memref<10x32xf32, #tpu.memory_space<vmem>>, vector<1x32xf32>
    tpu.vector_store %arg18[%c4_240, %c0_241], %491 {strides = array<i32>} : memref<10x32xf32, #tpu.memory_space<vmem>>, vector<1x32xf32>,
    %c5_242 = arith.constant 5 : index
    %c0_243 = arith.constant 0 : index
    %493 = vector.load %arg17[%c5_242, %c0_243] : memref<10x96xf32, #tpu.memory_space<vmem>>, vector<1x96xf32>
    %cst_244 = arith.constant dense<0.000000e+00> : vector<1x96xf32>
    %494 = tpu.matmul %491, %369, %cst_244 {dimension_numbers = #tpu.dot_dimension_numbers<[1], [0], [0], [1], [0, 0, 1, 1], [], []>} : vector<1x32xf32>, vector<32x96xf32>, vector<1x96xf32> -> vector<1x96xf32>
    %495 = vector.extract_strided_slice %493 {offsets = [0, 0], sizes = [1, 64], strides = [1, 1]} : vector<1x96xf32> to vector<1x64xf32>
    %496 = vector.extract_strided_slice %494 {offsets = [0, 0], sizes = [1, 64], strides = [1, 1]} : vector<1x96xf32> to vector<1x64xf32>
    %497 = arith.addf %495, %496 : vector<1x64xf32>
    %498 = arith.negf %497 : vector<1x64xf32>
    %499 = math.exp %498 : vector<1x64xf32>
    %cst_245 = arith.constant 1.000000e+00 : f32
    %500 = vector.broadcast %cst_245 : f32 to vector<1x64xf32>
    %501 = arith.addf %500, %499 : vector<1x64xf32>
    %502 = arith.divf %500, %501 : vector<1x64xf32>
    %503 = vector.extract_strided_slice %502 {offsets = [0, 0], sizes = [1, 32], strides = [1, 1]} : vector<1x64xf32> to vector<1x32xf32>
    %504 = vector.extract_strided_slice %502 {offsets = [0, 32], sizes = [1, 32], strides = [1, 1]} : vector<1x64xf32> to vector<1x32xf32>
    %505 = vector.extract_strided_slice %493 {offsets = [0, 64], sizes = [1, 32], strides = [1, 1]} : vector<1x96xf32> to vector<1x32xf32>
    %506 = vector.extract_strided_slice %494 {offsets = [0, 64], sizes = [1, 32], strides = [1, 1]} : vector<1x96xf32> to vector<1x32xf32>
    %507 = arith.addf %506, %371 : vector<1x32xf32>
    %508 = arith.mulf %503, %507 : vector<1x32xf32>
    %509 = arith.addf %505, %508 : vector<1x32xf32>
    %510 = math.tanh %509 : vector<1x32xf32>
    %cst_246 = arith.constant 1.000000e+00 : f32
    %511 = vector.broadcast %cst_246 : f32 to vector<1x32xf32>
    %512 = arith.subf %511, %504 : vector<1x32xf32>
    %513 = arith.mulf %512, %510 : vector<1x32xf32>
    %514 = arith.mulf %504, %491 : vector<1x32xf32>
    %515 = arith.addf %513, %514 : vector<1x32xf32>
    %c5_247 = arith.constant 5 : index
    %c0_248 = arith.constant 0 : index
    %516 = vector.load %arg18[%c5_247, %c0_248] : memref<10x32xf32, #tpu.memory_space<vmem>>, vector<1x32xf32>
    tpu.vector_store %arg18[%c5_247, %c0_248], %515 {strides = array<i32>} : memref<10x32xf32, #tpu.memory_space<vmem>>, vector<1x32xf32>,
    %c6_249 = arith.constant 6 : index
    %c0_250 = arith.constant 0 : index
    %517 = vector.load %arg17[%c6_249, %c0_250] : memref<10x96xf32, #tpu.memory_space<vmem>>, vector<1x96xf32>
    %cst_251 = arith.constant dense<0.000000e+00> : vector<1x96xf32>
    %518 = tpu.matmul %515, %369, %cst_251 {dimension_numbers = #tpu.dot_dimension_numbers<[1], [0], [0], [1], [0, 0, 1, 1], [], []>} : vector<1x32xf32>, vector<32x96xf32>, vector<1x96xf32> -> vector<1x96xf32>
    %519 = vector.extract_strided_slice %517 {offsets = [0, 0], sizes = [1, 64], strides = [1, 1]} : vector<1x96xf32> to vector<1x64xf32>
    %520 = vector.extract_strided_slice %518 {offsets = [0, 0], sizes = [1, 64], strides = [1, 1]} : vector<1x96xf32> to vector<1x64xf32>
    %521 = arith.addf %519, %520 : vector<1x64xf32>
    %522 = arith.negf %521 : vector<1x64xf32>
    %523 = math.exp %522 : vector<1x64xf32>
    %cst_252 = arith.constant 1.000000e+00 : f32
    %524 = vector.broadcast %cst_252 : f32 to vector<1x64xf32>
    %525 = arith.addf %524, %523 : vector<1x64xf32>
    %526 = arith.divf %524, %525 : vector<1x64xf32>
    %527 = vector.extract_strided_slice %526 {offsets = [0, 0], sizes = [1, 32], strides = [1, 1]} : vector<1x64xf32> to vector<1x32xf32>
    %528 = vector.extract_strided_slice %526 {offsets = [0, 32], sizes = [1, 32], strides = [1, 1]} : vector<1x64xf32> to vector<1x32xf32>
    %529 = vector.extract_strided_slice %517 {offsets = [0, 64], sizes = [1, 32], strides = [1, 1]} : vector<1x96xf32> to vector<1x32xf32>
    %530 = vector.extract_strided_slice %518 {offsets = [0, 64], sizes = [1, 32], strides = [1, 1]} : vector<1x96xf32> to vector<1x32xf32>
    %531 = arith.addf %530, %371 : vector<1x32xf32>
    %532 = arith.mulf %527, %531 : vector<1x32xf32>
    %533 = arith.addf %529, %532 : vector<1x32xf32>
    %534 = math.tanh %533 : vector<1x32xf32>
    %cst_253 = arith.constant 1.000000e+00 : f32
    %535 = vector.broadcast %cst_253 : f32 to vector<1x32xf32>
    %536 = arith.subf %535, %528 : vector<1x32xf32>
    %537 = arith.mulf %536, %534 : vector<1x32xf32>
    %538 = arith.mulf %528, %515 : vector<1x32xf32>
    %539 = arith.addf %537, %538 : vector<1x32xf32>
    %c6_254 = arith.constant 6 : index
    %c0_255 = arith.constant 0 : index
    %540 = vector.load %arg18[%c6_254, %c0_255] : memref<10x32xf32, #tpu.memory_space<vmem>>, vector<1x32xf32>
    tpu.vector_store %arg18[%c6_254, %c0_255], %539 {strides = array<i32>} : memref<10x32xf32, #tpu.memory_space<vmem>>, vector<1x32xf32>,
    %c7_256 = arith.constant 7 : index
    %c0_257 = arith.constant 0 : index
    %541 = vector.load %arg17[%c7_256, %c0_257] : memref<10x96xf32, #tpu.memory_space<vmem>>, vector<1x96xf32>
    %cst_258 = arith.constant dense<0.000000e+00> : vector<1x96xf32>
    %542 = tpu.matmul %539, %369, %cst_258 {dimension_numbers = #tpu.dot_dimension_numbers<[1], [0], [0], [1], [0, 0, 1, 1], [], []>} : vector<1x32xf32>, vector<32x96xf32>, vector<1x96xf32> -> vector<1x96xf32>
    %543 = vector.extract_strided_slice %541 {offsets = [0, 0], sizes = [1, 64], strides = [1, 1]} : vector<1x96xf32> to vector<1x64xf32>
    %544 = vector.extract_strided_slice %542 {offsets = [0, 0], sizes = [1, 64], strides = [1, 1]} : vector<1x96xf32> to vector<1x64xf32>
    %545 = arith.addf %543, %544 : vector<1x64xf32>
    %546 = arith.negf %545 : vector<1x64xf32>
    %547 = math.exp %546 : vector<1x64xf32>
    %cst_259 = arith.constant 1.000000e+00 : f32
    %548 = vector.broadcast %cst_259 : f32 to vector<1x64xf32>
    %549 = arith.addf %548, %547 : vector<1x64xf32>
    %550 = arith.divf %548, %549 : vector<1x64xf32>
    %551 = vector.extract_strided_slice %550 {offsets = [0, 0], sizes = [1, 32], strides = [1, 1]} : vector<1x64xf32> to vector<1x32xf32>
    %552 = vector.extract_strided_slice %550 {offsets = [0, 32], sizes = [1, 32], strides = [1, 1]} : vector<1x64xf32> to vector<1x32xf32>
    %553 = vector.extract_strided_slice %541 {offsets = [0, 64], sizes = [1, 32], strides = [1, 1]} : vector<1x96xf32> to vector<1x32xf32>
    %554 = vector.extract_strided_slice %542 {offsets = [0, 64], sizes = [1, 32], strides = [1, 1]} : vector<1x96xf32> to vector<1x32xf32>
    %555 = arith.addf %554, %371 : vector<1x32xf32>
    %556 = arith.mulf %551, %555 : vector<1x32xf32>
    %557 = arith.addf %553, %556 : vector<1x32xf32>
    %558 = math.tanh %557 : vector<1x32xf32>
    %cst_260 = arith.constant 1.000000e+00 : f32
    %559 = vector.broadcast %cst_260 : f32 to vector<1x32xf32>
    %560 = arith.subf %559, %552 : vector<1x32xf32>
    %561 = arith.mulf %560, %558 : vector<1x32xf32>
    %562 = arith.mulf %552, %539 : vector<1x32xf32>
    %563 = arith.addf %561, %562 : vector<1x32xf32>
    %c7_261 = arith.constant 7 : index
    %c0_262 = arith.constant 0 : index
    %564 = vector.load %arg18[%c7_261, %c0_262] : memref<10x32xf32, #tpu.memory_space<vmem>>, vector<1x32xf32>
    tpu.vector_store %arg18[%c7_261, %c0_262], %563 {strides = array<i32>} : memref<10x32xf32, #tpu.memory_space<vmem>>, vector<1x32xf32>,
    %c8_263 = arith.constant 8 : index
    %c0_264 = arith.constant 0 : index
    %565 = vector.load %arg17[%c8_263, %c0_264] : memref<10x96xf32, #tpu.memory_space<vmem>>, vector<1x96xf32>
    %cst_265 = arith.constant dense<0.000000e+00> : vector<1x96xf32>
    %566 = tpu.matmul %563, %369, %cst_265 {dimension_numbers = #tpu.dot_dimension_numbers<[1], [0], [0], [1], [0, 0, 1, 1], [], []>} : vector<1x32xf32>, vector<32x96xf32>, vector<1x96xf32> -> vector<1x96xf32>
    %567 = vector.extract_strided_slice %565 {offsets = [0, 0], sizes = [1, 64], strides = [1, 1]} : vector<1x96xf32> to vector<1x64xf32>
    %568 = vector.extract_strided_slice %566 {offsets = [0, 0], sizes = [1, 64], strides = [1, 1]} : vector<1x96xf32> to vector<1x64xf32>
    %569 = arith.addf %567, %568 : vector<1x64xf32>
    %570 = arith.negf %569 : vector<1x64xf32>
    %571 = math.exp %570 : vector<1x64xf32>
    %cst_266 = arith.constant 1.000000e+00 : f32
    %572 = vector.broadcast %cst_266 : f32 to vector<1x64xf32>
    %573 = arith.addf %572, %571 : vector<1x64xf32>
    %574 = arith.divf %572, %573 : vector<1x64xf32>
    %575 = vector.extract_strided_slice %574 {offsets = [0, 0], sizes = [1, 32], strides = [1, 1]} : vector<1x64xf32> to vector<1x32xf32>
    %576 = vector.extract_strided_slice %574 {offsets = [0, 32], sizes = [1, 32], strides = [1, 1]} : vector<1x64xf32> to vector<1x32xf32>
    %577 = vector.extract_strided_slice %565 {offsets = [0, 64], sizes = [1, 32], strides = [1, 1]} : vector<1x96xf32> to vector<1x32xf32>
    %578 = vector.extract_strided_slice %566 {offsets = [0, 64], sizes = [1, 32], strides = [1, 1]} : vector<1x96xf32> to vector<1x32xf32>
    %579 = arith.addf %578, %371 : vector<1x32xf32>
    %580 = arith.mulf %575, %579 : vector<1x32xf32>
    %581 = arith.addf %577, %580 : vector<1x32xf32>
    %582 = math.tanh %581 : vector<1x32xf32>
    %cst_267 = arith.constant 1.000000e+00 : f32
    %583 = vector.broadcast %cst_267 : f32 to vector<1x32xf32>
    %584 = arith.subf %583, %576 : vector<1x32xf32>
    %585 = arith.mulf %584, %582 : vector<1x32xf32>
    %586 = arith.mulf %576, %563 : vector<1x32xf32>
    %587 = arith.addf %585, %586 : vector<1x32xf32>
    %c8_268 = arith.constant 8 : index
    %c0_269 = arith.constant 0 : index
    %588 = vector.load %arg18[%c8_268, %c0_269] : memref<10x32xf32, #tpu.memory_space<vmem>>, vector<1x32xf32>
    tpu.vector_store %arg18[%c8_268, %c0_269], %587 {strides = array<i32>} : memref<10x32xf32, #tpu.memory_space<vmem>>, vector<1x32xf32>,
    %c9_270 = arith.constant 9 : index
    %c0_271 = arith.constant 0 : index
    %589 = vector.load %arg17[%c9_270, %c0_271] : memref<10x96xf32, #tpu.memory_space<vmem>>, vector<1x96xf32>
    %cst_272 = arith.constant dense<0.000000e+00> : vector<1x96xf32>
    %590 = tpu.matmul %587, %369, %cst_272 {dimension_numbers = #tpu.dot_dimension_numbers<[1], [0], [0], [1], [0, 0, 1, 1], [], []>} : vector<1x32xf32>, vector<32x96xf32>, vector<1x96xf32> -> vector<1x96xf32>
    %591 = vector.extract_strided_slice %589 {offsets = [0, 0], sizes = [1, 64], strides = [1, 1]} : vector<1x96xf32> to vector<1x64xf32>
    %592 = vector.extract_strided_slice %590 {offsets = [0, 0], sizes = [1, 64], strides = [1, 1]} : vector<1x96xf32> to vector<1x64xf32>
    %593 = arith.addf %591, %592 : vector<1x64xf32>
    %594 = arith.negf %593 : vector<1x64xf32>
    %595 = math.exp %594 : vector<1x64xf32>
    %cst_273 = arith.constant 1.000000e+00 : f32
    %596 = vector.broadcast %cst_273 : f32 to vector<1x64xf32>
    %597 = arith.addf %596, %595 : vector<1x64xf32>
    %598 = arith.divf %596, %597 : vector<1x64xf32>
    %599 = vector.extract_strided_slice %598 {offsets = [0, 0], sizes = [1, 32], strides = [1, 1]} : vector<1x64xf32> to vector<1x32xf32>
    %600 = vector.extract_strided_slice %598 {offsets = [0, 32], sizes = [1, 32], strides = [1, 1]} : vector<1x64xf32> to vector<1x32xf32>
    %601 = vector.extract_strided_slice %589 {offsets = [0, 64], sizes = [1, 32], strides = [1, 1]} : vector<1x96xf32> to vector<1x32xf32>
    %602 = vector.extract_strided_slice %590 {offsets = [0, 64], sizes = [1, 32], strides = [1, 1]} : vector<1x96xf32> to vector<1x32xf32>
    %603 = arith.addf %602, %371 : vector<1x32xf32>
    %604 = arith.mulf %599, %603 : vector<1x32xf32>
    %605 = arith.addf %601, %604 : vector<1x32xf32>
    %606 = math.tanh %605 : vector<1x32xf32>
    %cst_274 = arith.constant 1.000000e+00 : f32
    %607 = vector.broadcast %cst_274 : f32 to vector<1x32xf32>
    %608 = arith.subf %607, %600 : vector<1x32xf32>
    %609 = arith.mulf %608, %606 : vector<1x32xf32>
    %610 = arith.mulf %600, %587 : vector<1x32xf32>
    %611 = arith.addf %609, %610 : vector<1x32xf32>
    %c9_275 = arith.constant 9 : index
    %c0_276 = arith.constant 0 : index
    %612 = vector.load %arg18[%c9_275, %c0_276] : memref<10x32xf32, #tpu.memory_space<vmem>>, vector<1x32xf32>
    tpu.vector_store %arg18[%c9_275, %c0_276], %611 {strides = array<i32>} : memref<10x32xf32, #tpu.memory_space<vmem>>, vector<1x32xf32>,
    %c0_277 = arith.constant 0 : index
    %c0_278 = arith.constant 0 : index
    %613 = vector.load %arg18[%c0_277, %c0_278] : memref<10x32xf32, #tpu.memory_space<vmem>>, vector<10x32xf32>
    %c0_279 = arith.constant 0 : index
    %c0_280 = arith.constant 0 : index
    %614 = vector.load %arg14[%c0_279, %c0_280] : memref<32x8xf32, #tpu.memory_space<vmem>>, vector<32x8xf32>
    %cst_281 = arith.constant dense<0.000000e+00> : vector<10x8xf32>
    %615 = tpu.matmul %613, %614, %cst_281 {dimension_numbers = #tpu.dot_dimension_numbers<[1], [0], [0], [1], [0, 0, 1, 1], [], []>} : vector<10x32xf32>, vector<32x8xf32>, vector<10x8xf32> -> vector<10x8xf32>
    %c0_282 = arith.constant 0 : index
    %c0_283 = arith.constant 0 : index
    %616 = vector.load %arg15[%c0_282, %c0_283] : memref<1x8xf32, #tpu.memory_space<vmem>>, vector<1x8xf32>
    %617 = vector.broadcast %616 : vector<1x8xf32> to vector<10x8xf32>
    %618 = arith.addf %615, %617 : vector<10x8xf32>
    %c0_284 = arith.constant 0 : index
    %c0_285 = arith.constant 0 : index
    %c0_286 = arith.constant 0 : index
    %619 = vector.load %arg16[%c0_284, %c0_285, %c0_286] : memref<1x10x8xf32, #tpu.memory_space<vmem>>, vector<1x10x8xf32>
    %620 = vector.shape_cast %619 : vector<1x10x8xf32> to vector<10x8xf32>
    %621 = vector.shape_cast %618 : vector<10x8xf32> to vector<1x10x8xf32>
    tpu.vector_store %arg16[%c0_284, %c0_285, %c0_286], %621 {strides = array<i32>} : memref<1x10x8xf32, #tpu.memory_space<vmem>>, vector<1x10x8xf32>,
    return
  }
  func.func @transform_0(%arg0: i32) -> (i32, i32, i32) {
    %c0_i32 = arith.constant 0 : i32
    %c0_i32_0 = arith.constant 0 : i32
    %c0_i32_1 = arith.constant 0 : i32
    return %arg0, %c0_i32, %c0_i32_0 : i32, i32, i32
  }
  func.func @transform_1(%arg0: i32) -> (i32, i32) {
    %c0_i32 = arith.constant 0 : i32
    %c0_i32_0 = arith.constant 0 : i32
    %c0_i32_1 = arith.constant 0 : i32
    return %c0_i32, %c0_i32_0 : i32, i32
  }
  func.func @transform_2(%arg0: i32) -> (i32, i32, i32) {
    %c0_i32 = arith.constant 0 : i32
    %c0_i32_0 = arith.constant 0 : i32
    %c0_i32_1 = arith.constant 0 : i32
    %c0_i32_2 = arith.constant 0 : i32
    return %c0_i32, %c0_i32_0, %c0_i32_1 : i32, i32, i32
  }
  func.func @transform_3(%arg0: i32) -> (i32, i32) {
    %c0_i32 = arith.constant 0 : i32
    %c0_i32_0 = arith.constant 0 : i32
    %c0_i32_1 = arith.constant 0 : i32
    return %c0_i32, %c0_i32_0 : i32, i32
  }
  func.func @transform_4(%arg0: i32) -> (i32, i32) {
    %c0_i32 = arith.constant 0 : i32
    %c0_i32_0 = arith.constant 0 : i32
    %c0_i32_1 = arith.constant 0 : i32
    return %c0_i32, %c0_i32_0 : i32, i32
  }
  func.func @transform_5(%arg0: i32) -> (i32, i32, i32) {
    %c0_i32 = arith.constant 0 : i32
    %c0_i32_0 = arith.constant 0 : i32
    %c0_i32_1 = arith.constant 0 : i32
    %c0_i32_2 = arith.constant 0 : i32
    return %c0_i32, %c0_i32_0, %c0_i32_1 : i32, i32, i32
  }
  func.func @transform_6(%arg0: i32) -> (i32, i32) {
    %c0_i32 = arith.constant 0 : i32
    %c0_i32_0 = arith.constant 0 : i32
    %c0_i32_1 = arith.constant 0 : i32
    return %c0_i32, %c0_i32_0 : i32, i32
  }
  func.func @transform_7(%arg0: i32) -> (i32, i32) {
    %c0_i32 = arith.constant 0 : i32
    %c0_i32_0 = arith.constant 0 : i32
    %c0_i32_1 = arith.constant 0 : i32
    return %c0_i32, %c0_i32_0 : i32, i32
  }
  func.func @transform_8(%arg0: i32) -> (i32, i32) {
    %c0_i32 = arith.constant 0 : i32
    %c0_i32_0 = arith.constant 0 : i32
    %c0_i32_1 = arith.constant 0 : i32
    return %c0_i32, %c0_i32_0 : i32, i32
  }
  func.func @transform_9(%arg0: i32) -> (i32, i32, i32) {
    %c0_i32 = arith.constant 0 : i32
    %c0_i32_0 = arith.constant 0 : i32
    %c0_i32_1 = arith.constant 0 : i32
    %c0_i32_2 = arith.constant 0 : i32
    return %c0_i32, %c0_i32_0, %c0_i32_1 : i32, i32, i32
  }
  func.func @transform_10(%arg0: i32) -> (i32, i32, i32) {
    %c0_i32 = arith.constant 0 : i32
    %c0_i32_0 = arith.constant 0 : i32
    %c0_i32_1 = arith.constant 0 : i32
    %c0_i32_2 = arith.constant 0 : i32
    return %c0_i32, %c0_i32_0, %c0_i32_1 : i32, i32, i32
  }
  func.func @transform_11(%arg0: i32) -> (i32, i32, i32) {
    %c0_i32 = arith.constant 0 : i32
    %c0_i32_0 = arith.constant 0 : i32
    %c0_i32_1 = arith.constant 0 : i32
    %c0_i32_2 = arith.constant 0 : i32
    return %c0_i32, %c0_i32_0, %c0_i32_1 : i32, i32, i32
  }
  func.func @transform_12(%arg0: i32) -> (i32, i32, i32) {
    %c0_i32 = arith.constant 0 : i32
    %c0_i32_0 = arith.constant 0 : i32
    %c0_i32_1 = arith.constant 0 : i32
    %c0_i32_2 = arith.constant 0 : i32
    return %c0_i32, %c0_i32_0, %c0_i32_1 : i32, i32, i32
  }
  func.func @transform_13(%arg0: i32) -> (i32, i32) {
    %c0_i32 = arith.constant 0 : i32
    %c0_i32_0 = arith.constant 0 : i32
    %c0_i32_1 = arith.constant 0 : i32
    return %c0_i32, %c0_i32_0 : i32, i32
  }
  func.func @transform_14(%arg0: i32) -> (i32, i32) {
    %c0_i32 = arith.constant 0 : i32
    %c0_i32_0 = arith.constant 0 : i32
    %c0_i32_1 = arith.constant 0 : i32
    return %c0_i32, %c0_i32_0 : i32, i32
  }
  func.func @transform_15(%arg0: i32) -> (i32, i32, i32) {
    %c0_i32 = arith.constant 0 : i32
    %c0_i32_0 = arith.constant 0 : i32
    %c0_i32_1 = arith.constant 0 : i32
    return %arg0, %c0_i32, %c0_i32_0 : i32, i32, i32
  }
}

</mosaic_0001>

<llo_original>
// kernel: tpu_custom_call.1
$region0: #{tpu_custom_call.1}
  #allocation0 [shape = 'u32[]', space=smem, size = 0x4, offset = 0x4, fixed_abs, tag = 'smem constant byte address 0x4 - core index']
  #allocation1 [shape = 'u32[144,128]{1,0:T(1,128)}', space=vmem, size = 0x12000, scoped, tag = 'internal scratch']
  #allocation2 [shape = 'f32[10,96]{1,0:T(8,128)}', space=vmem, size = 0x2000, scoped, tag = 'scratch operand']
  #allocation3 [shape = 'f32[10,32]{1,0:T(8,128)}', space=vmem, size = 0x2000, scoped, tag = 'scratch operand']
  %s0 = inlined_call_operand.vmem [shape: f32[2,50,16], index: 0, kind: input, shape index: {}]
  %s1 = inlined_call_operand.vmem [shape: f32[50,50], index: 1, kind: input, shape index: {}]
  %s2 = inlined_call_operand.vmem [shape: f32[14,10,50], index: 2, kind: input, shape index: {}]
  %s3 = inlined_call_operand.vmem [shape: f32[16,16], index: 3, kind: input, shape index: {}]
  %s4 = inlined_call_operand.vmem [shape: f32[1,16], index: 4, kind: input, shape index: {}]
  %s5 = inlined_call_operand.vmem [shape: f32[14,16,96], index: 5, kind: input, shape index: {}]
  %s6 = inlined_call_operand.vmem [shape: f32[32,96], index: 6, kind: input, shape index: {}]
  %s7 = inlined_call_operand.vmem [shape: f32[1,96], index: 7, kind: input, shape index: {}]
  %s8 = inlined_call_operand.vmem [shape: f32[1,32], index: 8, kind: input, shape index: {}]
  %s9 = inlined_call_operand.vmem [shape: f32[1,32,96], index: 9, kind: input, shape index: {}]
  %s10 = inlined_call_operand.vmem [shape: f32[1,32,96], index: 10, kind: input, shape index: {}]
  %s11 = inlined_call_operand.vmem [shape: f32[1,1,96], index: 11, kind: input, shape index: {}]
  %s12 = inlined_call_operand.vmem [shape: f32[1,1,32], index: 12, kind: input, shape index: {}]
  %s13 = inlined_call_operand.vmem [shape: f32[32,8], index: 13, kind: input, shape index: {}]
  %s14 = inlined_call_operand.vmem [shape: f32[1,8], index: 14, kind: input, shape index: {}]
  %s15 = inlined_call_operand.vmem [shape: f32[2,10,8], index: 15, kind: output, shape index: {}]
  %s16 = sld [smem:[#allocation0]]
  $region93: #{tpu_custom_call.1} parent=0
    _
  %s18 = ssub.s32 1, %s16
  %s19 = scalar_select 0, %s18, %s16
  loop: start=0, step=1, limit=4
  $region2: #{tpu_custom_call.1} parent=0 // loop_pre_header
    _
  $region3: #{tpu_custom_call.1} parent=0 // loop_header
    %s21 = sphi 0, %s25
    %p22 = scmp.ge.s32.totalorder %s21, 4
    %s31 = sphi 0, %s33
    %s34 = sphi 0, %s31
    %s35 = sphi 0, %s34
    %s51 = sphi 0, %s35
    %s55 = sphi 0, %s55
    %s57 = sphi 0, %s55
    %s58 = sphi 0, %s57
    %s72 = sphi 0, %s58
    %s76 = sphi 0, %s76
    %s78 = sphi 0, %s76
    %s79 = sphi 0, %s78
    %s93 = sphi 0, %s79
    %s97 = sphi 0, %s97
    %s99 = sphi 0, %s97
    %s100 = sphi 0, %s99
    %s114 = sphi 0, %s100
    %s118 = sphi 0, %s118
    %s120 = sphi 0, %s118
    %s121 = sphi 0, %s120
    %s135 = sphi 0, %s121
    %s139 = sphi 0, %s139
    %s141 = sphi 0, %s139
    %s142 = sphi 0, %s141
    %s156 = sphi 0, %s142
    %s160 = sphi 0, %s160
    %s162 = sphi 0, %s160
    %s163 = sphi 0, %s162
    %s177 = sphi 0, %s163
    %s181 = sphi 0, %s181
    %s183 = sphi 0, %s181
    %s184 = sphi 0, %s183
    %s198 = sphi 0, %s184
    %s202 = sphi 0, %s202
    %s204 = sphi 0, %s202
    %s205 = sphi 0, %s204
    %s219 = sphi 0, %s205
    %s223 = sphi 0, %s223
    %s225 = sphi 0, %s223
    %s226 = sphi 0, %s225
    %s240 = sphi 0, %s226
    %s244 = sphi 0, %s244
    %s246 = sphi 0, %s244
    %s247 = sphi 0, %s246
    %s261 = sphi 0, %s247
    %s265 = sphi 0, %s265
    %s267 = sphi 0, %s265
    %s268 = sphi 0, %s267
    %s282 = sphi 0, %s268
    %s286 = sphi 0, %s286
    %s288 = sphi 0, %s286
    %s289 = sphi 0, %s288
    %s303 = sphi 0, %s289
    %s307 = sphi 0, %s307
    %s309 = sphi 0, %s307
    %s310 = sphi 0, %s309
    %s324 = sphi 0, %s310
    %s328 = sphi 0, %s328
    %s330 = sphi 0, %s328
    %s331 = sphi 0, %s330
    %s345 = sphi 0, %s331
    %s351 = sphi 0, %s353
    %s354 = sphi 0, %s351
    %s355 = sphi 0, %s354
    %s371 = sphi 0, %s355
  $region4: #{tpu_custom_call.1} parent=0 // loop_header_branch
    %24 = sbr.rel (%p22) target = $region8
  $region5: #{tpu_custom_call.1} parent=0 // loop_body
    %s26 = ssub.s32 %s21, 1
    %s27 = ssub.s32 %s21, 2
    %s28 = sadd.s32 %s21, 1
    %s29 = ssub.s32 %s21, %s28
    %p30 = scmp.eq.s32.totalorder %s29, 0
    %s32 = sadd.s32 %s31, 1
    %s33 = scalar_select %p30, %s31, %s32
    %p36 = pneg %p30
    %p37 = scmp.eq.s32.totalorder %s21, 1
    %p38 = por %p36, %p37
    %p39 = scmp.ne.s32.totalorder %s31, %s34
    %p40 = scmp.eq.s32.totalorder %s21, 0
    %p41 = por %p39, %p40
    %p42 = scmp.ne.s32.totalorder %s31, %s34
    %p43 = scmp.eq.s32.totalorder %s26, 1
    %p44 = por %p42, %p43
    %p45 = scmp.ne.s32.totalorder %s34, %s35
    %p46 = scmp.eq.s32.totalorder %s26, 0
    %p47 = por %p45, %p46
    %p48 = scmp.ne.s32.totalorder %s34, %s35
    %p49 = scmp.eq.s32.totalorder %s27, 1
    %p50 = por %p48, %p49
    %p52 = scmp.ne.s32.totalorder %s35, %s51
    %p53 = scmp.eq.s32.totalorder %s27, 0
    %p54 = por %p52, %p53
    %s56 = sadd.s32 %s55, 1
    %p59 = scmp.eq.s32.totalorder %s21, 1
    %p60 = scmp.ne.s32.totalorder %s55, %s57
    %p61 = scmp.eq.s32.totalorder %s21, 0
    %p62 = por %p60, %p61
    %p63 = scmp.ne.s32.totalorder %s55, %s57
    %p64 = scmp.eq.s32.totalorder %s26, 1
    %p65 = por %p63, %p64
    %p66 = scmp.ne.s32.totalorder %s57, %s58
    %p67 = scmp.eq.s32.totalorder %s26, 0
    %p68 = por %p66, %p67
    %p69 = scmp.ne.s32.totalorder %s57, %s58
    %p70 = scmp.eq.s32.totalorder %s27, 1
    %p71 = por %p69, %p70
    %p73 = scmp.ne.s32.totalorder %s58, %s72
    %p74 = scmp.eq.s32.totalorder %s27, 0
    %p75 = por %p73, %p74
    %s77 = sadd.s32 %s76, 1
    %p80 = scmp.eq.s32.totalorder %s21, 1
    %p81 = scmp.ne.s32.totalorder %s76, %s78
    %p82 = scmp.eq.s32.totalorder %s21, 0
    %p83 = por %p81, %p82
    %p84 = scmp.ne.s32.totalorder %s76, %s78
    %p85 = scmp.eq.s32.totalorder %s26, 1
    %p86 = por %p84, %p85
    %p87 = scmp.ne.s32.totalorder %s78, %s79
    %p88 = scmp.eq.s32.totalorder %s26, 0
    %p89 = por %p87, %p88
    %p90 = scmp.ne.s32.totalorder %s78, %s79
    %p91 = scmp.eq.s32.totalorder %s27, 1
    %p92 = por %p90, %p91
    %p94 = scmp.ne.s32.totalorder %s79, %s93
    %p95 = scmp.eq.s32.totalorder %s27, 0
    %p96 = por %p94, %p95
    %s98 = sadd.s32 %s97, 1
    %p101 = scmp.eq.s32.totalorder %s21, 1
    %p102 = scmp.ne.s32.totalorder %s97, %s99
    %p103 = scmp.eq.s32.totalorder %s21, 0
    %p104 = por %p102, %p103
    %p105 = scmp.ne.s32.totalorder %s97, %s99
    %p106 = scmp.eq.s32.totalorder %s26, 1
    %p107 = por %p105, %p106
    %p108 = scmp.ne.s32.totalorder %s99, %s100
    %p109 = scmp.eq.s32.totalorder %s26, 0
    %p110 = por %p108, %p109
    %p111 = scmp.ne.s32.totalorder %s99, %s100
    %p112 = scmp.eq.s32.totalorder %s27, 1
    %p113 = por %p111, %p112
    %p115 = scmp.ne.s32.totalorder %s100, %s114
    %p116 = scmp.eq.s32.totalorder %s27, 0
    %p117 = por %p115, %p116
    %s119 = sadd.s32 %s118, 1
    %p122 = scmp.eq.s32.totalorder %s21, 1
    %p123 = scmp.ne.s32.totalorder %s118, %s120
    %p124 = scmp.eq.s32.totalorder %s21, 0
    %p125 = por %p123, %p124
    %p126 = scmp.ne.s32.totalorder %s118, %s120
    %p127 = scmp.eq.s32.totalorder %s26, 1
    %p128 = por %p126, %p127
    %p129 = scmp.ne.s32.totalorder %s120, %s121
    %p130 = scmp.eq.s32.totalorder %s26, 0
    %p131 = por %p129, %p130
    %p132 = scmp.ne.s32.totalorder %s120, %s121
    %p133 = scmp.eq.s32.totalorder %s27, 1
    %p134 = por %p132, %p133
    %p136 = scmp.ne.s32.totalorder %s121, %s135
    %p137 = scmp.eq.s32.totalorder %s27, 0
    %p138 = por %p136, %p137
    %s140 = sadd.s32 %s139, 1
    %p143 = scmp.eq.s32.totalorder %s21, 1
    %p144 = scmp.ne.s32.totalorder %s139, %s141
    %p145 = scmp.eq.s32.totalorder %s21, 0
    %p146 = por %p144, %p145
    %p147 = scmp.ne.s32.totalorder %s139, %s141
    %p148 = scmp.eq.s32.totalorder %s26, 1
    %p149 = por %p147, %p148
    %p150 = scmp.ne.s32.totalorder %s141, %s142
    %p151 = scmp.eq.s32.totalorder %s26, 0
    %p152 = por %p150, %p151
    %p153 = scmp.ne.s32.totalorder %s141, %s142
    %p154 = scmp.eq.s32.totalorder %s27, 1
    %p155 = por %p153, %p154
    %p157 = scmp.ne.s32.totalorder %s142, %s156
    %p158 = scmp.eq.s32.totalorder %s27, 0
    %p159 = por %p157, %p158
    %s161 = sadd.s32 %s160, 1
    %p164 = scmp.eq.s32.totalorder %s21, 1
    %p165 = scmp.ne.s32.totalorder %s160, %s162
    %p166 = scmp.eq.s32.totalorder %s21, 0
    %p167 = por %p165, %p166
    %p168 = scmp.ne.s32.totalorder %s160, %s162
    %p169 = scmp.eq.s32.totalorder %s26, 1
    %p170 = por %p168, %p169
    %p171 = scmp.ne.s32.totalorder %s162, %s163
    %p172 = scmp.eq.s32.totalorder %s26, 0
    %p173 = por %p171, %p172
    %p174 = scmp.ne.s32.totalorder %s162, %s163
    %p175 = scmp.eq.s32.totalorder %s27, 1
    %p176 = por %p174, %p175
    %p178 = scmp.ne.s32.totalorder %s163, %s177
    %p179 = scmp.eq.s32.totalorder %s27, 0
    %p180 = por %p178, %p179
    %s182 = sadd.s32 %s181, 1
    %p185 = scmp.eq.s32.totalorder %s21, 1
    %p186 = scmp.ne.s32.totalorder %s181, %s183
    %p187 = scmp.eq.s32.totalorder %s21, 0
    %p188 = por %p186, %p187
    %p189 = scmp.ne.s32.totalorder %s181, %s183
    %p190 = scmp.eq.s32.totalorder %s26, 1
    %p191 = por %p189, %p190
    %p192 = scmp.ne.s32.totalorder %s183, %s184
    %p193 = scmp.eq.s32.totalorder %s26, 0
    %p194 = por %p192, %p193
    %p195 = scmp.ne.s32.totalorder %s183, %s184
    %p196 = scmp.eq.s32.totalorder %s27, 1
    %p197 = por %p195, %p196
    %p199 = scmp.ne.s32.totalorder %s184, %s198
    %p200 = scmp.eq.s32.totalorder %s27, 0
    %p201 = por %p199, %p200
    %s203 = sadd.s32 %s202, 1
    %p206 = scmp.eq.s32.totalorder %s21, 1
    %p207 = scmp.ne.s32.totalorder %s202, %s204
    %p208 = scmp.eq.s32.totalorder %s21, 0
    %p209 = por %p207, %p208
    %p210 = scmp.ne.s32.totalorder %s202, %s204
    %p211 = scmp.eq.s32.totalorder %s26, 1
    %p212 = por %p210, %p211
    %p213 = scmp.ne.s32.totalorder %s204, %s205
    %p214 = scmp.eq.s32.totalorder %s26, 0
    %p215 = por %p213, %p214
    %p216 = scmp.ne.s32.totalorder %s204, %s205
    %p217 = scmp.eq.s32.totalorder %s27, 1
    %p218 = por %p216, %p217
    %p220 = scmp.ne.s32.totalorder %s205, %s219
    %p221 = scmp.eq.s32.totalorder %s27, 0
    %p222 = por %p220, %p221
    %s224 = sadd.s32 %s223, 1
    %p227 = scmp.eq.s32.totalorder %s21, 1
    %p228 = scmp.ne.s32.totalorder %s223, %s225
    %p229 = scmp.eq.s32.totalorder %s21, 0
    %p230 = por %p228, %p229
    %p231 = scmp.ne.s32.totalorder %s223, %s225
    %p232 = scmp.eq.s32.totalorder %s26, 1
    %p233 = por %p231, %p232
    %p234 = scmp.ne.s32.totalorder %s225, %s226
    %p235 = scmp.eq.s32.totalorder %s26, 0
    %p236 = por %p234, %p235
    %p237 = scmp.ne.s32.totalorder %s225, %s226
    %p238 = scmp.eq.s32.totalorder %s27, 1
    %p239 = por %p237, %p238
    %p241 = scmp.ne.s32.totalorder %s226, %s240
    %p242 = scmp.eq.s32.totalorder %s27, 0
    %p243 = por %p241, %p242
    %s245 = sadd.s32 %s244, 1
    %p248 = scmp.eq.s32.totalorder %s21, 1
    %p249 = scmp.ne.s32.totalorder %s244, %s246
    %p250 = scmp.eq.s32.totalorder %s21, 0
    %p251 = por %p249, %p250
    %p252 = scmp.ne.s32.totalorder %s244, %s246
    %p253 = scmp.eq.s32.totalorder %s26, 1
    %p254 = por %p252, %p253
    %p255 = scmp.ne.s32.totalorder %s246, %s247
    %p256 = scmp.eq.s32.totalorder %s26, 0
    %p257 = por %p255, %p256
    %p258 = scmp.ne.s32.totalorder %s246, %s247
    %p259 = scmp.eq.s32.totalorder %s27, 1
    %p260 = por %p258, %p259
    %p262 = scmp.ne.s32.totalorder %s247, %s261
    %p263 = scmp.eq.s32.totalorder %s27, 0
    %p264 = por %p262, %p263
    %s266 = sadd.s32 %s265, 1
    %p269 = scmp.eq.s32.totalorder %s21, 1
    %p270 = scmp.ne.s32.totalorder %s265, %s267
    %p271 = scmp.eq.s32.totalorder %s21, 0
    %p272 = por %p270, %p271
    %p273 = scmp.ne.s32.totalorder %s265, %s267
    %p274 = scmp.eq.s32.totalorder %s26, 1
    %p275 = por %p273, %p274
    %p276 = scmp.ne.s32.totalorder %s267, %s268
    %p277 = scmp.eq.s32.totalorder %s26, 0
    %p278 = por %p276, %p277
    %p279 = scmp.ne.s32.totalorder %s267, %s268
    %p280 = scmp.eq.s32.totalorder %s27, 1
    %p281 = por %p279, %p280
    %p283 = scmp.ne.s32.totalorder %s268, %s282
    %p284 = scmp.eq.s32.totalorder %s27, 0
    %p285 = por %p283, %p284
    %s287 = sadd.s32 %s286, 1
    %p290 = scmp.eq.s32.totalorder %s21, 1
    %p291 = scmp.ne.s32.totalorder %s286, %s288
    %p292 = scmp.eq.s32.totalorder %s21, 0
    %p293 = por %p291, %p292
    %p294 = scmp.ne.s32.totalorder %s286, %s288
    %p295 = scmp.eq.s32.totalorder %s26, 1
    %p296 = por %p294, %p295
    %p297 = scmp.ne.s32.totalorder %s288, %s289
    %p298 = scmp.eq.s32.totalorder %s26, 0
    %p299 = por %p297, %p298
    %p300 = scmp.ne.s32.totalorder %s288, %s289
    %p301 = scmp.eq.s32.totalorder %s27, 1
    %p302 = por %p300, %p301
    %p304 = scmp.ne.s32.totalorder %s289, %s303
    %p305 = scmp.eq.s32.totalorder %s27, 0
    %p306 = por %p304, %p305
    %s308 = sadd.s32 %s307, 1
    %p311 = scmp.eq.s32.totalorder %s21, 1
    %p312 = scmp.ne.s32.totalorder %s307, %s309
    %p313 = scmp.eq.s32.totalorder %s21, 0
    %p314 = por %p312, %p313
    %p315 = scmp.ne.s32.totalorder %s307, %s309
    %p316 = scmp.eq.s32.totalorder %s26, 1
    %p317 = por %p315, %p316
    %p318 = scmp.ne.s32.totalorder %s309, %s310
    %p319 = scmp.eq.s32.totalorder %s26, 0
    %p320 = por %p318, %p319
    %p321 = scmp.ne.s32.totalorder %s309, %s310
    %p322 = scmp.eq.s32.totalorder %s27, 1
    %p323 = por %p321, %p322
    %p325 = scmp.ne.s32.totalorder %s310, %s324
    %p326 = scmp.eq.s32.totalorder %s27, 0
    %p327 = por %p325, %p326
    %s329 = sadd.s32 %s328, 1
    %p332 = scmp.eq.s32.totalorder %s21, 1
    %p333 = scmp.ne.s32.totalorder %s328, %s330
    %p334 = scmp.eq.s32.totalorder %s21, 0
    %p335 = por %p333, %p334
    %p336 = scmp.ne.s32.totalorder %s328, %s330
    %p337 = scmp.eq.s32.totalorder %s26, 1
    %p338 = por %p336, %p337
    %p339 = scmp.ne.s32.totalorder %s330, %s331
    %p340 = scmp.eq.s32.totalorder %s26, 0
    %p341 = por %p339, %p340
    %p342 = scmp.ne.s32.totalorder %s330, %s331
    %p343 = scmp.eq.s32.totalorder %s27, 1
    %p344 = por %p342, %p343
    %p346 = scmp.ne.s32.totalorder %s331, %s345
    %p347 = scmp.eq.s32.totalorder %s27, 0
    %p348 = por %p346, %p347
    %s349 = ssub.s32 %s21, %s28
    %p350 = scmp.eq.s32.totalorder %s349, 0
    %s352 = sadd.s32 %s351, 1
    %s353 = scalar_select %p350, %s351, %s352
    %p356 = pneg %p350
    %p357 = scmp.eq.s32.totalorder %s21, 1
    %p358 = por %p356, %p357
    %p359 = scmp.ne.s32.totalorder %s351, %s354
    %p360 = scmp.eq.s32.totalorder %s21, 0
    %p361 = por %p359, %p360
    %p362 = scmp.ne.s32.totalorder %s351, %s354
    %p363 = scmp.eq.s32.totalorder %s26, 1
    %p364 = por %p362, %p363
    %p365 = scmp.ne.s32.totalorder %s354, %s355
    %p366 = scmp.eq.s32.totalorder %s26, 0
    %p367 = por %p365, %p366
    %p368 = scmp.ne.s32.totalorder %s354, %s355
    %p369 = scmp.eq.s32.totalorder %s27, 1
    %p370 = por %p368, %p369
    %p372 = scmp.ne.s32.totalorder %s355, %s371
    %p373 = scmp.eq.s32.totalorder %s27, 0
    %p374 = por %p372, %p373
    %p375 = scmp.le.s32.totalorder 1, %s21
    %p376 = scmp.lt.s32.totalorder %s21, 3
    %p377 = pnand %p375, %p376
    %p378 = pneg %p377
    // Predicated region
    $region9: #{tpu_custom_call.1} parent=5 // pred_check
      _
    $region10: #{tpu_custom_call.1} parent=5 // pred_check_branch
      %380 = sbr.rel (%p377) target = $region12
    $region11: #{tpu_custom_call.1} parent=5 // pred_region
      %s381 = ssub.s32 %s21, 1
      // Predicated region
      $region13: #{tpu_custom_call.1} parent=11 // pred_check
        %p382 = pneg %p68
      $region14: #{tpu_custom_call.1} parent=11 // pred_check_branch
        %384 = sbr.rel (%p382) target = $region16
      $region15: #{tpu_custom_call.1} parent=11 // pred_region
        _
      $region16: #{tpu_custom_call.1} parent=11 // pred_fallthru
        _
      // Predicated region
      $region17: #{tpu_custom_call.1} parent=11 // pred_check
        %p385 = pneg %p89
      $region18: #{tpu_custom_call.1} parent=11 // pred_check_branch
        %387 = sbr.rel (%p385) target = $region20
      $region19: #{tpu_custom_call.1} parent=11 // pred_region
        _
      $region20: #{tpu_custom_call.1} parent=11 // pred_fallthru
        _
      // Predicated region
      $region21: #{tpu_custom_call.1} parent=11 // pred_check
        %p388 = pneg %p110
      $region22: #{tpu_custom_call.1} parent=11 // pred_check_branch
        %390 = sbr.rel (%p388) target = $region24
      $region23: #{tpu_custom_call.1} parent=11 // pred_region
        _
      $region24: #{tpu_custom_call.1} parent=11 // pred_fallthru
        _
      // Predicated region
      $region25: #{tpu_custom_call.1} parent=11 // pred_check
        %p391 = pneg %p131
      $region26: #{tpu_custom_call.1} parent=11 // pred_check_branch
        %393 = sbr.rel (%p391) target = $region28
      $region27: #{tpu_custom_call.1} parent=11 // pred_region
        _
      $region28: #{tpu_custom_call.1} parent=11 // pred_fallthru
        _
      // Predicated region
      $region29: #{tpu_custom_call.1} parent=11 // pred_check
        %p394 = pneg %p152
      $region30: #{tpu_custom_call.1} parent=11 // pred_check_branch
        %396 = sbr.rel (%p394) target = $region32
      $region31: #{tpu_custom_call.1} parent=11 // pred_region
        _
      $region32: #{tpu_custom_call.1} parent=11 // pred_fallthru
        _
      // Predicated region
      $region33: #{tpu_custom_call.1} parent=11 // pred_check
        %p397 = pneg %p173
      $region34: #{tpu_custom_call.1} parent=11 // pred_check_branch
        %399 = sbr.rel (%p397) target = $region36
      $region35: #{tpu_custom_call.1} parent=11 // pred_region
        _
      $region36: #{tpu_custom_call.1} parent=11 // pred_fallthru
        _
      // Predicated region
      $region37: #{tpu_custom_call.1} parent=11 // pred_check
        %p400 = pneg %p194
      $region38: #{tpu_custom_call.1} parent=11 // pred_check_branch
        %402 = sbr.rel (%p400) target = $region40
      $region39: #{tpu_custom_call.1} parent=11 // pred_region
        _
      $region40: #{tpu_custom_call.1} parent=11 // pred_fallthru
        _
      // Predicated region
      $region41: #{tpu_custom_call.1} parent=11 // pred_check
        %p403 = pneg %p215
      $region42: #{tpu_custom_call.1} parent=11 // pred_check_branch
        %405 = sbr.rel (%p403) target = $region44
      $region43: #{tpu_custom_call.1} parent=11 // pred_region
        _
      $region44: #{tpu_custom_call.1} parent=11 // pred_fallthru
        _
      // Predicated region
      $region45: #{tpu_custom_call.1} parent=11 // pred_check
        %p406 = pneg %p236
      $region46: #{tpu_custom_call.1} parent=11 // pred_check_branch
        %408 = sbr.rel (%p406) target = $region48
      $region47: #{tpu_custom_call.1} parent=11 // pred_region
        _
      $region48: #{tpu_custom_call.1} parent=11 // pred_fallthru
        _
      // Predicated region
      $region49: #{tpu_custom_call.1} parent=11 // pred_check
        %p409 = pneg %p257
      $region50: #{tpu_custom_call.1} parent=11 // pred_check_branch
        %411 = sbr.rel (%p409) target = $region52
      $region51: #{tpu_custom_call.1} parent=11 // pred_region
        _
      $region52: #{tpu_custom_call.1} parent=11 // pred_fallthru
        _
      // Predicated region
      $region53: #{tpu_custom_call.1} parent=11 // pred_check
        %p412 = pneg %p278
      $region54: #{tpu_custom_call.1} parent=11 // pred_check_branch
        %414 = sbr.rel (%p412) target = $region56
      $region55: #{tpu_custom_call.1} parent=11 // pred_region
        _
      $region56: #{tpu_custom_call.1} parent=11 // pred_fallthru
        _
      // Predicated region
      $region57: #{tpu_custom_call.1} parent=11 // pred_check
        %p415 = pneg %p299
      $region58: #{tpu_custom_call.1} parent=11 // pred_check_branch
        %417 = sbr.rel (%p415) target = $region60
      $region59: #{tpu_custom_call.1} parent=11 // pred_region
        _
      $region60: #{tpu_custom_call.1} parent=11 // pred_fallthru
        _
      // Predicated region
      $region61: #{tpu_custom_call.1} parent=11 // pred_check
        %p418 = pneg %p320
      $region62: #{tpu_custom_call.1} parent=11 // pred_check_branch
        %420 = sbr.rel (%p418) target = $region64
      $region63: #{tpu_custom_call.1} parent=11 // pred_region
        _
      $region64: #{tpu_custom_call.1} parent=11 // pred_fallthru
        _
      // Predicated region
      $region65: #{tpu_custom_call.1} parent=11 // pred_check
        %p421 = pneg %p341
      $region66: #{tpu_custom_call.1} parent=11 // pred_check_branch
        %423 = sbr.rel (%p421) target = $region68
      $region67: #{tpu_custom_call.1} parent=11 // pred_region
        _
      $region68: #{tpu_custom_call.1} parent=11 // pred_fallthru
        _
    $region12: #{tpu_custom_call.1} parent=5 // pred_fallthru
      _
    %p424 = scmp.lt.s32.totalorder %s21, 2
    // Predicated region
    $region69: #{tpu_custom_call.1} parent=5 // pred_check
      %p425 = pneg %p424
    $region70: #{tpu_custom_call.1} parent=5 // pred_check_branch
      %427 = sbr.rel (%p425) target = $region72
    $region71: #{tpu_custom_call.1} parent=5 // pred_region
      // Predicated region
      $region73: #{tpu_custom_call.1} parent=71 // pred_check
        %p428 = pneg %p41
      $region74: #{tpu_custom_call.1} parent=71 // pred_check_branch
        %430 = sbr.rel (%p428) target = $region76
      $region75: #{tpu_custom_call.1} parent=71 // pred_region
        %p431 = scmp.lt.s32.totalorder %s21, 1
        %s432 = scalar_select %p431, %s21, 1
        %s433 = smul.addr %s432, 7
        %s434 = smul.addr %s433, 8
        %s435 = scalar_lea.vmem %s0, %s434
      $region76: #{tpu_custom_call.1} parent=71 // pred_fallthru
        _
    $region72: #{tpu_custom_call.1} parent=5 // pred_fallthru
      _
    %p436 = scmp.le.s32.totalorder 1, %s21
    %p437 = scmp.lt.s32.totalorder %s21, 3
    %p438 = pnand %p436, %p437
    %p439 = pneg %p438
    // Predicated region
    $region77: #{tpu_custom_call.1} parent=5 // pred_check
      _
    $region78: #{tpu_custom_call.1} parent=5 // pred_check_branch
      %441 = sbr.rel (%p438) target = $region80
    $region79: #{tpu_custom_call.1} parent=5 // pred_region
      %s442 = ssub.s32 %s21, 1
      %p443 = scmp.lt.s32.totalorder %s26, 1
      %s444 = scalar_select %p443, %s26, 1
      %s445 = smul.addr %s444, 7
      %s446 = smul.addr %s445, 8
      %s447 = scalar_lea.vmem %s0, %s446
      %p448 = pneg %p47
      %p449 = pneg %p44
      %p450 = pneg %p68
      %p451 = pneg %p65
      %p452 = pneg %p89
      %p453 = pneg %p86
      %p454 = pneg %p110
      %p455 = pneg %p107
      %p456 = pneg %p131
      %p457 = pneg %p128
      %p458 = pneg %p152
      %p459 = pneg %p149
      %p460 = pneg %p173
      %p461 = pneg %p170
      %p462 = pneg %p194
      %p463 = pneg %p191
      %p464 = pneg %p215
      %p465 = pneg %p212
      %p466 = pneg %p236
      %p467 = pneg %p233
      %p468 = pneg %p257
      %p469 = pneg %p254
      %p470 = pneg %p278
      %p471 = pneg %p275
      %p472 = pneg %p299
      %p473 = pneg %p296
      %p474 = pneg %p320
      %p475 = pneg %p317
      %p476 = pneg %p341
      %p477 = pneg %p338
      %p478 = pneg %p367
      %p479 = pneg %p364
      %p480 = scmp.lt.s32.totalorder %s26, 1
      %s481 = scalar_select %p480, %s26, 1
      %s482 = smul.addr %s481, 2
      %s483 = smul.addr %s482, 8
      %s484 = scalar_lea.vmem %s15, %s483
      %p485 = scmp.lt.s32.totalorder %s26, 1
      %s486 = scalar_select %p485, %s26, 1
      %s487 = smul.addr %s486, 7
      %s488 = smul.addr %s487, 8
      %s489 = scalar_lea.vmem %s0, %s488
      %p490 = scmp.lt.s32.totalorder %s26, 1
      %s491 = scalar_select %p490, %s26, 1
      %s492 = smul.addr %s491, 2
      %s493 = smul.addr %s492, 8
      %s494 = scalar_lea.vmem %s15, %s493
      %v495 = vld [vmem:[%s489] sm:$0xff]
      %v496 = vld [vmem:[%s489 + $0x8] sm:$0xff]
      %v497 = vld [vmem:[%s489 + $0x10] sm:$0xff]
      %v498 = vld [vmem:[%s489 + $0x18] sm:$0xff]
      %v499 = vld [vmem:[%s489 + $0x20] sm:$0xff]
      %v500 = vld [vmem:[%s489 + $0x28] sm:$0xff]
      %v501 = vld [vmem:[%s489 + $0x30] sm:$0x3]
      %v502 = vld [vmem:[%s1] sm:$0xff]
      %v503 = vld [vmem:[%s1 + $0x8] sm:$0xff]
      %v504 = vld [vmem:[%s1 + $0x10] sm:$0xff]
      %v505 = vld [vmem:[%s1 + $0x18] sm:$0xff]
      %v506 = vld [vmem:[%s1 + $0x20] sm:$0xff]
      %v507 = vld [vmem:[%s1 + $0x28] sm:$0xff]
      %v508 = vld [vmem:[%s1 + $0x30] sm:$0x3]
      %vm509 = vcmask 408576
      %v511 = vsel %vm509, %v502, 0
      %v514 = vsel %vm509, %v503, 0
      %v517 = vsel %vm509, %v504, 0
      %v520 = vsel %vm509, %v505, 0
      %v523 = vsel %vm509, %v506, 0
      %v526 = vsel %vm509, %v507, 0
      %v529 = vsel %vm509, %v508, 0
      %vm531 = vcmask 1041408
      %v533 = vsel %vm531, %v501, 0
      %535 = vmatprep.subr.mxu0 0.0
      %536 = vmatpush1.msra.mxu0 %v495
      %537 = vmatprep.subr.mxu0 0.0
      %538 = vmatpush1.msra.mxu0 %v496
      %539 = vmatprep.subr.mxu0 0.0
      %540 = vmatpush1.msra.mxu0 %v497
      %541 = vmatprep.subr.mxu0 0.0
      %542 = vmatpush1.msra.mxu0 %v498
      %543 = vmatprep.subr.mxu0 0.0
      %544 = vmatpush1.msra.mxu0 %v499
      %545 = vmatprep.subr.mxu0 0.0
      %546 = vmatpush1.msra.mxu0 %v500
      %547 = vmatprep.subr.mxu0 0.0
      %548 = vmatpush1.msra.mxu0 %v533
      %549 = vmatprep.subr.mxu0 0.0
      %550 = vmatpush1.msra.mxu0 0.0
      %551 = vmatprep.subr.mxu0 0.0
      %552 = vmatpush1.msra.mxu0 0.0
      %553 = vmatprep.subr.mxu0 0.0
      %554 = vmatpush1.msra.mxu0 0.0
      %555 = vmatprep.subr.mxu0 0.0
      %556 = vmatpush1.msra.mxu0 0.0
      %557 = vmatprep.subr.mxu0 0.0
      %558 = vmatpush1.msra.mxu0 0.0
      %559 = vmatprep.subr.mxu0 0.0
      %560 = vmatpush1.msra.mxu0 0.0
      %561 = vmatprep.subr.mxu0 0.0
      %562 = vmatpush1.msra.mxu0 0.0
      %563 = vmatprep.subr.mxu0 0.0
      %564 = vmatpush1.msra.mxu0 0.0
      %565 = vmatprep.subr.mxu0 0.0
      %566 = vmatpush1.msra.mxu0 0.0
      %567 = vmatprep.subr.mxu0 0.0
      %568 = vmatpush1.msra.mxu0 0.0
      %569 = vmatprep.subr.mxu0 0.0
      %570 = vmatpush1.msra.mxu0 0.0
      %571 = vmatprep.subr.mxu0 0.0
      %572 = vmatpush1.msra.mxu0 0.0
      %573 = vmatprep.subr.mxu0 0.0
      %574 = vmatpush1.msra.mxu0 0.0
      %575 = vmatprep.subr.mxu0 0.0
      %576 = vmatpush1.msra.mxu0 0.0
      %577 = vmatprep.subr.mxu0 0.0
      %578 = vmatpush1.msra.mxu0 0.0
      %579 = vmatprep.subr.mxu0 0.0
      %580 = vmatpush1.msra.mxu0 0.0
      %581 = vmatprep.subr.mxu0 0.0
      %582 = vmatpush1.msra.mxu0 0.0
      %583 = vmatprep.subr.mxu0 0.0
      %584 = vmatpush1.msra.mxu0 0.0
      %585 = vmatprep.subr.mxu0 0.0
      %586 = vmatpush1.msra.mxu0 0.0
      %587 = vmatprep.subr.mxu0 0.0
      %588 = vmatpush1.msra.mxu0 0.0
      %589 = vmatprep.subr.mxu0 0.0
      %590 = vmatpush1.msra.mxu0 0.0
      %591 = vmatprep.subr.mxu0 0.0
      %592 = vmatpush1.msra.mxu0 0.0
      %593 = vmatprep.subr.mxu0 0.0
      %594 = vmatpush1.msra.mxu0 0.0
      %595 = vmatprep.subr.mxu0 0.0
      %596 = vmatpush1.msra.mxu0 0.0
      %597 = vmatprep.subr.mxu0 0.0
      %598 = vmatpush1.msra.mxu0 0.0
      %599 = vmatprep.mubr.f32.mxu0 0.0
      %600 = vmatmul.mubr.f32.gmra.mrb[0].mxu0 %v511
      %v601 = vpop.f32.mrb[0].mxu0
      %v602 = vadd.f32 0.0, %v601
      %v603 = vpop.f32.mrb[0].mxu0
      %604 = vmatprep.mubr.f32.mxu0 0.0
      %605 = vmatmul.mubr.f32.gmra.mrb[0].mxu0 %v514
      %v606 = vpop.f32.mrb[0].mxu0
      %v607 = vadd.f32 0.0, %v606
      %v608 = vpop.f32.mrb[0].mxu0
      %609 = vmatprep.mubr.f32.mxu0 0.0
      %610 = vmatmul.mubr.f32.gmra.mrb[0].mxu0 %v517
      %v611 = vpop.f32.mrb[0].mxu0
      %v612 = vadd.f32 0.0, %v611
      %v613 = vpop.f32.mrb[0].mxu0
      %614 = vmatprep.mubr.f32.mxu0 0.0
      %615 = vmatmul.mubr.f32.gmra.mrb[0].mxu0 %v520
      %v616 = vpop.f32.mrb[0].mxu0
      %v617 = vadd.f32 0.0, %v616
      %v618 = vpop.f32.mrb[0].mxu0
      %619 = vmatprep.mubr.f32.mxu0 0.0
      %620 = vmatmul.mubr.f32.gmra.mrb[0].mxu0 %v523
      %v621 = vpop.f32.mrb[0].mxu0
      %v622 = vadd.f32 0.0, %v621
      %v623 = vpop.f32.mrb[0].mxu0
      %624 = vmatprep.mubr.f32.mxu0 0.0
      %625 = vmatmul.mubr.f32.gmra.mrb[0].mxu0 %v526
      %v626 = vpop.f32.mrb[0].mxu0
      %v627 = vadd.f32 0.0, %v626
      %v628 = vpop.f32.mrb[0].mxu0
      %629 = vmatprep.mubr.f32.mxu0 0.0
      %630 = vmatmul.mubr.f32.gmra.mrb[0].mxu0 %v529
      %v631 = vpop.f32.mrb[0].mxu0
      %v632 = vadd.f32 0.0, %v631
      %v633 = vpop.f32.mrb[0].mxu0
      %634 = vdwg.mxu0
      %v635 = vld [vmem:[%s3] sm:$0xff]
      %v636 = vld [vmem:[%s3 + $0x8] sm:$0xff]
      %v637 = vld [vmem:[%s4] sm:$0x1]
      %v639 = vlaneseq
      %v640 = vshrl.u32 %v639, 7
      %v641 = vsub.s32 0, %v640
      %v642 = vrot.slane %v637, %v641
      %vm644 = vcmask 130048
      %v646 = vsel %vm644, %v602, 0
      %v649 = vsel %vm644, %v607, 0
      %v652 = vsel %vm644, %v612, 0
      %v655 = vsel %vm644, %v617, 0
      %v658 = vsel %vm644, %v622, 0
      %v661 = vsel %vm644, %v627, 0
      %v664 = vsel %vm644, %v632, 0
      %666 = vmatprep.subr.mxu0 0.0
      %667 = vmatpush1.msra.mxu0 %v635
      %668 = vmatprep.subr.mxu0 0.0
      %669 = vmatpush1.msra.mxu0 %v636
      %670 = vmatprep.subr.mxu0 0.0
      %671 = vmatpush1.msra.mxu0 0.0
      %672 = vmatprep.subr.mxu0 0.0
      %673 = vmatpush1.msra.mxu0 0.0
      %674 = vmatprep.subr.mxu0 0.0
      %675 = vmatpush1.msra.mxu0 0.0
      %676 = vmatprep.subr.mxu0 0.0
      %677 = vmatpush1.msra.mxu0 0.0
      %678 = vmatprep.subr.mxu0 0.0
      %679 = vmatpush1.msra.mxu0 0.0
      %680 = vmatprep.subr.mxu0 0.0
      %681 = vmatpush1.msra.mxu0 0.0
      %682 = vmatprep.subr.mxu0 0.0
      %683 = vmatpush1.msra.mxu0 0.0
      %684 = vmatprep.subr.mxu0 0.0
      %685 = vmatpush1.msra.mxu0 0.0
      %686 = vmatprep.subr.mxu0 0.0
      %687 = vmatpush1.msra.mxu0 0.0
      %688 = vmatprep.subr.mxu0 0.0
      %689 = vmatpush1.msra.mxu0 0.0
      %690 = vmatprep.subr.mxu0 0.0
      %691 = vmatpush1.msra.mxu0 0.0
      %692 = vmatprep.subr.mxu0 0.0
      %693 = vmatpush1.msra.mxu0 0.0
      %694 = vmatprep.subr.mxu0 0.0
      %695 = vmatpush1.msra.mxu0 0.0
      %696 = vmatprep.subr.mxu0 0.0
      %697 = vmatpush1.msra.mxu0 0.0
      %698 = vmatprep.subr.mxu0 0.0
      %699 = vmatpush1.msra.mxu0 0.0
      %700 = vmatprep.subr.mxu0 0.0
      %701 = vmatpush1.msra.mxu0 0.0
      %702 = vmatprep.subr.mxu0 0.0
      %703 = vmatpush1.msra.mxu0 0.0
      %704 = vmatprep.subr.mxu0 0.0
      %705 = vmatpush1.msra.mxu0 0.0
      %706 = vmatprep.subr.mxu0 0.0
      %707 = vmatpush1.msra.mxu0 0.0
      %708 = vmatprep.subr.mxu0 0.0
      %709 = vmatpush1.msra.mxu0 0.0
      %710 = vmatprep.subr.mxu0 0.0
      %711 = vmatpush1.msra.mxu0 0.0
      %712 = vmatprep.subr.mxu0 0.0
      %713 = vmatpush1.msra.mxu0 0.0
      %714 = vmatprep.subr.mxu0 0.0
      %715 = vmatpush1.msra.mxu0 0.0
      %716 = vmatprep.subr.mxu0 0.0
      %717 = vmatpush1.msra.mxu0 0.0
      %718 = vmatprep.subr.mxu0 0.0
      %719 = vmatpush1.msra.mxu0 0.0
      %720 = vmatprep.subr.mxu0 0.0
      %721 = vmatpush1.msra.mxu0 0.0
      %722 = vmatprep.subr.mxu0 0.0
      %723 = vmatpush1.msra.mxu0 0.0
      %724 = vmatprep.subr.mxu0 0.0
      %725 = vmatpush1.msra.mxu0 0.0
      %726 = vmatprep.subr.mxu0 0.0
      %727 = vmatpush1.msra.mxu0 0.0
      %728 = vmatprep.subr.mxu0 0.0
      %729 = vmatpush1.msra.mxu0 0.0
      %730 = vmatprep.mubr.f32.mxu0 0.0
      %731 = vmatmul.mubr.f32.gmra.mrb[0].mxu0 %v646
      %v732 = vpop.f32.mrb[0].mxu0
      %v733 = vadd.f32 %v642, %v732
      %v734 = vpop.f32.mrb[0].mxu0
      %735 = vmatprep.mubr.f32.mxu0 0.0
      %736 = vmatmul.mubr.f32.gmra.mrb[0].mxu0 %v649
      %v737 = vpop.f32.mrb[0].mxu0
      %v738 = vadd.f32 %v642, %v737
      %v739 = vpop.f32.mrb[0].mxu0
      %740 = vmatprep.mubr.f32.mxu0 0.0
      %741 = vmatmul.mubr.f32.gmra.mrb[0].mxu0 %v652
      %v742 = vpop.f32.mrb[0].mxu0
      %v743 = vadd.f32 %v642, %v742
      %v744 = vpop.f32.mrb[0].mxu0
      %745 = vmatprep.mubr.f32.mxu0 0.0
      %746 = vmatmul.mubr.f32.gmra.mrb[0].mxu0 %v655
      %v747 = vpop.f32.mrb[0].mxu0
      %v748 = vadd.f32 %v642, %v747
      %v749 = vpop.f32.mrb[0].mxu0
      %750 = vmatprep.mubr.f32.mxu0 0.0
      %751 = vmatmul.mubr.f32.gmra.mrb[0].mxu0 %v658
      %v752 = vpop.f32.mrb[0].mxu0
      %v753 = vadd.f32 %v642, %v752
      %v754 = vpop.f32.mrb[0].mxu0
      %755 = vmatprep.mubr.f32.mxu0 0.0
      %756 = vmatmul.mubr.f32.gmra.mrb[0].mxu0 %v661
      %v757 = vpop.f32.mrb[0].mxu0
      %v758 = vadd.f32 %v642, %v757
      %v759 = vpop.f32.mrb[0].mxu0
      %760 = vmatprep.mubr.f32.mxu0 0.0
      %761 = vmatmul.mubr.f32.gmra.mrb[0].mxu0 %v664
      %v762 = vpop.f32.mrb[0].mxu0
      %v763 = vadd.f32 %v642, %v762
      %v764 = vpop.f32.mrb[0].mxu0
      %765 = vdwg.mxu0
      %v766 = vand.u32 2147483647, %v733
      %v767 = vand.u32 2147483647, %v738
      %v768 = vand.u32 2147483647, %v743
      %v769 = vand.u32 2147483647, %v748
      %v770 = vand.u32 2147483647, %v753
      %v771 = vand.u32 2147483647, %v758
      %v772 = vand.u32 2147483647, %v763
      %v773 = vadd.f32 %v766, 1.0
      %v774 = vadd.f32 %v767, 1.0
      %v775 = vadd.f32 %v768, 1.0
      %v776 = vadd.f32 %v769, 1.0
      %v777 = vadd.f32 %v770, 1.0
      %v778 = vadd.f32 %v771, 1.0
      %v779 = vadd.f32 %v772, 1.0
      %v780 = vrcp.pop %v773
      %v781 = vmul.f32 %v733, %v780
      %v782 = vrcp.pop %v774
      %v783 = vmul.f32 %v738, %v782
      %v784 = vrcp.pop %v775
      %v785 = vmul.f32 %v743, %v784
      %v786 = vrcp.pop %v776
      %v787 = vmul.f32 %v748, %v786
      %v788 = vrcp.pop %v777
      %v789 = vmul.f32 %v753, %v788
      %v790 = vrcp.pop %v778
      %v791 = vmul.f32 %v758, %v790
      %v792 = vrcp.pop %v779
      %v793 = vmul.f32 %v763, %v792
      %v794 = vld [vmem:[%s2] sm:$0xff]
      %v795 = vld [vmem:[%s2 + $0x8] sm:$0x3]
      %v797 = vsel %vm509, %v794, 0
      %v800 = vsel %vm509, %v795, 0
      %v803 = vsel %vm531, %v793, 0
      %805 = vmatprep.subr.mxu0 0.0
      %806 = vmatpush1.msra.mxu0 %v781
      %807 = vmatprep.subr.mxu0 0.0
      %808 = vmatpush1.msra.mxu0 %v783
      %809 = vmatprep.subr.mxu0 0.0
      %810 = vmatpush1.msra.mxu0 %v785
      %811 = vmatprep.subr.mxu0 0.0
      %812 = vmatpush1.msra.mxu0 %v787
      %813 = vmatprep.subr.mxu0 0.0
      %814 = vmatpush1.msra.mxu0 %v789
      %815 = vmatprep.subr.mxu0 0.0
      %816 = vmatpush1.msra.mxu0 %v791
      %817 = vmatprep.subr.mxu0 0.0
      %818 = vmatpush1.msra.mxu0 %v803
      %819 = vmatprep.subr.mxu0 0.0
      %820 = vmatpush1.msra.mxu0 0.0
      %821 = vmatprep.subr.mxu0 0.0
      %822 = vmatpush1.msra.mxu0 0.0
      %823 = vmatprep.subr.mxu0 0.0
      %824 = vmatpush1.msra.mxu0 0.0
      %825 = vmatprep.subr.mxu0 0.0
      %826 = vmatpush1.msra.mxu0 0.0
      %827 = vmatprep.subr.mxu0 0.0
      %828 = vmatpush1.msra.mxu0 0.0
      %829 = vmatprep.subr.mxu0 0.0
      %830 = vmatpush1.msra.mxu0 0.0
      %831 = vmatprep.subr.mxu0 0.0
      %832 = vmatpush1.msra.mxu0 0.0
      %833 = vmatprep.subr.mxu0 0.0
      %834 = vmatpush1.msra.mxu0 0.0
      %835 = vmatprep.subr.mxu0 0.0
      %836 = vmatpush1.msra.mxu0 0.0
      %837 = vmatprep.subr.mxu0 0.0
      %838 = vmatpush1.msra.mxu0 0.0
      %839 = vmatprep.subr.mxu0 0.0
      %840 = vmatpush1.msra.mxu0 0.0
      %841 = vmatprep.subr.mxu0 0.0
      %842 = vmatpush1.msra.mxu0 0.0
      %843 = vmatprep.subr.mxu0 0.0
      %844 = vmatpush1.msra.mxu0 0.0
      %845 = vmatprep.subr.mxu0 0.0
      %846 = vmatpush1.msra.mxu0 0.0
      %847 = vmatprep.subr.mxu0 0.0
      %848 = vmatpush1.msra.mxu0 0.0
      %849 = vmatprep.subr.mxu0 0.0
      %850 = vmatpush1.msra.mxu0 0.0
      %851 = vmatprep.subr.mxu0 0.0
      %852 = vmatpush1.msra.mxu0 0.0
      %853 = vmatprep.subr.mxu0 0.0
      %854 = vmatpush1.msra.mxu0 0.0
      %855 = vmatprep.subr.mxu0 0.0
      %856 = vmatpush1.msra.mxu0 0.0
      %857 = vmatprep.subr.mxu0 0.0
      %858 = vmatpush1.msra.mxu0 0.0
      %859 = vmatprep.subr.mxu0 0.0
      %860 = vmatpush1.msra.mxu0 0.0
      %861 = vmatprep.subr.mxu0 0.0
      %862 = vmatpush1.msra.mxu0 0.0
      %863 = vmatprep.subr.mxu0 0.0
      %864 = vmatpush1.msra.mxu0 0.0
      %865 = vmatprep.subr.mxu0 0.0
      %866 = vmatpush1.msra.mxu0 0.0
      %867 = vmatprep.subr.mxu0 0.0
      %868 = vmatpush1.msra.mxu0 0.0
      %869 = vmatprep.mubr.f32.mxu0 0.0
      %870 = vmatmul.mubr.f32.gmra.mrb[0].mxu0 %v797
      %v871 = vpop.f32.mrb[0].mxu0
      %v872 = vadd.f32 0.0, %v871
      %v873 = vpop.f32.mrb[0].mxu0
      %874 = vmatprep.mubr.f32.mxu0 0.0
      %875 = vmatmul.mubr.f32.gmra.mrb[0].mxu0 %v800
      %v876 = vpop.f32.mrb[0].mxu0
      %v877 = vadd.f32 0.0, %v876
      %v878 = vpop.f32.mrb[0].mxu0
      %879 = vdwg.mxu0
      %v880 = vld [vmem:[%s5] sm:$0xff]
      %v881 = vld [vmem:[%s5 + $0x8] sm:$0xff]
      %s882 = scalar_lea.vmem %s2, 16
      %v883 = vld [vmem:[%s882] sm:$0xff]
      %v884 = vld [vmem:[%s882 + $0x8] sm:$0x3]
      %v886 = vsel %vm509, %v883, 0
      %v889 = vsel %vm509, %v884, 0
      %891 = vmatprep.subr.mxu0 0.0
      %892 = vmatpush1.msra.mxu0 %v781
      %893 = vmatprep.subr.mxu0 0.0
      %894 = vmatpush1.msra.mxu0 %v783
      %895 = vmatprep.subr.mxu0 0.0
      %896 = vmatpush1.msra.mxu0 %v785
      %897 = vmatprep.subr.mxu0 0.0
      %898 = vmatpush1.msra.mxu0 %v787
      %899 = vmatprep.subr.mxu0 0.0
      %900 = vmatpush1.msra.mxu0 %v789
      %901 = vmatprep.subr.mxu0 0.0
      %902 = vmatpush1.msra.mxu0 %v791
      %903 = vmatprep.subr.mxu0 0.0
      %904 = vmatpush1.msra.mxu0 %v803
      %905 = vmatprep.subr.mxu0 0.0
      %906 = vmatpush1.msra.mxu0 0.0
      %907 = vmatprep.subr.mxu0 0.0
      %908 = vmatpush1.msra.mxu0 0.0
      %909 = vmatprep.subr.mxu0 0.0
      %910 = vmatpush1.msra.mxu0 0.0
      %911 = vmatprep.subr.mxu0 0.0
      %912 = vmatpush1.msra.mxu0 0.0
      %913 = vmatprep.subr.mxu0 0.0
      %914 = vmatpush1.msra.mxu0 0.0
      %915 = vmatprep.subr.mxu0 0.0
      %916 = vmatpush1.msra.mxu0 0.0
      %917 = vmatprep.subr.mxu0 0.0
      %918 = vmatpush1.msra.mxu0 0.0
      %919 = vmatprep.subr.mxu0 0.0
      %920 = vmatpush1.msra.mxu0 0.0
      %921 = vmatprep.subr.mxu0 0.0
      %922 = vmatpush1.msra.mxu0 0.0
      %923 = vmatprep.subr.mxu0 0.0
      %924 = vmatpush1.msra.mxu0 0.0
      %925 = vmatprep.subr.mxu0 0.0
      %926 = vmatpush1.msra.mxu0 0.0
      %927 = vmatprep.subr.mxu0 0.0
      %928 = vmatpush1.msra.mxu0 0.0
      %929 = vmatprep.subr.mxu0 0.0
      %930 = vmatpush1.msra.mxu0 0.0
      %931 = vmatprep.subr.mxu0 0.0
      %932 = vmatpush1.msra.mxu0 0.0
      %933 = vmatprep.subr.mxu0 0.0
      %934 = vmatpush1.msra.mxu0 0.0
      %935 = vmatprep.subr.mxu0 0.0
      %936 = vmatpush1.msra.mxu0 0.0
      %937 = vmatprep.subr.mxu0 0.0
      %938 = vmatpush1.msra.mxu0 0.0
      %939 = vmatprep.subr.mxu0 0.0
      %940 = vmatpush1.msra.mxu0 0.0
      %941 = vmatprep.subr.mxu0 0.0
      %942 = vmatpush1.msra.mxu0 0.0
      %943 = vmatprep.subr.mxu0 0.0
      %944 = vmatpush1.msra.mxu0 0.0
      %945 = vmatprep.subr.mxu0 0.0
      %946 = vmatpush1.msra.mxu0 0.0
      %947 = vmatprep.subr.mxu0 0.0
      %948 = vmatpush1.msra.mxu0 0.0
      %949 = vmatprep.subr.mxu0 0.0
      %950 = vmatpush1.msra.mxu0 0.0
      %951 = vmatprep.subr.mxu0 0.0
      %952 = vmatpush1.msra.mxu0 0.0
      %953 = vmatprep.subr.mxu0 0.0
      %954 = vmatpush1.msra.mxu0 0.0
      %955 = vmatprep.mubr.f32.mxu0 0.0
      %956 = vmatmul.mubr.f32.gmra.mrb[0].mxu0 %v886
      %v957 = vpop.f32.mrb[0].mxu0
      %v958 = vadd.f32 0.0, %v957
      %v959 = vpop.f32.mrb[0].mxu0
      %960 = vmatprep.mubr.f32.mxu0 0.0
      %961 = vmatmul.mubr.f32.gmra.mrb[0].mxu0 %v889
      %v962 = vpop.f32.mrb[0].mxu0
      %v963 = vadd.f32 0.0, %v962
      %v964 = vpop.f32.mrb[0].mxu0
      %965 = vdwg.mxu0
      %s966 = scalar_lea.vmem %s5, 16
      %v967 = vld [vmem:[%s966] sm:$0xff]
      %v968 = vld [vmem:[%s966 + $0x8] sm:$0xff]
      %v970 = vsel %vm644, %v958, 0
      %v973 = vsel %vm644, %v963, 0
      %975 = vmatprep.subr.mxu0 0.0
      %976 = vmatpush1.msra.mxu0 %v967
      %977 = vmatprep.subr.mxu0 0.0
      %978 = vmatpush1.msra.mxu0 %v968
      %979 = vmatprep.subr.mxu0 0.0
      %980 = vmatpush1.msra.mxu0 0.0
      %981 = vmatprep.subr.mxu0 0.0
      %982 = vmatpush1.msra.mxu0 0.0
      %983 = vmatprep.subr.mxu0 0.0
      %984 = vmatpush1.msra.mxu0 0.0
      %985 = vmatprep.subr.mxu0 0.0
      %986 = vmatpush1.msra.mxu0 0.0
      %987 = vmatprep.subr.mxu0 0.0
      %988 = vmatpush1.msra.mxu0 0.0
      %989 = vmatprep.subr.mxu0 0.0
      %990 = vmatpush1.msra.mxu0 0.0
      %991 = vmatprep.subr.mxu0 0.0
      %992 = vmatpush1.msra.mxu0 0.0
      %993 = vmatprep.subr.mxu0 0.0
      %994 = vmatpush1.msra.mxu0 0.0
      %995 = vmatprep.subr.mxu0 0.0
      %996 = vmatpush1.msra.mxu0 0.0
      %997 = vmatprep.subr.mxu0 0.0
      %998 = vmatpush1.msra.mxu0 0.0
      %999 = vmatprep.subr.mxu0 0.0
      %1000 = vmatpush1.msra.mxu0 0.0
      %1001 = vmatprep.subr.mxu0 0.0
      %1002 = vmatpush1.msra.mxu0 0.0
      %1003 = vmatprep.subr.mxu0 0.0
      %1004 = vmatpush1.msra.mxu0 0.0
      %1005 = vmatprep.subr.mxu0 0.0
      %1006 = vmatpush1.msra.mxu0 0.0
      %1007 = vmatprep.subr.mxu0 0.0
      %1008 = vmatpush1.msra.mxu0 0.0
      %1009 = vmatprep.subr.mxu0 0.0
      %1010 = vmatpush1.msra.mxu0 0.0
      %1011 = vmatprep.subr.mxu0 0.0
      %1012 = vmatpush1.msra.mxu0 0.0
      %1013 = vmatprep.subr.mxu0 0.0
      %1014 = vmatpush1.msra.mxu0 0.0
      %1015 = vmatprep.subr.mxu0 0.0
      %1016 = vmatpush1.msra.mxu0 0.0
      %1017 = vmatprep.subr.mxu0 0.0
      %1018 = vmatpush1.msra.mxu0 0.0
      %1019 = vmatprep.subr.mxu0 0.0
      %1020 = vmatpush1.msra.mxu0 0.0
      %1021 = vmatprep.subr.mxu0 0.0
      %1022 = vmatpush1.msra.mxu0 0.0
      %1023 = vmatprep.subr.mxu0 0.0
      %1024 = vmatpush1.msra.mxu0 0.0
      %1025 = vmatprep.subr.mxu0 0.0
      %1026 = vmatpush1.msra.mxu0 0.0
      %1027 = vmatprep.subr.mxu0 0.0
      %1028 = vmatpush1.msra.mxu0 0.0
      %1029 = vmatprep.subr.mxu0 0.0
      %1030 = vmatpush1.msra.mxu0 0.0
      %1031 = vmatprep.subr.mxu0 0.0
      %1032 = vmatpush1.msra.mxu0 0.0
      %1033 = vmatprep.subr.mxu0 0.0
      %1034 = vmatpush1.msra.mxu0 0.0
      %1035 = vmatprep.subr.mxu0 0.0
      %1036 = vmatpush1.msra.mxu0 0.0
      %1037 = vmatprep.subr.mxu0 0.0
      %1038 = vmatpush1.msra.mxu0 0.0
      %1039 = vmatprep.mubr.f32.mxu0 0.0
      %1040 = vmatmul.mubr.f32.gmra.mrb[0].mxu0 %v970
      %v1041 = vpop.f32.mrb[0].mxu0
      %v1042 = vadd.f32 0.0, %v1041
      %v1043 = vpop.f32.mrb[0].mxu0
      %1044 = vmatprep.mubr.f32.mxu0 0.0
      %1045 = vmatmul.mubr.f32.gmra.mrb[0].mxu0 %v973
      %v1046 = vpop.f32.mrb[0].mxu0
      %v1047 = vadd.f32 0.0, %v1046
      %v1048 = vpop.f32.mrb[0].mxu0
      %1049 = vdwg.mxu0
      %v1051 = vsel %vm644, %v872, 0
      %v1054 = vsel %vm644, %v877, 0
      %1056 = vmatprep.subr.mxu0 0.0
      %1057 = vmatpush1.msra.mxu0 %v880
      %1058 = vmatprep.subr.mxu0 0.0
      %1059 = vmatpush1.msra.mxu0 %v881
      %1060 = vmatprep.subr.mxu0 0.0
      %1061 = vmatpush1.msra.mxu0 0.0
      %1062 = vmatprep.subr.mxu0 0.0
      %1063 = vmatpush1.msra.mxu0 0.0
      %1064 = vmatprep.subr.mxu0 0.0
      %1065 = vmatpush1.msra.mxu0 0.0
      %1066 = vmatprep.subr.mxu0 0.0
      %1067 = vmatpush1.msra.mxu0 0.0
      %1068 = vmatprep.subr.mxu0 0.0
      %1069 = vmatpush1.msra.mxu0 0.0
      %1070 = vmatprep.subr.mxu0 0.0
      %1071 = vmatpush1.msra.mxu0 0.0
      %1072 = vmatprep.subr.mxu0 0.0
      %1073 = vmatpush1.msra.mxu0 0.0
      %1074 = vmatprep.subr.mxu0 0.0
      %1075 = vmatpush1.msra.mxu0 0.0
      %1076 = vmatprep.subr.mxu0 0.0
      %1077 = vmatpush1.msra.mxu0 0.0
      %1078 = vmatprep.subr.mxu0 0.0
      %1079 = vmatpush1.msra.mxu0 0.0
      %1080 = vmatprep.subr.mxu0 0.0
      %1081 = vmatpush1.msra.mxu0 0.0
      %1082 = vmatprep.subr.mxu0 0.0
      %1083 = vmatpush1.msra.mxu0 0.0
      %1084 = vmatprep.subr.mxu0 0.0
      %1085 = vmatpush1.msra.mxu0 0.0
      %1086 = vmatprep.subr.mxu0 0.0
      %1087 = vmatpush1.msra.mxu0 0.0
      %1088 = vmatprep.subr.mxu0 0.0
      %1089 = vmatpush1.msra.mxu0 0.0
      %1090 = vmatprep.subr.mxu0 0.0
      %1091 = vmatpush1.msra.mxu0 0.0
      %1092 = vmatprep.subr.mxu0 0.0
      %1093 = vmatpush1.msra.mxu0 0.0
      %1094 = vmatprep.subr.mxu0 0.0
      %1095 = vmatpush1.msra.mxu0 0.0
      %1096 = vmatprep.subr.mxu0 0.0
      %1097 = vmatpush1.msra.mxu0 0.0
      %1098 = vmatprep.subr.mxu0 0.0
      %1099 = vmatpush1.msra.mxu0 0.0
      %1100 = vmatprep.subr.mxu0 0.0
      %1101 = vmatpush1.msra.mxu0 0.0
      %1102 = vmatprep.subr.mxu0 0.0
      %1103 = vmatpush1.msra.mxu0 0.0
      %1104 = vmatprep.subr.mxu0 0.0
      %1105 = vmatpush1.msra.mxu0 0.0
      %1106 = vmatprep.subr.mxu0 0.0
      %1107 = vmatpush1.msra.mxu0 0.0
      %1108 = vmatprep.subr.mxu0 0.0
      %1109 = vmatpush1.msra.mxu0 0.0
      %1110 = vmatprep.subr.mxu0 0.0
      %1111 = vmatpush1.msra.mxu0 0.0
      %1112 = vmatprep.subr.mxu0 0.0
      %1113 = vmatpush1.msra.mxu0 0.0
      %1114 = vmatprep.subr.mxu0 0.0
      %1115 = vmatpush1.msra.mxu0 0.0
      %1116 = vmatprep.subr.mxu0 0.0
      %1117 = vmatpush1.msra.mxu0 0.0
      %1118 = vmatprep.subr.mxu0 0.0
      %1119 = vmatpush1.msra.mxu0 0.0
      %1120 = vmatprep.mubr.f32.mxu0 0.0
      %1121 = vmatmul.mubr.f32.gmra.mrb[0].mxu0 %v1051
      %v1122 = vpop.f32.mrb[0].mxu0
      %v1123 = vadd.f32 %v1042, %v1122
      %v1124 = vpop.f32.mrb[0].mxu0
      %1125 = vmatprep.mubr.f32.mxu0 0.0
      %1126 = vmatmul.mubr.f32.gmra.mrb[0].mxu0 %v1054
      %v1127 = vpop.f32.mrb[0].mxu0
      %v1128 = vadd.f32 %v1047, %v1127
      %v1129 = vpop.f32.mrb[0].mxu0
      %1130 = vdwg.mxu0
      %s1131 = scalar_lea.vmem %s2, 32
      %v1132 = vld [vmem:[%s1131] sm:$0xff]
      %v1133 = vld [vmem:[%s1131 + $0x8] sm:$0x3]
      %v1135 = vsel %vm509, %v1132, 0
      %v1138 = vsel %vm509, %v1133, 0
      %1140 = vmatprep.subr.mxu0 0.0
      %1141 = vmatpush1.msra.mxu0 %v781
      %1142 = vmatprep.subr.mxu0 0.0
      %1143 = vmatpush1.msra.mxu0 %v783
      %1144 = vmatprep.subr.mxu0 0.0
      %1145 = vmatpush1.msra.mxu0 %v785
      %1146 = vmatprep.subr.mxu0 0.0
      %1147 = vmatpush1.msra.mxu0 %v787
      %1148 = vmatprep.subr.mxu0 0.0
      %1149 = vmatpush1.msra.mxu0 %v789
      %1150 = vmatprep.subr.mxu0 0.0
      %1151 = vmatpush1.msra.mxu0 %v791
      %1152 = vmatprep.subr.mxu0 0.0
      %1153 = vmatpush1.msra.mxu0 %v803
      %1154 = vmatprep.subr.mxu0 0.0
      %1155 = vmatpush1.msra.mxu0 0.0
      %1156 = vmatprep.subr.mxu0 0.0
      %1157 = vmatpush1.msra.mxu0 0.0
      %1158 = vmatprep.subr.mxu0 0.0
      %1159 = vmatpush1.msra.mxu0 0.0
      %1160 = vmatprep.subr.mxu0 0.0
      %1161 = vmatpush1.msra.mxu0 0.0
      %1162 = vmatprep.subr.mxu0 0.0
      %1163 = vmatpush1.msra.mxu0 0.0
      %1164 = vmatprep.subr.mxu0 0.0
      %1165 = vmatpush1.msra.mxu0 0.0
      %1166 = vmatprep.subr.mxu0 0.0
      %1167 = vmatpush1.msra.mxu0 0.0
      %1168 = vmatprep.subr.mxu0 0.0
      %1169 = vmatpush1.msra.mxu0 0.0
      %1170 = vmatprep.subr.mxu0 0.0
      %1171 = vmatpush1.msra.mxu0 0.0
      %1172 = vmatprep.subr.mxu0 0.0
      %1173 = vmatpush1.msra.mxu0 0.0
      %1174 = vmatprep.subr.mxu0 0.0
      %1175 = vmatpush1.msra.mxu0 0.0
      %1176 = vmatprep.subr.mxu0 0.0
      %1177 = vmatpush1.msra.mxu0 0.0
      %1178 = vmatprep.subr.mxu0 0.0
      %1179 = vmatpush1.msra.mxu0 0.0
      %1180 = vmatprep.subr.mxu0 0.0
      %1181 = vmatpush1.msra.mxu0 0.0
      %1182 = vmatprep.subr.mxu0 0.0
      %1183 = vmatpush1.msra.mxu0 0.0
      %1184 = vmatprep.subr.mxu0 0.0
      %1185 = vmatpush1.msra.mxu0 0.0
      %1186 = vmatprep.subr.mxu0 0.0
      %1187 = vmatpush1.msra.mxu0 0.0
      %1188 = vmatprep.subr.mxu0 0.0
      %1189 = vmatpush1.msra.mxu0 0.0
      %1190 = vmatprep.subr.mxu0 0.0
      %1191 = vmatpush1.msra.mxu0 0.0
      %1192 = vmatprep.subr.mxu0 0.0
      %1193 = vmatpush1.msra.mxu0 0.0
      %1194 = vmatprep.subr.mxu0 0.0
      %1195 = vmatpush1.msra.mxu0 0.0
      %1196 = vmatprep.subr.mxu0 0.0
      %1197 = vmatpush1.msra.mxu0 0.0
      %1198 = vmatprep.subr.mxu0 0.0
      %1199 = vmatpush1.msra.mxu0 0.0
      %1200 = vmatprep.subr.mxu0 0.0
      %1201 = vmatpush1.msra.mxu0 0.0
      %1202 = vmatprep.subr.mxu0 0.0
      %1203 = vmatpush1.msra.mxu0 0.0
      %1204 = vmatprep.mubr.f32.mxu0 0.0
      %1205 = vmatmul.mubr.f32.gmra.mrb[0].mxu0 %v1135
      %v1206 = vpop.f32.mrb[0].mxu0
      %v1207 = vadd.f32 0.0, %v1206
      %v1208 = vpop.f32.mrb[0].mxu0
      %1209 = vmatprep.mubr.f32.mxu0 0.0
      %1210 = vmatmul.mubr.f32.gmra.mrb[0].mxu0 %v1138
      %v1211 = vpop.f32.mrb[0].mxu0
      %v1212 = vadd.f32 0.0, %v1211
      %v1213 = vpop.f32.mrb[0].mxu0
      %1214 = vdwg.mxu0
      %s1215 = scalar_lea.vmem %s5, 32
      %v1216 = vld [vmem:[%s1215] sm:$0xff]
      %v1217 = vld [vmem:[%s1215 + $0x8] sm:$0xff]
      %v1219 = vsel %vm644, %v1207, 0
      %v1222 = vsel %vm644, %v1212, 0
      %1224 = vmatprep.subr.mxu0 0.0
      %1225 = vmatpush1.msra.mxu0 %v1216
      %1226 = vmatprep.subr.mxu0 0.0
      %1227 = vmatpush1.msra.mxu0 %v1217
      %1228 = vmatprep.subr.mxu0 0.0
      %1229 = vmatpush1.msra.mxu0 0.0
      %1230 = vmatprep.subr.mxu0 0.0
      %1231 = vmatpush1.msra.mxu0 0.0
      %1232 = vmatprep.subr.mxu0 0.0
      %1233 = vmatpush1.msra.mxu0 0.0
      %1234 = vmatprep.subr.mxu0 0.0
      %1235 = vmatpush1.msra.mxu0 0.0
      %1236 = vmatprep.subr.mxu0 0.0
      %1237 = vmatpush1.msra.mxu0 0.0
      %1238 = vmatprep.subr.mxu0 0.0
      %1239 = vmatpush1.msra.mxu0 0.0
      %1240 = vmatprep.subr.mxu0 0.0
      %1241 = vmatpush1.msra.mxu0 0.0
      %1242 = vmatprep.subr.mxu0 0.0
      %1243 = vmatpush1.msra.mxu0 0.0
      %1244 = vmatprep.subr.mxu0 0.0
      %1245 = vmatpush1.msra.mxu0 0.0
      %1246 = vmatprep.subr.mxu0 0.0
      %1247 = vmatpush1.msra.mxu0 0.0
      %1248 = vmatprep.subr.mxu0 0.0
      %1249 = vmatpush1.msra.mxu0 0.0
      %1250 = vmatprep.subr.mxu0 0.0
      %1251 = vmatpush1.msra.mxu0 0.0
      %1252 = vmatprep.subr.mxu0 0.0
      %1253 = vmatpush1.msra.mxu0 0.0
      %1254 = vmatprep.subr.mxu0 0.0
      %1255 = vmatpush1.msra.mxu0 0.0
      %1256 = vmatprep.subr.mxu0 0.0
      %1257 = vmatpush1.msra.mxu0 0.0
      %1258 = vmatprep.subr.mxu0 0.0
      %1259 = vmatpush1.msra.mxu0 0.0
      %1260 = vmatprep.subr.mxu0 0.0
      %1261 = vmatpush1.msra.mxu0 0.0
      %1262 = vmatprep.subr.mxu0 0.0
      %1263 = vmatpush1.msra.mxu0 0.0
      %1264 = vmatprep.subr.mxu0 0.0
      %1265 = vmatpush1.msra.mxu0 0.0
      %1266 = vmatprep.subr.mxu0 0.0
      %1267 = vmatpush1.msra.mxu0 0.0
      %1268 = vmatprep.subr.mxu0 0.0
      %1269 = vmatpush1.msra.mxu0 0.0
      %1270 = vmatprep.subr.mxu0 0.0
      %1271 = vmatpush1.msra.mxu0 0.0
      %1272 = vmatprep.subr.mxu0 0.0
      %1273 = vmatpush1.msra.mxu0 0.0
      %1274 = vmatprep.subr.mxu0 0.0
      %1275 = vmatpush1.msra.mxu0 0.0
      %1276 = vmatprep.subr.mxu0 0.0
      %1277 = vmatpush1.msra.mxu0 0.0
      %1278 = vmatprep.subr.mxu0 0.0
      %1279 = vmatpush1.msra.mxu0 0.0
      %1280 = vmatprep.subr.mxu0 0.0
      %1281 = vmatpush1.msra.mxu0 0.0
      %1282 = vmatprep.subr.mxu0 0.0
      %1283 = vmatpush1.msra.mxu0 0.0
      %1284 = vmatprep.subr.mxu0 0.0
      %1285 = vmatpush1.msra.mxu0 0.0
      %1286 = vmatprep.subr.mxu0 0.0
      %1287 = vmatpush1.msra.mxu0 0.0
      %1288 = vmatprep.mubr.f32.mxu0 0.0
      %1289 = vmatmul.mubr.f32.gmra.mrb[0].mxu0 %v1219
      %v1290 = vpop.f32.mrb[0].mxu0
      %v1291 = vadd.f32 0.0, %v1290
      %v1292 = vpop.f32.mrb[0].mxu0
      %1293 = vmatprep.mubr.f32.mxu0 0.0
      %1294 = vmatmul.mubr.f32.gmra.mrb[0].mxu0 %v1222
      %v1295 = vpop.f32.mrb[0].mxu0
      %v1296 = vadd.f32 0.0, %v1295
      %v1297 = vpop.f32.mrb[0].mxu0
      %1298 = vdwg.mxu0
      %v1299 = vadd.f32 %v1123, %v1291
      %v1300 = vadd.f32 %v1128, %v1296
      %s1301 = scalar_lea.vmem %s2, 48
      %v1302 = vld [vmem:[%s1301] sm:$0xff]
      %v1303 = vld [vmem:[%s1301 + $0x8] sm:$0x3]
      %v1305 = vsel %vm509, %v1302, 0
      %v1308 = vsel %vm509, %v1303, 0
      %1310 = vmatprep.subr.mxu0 0.0
      %1311 = vmatpush1.msra.mxu0 %v781
      %1312 = vmatprep.subr.mxu0 0.0
      %1313 = vmatpush1.msra.mxu0 %v783
      %1314 = vmatprep.subr.mxu0 0.0
      %1315 = vmatpush1.msra.mxu0 %v785
      %1316 = vmatprep.subr.mxu0 0.0
      %1317 = vmatpush1.msra.mxu0 %v787
      %1318 = vmatprep.subr.mxu0 0.0
      %1319 = vmatpush1.msra.mxu0 %v789
      %1320 = vmatprep.subr.mxu0 0.0
      %1321 = vmatpush1.msra.mxu0 %v791
      %1322 = vmatprep.subr.mxu0 0.0
      %1323 = vmatpush1.msra.mxu0 %v803
      %1324 = vmatprep.subr.mxu0 0.0
      %1325 = vmatpush1.msra.mxu0 0.0
      %1326 = vmatprep.subr.mxu0 0.0
      %1327 = vmatpush1.msra.mxu0 0.0
      %1328 = vmatprep.subr.mxu0 0.0
      %1329 = vmatpush1.msra.mxu0 0.0
      %1330 = vmatprep.subr.mxu0 0.0
      %1331 = vmatpush1.msra.mxu0 0.0
      %1332 = vmatprep.subr.mxu0 0.0
      %1333 = vmatpush1.msra.mxu0 0.0
      %1334 = vmatprep.subr.mxu0 0.0
      %1335 = vmatpush1.msra.mxu0 0.0
      %1336 = vmatprep.subr.mxu0 0.0
      %1337 = vmatpush1.msra.mxu0 0.0
      %1338 = vmatprep.subr.mxu0 0.0
      %1339 = vmatpush1.msra.mxu0 0.0
      %1340 = vmatprep.subr.mxu0 0.0
      %1341 = vmatpush1.msra.mxu0 0.0
      %1342 = vmatprep.subr.mxu0 0.0
      %1343 = vmatpush1.msra.mxu0 0.0
      %1344 = vmatprep.subr.mxu0 0.0
      %1345 = vmatpush1.msra.mxu0 0.0
      %1346 = vmatprep.subr.mxu0 0.0
      %1347 = vmatpush1.msra.mxu0 0.0
      %1348 = vmatprep.subr.mxu0 0.0
      %1349 = vmatpush1.msra.mxu0 0.0
      %1350 = vmatprep.subr.mxu0 0.0
      %1351 = vmatpush1.msra.mxu0 0.0
      %1352 = vmatprep.subr.mxu0 0.0
      %1353 = vmatpush1.msra.mxu0 0.0
      %1354 = vmatprep.subr.mxu0 0.0
      %1355 = vmatpush1.msra.mxu0 0.0
      %1356 = vmatprep.subr.mxu0 0.0
      %1357 = vmatpush1.msra.mxu0 0.0
      %1358 = vmatprep.subr.mxu0 0.0
      %1359 = vmatpush1.msra.mxu0 0.0
      %1360 = vmatprep.subr.mxu0 0.0
      %1361 = vmatpush1.msra.mxu0 0.0
      %1362 = vmatprep.subr.mxu0 0.0
      %1363 = vmatpush1.msra.mxu0 0.0
      %1364 = vmatprep.subr.mxu0 0.0
      %1365 = vmatpush1.msra.mxu0 0.0
      %1366 = vmatprep.subr.mxu0 0.0
      %1367 = vmatpush1.msra.mxu0 0.0
      %1368 = vmatprep.subr.mxu0 0.0
      %1369 = vmatpush1.msra.mxu0 0.0
      %1370 = vmatprep.subr.mxu0 0.0
      %1371 = vmatpush1.msra.mxu0 0.0
      %1372 = vmatprep.subr.mxu0 0.0
      %1373 = vmatpush1.msra.mxu0 0.0
      %1374 = vmatprep.mubr.f32.mxu0 0.0
      %1375 = vmatmul.mubr.f32.gmra.mrb[0].mxu0 %v1305
      %v1376 = vpop.f32.mrb[0].mxu0
      %v1377 = vadd.f32 0.0, %v1376
      %v1378 = vpop.f32.mrb[0].mxu0
      %1379 = vmatprep.mubr.f32.mxu0 0.0
      %1380 = vmatmul.mubr.f32.gmra.mrb[0].mxu0 %v1308
      %v1381 = vpop.f32.mrb[0].mxu0
      %v1382 = vadd.f32 0.0, %v1381
      %v1383 = vpop.f32.mrb[0].mxu0
      %1384 = vdwg.mxu0
      %s1385 = scalar_lea.vmem %s5, 48
      %v1386 = vld [vmem:[%s1385] sm:$0xff]
      %v1387 = vld [vmem:[%s1385 + $0x8] sm:$0xff]
      %v1389 = vsel %vm644, %v1377, 0
      %v1392 = vsel %vm644, %v1382, 0
      %1394 = vmatprep.subr.mxu0 0.0
      %1395 = vmatpush1.msra.mxu0 %v1386
      %1396 = vmatprep.subr.mxu0 0.0
      %1397 = vmatpush1.msra.mxu0 %v1387
      %1398 = vmatprep.subr.mxu0 0.0
      %1399 = vmatpush1.msra.mxu0 0.0
      %1400 = vmatprep.subr.mxu0 0.0
      %1401 = vmatpush1.msra.mxu0 0.0
      %1402 = vmatprep.subr.mxu0 0.0
      %1403 = vmatpush1.msra.mxu0 0.0
      %1404 = vmatprep.subr.mxu0 0.0
      %1405 = vmatpush1.msra.mxu0 0.0
      %1406 = vmatprep.subr.mxu0 0.0
      %1407 = vmatpush1.msra.mxu0 0.0
      %1408 = vmatprep.subr.mxu0 0.0
      %1409 = vmatpush1.msra.mxu0 0.0
      %1410 = vmatprep.subr.mxu0 0.0
      %1411 = vmatpush1.msra.mxu0 0.0
      %1412 = vmatprep.subr.mxu0 0.0
      %1413 = vmatpush1.msra.mxu0 0.0
      %1414 = vmatprep.subr.mxu0 0.0
      %1415 = vmatpush1.msra.mxu0 0.0
      %1416 = vmatprep.subr.mxu0 0.0
      %1417 = vmatpush1.msra.mxu0 0.0
      %1418 = vmatprep.subr.mxu0 0.0
      %1419 = vmatpush1.msra.mxu0 0.0
      %1420 = vmatprep.subr.mxu0 0.0
      %1421 = vmatpush1.msra.mxu0 0.0
      %1422 = vmatprep.subr.mxu0 0.0
      %1423 = vmatpush1.msra.mxu0 0.0
      %1424 = vmatprep.subr.mxu0 0.0
      %1425 = vmatpush1.msra.mxu0 0.0
      %1426 = vmatprep.subr.mxu0 0.0
      %1427 = vmatpush1.msra.mxu0 0.0
      %1428 = vmatprep.subr.mxu0 0.0
      %1429 = vmatpush1.msra.mxu0 0.0
      %1430 = vmatprep.subr.mxu0 0.0
      %1431 = vmatpush1.msra.mxu0 0.0
      %1432 = vmatprep.subr.mxu0 0.0
      %1433 = vmatpush1.msra.mxu0 0.0
      %1434 = vmatprep.subr.mxu0 0.0
      %1435 = vmatpush1.msra.mxu0 0.0
      %1436 = vmatprep.subr.mxu0 0.0
      %1437 = vmatpush1.msra.mxu0 0.0
      %1438 = vmatprep.subr.mxu0 0.0
      %1439 = vmatpush1.msra.mxu0 0.0
      %1440 = vmatprep.subr.mxu0 0.0
      %1441 = vmatpush1.msra.mxu0 0.0
      %1442 = vmatprep.subr.mxu0 0.0
      %1443 = vmatpush1.msra.mxu0 0.0
      %1444 = vmatprep.subr.mxu0 0.0
      %1445 = vmatpush1.msra.mxu0 0.0
      %1446 = vmatprep.subr.mxu0 0.0
      %1447 = vmatpush1.msra.mxu0 0.0
      %1448 = vmatprep.subr.mxu0 0.0
      %1449 = vmatpush1.msra.mxu0 0.0
      %1450 = vmatprep.subr.mxu0 0.0
      %1451 = vmatpush1.msra.mxu0 0.0
      %1452 = vmatprep.subr.mxu0 0.0
      %1453 = vmatpush1.msra.mxu0 0.0
      %1454 = vmatprep.subr.mxu0 0.0
      %1455 = vmatpush1.msra.mxu0 0.0
      %1456 = vmatprep.subr.mxu0 0.0
      %1457 = vmatpush1.msra.mxu0 0.0
      %1458 = vmatprep.mubr.f32.mxu0 0.0
      %1459 = vmatmul.mubr.f32.gmra.mrb[0].mxu0 %v1389
      %v1460 = vpop.f32.mrb[0].mxu0
      %v1461 = vadd.f32 0.0, %v1460
      %v1462 = vpop.f32.mrb[0].mxu0
      %1463 = vmatprep.mubr.f32.mxu0 0.0
      %1464 = vmatmul.mubr.f32.gmra.mrb[0].mxu0 %v1392
      %v1465 = vpop.f32.mrb[0].mxu0
      %v1466 = vadd.f32 0.0, %v1465
      %v1467 = vpop.f32.mrb[0].mxu0
      %1468 = vdwg.mxu0
      %v1469 = vadd.f32 %v1299, %v1461
      %v1470 = vadd.f32 %v1300, %v1466
      %s1471 = scalar_lea.vmem %s2, 64
      %v1472 = vld [vmem:[%s1471] sm:$0xff]
      %v1473 = vld [vmem:[%s1471 + $0x8] sm:$0x3]
      %v1475 = vsel %vm509, %v1472, 0
      %v1478 = vsel %vm509, %v1473, 0
      %1480 = vmatprep.subr.mxu0 0.0
      %1481 = vmatpush1.msra.mxu0 %v781
      %1482 = vmatprep.subr.mxu0 0.0
      %1483 = vmatpush1.msra.mxu0 %v783
      %1484 = vmatprep.subr.mxu0 0.0
      %1485 = vmatpush1.msra.mxu0 %v785
      %1486 = vmatprep.subr.mxu0 0.0
      %1487 = vmatpush1.msra.mxu0 %v787
      %1488 = vmatprep.subr.mxu0 0.0
      %1489 = vmatpush1.msra.mxu0 %v789
      %1490 = vmatprep.subr.mxu0 0.0
      %1491 = vmatpush1.msra.mxu0 %v791
      %1492 = vmatprep.subr.mxu0 0.0
      %1493 = vmatpush1.msra.mxu0 %v803
      %1494 = vmatprep.subr.mxu0 0.0
      %1495 = vmatpush1.msra.mxu0 0.0
      %1496 = vmatprep.subr.mxu0 0.0
      %1497 = vmatpush1.msra.mxu0 0.0
      %1498 = vmatprep.subr.mxu0 0.0
      %1499 = vmatpush1.msra.mxu0 0.0
      %1500 = vmatprep.subr.mxu0 0.0
      %1501 = vmatpush1.msra.mxu0 0.0
      %1502 = vmatprep.subr.mxu0 0.0
      %1503 = vmatpush1.msra.mxu0 0.0
      %1504 = vmatprep.subr.mxu0 0.0
      %1505 = vmatpush1.msra.mxu0 0.0
      %1506 = vmatprep.subr.mxu0 0.0
      %1507 = vmatpush1.msra.mxu0 0.0
      %1508 = vmatprep.subr.mxu0 0.0
      %1509 = vmatpush1.msra.mxu0 0.0
      %1510 = vmatprep.subr.mxu0 0.0
      %1511 = vmatpush1.msra.mxu0 0.0
      %1512 = vmatprep.subr.mxu0 0.0
      %1513 = vmatpush1.msra.mxu0 0.0
      %1514 = vmatprep.subr.mxu0 0.0
      %1515 = vmatpush1.msra.mxu0 0.0
      %1516 = vmatprep.subr.mxu0 0.0
      %1517 = vmatpush1.msra.mxu0 0.0
      %1518 = vmatprep.subr.mxu0 0.0
      %1519 = vmatpush1.msra.mxu0 0.0
      %1520 = vmatprep.subr.mxu0 0.0
      %1521 = vmatpush1.msra.mxu0 0.0
      %1522 = vmatprep.subr.mxu0 0.0
      %1523 = vmatpush1.msra.mxu0 0.0
      %1524 = vmatprep.subr.mxu0 0.0
      %1525 = vmatpush1.msra.mxu0 0.0
      %1526 = vmatprep.subr.mxu0 0.0
      %1527 = vmatpush1.msra.mxu0 0.0
      %1528 = vmatprep.subr.mxu0 0.0
      %1529 = vmatpush1.msra.mxu0 0.0
      %1530 = vmatprep.subr.mxu0 0.0
      %1531 = vmatpush1.msra.mxu0 0.0
      %1532 = vmatprep.subr.mxu0 0.0
      %1533 = vmatpush1.msra.mxu0 0.0
      %1534 = vmatprep.subr.mxu0 0.0
      %1535 = vmatpush1.msra.mxu0 0.0
      %1536 = vmatprep.subr.mxu0 0.0
      %1537 = vmatpush1.msra.mxu0 0.0
      %1538 = vmatprep.subr.mxu0 0.0
      %1539 = vmatpush1.msra.mxu0 0.0
      %1540 = vmatprep.subr.mxu0 0.0
      %1541 = vmatpush1.msra.mxu0 0.0
      %1542 = vmatprep.subr.mxu0 0.0
      %1543 = vmatpush1.msra.mxu0 0.0
      %1544 = vmatprep.mubr.f32.mxu0 0.0
      %1545 = vmatmul.mubr.f32.gmra.mrb[0].mxu0 %v1475
      %v1546 = vpop.f32.mrb[0].mxu0
      %v1547 = vadd.f32 0.0, %v1546
      %v1548 = vpop.f32.mrb[0].mxu0
      %1549 = vmatprep.mubr.f32.mxu0 0.0
      %1550 = vmatmul.mubr.f32.gmra.mrb[0].mxu0 %v1478
      %v1551 = vpop.f32.mrb[0].mxu0
      %v1552 = vadd.f32 0.0, %v1551
      %v1553 = vpop.f32.mrb[0].mxu0
      %1554 = vdwg.mxu0
      %s1555 = scalar_lea.vmem %s5, 64
      %v1556 = vld [vmem:[%s1555] sm:$0xff]
      %v1557 = vld [vmem:[%s1555 + $0x8] sm:$0xff]
      %v1559 = vsel %vm644, %v1547, 0
      %v1562 = vsel %vm644, %v1552, 0
      %1564 = vmatprep.subr.mxu0 0.0
      %1565 = vmatpush1.msra.mxu0 %v1556
      %1566 = vmatprep.subr.mxu0 0.0
      %1567 = vmatpush1.msra.mxu0 %v1557
      %1568 = vmatprep.subr.mxu0 0.0
      %1569 = vmatpush1.msra.mxu0 0.0
      %1570 = vmatprep.subr.mxu0 0.0
      %1571 = vmatpush1.msra.mxu0 0.0
      %1572 = vmatprep.subr.mxu0 0.0
      %1573 = vmatpush1.msra.mxu0 0.0
      %1574 = vmatprep.subr.mxu0 0.0
      %1575 = vmatpush1.msra.mxu0 0.0
      %1576 = vmatprep.subr.mxu0 0.0
      %1577 = vmatpush1.msra.mxu0 0.0
      %1578 = vmatprep.subr.mxu0 0.0
      %1579 = vmatpush1.msra.mxu0 0.0
      %1580 = vmatprep.subr.mxu0 0.0
      %1581 = vmatpush1.msra.mxu0 0.0
      %1582 = vmatprep.subr.mxu0 0.0
      %1583 = vmatpush1.msra.mxu0 0.0
      %1584 = vmatprep.subr.mxu0 0.0
      %1585 = vmatpush1.msra.mxu0 0.0
      %1586 = vmatprep.subr.mxu0 0.0
      %1587 = vmatpush1.msra.mxu0 0.0
      %1588 = vmatprep.subr.mxu0 0.0
      %1589 = vmatpush1.msra.mxu0 0.0
      %1590 = vmatprep.subr.mxu0 0.0
      %1591 = vmatpush1.msra.mxu0 0.0
      %1592 = vmatprep.subr.mxu0 0.0
      %1593 = vmatpush1.msra.mxu0 0.0
      %1594 = vmatprep.subr.mxu0 0.0
      %1595 = vmatpush1.msra.mxu0 0.0
      %1596 = vmatprep.subr.mxu0 0.0
      %1597 = vmatpush1.msra.mxu0 0.0
      %1598 = vmatprep.subr.mxu0 0.0
      %1599 = vmatpush1.msra.mxu0 0.0
      %1600 = vmatprep.subr.mxu0 0.0
      %1601 = vmatpush1.msra.mxu0 0.0
      %1602 = vmatprep.subr.mxu0 0.0
      %1603 = vmatpush1.msra.mxu0 0.0
      %1604 = vmatprep.subr.mxu0 0.0
      %1605 = vmatpush1.msra.mxu0 0.0
      %1606 = vmatprep.subr.mxu0 0.0
      %1607 = vmatpush1.msra.mxu0 0.0
      %1608 = vmatprep.subr.mxu0 0.0
      %1609 = vmatpush1.msra.mxu0 0.0
      %1610 = vmatprep.subr.mxu0 0.0
      %1611 = vmatpush1.msra.mxu0 0.0
      %1612 = vmatprep.subr.mxu0 0.0
      %1613 = vmatpush1.msra.mxu0 0.0
      %1614 = vmatprep.subr.mxu0 0.0
      %1615 = vmatpush1.msra.mxu0 0.0
      %1616 = vmatprep.subr.mxu0 0.0
      %1617 = vmatpush1.msra.mxu0 0.0
      %1618 = vmatprep.subr.mxu0 0.0
      %1619 = vmatpush1.msra.mxu0 0.0
      %1620 = vmatprep.subr.mxu0 0.0
      %1621 = vmatpush1.msra.mxu0 0.0
      %1622 = vmatprep.subr.mxu0 0.0
      %1623 = vmatpush1.msra.mxu0 0.0
      %1624 = vmatprep.subr.mxu0 0.0
      %1625 = vmatpush1.msra.mxu0 0.0
      %1626 = vmatprep.subr.mxu0 0.0
      %1627 = vmatpush1.msra.mxu0 0.0
      %1628 = vmatprep.mubr.f32.mxu0 0.0
      %1629 = vmatmul.mubr.f32.gmra.mrb[0].mxu0 %v1559
      %v1630 = vpop.f32.mrb[0].mxu0
      %v1631 = vadd.f32 0.0, %v1630
      %v1632 = vpop.f32.mrb[0].mxu0
      %1633 = vmatprep.mubr.f32.mxu0 0.0
      %1634 = vmatmul.mubr.f32.gmra.mrb[0].mxu0 %v1562
      %v1635 = vpop.f32.mrb[0].mxu0
      %v1636 = vadd.f32 0.0, %v1635
      %v1637 = vpop.f32.mrb[0].mxu0
      %1638 = vdwg.mxu0
      %v1639 = vadd.f32 %v1469, %v1631
      %v1640 = vadd.f32 %v1470, %v1636
      %s1641 = scalar_lea.vmem %s2, 80
      %v1642 = vld [vmem:[%s1641] sm:$0xff]
      %v1643 = vld [vmem:[%s1641 + $0x8] sm:$0x3]
      %v1645 = vsel %vm509, %v1642, 0
      %v1648 = vsel %vm509, %v1643, 0
      %1650 = vmatprep.subr.mxu0 0.0
      %1651 = vmatpush1.msra.mxu0 %v781
      %1652 = vmatprep.subr.mxu0 0.0
      %1653 = vmatpush1.msra.mxu0 %v783
      %1654 = vmatprep.subr.mxu0 0.0
      %1655 = vmatpush1.msra.mxu0 %v785
      %1656 = vmatprep.subr.mxu0 0.0
      %1657 = vmatpush1.msra.mxu0 %v787
      %1658 = vmatprep.subr.mxu0 0.0
      %1659 = vmatpush1.msra.mxu0 %v789
      %1660 = vmatprep.subr.mxu0 0.0
      %1661 = vmatpush1.msra.mxu0 %v791
      %1662 = vmatprep.subr.mxu0 0.0
      %1663 = vmatpush1.msra.mxu0 %v803
      %1664 = vmatprep.subr.mxu0 0.0
      %1665 = vmatpush1.msra.mxu0 0.0
      %1666 = vmatprep.subr.mxu0 0.0
      %1667 = vmatpush1.msra.mxu0 0.0
      %1668 = vmatprep.subr.mxu0 0.0
      %1669 = vmatpush1.msra.mxu0 0.0
      %1670 = vmatprep.subr.mxu0 0.0
      %1671 = vmatpush1.msra.mxu0 0.0
      %1672 = vmatprep.subr.mxu0 0.0
      %1673 = vmatpush1.msra.mxu0 0.0
      %1674 = vmatprep.subr.mxu0 0.0
      %1675 = vmatpush1.msra.mxu0 0.0
      %1676 = vmatprep.subr.mxu0 0.0
      %1677 = vmatpush1.msra.mxu0 0.0
      %1678 = vmatprep.subr.mxu0 0.0
      %1679 = vmatpush1.msra.mxu0 0.0
      %1680 = vmatprep.subr.mxu0 0.0
      %1681 = vmatpush1.msra.mxu0 0.0
      %1682 = vmatprep.subr.mxu0 0.0
      %1683 = vmatpush1.msra.mxu0 0.0
      %1684 = vmatprep.subr.mxu0 0.0
      %1685 = vmatpush1.msra.mxu0 0.0
      %1686 = vmatprep.subr.mxu0 0.0
      %1687 = vmatpush1.msra.mxu0 0.0
      %1688 = vmatprep.subr.mxu0 0.0
      %1689 = vmatpush1.msra.mxu0 0.0
      %1690 = vmatprep.subr.mxu0 0.0
      %1691 = vmatpush1.msra.mxu0 0.0
      %1692 = vmatprep.subr.mxu0 0.0
      %1693 = vmatpush1.msra.mxu0 0.0
      %1694 = vmatprep.subr.mxu0 0.0
      %1695 = vmatpush1.msra.mxu0 0.0
      %1696 = vmatprep.subr.mxu0 0.0
      %1697 = vmatpush1.msra.mxu0 0.0
      %1698 = vmatprep.subr.mxu0 0.0
      %1699 = vmatpush1.msra.mxu0 0.0
      %1700 = vmatprep.subr.mxu0 0.0
      %1701 = vmatpush1.msra.mxu0 0.0
      %1702 = vmatprep.subr.mxu0 0.0
      %1703 = vmatpush1.msra.mxu0 0.0
      %1704 = vmatprep.subr.mxu0 0.0
      %1705 = vmatpush1.msra.mxu0 0.0
      %1706 = vmatprep.subr.mxu0 0.0
      %1707 = vmatpush1.msra.mxu0 0.0
      %1708 = vmatprep.subr.mxu0 0.0
      %1709 = vmatpush1.msra.mxu0 0.0
      %1710 = vmatprep.subr.mxu0 0.0
      %1711 = vmatpush1.msra.mxu0 0.0
      %1712 = vmatprep.subr.mxu0 0.0
      %1713 = vmatpush1.msra.mxu0 0.0
      %1714 = vmatprep.mubr.f32.mxu0 0.0
      %1715 = vmatmul.mubr.f32.gmra.mrb[0].mxu0 %v1645
      %v1716 = vpop.f32.mrb[0].mxu0
      %v1717 = vadd.f32 0.0, %v1716
      %v1718 = vpop.f32.mrb[0].mxu0
      %1719 = vmatprep.mubr.f32.mxu0 0.0
      %1720 = vmatmul.mubr.f32.gmra.mrb[0].mxu0 %v1648
      %v1721 = vpop.f32.mrb[0].mxu0
      %v1722 = vadd.f32 0.0, %v1721
      %v1723 = vpop.f32.mrb[0].mxu0
      %1724 = vdwg.mxu0
      %s1725 = scalar_lea.vmem %s5, 80
      %v1726 = vld [vmem:[%s1725] sm:$0xff]
      %v1727 = vld [vmem:[%s1725 + $0x8] sm:$0xff]
      %v1729 = vsel %vm644, %v1717, 0
      %v1732 = vsel %vm644, %v1722, 0
      %1734 = vmatprep.subr.mxu0 0.0
      %1735 = vmatpush1.msra.mxu0 %v1726
      %1736 = vmatprep.subr.mxu0 0.0
      %1737 = vmatpush1.msra.mxu0 %v1727
      %1738 = vmatprep.subr.mxu0 0.0
      %1739 = vmatpush1.msra.mxu0 0.0
      %1740 = vmatprep.subr.mxu0 0.0
      %1741 = vmatpush1.msra.mxu0 0.0
      %1742 = vmatprep.subr.mxu0 0.0
      %1743 = vmatpush1.msra.mxu0 0.0
      %1744 = vmatprep.subr.mxu0 0.0
      %1745 = vmatpush1.msra.mxu0 0.0
      %1746 = vmatprep.subr.mxu0 0.0
      %1747 = vmatpush1.msra.mxu0 0.0
      %1748 = vmatprep.subr.mxu0 0.0
      %1749 = vmatpush1.msra.mxu0 0.0
      %1750 = vmatprep.subr.mxu0 0.0
      %1751 = vmatpush1.msra.mxu0 0.0
      %1752 = vmatprep.subr.mxu0 0.0
      %1753 = vmatpush1.msra.mxu0 0.0
      %1754 = vmatprep.subr.mxu0 0.0
      %1755 = vmatpush1.msra.mxu0 0.0
      %1756 = vmatprep.subr.mxu0 0.0
      %1757 = vmatpush1.msra.mxu0 0.0
      %1758 = vmatprep.subr.mxu0 0.0
      %1759 = vmatpush1.msra.mxu0 0.0
      %1760 = vmatprep.subr.mxu0 0.0
      %1761 = vmatpush1.msra.mxu0 0.0
      %1762 = vmatprep.subr.mxu0 0.0
      %1763 = vmatpush1.msra.mxu0 0.0
      %1764 = vmatprep.subr.mxu0 0.0
      %1765 = vmatpush1.msra.mxu0 0.0
      %1766 = vmatprep.subr.mxu0 0.0
      %1767 = vmatpush1.msra.mxu0 0.0
      %1768 = vmatprep.subr.mxu0 0.0
      %1769 = vmatpush1.msra.mxu0 0.0
      %1770 = vmatprep.subr.mxu0 0.0
      %1771 = vmatpush1.msra.mxu0 0.0
      %1772 = vmatprep.subr.mxu0 0.0
      %1773 = vmatpush1.msra.mxu0 0.0
      %1774 = vmatprep.subr.mxu0 0.0
      %1775 = vmatpush1.msra.mxu0 0.0
      %1776 = vmatprep.subr.mxu0 0.0
      %1777 = vmatpush1.msra.mxu0 0.0
      %1778 = vmatprep.subr.mxu0 0.0
      %1779 = vmatpush1.msra.mxu0 0.0
      %1780 = vmatprep.subr.mxu0 0.0
      %1781 = vmatpush1.msra.mxu0 0.0
      %1782 = vmatprep.subr.mxu0 0.0
      %1783 = vmatpush1.msra.mxu0 0.0
      %1784 = vmatprep.subr.mxu0 0.0
      %1785 = vmatpush1.msra.mxu0 0.0
      %1786 = vmatprep.subr.mxu0 0.0
      %1787 = vmatpush1.msra.mxu0 0.0
      %1788 = vmatprep.subr.mxu0 0.0
      %1789 = vmatpush1.msra.mxu0 0.0
      %1790 = vmatprep.subr.mxu0 0.0
      %1791 = vmatpush1.msra.mxu0 0.0
      %1792 = vmatprep.subr.mxu0 0.0
      %1793 = vmatpush1.msra.mxu0 0.0
      %1794 = vmatprep.subr.mxu0 0.0
      %1795 = vmatpush1.msra.mxu0 0.0
      %1796 = vmatprep.subr.mxu0 0.0
      %1797 = vmatpush1.msra.mxu0 0.0
      %1798 = vmatprep.mubr.f32.mxu0 0.0
      %1799 = vmatmul.mubr.f32.gmra.mrb[0].mxu0 %v1729
      %v1800 = vpop.f32.mrb[0].mxu0
      %v1801 = vadd.f32 0.0, %v1800
      %v1802 = vpop.f32.mrb[0].mxu0
      %1803 = vmatprep.mubr.f32.mxu0 0.0
      %1804 = vmatmul.mubr.f32.gmra.mrb[0].mxu0 %v1732
      %v1805 = vpop.f32.mrb[0].mxu0
      %v1806 = vadd.f32 0.0, %v1805
      %v1807 = vpop.f32.mrb[0].mxu0
      %1808 = vdwg.mxu0
      %v1809 = vadd.f32 %v1639, %v1801
      %v1810 = vadd.f32 %v1640, %v1806
      %s1811 = scalar_lea.vmem %s2, 96
      %v1812 = vld [vmem:[%s1811] sm:$0xff]
      %v1813 = vld [vmem:[%s1811 + $0x8] sm:$0x3]
      %v1815 = vsel %vm509, %v1812, 0
      %v1818 = vsel %vm509, %v1813, 0
      %1820 = vmatprep.subr.mxu0 0.0
      %1821 = vmatpush1.msra.mxu0 %v781
      %1822 = vmatprep.subr.mxu0 0.0
      %1823 = vmatpush1.msra.mxu0 %v783
      %1824 = vmatprep.subr.mxu0 0.0
      %1825 = vmatpush1.msra.mxu0 %v785
      %1826 = vmatprep.subr.mxu0 0.0
      %1827 = vmatpush1.msra.mxu0 %v787
      %1828 = vmatprep.subr.mxu0 0.0
      %1829 = vmatpush1.msra.mxu0 %v789
      %1830 = vmatprep.subr.mxu0 0.0
      %1831 = vmatpush1.msra.mxu0 %v791
      %1832 = vmatprep.subr.mxu0 0.0
      %1833 = vmatpush1.msra.mxu0 %v803
      %1834 = vmatprep.subr.mxu0 0.0
      %1835 = vmatpush1.msra.mxu0 0.0
      %1836 = vmatprep.subr.mxu0 0.0
      %1837 = vmatpush1.msra.mxu0 0.0
      %1838 = vmatprep.subr.mxu0 0.0
      %1839 = vmatpush1.msra.mxu0 0.0
      %1840 = vmatprep.subr.mxu0 0.0
      %1841 = vmatpush1.msra.mxu0 0.0
      %1842 = vmatprep.subr.mxu0 0.0
      %1843 = vmatpush1.msra.mxu0 0.0
      %1844 = vmatprep.subr.mxu0 0.0
      %1845 = vmatpush1.msra.mxu0 0.0
      %1846 = vmatprep.subr.mxu0 0.0
      %1847 = vmatpush1.msra.mxu0 0.0
      %1848 = vmatprep.subr.mxu0 0.0
      %1849 = vmatpush1.msra.mxu0 0.0
      %1850 = vmatprep.subr.mxu0 0.0
      %1851 = vmatpush1.msra.mxu0 0.0
      %1852 = vmatprep.subr.mxu0 0.0
      %1853 = vmatpush1.msra.mxu0 0.0
      %1854 = vmatprep.subr.mxu0 0.0
      %1855 = vmatpush1.msra.mxu0 0.0
      %1856 = vmatprep.subr.mxu0 0.0
      %1857 = vmatpush1.msra.mxu0 0.0
      %1858 = vmatprep.subr.mxu0 0.0
      %1859 = vmatpush1.msra.mxu0 0.0
      %1860 = vmatprep.subr.mxu0 0.0
      %1861 = vmatpush1.msra.mxu0 0.0
      %1862 = vmatprep.subr.mxu0 0.0
      %1863 = vmatpush1.msra.mxu0 0.0
      %1864 = vmatprep.subr.mxu0 0.0
      %1865 = vmatpush1.msra.mxu0 0.0
      %1866 = vmatprep.subr.mxu0 0.0
      %1867 = vmatpush1.msra.mxu0 0.0
      %1868 = vmatprep.subr.mxu0 0.0
      %1869 = vmatpush1.msra.mxu0 0.0
      %1870 = vmatprep.subr.mxu0 0.0
      %1871 = vmatpush1.msra.mxu0 0.0
      %1872 = vmatprep.subr.mxu0 0.0
      %1873 = vmatpush1.msra.mxu0 0.0
      %1874 = vmatprep.subr.mxu0 0.0
      %1875 = vmatpush1.msra.mxu0 0.0
      %1876 = vmatprep.subr.mxu0 0.0
      %1877 = vmatpush1.msra.mxu0 0.0
      %1878 = vmatprep.subr.mxu0 0.0
      %1879 = vmatpush1.msra.mxu0 0.0
      %1880 = vmatprep.subr.mxu0 0.0
      %1881 = vmatpush1.msra.mxu0 0.0
      %1882 = vmatprep.subr.mxu0 0.0
      %1883 = vmatpush1.msra.mxu0 0.0
      %1884 = vmatprep.mubr.f32.mxu0 0.0
      %1885 = vmatmul.mubr.f32.gmra.mrb[0].mxu0 %v1815
      %v1886 = vpop.f32.mrb[0].mxu0
      %v1887 = vadd.f32 0.0, %v1886
      %v1888 = vpop.f32.mrb[0].mxu0
      %1889 = vmatprep.mubr.f32.mxu0 0.0
      %1890 = vmatmul.mubr.f32.gmra.mrb[0].mxu0 %v1818
      %v1891 = vpop.f32.mrb[0].mxu0
      %v1892 = vadd.f32 0.0, %v1891
      %v1893 = vpop.f32.mrb[0].mxu0
      %1894 = vdwg.mxu0
      %s1895 = scalar_lea.vmem %s5, 96
      %v1896 = vld [vmem:[%s1895] sm:$0xff]
      %v1897 = vld [vmem:[%s1895 + $0x8] sm:$0xff]
      %v1899 = vsel %vm644, %v1887, 0
      %v1902 = vsel %vm644, %v1892, 0
      %1904 = vmatprep.subr.mxu0 0.0
      %1905 = vmatpush1.msra.mxu0 %v1896
      %1906 = vmatprep.subr.mxu0 0.0
      %1907 = vmatpush1.msra.mxu0 %v1897
      %1908 = vmatprep.subr.mxu0 0.0
      %1909 = vmatpush1.msra.mxu0 0.0
      %1910 = vmatprep.subr.mxu0 0.0
      %1911 = vmatpush1.msra.mxu0 0.0
      %1912 = vmatprep.subr.mxu0 0.0
      %1913 = vmatpush1.msra.mxu0 0.0
      %1914 = vmatprep.subr.mxu0 0.0
      %1915 = vmatpush1.msra.mxu0 0.0
      %1916 = vmatprep.subr.mxu0 0.0
      %1917 = vmatpush1.msra.mxu0 0.0
      %1918 = vmatprep.subr.mxu0 0.0
      %1919 = vmatpush1.msra.mxu0 0.0
      %1920 = vmatprep.subr.mxu0 0.0
      %1921 = vmatpush1.msra.mxu0 0.0
      %1922 = vmatprep.subr.mxu0 0.0
      %1923 = vmatpush1.msra.mxu0 0.0
      %1924 = vmatprep.subr.mxu0 0.0
      %1925 = vmatpush1.msra.mxu0 0.0
      %1926 = vmatprep.subr.mxu0 0.0
      %1927 = vmatpush1.msra.mxu0 0.0
      %1928 = vmatprep.subr.mxu0 0.0
      %1929 = vmatpush1.msra.mxu0 0.0
      %1930 = vmatprep.subr.mxu0 0.0
      %1931 = vmatpush1.msra.mxu0 0.0
      %1932 = vmatprep.subr.mxu0 0.0
      %1933 = vmatpush1.msra.mxu0 0.0
      %1934 = vmatprep.subr.mxu0 0.0
      %1935 = vmatpush1.msra.mxu0 0.0
      %1936 = vmatprep.subr.mxu0 0.0
      %1937 = vmatpush1.msra.mxu0 0.0
      %1938 = vmatprep.subr.mxu0 0.0
      %1939 = vmatpush1.msra.mxu0 0.0
      %1940 = vmatprep.subr.mxu0 0.0
      %1941 = vmatpush1.msra.mxu0 0.0
      %1942 = vmatprep.subr.mxu0 0.0
      %1943 = vmatpush1.msra.mxu0 0.0
      %1944 = vmatprep.subr.mxu0 0.0
      %1945 = vmatpush1.msra.mxu0 0.0
      %1946 = vmatprep.subr.mxu0 0.0
      %1947 = vmatpush1.msra.mxu0 0.0
      %1948 = vmatprep.subr.mxu0 0.0
      %1949 = vmatpush1.msra.mxu0 0.0
      %1950 = vmatprep.subr.mxu0 0.0
      %1951 = vmatpush1.msra.mxu0 0.0
      %1952 = vmatprep.subr.mxu0 0.0
      %1953 = vmatpush1.msra.mxu0 0.0
      %1954 = vmatprep.subr.mxu0 0.0
      %1955 = vmatpush1.msra.mxu0 0.0
      %1956 = vmatprep.subr.mxu0 0.0
      %1957 = vmatpush1.msra.mxu0 0.0
      %1958 = vmatprep.subr.mxu0 0.0
      %1959 = vmatpush1.msra.mxu0 0.0
      %1960 = vmatprep.subr.mxu0 0.0
      %1961 = vmatpush1.msra.mxu0 0.0
      %1962 = vmatprep.subr.mxu0 0.0
      %1963 = vmatpush1.msra.mxu0 0.0
      %1964 = vmatprep.subr.mxu0 0.0
      %1965 = vmatpush1.msra.mxu0 0.0
      %1966 = vmatprep.subr.mxu0 0.0
      %1967 = vmatpush1.msra.mxu0 0.0
      %1968 = vmatprep.mubr.f32.mxu0 0.0
      %1969 = vmatmul.mubr.f32.gmra.mrb[0].mxu0 %v1899
      %v1970 = vpop.f32.mrb[0].mxu0
      %v1971 = vadd.f32 0.0, %v1970
      %v1972 = vpop.f32.mrb[0].mxu0
      %1973 = vmatprep.mubr.f32.mxu0 0.0
      %1974 = vmatmul.mubr.f32.gmra.mrb[0].mxu0 %v1902
      %v1975 = vpop.f32.mrb[0].mxu0
      %v1976 = vadd.f32 0.0, %v1975
      %v1977 = vpop.f32.mrb[0].mxu0
      %1978 = vdwg.mxu0
      %v1979 = vadd.f32 %v1809, %v1971
      %v1980 = vadd.f32 %v1810, %v1976
      %s1981 = scalar_lea.vmem %s2, 112
      %v1982 = vld [vmem:[%s1981] sm:$0xff]
      %v1983 = vld [vmem:[%s1981 + $0x8] sm:$0x3]
      %v1985 = vsel %vm509, %v1982, 0
      %v1988 = vsel %vm509, %v1983, 0
      %1990 = vmatprep.subr.mxu0 0.0
      %1991 = vmatpush1.msra.mxu0 %v781
      %1992 = vmatprep.subr.mxu0 0.0
      %1993 = vmatpush1.msra.mxu0 %v783
      %1994 = vmatprep.subr.mxu0 0.0
      %1995 = vmatpush1.msra.mxu0 %v785
      %1996 = vmatprep.subr.mxu0 0.0
      %1997 = vmatpush1.msra.mxu0 %v787
      %1998 = vmatprep.subr.mxu0 0.0
      %1999 = vmatpush1.msra.mxu0 %v789
      %2000 = vmatprep.subr.mxu0 0.0
      %2001 = vmatpush1.msra.mxu0 %v791
      %2002 = vmatprep.subr.mxu0 0.0
      %2003 = vmatpush1.msra.mxu0 %v803
      %2004 = vmatprep.subr.mxu0 0.0
      %2005 = vmatpush1.msra.mxu0 0.0
      %2006 = vmatprep.subr.mxu0 0.0
      %2007 = vmatpush1.msra.mxu0 0.0
      %2008 = vmatprep.subr.mxu0 0.0
      %2009 = vmatpush1.msra.mxu0 0.0
      %2010 = vmatprep.subr.mxu0 0.0
      %2011 = vmatpush1.msra.mxu0 0.0
      %2012 = vmatprep.subr.mxu0 0.0
      %2013 = vmatpush1.msra.mxu0 0.0
      %2014 = vmatprep.subr.mxu0 0.0
      %2015 = vmatpush1.msra.mxu0 0.0
      %2016 = vmatprep.subr.mxu0 0.0
      %2017 = vmatpush1.msra.mxu0 0.0
      %2018 = vmatprep.subr.mxu0 0.0
      %2019 = vmatpush1.msra.mxu0 0.0
      %2020 = vmatprep.subr.mxu0 0.0
      %2021 = vmatpush1.msra.mxu0 0.0
      %2022 = vmatprep.subr.mxu0 0.0
      %2023 = vmatpush1.msra.mxu0 0.0
      %2024 = vmatprep.subr.mxu0 0.0
      %2025 = vmatpush1.msra.mxu0 0.0
      %2026 = vmatprep.subr.mxu0 0.0
      %2027 = vmatpush1.msra.mxu0 0.0
      %2028 = vmatprep.subr.mxu0 0.0
      %2029 = vmatpush1.msra.mxu0 0.0
      %2030 = vmatprep.subr.mxu0 0.0
      %2031 = vmatpush1.msra.mxu0 0.0
      %2032 = vmatprep.subr.mxu0 0.0
      %2033 = vmatpush1.msra.mxu0 0.0
      %2034 = vmatprep.subr.mxu0 0.0
      %2035 = vmatpush1.msra.mxu0 0.0
      %2036 = vmatprep.subr.mxu0 0.0
      %2037 = vmatpush1.msra.mxu0 0.0
      %2038 = vmatprep.subr.mxu0 0.0
      %2039 = vmatpush1.msra.mxu0 0.0
      %2040 = vmatprep.subr.mxu0 0.0
      %2041 = vmatpush1.msra.mxu0 0.0
      %2042 = vmatprep.subr.mxu0 0.0
      %2043 = vmatpush1.msra.mxu0 0.0
      %2044 = vmatprep.subr.mxu0 0.0
      %2045 = vmatpush1.msra.mxu0 0.0
      %2046 = vmatprep.subr.mxu0 0.0
      %2047 = vmatpush1.msra.mxu0 0.0
      %2048 = vmatprep.subr.mxu0 0.0
      %2049 = vmatpush1.msra.mxu0 0.0
      %2050 = vmatprep.subr.mxu0 0.0
      %2051 = vmatpush1.msra.mxu0 0.0
      %2052 = vmatprep.subr.mxu0 0.0
      %2053 = vmatpush1.msra.mxu0 0.0
      %2054 = vmatprep.mubr.f32.mxu0 0.0
      %2055 = vmatmul.mubr.f32.gmra.mrb[0].mxu0 %v1985
      %v2056 = vpop.f32.mrb[0].mxu0
      %v2057 = vadd.f32 0.0, %v2056
      %v2058 = vpop.f32.mrb[0].mxu0
      %2059 = vmatprep.mubr.f32.mxu0 0.0
      %2060 = vmatmul.mubr.f32.gmra.mrb[0].mxu0 %v1988
      %v2061 = vpop.f32.mrb[0].mxu0
      %v2062 = vadd.f32 0.0, %v2061
      %v2063 = vpop.f32.mrb[0].mxu0
      %2064 = vdwg.mxu0
      %s2065 = scalar_lea.vmem %s5, 112
      %v2066 = vld [vmem:[%s2065] sm:$0xff]
      %v2067 = vld [vmem:[%s2065 + $0x8] sm:$0xff]
      %v2069 = vsel %vm644, %v2057, 0
      %v2072 = vsel %vm644, %v2062, 0
      %2074 = vmatprep.subr.mxu0 0.0
      %2075 = vmatpush1.msra.mxu0 %v2066
      %2076 = vmatprep.subr.mxu0 0.0
      %2077 = vmatpush1.msra.mxu0 %v2067
      %2078 = vmatprep.subr.mxu0 0.0
      %2079 = vmatpush1.msra.mxu0 0.0
      %2080 = vmatprep.subr.mxu0 0.0
      %2081 = vmatpush1.msra.mxu0 0.0
      %2082 = vmatprep.subr.mxu0 0.0
      %2083 = vmatpush1.msra.mxu0 0.0
      %2084 = vmatprep.subr.mxu0 0.0
      %2085 = vmatpush1.msra.mxu0 0.0
      %2086 = vmatprep.subr.mxu0 0.0
      %2087 = vmatpush1.msra.mxu0 0.0
      %2088 = vmatprep.subr.mxu0 0.0
      %2089 = vmatpush1.msra.mxu0 0.0
      %2090 = vmatprep.subr.mxu0 0.0
      %2091 = vmatpush1.msra.mxu0 0.0
      %2092 = vmatprep.subr.mxu0 0.0
      %2093 = vmatpush1.msra.mxu0 0.0
      %2094 = vmatprep.subr.mxu0 0.0
      %2095 = vmatpush1.msra.mxu0 0.0
      %2096 = vmatprep.subr.mxu0 0.0
      %2097 = vmatpush1.msra.mxu0 0.0
      %2098 = vmatprep.subr.mxu0 0.0
      %2099 = vmatpush1.msra.mxu0 0.0
      %2100 = vmatprep.subr.mxu0 0.0
      %2101 = vmatpush1.msra.mxu0 0.0
      %2102 = vmatprep.subr.mxu0 0.0
      %2103 = vmatpush1.msra.mxu0 0.0
      %2104 = vmatprep.subr.mxu0 0.0
      %2105 = vmatpush1.msra.mxu0 0.0
      %2106 = vmatprep.subr.mxu0 0.0
      %2107 = vmatpush1.msra.mxu0 0.0
      %2108 = vmatprep.subr.mxu0 0.0
      %2109 = vmatpush1.msra.mxu0 0.0
      %2110 = vmatprep.subr.mxu0 0.0
      %2111 = vmatpush1.msra.mxu0 0.0
      %2112 = vmatprep.subr.mxu0 0.0
      %2113 = vmatpush1.msra.mxu0 0.0
      %2114 = vmatprep.subr.mxu0 0.0
      %2115 = vmatpush1.msra.mxu0 0.0
      %2116 = vmatprep.subr.mxu0 0.0
      %2117 = vmatpush1.msra.mxu0 0.0
      %2118 = vmatprep.subr.mxu0 0.0
      %2119 = vmatpush1.msra.mxu0 0.0
      %2120 = vmatprep.subr.mxu0 0.0
      %2121 = vmatpush1.msra.mxu0 0.0
      %2122 = vmatprep.subr.mxu0 0.0
      %2123 = vmatpush1.msra.mxu0 0.0
      %2124 = vmatprep.subr.mxu0 0.0
      %2125 = vmatpush1.msra.mxu0 0.0
      %2126 = vmatprep.subr.mxu0 0.0
      %2127 = vmatpush1.msra.mxu0 0.0
      %2128 = vmatprep.subr.mxu0 0.0
      %2129 = vmatpush1.msra.mxu0 0.0
      %2130 = vmatprep.subr.mxu0 0.0
      %2131 = vmatpush1.msra.mxu0 0.0
      %2132 = vmatprep.subr.mxu0 0.0
      %2133 = vmatpush1.msra.mxu0 0.0
      %2134 = vmatprep.subr.mxu0 0.0
      %2135 = vmatpush1.msra.mxu0 0.0
      %2136 = vmatprep.subr.mxu0 0.0
      %2137 = vmatpush1.msra.mxu0 0.0
      %2138 = vmatprep.mubr.f32.mxu0 0.0
      %2139 = vmatmul.mubr.f32.gmra.mrb[0].mxu0 %v2069
      %v2140 = vpop.f32.mrb[0].mxu0
      %v2141 = vadd.f32 0.0, %v2140
      %v2142 = vpop.f32.mrb[0].mxu0
      %2143 = vmatprep.mubr.f32.mxu0 0.0
      %2144 = vmatmul.mubr.f32.gmra.mrb[0].mxu0 %v2072
      %v2145 = vpop.f32.mrb[0].mxu0
      %v2146 = vadd.f32 0.0, %v2145
      %v2147 = vpop.f32.mrb[0].mxu0
      %2148 = vdwg.mxu0
      %v2149 = vadd.f32 %v1979, %v2141
      %v2150 = vadd.f32 %v1980, %v2146
      %s2151 = scalar_lea.vmem %s2, 128
      %v2152 = vld [vmem:[%s2151] sm:$0xff]
      %v2153 = vld [vmem:[%s2151 + $0x8] sm:$0x3]
      %v2155 = vsel %vm509, %v2152, 0
      %v2158 = vsel %vm509, %v2153, 0
      %2160 = vmatprep.subr.mxu0 0.0
      %2161 = vmatpush1.msra.mxu0 %v781
      %2162 = vmatprep.subr.mxu0 0.0
      %2163 = vmatpush1.msra.mxu0 %v783
      %2164 = vmatprep.subr.mxu0 0.0
      %2165 = vmatpush1.msra.mxu0 %v785
      %2166 = vmatprep.subr.mxu0 0.0
      %2167 = vmatpush1.msra.mxu0 %v787
      %2168 = vmatprep.subr.mxu0 0.0
      %2169 = vmatpush1.msra.mxu0 %v789
      %2170 = vmatprep.subr.mxu0 0.0
      %2171 = vmatpush1.msra.mxu0 %v791
      %2172 = vmatprep.subr.mxu0 0.0
      %2173 = vmatpush1.msra.mxu0 %v803
      %2174 = vmatprep.subr.mxu0 0.0
      %2175 = vmatpush1.msra.mxu0 0.0
      %2176 = vmatprep.subr.mxu0 0.0
      %2177 = vmatpush1.msra.mxu0 0.0
      %2178 = vmatprep.subr.mxu0 0.0
      %2179 = vmatpush1.msra.mxu0 0.0
      %2180 = vmatprep.subr.mxu0 0.0
      %2181 = vmatpush1.msra.mxu0 0.0
      %2182 = vmatprep.subr.mxu0 0.0
      %2183 = vmatpush1.msra.mxu0 0.0
      %2184 = vmatprep.subr.mxu0 0.0
      %2185 = vmatpush1.msra.mxu0 0.0
      %2186 = vmatprep.subr.mxu0 0.0
      %2187 = vmatpush1.msra.mxu0 0.0
      %2188 = vmatprep.subr.mxu0 0.0
      %2189 = vmatpush1.msra.mxu0 0.0
      %2190 = vmatprep.subr.mxu0 0.0
      %2191 = vmatpush1.msra.mxu0 0.0
      %2192 = vmatprep.subr.mxu0 0.0
      %2193 = vmatpush1.msra.mxu0 0.0
      %2194 = vmatprep.subr.mxu0 0.0
      %2195 = vmatpush1.msra.mxu0 0.0
      %2196 = vmatprep.subr.mxu0 0.0
      %2197 = vmatpush1.msra.mxu0 0.0
      %2198 = vmatprep.subr.mxu0 0.0
      %2199 = vmatpush1.msra.mxu0 0.0
      %2200 = vmatprep.subr.mxu0 0.0
      %2201 = vmatpush1.msra.mxu0 0.0
      %2202 = vmatprep.subr.mxu0 0.0
      %2203 = vmatpush1.msra.mxu0 0.0
      %2204 = vmatprep.subr.mxu0 0.0
      %2205 = vmatpush1.msra.mxu0 0.0
      %2206 = vmatprep.subr.mxu0 0.0
      %2207 = vmatpush1.msra.mxu0 0.0
      %2208 = vmatprep.subr.mxu0 0.0
      %2209 = vmatpush1.msra.mxu0 0.0
      %2210 = vmatprep.subr.mxu0 0.0
      %2211 = vmatpush1.msra.mxu0 0.0
      %2212 = vmatprep.subr.mxu0 0.0
      %2213 = vmatpush1.msra.mxu0 0.0
      %2214 = vmatprep.subr.mxu0 0.0
      %2215 = vmatpush1.msra.mxu0 0.0
      %2216 = vmatprep.subr.mxu0 0.0
      %2217 = vmatpush1.msra.mxu0 0.0
      %2218 = vmatprep.subr.mxu0 0.0
      %2219 = vmatpush1.msra.mxu0 0.0
      %2220 = vmatprep.subr.mxu0 0.0
      %2221 = vmatpush1.msra.mxu0 0.0
      %2222 = vmatprep.subr.mxu0 0.0
      %2223 = vmatpush1.msra.mxu0 0.0
      %2224 = vmatprep.mubr.f32.mxu0 0.0
      %2225 = vmatmul.mubr.f32.gmra.mrb[0].mxu0 %v2155
      %v2226 = vpop.f32.mrb[0].mxu0
      %v2227 = vadd.f32 0.0, %v2226
      %v2228 = vpop.f32.mrb[0].mxu0
      %2229 = vmatprep.mubr.f32.mxu0 0.0
      %2230 = vmatmul.mubr.f32.gmra.mrb[0].mxu0 %v2158
      %v2231 = vpop.f32.mrb[0].mxu0
      %v2232 = vadd.f32 0.0, %v2231
      %v2233 = vpop.f32.mrb[0].mxu0
      %2234 = vdwg.mxu0
      %s2235 = scalar_lea.vmem %s5, 128
      %v2236 = vld [vmem:[%s2235] sm:$0xff]
      %v2237 = vld [vmem:[%s2235 + $0x8] sm:$0xff]
      %v2239 = vsel %vm644, %v2227, 0
      %v2242 = vsel %vm644, %v2232, 0
      %2244 = vmatprep.subr.mxu0 0.0
      %2245 = vmatpush1.msra.mxu0 %v2236
      %2246 = vmatprep.subr.mxu0 0.0
      %2247 = vmatpush1.msra.mxu0 %v2237
      %2248 = vmatprep.subr.mxu0 0.0
      %2249 = vmatpush1.msra.mxu0 0.0
      %2250 = vmatprep.subr.mxu0 0.0
      %2251 = vmatpush1.msra.mxu0 0.0
      %2252 = vmatprep.subr.mxu0 0.0
      %2253 = vmatpush1.msra.mxu0 0.0
      %2254 = vmatprep.subr.mxu0 0.0
      %2255 = vmatpush1.msra.mxu0 0.0
      %2256 = vmatprep.subr.mxu0 0.0
      %2257 = vmatpush1.msra.mxu0 0.0
      %2258 = vmatprep.subr.mxu0 0.0
      %2259 = vmatpush1.msra.mxu0 0.0
      %2260 = vmatprep.subr.mxu0 0.0
      %2261 = vmatpush1.msra.mxu0 0.0
      %2262 = vmatprep.subr.mxu0 0.0
      %2263 = vmatpush1.msra.mxu0 0.0
      %2264 = vmatprep.subr.mxu0 0.0
      %2265 = vmatpush1.msra.mxu0 0.0
      %2266 = vmatprep.subr.mxu0 0.0
      %2267 = vmatpush1.msra.mxu0 0.0
      %2268 = vmatprep.subr.mxu0 0.0
      %2269 = vmatpush1.msra.mxu0 0.0
      %2270 = vmatprep.subr.mxu0 0.0
      %2271 = vmatpush1.msra.mxu0 0.0
      %2272 = vmatprep.subr.mxu0 0.0
      %2273 = vmatpush1.msra.mxu0 0.0
      %2274 = vmatprep.subr.mxu0 0.0
      %2275 = vmatpush1.msra.mxu0 0.0
      %2276 = vmatprep.subr.mxu0 0.0
      %2277 = vmatpush1.msra.mxu0 0.0
      %2278 = vmatprep.subr.mxu0 0.0
      %2279 = vmatpush1.msra.mxu0 0.0
      %2280 = vmatprep.subr.mxu0 0.0
      %2281 = vmatpush1.msra.mxu0 0.0
      %2282 = vmatprep.subr.mxu0 0.0
      %2283 = vmatpush1.msra.mxu0 0.0
      %2284 = vmatprep.subr.mxu0 0.0
      %2285 = vmatpush1.msra.mxu0 0.0
      %2286 = vmatprep.subr.mxu0 0.0
      %2287 = vmatpush1.msra.mxu0 0.0
      %2288 = vmatprep.subr.mxu0 0.0
      %2289 = vmatpush1.msra.mxu0 0.0
      %2290 = vmatprep.subr.mxu0 0.0
      %2291 = vmatpush1.msra.mxu0 0.0
      %2292 = vmatprep.subr.mxu0 0.0
      %2293 = vmatpush1.msra.mxu0 0.0
      %2294 = vmatprep.subr.mxu0 0.0
      %2295 = vmatpush1.msra.mxu0 0.0
      %2296 = vmatprep.subr.mxu0 0.0
      %2297 = vmatpush1.msra.mxu0 0.0
      %2298 = vmatprep.subr.mxu0 0.0
      %2299 = vmatpush1.msra.mxu0 0.0
      %2300 = vmatprep.subr.mxu0 0.0
      %2301 = vmatpush1.msra.mxu0 0.0
      %2302 = vmatprep.subr.mxu0 0.0
      %2303 = vmatpush1.msra.mxu0 0.0
      %2304 = vmatprep.subr.mxu0 0.0
      %2305 = vmatpush1.msra.mxu0 0.0
      %2306 = vmatprep.subr.mxu0 0.0
      %2307 = vmatpush1.msra.mxu0 0.0
      %2308 = vmatprep.mubr.f32.mxu0 0.0
      %2309 = vmatmul.mubr.f32.gmra.mrb[0].mxu0 %v2239
      %v2310 = vpop.f32.mrb[0].mxu0
      %v2311 = vadd.f32 0.0, %v2310
      %v2312 = vpop.f32.mrb[0].mxu0
      %2313 = vmatprep.mubr.f32.mxu0 0.0
      %2314 = vmatmul.mubr.f32.gmra.mrb[0].mxu0 %v2242
      %v2315 = vpop.f32.mrb[0].mxu0
      %v2316 = vadd.f32 0.0, %v2315
      %v2317 = vpop.f32.mrb[0].mxu0
      %2318 = vdwg.mxu0
      %v2319 = vadd.f32 %v2149, %v2311
      %v2320 = vadd.f32 %v2150, %v2316
      %s2321 = scalar_lea.vmem %s2, 144
      %v2322 = vld [vmem:[%s2321] sm:$0xff]
      %v2323 = vld [vmem:[%s2321 + $0x8] sm:$0x3]
      %v2325 = vsel %vm509, %v2322, 0
      %v2328 = vsel %vm509, %v2323, 0
      %2330 = vmatprep.subr.mxu0 0.0
      %2331 = vmatpush1.msra.mxu0 %v781
      %2332 = vmatprep.subr.mxu0 0.0
      %2333 = vmatpush1.msra.mxu0 %v783
      %2334 = vmatprep.subr.mxu0 0.0
      %2335 = vmatpush1.msra.mxu0 %v785
      %2336 = vmatprep.subr.mxu0 0.0
      %2337 = vmatpush1.msra.mxu0 %v787
      %2338 = vmatprep.subr.mxu0 0.0
      %2339 = vmatpush1.msra.mxu0 %v789
      %2340 = vmatprep.subr.mxu0 0.0
      %2341 = vmatpush1.msra.mxu0 %v791
      %2342 = vmatprep.subr.mxu0 0.0
      %2343 = vmatpush1.msra.mxu0 %v803
      %2344 = vmatprep.subr.mxu0 0.0
      %2345 = vmatpush1.msra.mxu0 0.0
      %2346 = vmatprep.subr.mxu0 0.0
      %2347 = vmatpush1.msra.mxu0 0.0
      %2348 = vmatprep.subr.mxu0 0.0
      %2349 = vmatpush1.msra.mxu0 0.0
      %2350 = vmatprep.subr.mxu0 0.0
      %2351 = vmatpush1.msra.mxu0 0.0
      %2352 = vmatprep.subr.mxu0 0.0
      %2353 = vmatpush1.msra.mxu0 0.0
      %2354 = vmatprep.subr.mxu0 0.0
      %2355 = vmatpush1.msra.mxu0 0.0
      %2356 = vmatprep.subr.mxu0 0.0
      %2357 = vmatpush1.msra.mxu0 0.0
      %2358 = vmatprep.subr.mxu0 0.0
      %2359 = vmatpush1.msra.mxu0 0.0
      %2360 = vmatprep.subr.mxu0 0.0
      %2361 = vmatpush1.msra.mxu0 0.0
      %2362 = vmatprep.subr.mxu0 0.0
      %2363 = vmatpush1.msra.mxu0 0.0
      %2364 = vmatprep.subr.mxu0 0.0
      %2365 = vmatpush1.msra.mxu0 0.0
      %2366 = vmatprep.subr.mxu0 0.0
      %2367 = vmatpush1.msra.mxu0 0.0
      %2368 = vmatprep.subr.mxu0 0.0
      %2369 = vmatpush1.msra.mxu0 0.0
      %2370 = vmatprep.subr.mxu0 0.0
      %2371 = vmatpush1.msra.mxu0 0.0
      %2372 = vmatprep.subr.mxu0 0.0
      %2373 = vmatpush1.msra.mxu0 0.0
      %2374 = vmatprep.subr.mxu0 0.0
      %2375 = vmatpush1.msra.mxu0 0.0
      %2376 = vmatprep.subr.mxu0 0.0
      %2377 = vmatpush1.msra.mxu0 0.0
      %2378 = vmatprep.subr.mxu0 0.0
      %2379 = vmatpush1.msra.mxu0 0.0
      %2380 = vmatprep.subr.mxu0 0.0
      %2381 = vmatpush1.msra.mxu0 0.0
      %2382 = vmatprep.subr.mxu0 0.0
      %2383 = vmatpush1.msra.mxu0 0.0
      %2384 = vmatprep.subr.mxu0 0.0
      %2385 = vmatpush1.msra.mxu0 0.0
      %2386 = vmatprep.subr.mxu0 0.0
      %2387 = vmatpush1.msra.mxu0 0.0
      %2388 = vmatprep.subr.mxu0 0.0
      %2389 = vmatpush1.msra.mxu0 0.0
      %2390 = vmatprep.subr.mxu0 0.0
      %2391 = vmatpush1.msra.mxu0 0.0
      %2392 = vmatprep.subr.mxu0 0.0
      %2393 = vmatpush1.msra.mxu0 0.0
      %2394 = vmatprep.mubr.f32.mxu0 0.0
      %2395 = vmatmul.mubr.f32.gmra.mrb[0].mxu0 %v2325
      %v2396 = vpop.f32.mrb[0].mxu0
      %v2397 = vadd.f32 0.0, %v2396
      %v2398 = vpop.f32.mrb[0].mxu0
      %2399 = vmatprep.mubr.f32.mxu0 0.0
      %2400 = vmatmul.mubr.f32.gmra.mrb[0].mxu0 %v2328
      %v2401 = vpop.f32.mrb[0].mxu0
      %v2402 = vadd.f32 0.0, %v2401
      %v2403 = vpop.f32.mrb[0].mxu0
      %2404 = vdwg.mxu0
      %s2405 = scalar_lea.vmem %s5, 144
      %v2406 = vld [vmem:[%s2405] sm:$0xff]
      %v2407 = vld [vmem:[%s2405 + $0x8] sm:$0xff]
      %v2409 = vsel %vm644, %v2397, 0
      %v2412 = vsel %vm644, %v2402, 0
      %2414 = vmatprep.subr.mxu0 0.0
      %2415 = vmatpush1.msra.mxu0 %v2406
      %2416 = vmatprep.subr.mxu0 0.0
      %2417 = vmatpush1.msra.mxu0 %v2407
      %2418 = vmatprep.subr.mxu0 0.0
      %2419 = vmatpush1.msra.mxu0 0.0
      %2420 = vmatprep.subr.mxu0 0.0
      %2421 = vmatpush1.msra.mxu0 0.0
      %2422 = vmatprep.subr.mxu0 0.0
      %2423 = vmatpush1.msra.mxu0 0.0
      %2424 = vmatprep.subr.mxu0 0.0
      %2425 = vmatpush1.msra.mxu0 0.0
      %2426 = vmatprep.subr.mxu0 0.0
      %2427 = vmatpush1.msra.mxu0 0.0
      %2428 = vmatprep.subr.mxu0 0.0
      %2429 = vmatpush1.msra.mxu0 0.0
      %2430 = vmatprep.subr.mxu0 0.0
      %2431 = vmatpush1.msra.mxu0 0.0
      %2432 = vmatprep.subr.mxu0 0.0
      %2433 = vmatpush1.msra.mxu0 0.0
      %2434 = vmatprep.subr.mxu0 0.0
      %2435 = vmatpush1.msra.mxu0 0.0
      %2436 = vmatprep.subr.mxu0 0.0
      %2437 = vmatpush1.msra.mxu0 0.0
      %2438 = vmatprep.subr.mxu0 0.0
      %2439 = vmatpush1.msra.mxu0 0.0
      %2440 = vmatprep.subr.mxu0 0.0
      %2441 = vmatpush1.msra.mxu0 0.0
      %2442 = vmatprep.subr.mxu0 0.0
      %2443 = vmatpush1.msra.mxu0 0.0
      %2444 = vmatprep.subr.mxu0 0.0
      %2445 = vmatpush1.msra.mxu0 0.0
      %2446 = vmatprep.subr.mxu0 0.0
      %2447 = vmatpush1.msra.mxu0 0.0
      %2448 = vmatprep.subr.mxu0 0.0
      %2449 = vmatpush1.msra.mxu0 0.0
      %2450 = vmatprep.subr.mxu0 0.0
      %2451 = vmatpush1.msra.mxu0 0.0
      %2452 = vmatprep.subr.mxu0 0.0
      %2453 = vmatpush1.msra.mxu0 0.0
      %2454 = vmatprep.subr.mxu0 0.0
      %2455 = vmatpush1.msra.mxu0 0.0
      %2456 = vmatprep.subr.mxu0 0.0
      %2457 = vmatpush1.msra.mxu0 0.0
      %2458 = vmatprep.subr.mxu0 0.0
      %2459 = vmatpush1.msra.mxu0 0.0
      %2460 = vmatprep.subr.mxu0 0.0
      %2461 = vmatpush1.msra.mxu0 0.0
      %2462 = vmatprep.subr.mxu0 0.0
      %2463 = vmatpush1.msra.mxu0 0.0
      %2464 = vmatprep.subr.mxu0 0.0
      %2465 = vmatpush1.msra.mxu0 0.0
      %2466 = vmatprep.subr.mxu0 0.0
      %2467 = vmatpush1.msra.mxu0 0.0
      %2468 = vmatprep.subr.mxu0 0.0
      %2469 = vmatpush1.msra.mxu0 0.0
      %2470 = vmatprep.subr.mxu0 0.0
      %2471 = vmatpush1.msra.mxu0 0.0
      %2472 = vmatprep.subr.mxu0 0.0
      %2473 = vmatpush1.msra.mxu0 0.0
      %2474 = vmatprep.subr.mxu0 0.0
      %2475 = vmatpush1.msra.mxu0 0.0
      %2476 = vmatprep.subr.mxu0 0.0
      %2477 = vmatpush1.msra.mxu0 0.0
      %2478 = vmatprep.mubr.f32.mxu0 0.0
      %2479 = vmatmul.mubr.f32.gmra.mrb[0].mxu0 %v2409
      %v2480 = vpop.f32.mrb[0].mxu0
      %v2481 = vadd.f32 0.0, %v2480
      %v2482 = vpop.f32.mrb[0].mxu0
      %2483 = vmatprep.mubr.f32.mxu0 0.0
      %2484 = vmatmul.mubr.f32.gmra.mrb[0].mxu0 %v2412
      %v2485 = vpop.f32.mrb[0].mxu0
      %v2486 = vadd.f32 0.0, %v2485
      %v2487 = vpop.f32.mrb[0].mxu0
      %2488 = vdwg.mxu0
      %v2489 = vadd.f32 %v2319, %v2481
      %v2490 = vadd.f32 %v2320, %v2486
      %s2491 = scalar_lea.vmem %s2, 160
      %v2492 = vld [vmem:[%s2491] sm:$0xff]
      %v2493 = vld [vmem:[%s2491 + $0x8] sm:$0x3]
      %v2495 = vsel %vm509, %v2492, 0
      %v2498 = vsel %vm509, %v2493, 0
      %2500 = vmatprep.subr.mxu0 0.0
      %2501 = vmatpush1.msra.mxu0 %v781
      %2502 = vmatprep.subr.mxu0 0.0
      %2503 = vmatpush1.msra.mxu0 %v783
      %2504 = vmatprep.subr.mxu0 0.0
      %2505 = vmatpush1.msra.mxu0 %v785
      %2506 = vmatprep.subr.mxu0 0.0
      %2507 = vmatpush1.msra.mxu0 %v787
      %2508 = vmatprep.subr.mxu0 0.0
      %2509 = vmatpush1.msra.mxu0 %v789
      %2510 = vmatprep.subr.mxu0 0.0
      %2511 = vmatpush1.msra.mxu0 %v791
      %2512 = vmatprep.subr.mxu0 0.0
      %2513 = vmatpush1.msra.mxu0 %v803
      %2514 = vmatprep.subr.mxu0 0.0
      %2515 = vmatpush1.msra.mxu0 0.0
      %2516 = vmatprep.subr.mxu0 0.0
      %2517 = vmatpush1.msra.mxu0 0.0
      %2518 = vmatprep.subr.mxu0 0.0
      %2519 = vmatpush1.msra.mxu0 0.0
      %2520 = vmatprep.subr.mxu0 0.0
      %2521 = vmatpush1.msra.mxu0 0.0
      %2522 = vmatprep.subr.mxu0 0.0
      %2523 = vmatpush1.msra.mxu0 0.0
      %2524 = vmatprep.subr.mxu0 0.0
      %2525 = vmatpush1.msra.mxu0 0.0
      %2526 = vmatprep.subr.mxu0 0.0
      %2527 = vmatpush1.msra.mxu0 0.0
      %2528 = vmatprep.subr.mxu0 0.0
      %2529 = vmatpush1.msra.mxu0 0.0
      %2530 = vmatprep.subr.mxu0 0.0
      %2531 = vmatpush1.msra.mxu0 0.0
      %2532 = vmatprep.subr.mxu0 0.0
      %2533 = vmatpush1.msra.mxu0 0.0
      %2534 = vmatprep.subr.mxu0 0.0
      %2535 = vmatpush1.msra.mxu0 0.0
      %2536 = vmatprep.subr.mxu0 0.0
      %2537 = vmatpush1.msra.mxu0 0.0
      %2538 = vmatprep.subr.mxu0 0.0
      %2539 = vmatpush1.msra.mxu0 0.0
      %2540 = vmatprep.subr.mxu0 0.0
      %2541 = vmatpush1.msra.mxu0 0.0
      %2542 = vmatprep.subr.mxu0 0.0
      %2543 = vmatpush1.msra.mxu0 0.0
      %2544 = vmatprep.subr.mxu0 0.0
      %2545 = vmatpush1.msra.mxu0 0.0
      %2546 = vmatprep.subr.mxu0 0.0
      %2547 = vmatpush1.msra.mxu0 0.0
      %2548 = vmatprep.subr.mxu0 0.0
      %2549 = vmatpush1.msra.mxu0 0.0
      %2550 = vmatprep.subr.mxu0 0.0
      %2551 = vmatpush1.msra.mxu0 0.0
      %2552 = vmatprep.subr.mxu0 0.0
      %2553 = vmatpush1.msra.mxu0 0.0
      %2554 = vmatprep.subr.mxu0 0.0
      %2555 = vmatpush1.msra.mxu0 0.0
      %2556 = vmatprep.subr.mxu0 0.0
      %2557 = vmatpush1.msra.mxu0 0.0
      %2558 = vmatprep.subr.mxu0 0.0
      %2559 = vmatpush1.msra.mxu0 0.0
      %2560 = vmatprep.subr.mxu0 0.0
      %2561 = vmatpush1.msra.mxu0 0.0
      %2562 = vmatprep.subr.mxu0 0.0
      %2563 = vmatpush1.msra.mxu0 0.0
      %2564 = vmatprep.mubr.f32.mxu0 0.0
      %2565 = vmatmul.mubr.f32.gmra.mrb[0].mxu0 %v2495
      %v2566 = vpop.f32.mrb[0].mxu0
      %v2567 = vadd.f32 0.0, %v2566
      %v2568 = vpop.f32.mrb[0].mxu0
      %2569 = vmatprep.mubr.f32.mxu0 0.0
      %2570 = vmatmul.mubr.f32.gmra.mrb[0].mxu0 %v2498
      %v2571 = vpop.f32.mrb[0].mxu0
      %v2572 = vadd.f32 0.0, %v2571
      %v2573 = vpop.f32.mrb[0].mxu0
      %2574 = vdwg.mxu0
      %s2575 = scalar_lea.vmem %s5, 160
      %v2576 = vld [vmem:[%s2575] sm:$0xff]
      %v2577 = vld [vmem:[%s2575 + $0x8] sm:$0xff]
      %v2579 = vsel %vm644, %v2567, 0
      %v2582 = vsel %vm644, %v2572, 0
      %2584 = vmatprep.subr.mxu0 0.0
      %2585 = vmatpush1.msra.mxu0 %v2576
      %2586 = vmatprep.subr.mxu0 0.0
      %2587 = vmatpush1.msra.mxu0 %v2577
      %2588 = vmatprep.subr.mxu0 0.0
      %2589 = vmatpush1.msra.mxu0 0.0
      %2590 = vmatprep.subr.mxu0 0.0
      %2591 = vmatpush1.msra.mxu0 0.0
      %2592 = vmatprep.subr.mxu0 0.0
      %2593 = vmatpush1.msra.mxu0 0.0
      %2594 = vmatprep.subr.mxu0 0.0
      %2595 = vmatpush1.msra.mxu0 0.0
      %2596 = vmatprep.subr.mxu0 0.0
      %2597 = vmatpush1.msra.mxu0 0.0
      %2598 = vmatprep.subr.mxu0 0.0
      %2599 = vmatpush1.msra.mxu0 0.0
      %2600 = vmatprep.subr.mxu0 0.0
      %2601 = vmatpush1.msra.mxu0 0.0
      %2602 = vmatprep.subr.mxu0 0.0
      %2603 = vmatpush1.msra.mxu0 0.0
      %2604 = vmatprep.subr.mxu0 0.0
      %2605 = vmatpush1.msra.mxu0 0.0
      %2606 = vmatprep.subr.mxu0 0.0
      %2607 = vmatpush1.msra.mxu0 0.0
      %2608 = vmatprep.subr.mxu0 0.0
      %2609 = vmatpush1.msra.mxu0 0.0
      %2610 = vmatprep.subr.mxu0 0.0
      %2611 = vmatpush1.msra.mxu0 0.0
      %2612 = vmatprep.subr.mxu0 0.0
      %2613 = vmatpush1.msra.mxu0 0.0
      %2614 = vmatprep.subr.mxu0 0.0
      %2615 = vmatpush1.msra.mxu0 0.0
      %2616 = vmatprep.subr.mxu0 0.0
      %2617 = vmatpush1.msra.mxu0 0.0
      %2618 = vmatprep.subr.mxu0 0.0
      %2619 = vmatpush1.msra.mxu0 0.0
      %2620 = vmatprep.subr.mxu0 0.0
      %2621 = vmatpush1.msra.mxu0 0.0
      %2622 = vmatprep.subr.mxu0 0.0
      %2623 = vmatpush1.msra.mxu0 0.0
      %2624 = vmatprep.subr.mxu0 0.0
      %2625 = vmatpush1.msra.mxu0 0.0
      %2626 = vmatprep.subr.mxu0 0.0
      %2627 = vmatpush1.msra.mxu0 0.0
      %2628 = vmatprep.subr.mxu0 0.0
      %2629 = vmatpush1.msra.mxu0 0.0
      %2630 = vmatprep.subr.mxu0 0.0
      %2631 = vmatpush1.msra.mxu0 0.0
      %2632 = vmatprep.subr.mxu0 0.0
      %2633 = vmatpush1.msra.mxu0 0.0
      %2634 = vmatprep.subr.mxu0 0.0
      %2635 = vmatpush1.msra.mxu0 0.0
      %2636 = vmatprep.subr.mxu0 0.0
      %2637 = vmatpush1.msra.mxu0 0.0
      %2638 = vmatprep.subr.mxu0 0.0
      %2639 = vmatpush1.msra.mxu0 0.0
      %2640 = vmatprep.subr.mxu0 0.0
      %2641 = vmatpush1.msra.mxu0 0.0
      %2642 = vmatprep.subr.mxu0 0.0
      %2643 = vmatpush1.msra.mxu0 0.0
      %2644 = vmatprep.subr.mxu0 0.0
      %2645 = vmatpush1.msra.mxu0 0.0
      %2646 = vmatprep.subr.mxu0 0.0
      %2647 = vmatpush1.msra.mxu0 0.0
      %2648 = vmatprep.mubr.f32.mxu0 0.0
      %2649 = vmatmul.mubr.f32.gmra.mrb[0].mxu0 %v2579
      %v2650 = vpop.f32.mrb[0].mxu0
      %v2651 = vadd.f32 0.0, %v2650
      %v2652 = vpop.f32.mrb[0].mxu0
      %2653 = vmatprep.mubr.f32.mxu0 0.0
      %2654 = vmatmul.mubr.f32.gmra.mrb[0].mxu0 %v2582
      %v2655 = vpop.f32.mrb[0].mxu0
      %v2656 = vadd.f32 0.0, %v2655
      %v2657 = vpop.f32.mrb[0].mxu0
      %2658 = vdwg.mxu0
      %v2659 = vadd.f32 %v2489, %v2651
      %v2660 = vadd.f32 %v2490, %v2656
      %s2661 = scalar_lea.vmem %s2, 176
      %v2662 = vld [vmem:[%s2661] sm:$0xff]
      %v2663 = vld [vmem:[%s2661 + $0x8] sm:$0x3]
      %v2665 = vsel %vm509, %v2662, 0
      %v2668 = vsel %vm509, %v2663, 0
      %2670 = vmatprep.subr.mxu0 0.0
      %2671 = vmatpush1.msra.mxu0 %v781
      %2672 = vmatprep.subr.mxu0 0.0
      %2673 = vmatpush1.msra.mxu0 %v783
      %2674 = vmatprep.subr.mxu0 0.0
      %2675 = vmatpush1.msra.mxu0 %v785
      %2676 = vmatprep.subr.mxu0 0.0
      %2677 = vmatpush1.msra.mxu0 %v787
      %2678 = vmatprep.subr.mxu0 0.0
      %2679 = vmatpush1.msra.mxu0 %v789
      %2680 = vmatprep.subr.mxu0 0.0
      %2681 = vmatpush1.msra.mxu0 %v791
      %2682 = vmatprep.subr.mxu0 0.0
      %2683 = vmatpush1.msra.mxu0 %v803
      %2684 = vmatprep.subr.mxu0 0.0
      %2685 = vmatpush1.msra.mxu0 0.0
      %2686 = vmatprep.subr.mxu0 0.0
      %2687 = vmatpush1.msra.mxu0 0.0
      %2688 = vmatprep.subr.mxu0 0.0
      %2689 = vmatpush1.msra.mxu0 0.0
      %2690 = vmatprep.subr.mxu0 0.0
      %2691 = vmatpush1.msra.mxu0 0.0
      %2692 = vmatprep.subr.mxu0 0.0
      %2693 = vmatpush1.msra.mxu0 0.0
      %2694 = vmatprep.subr.mxu0 0.0
      %2695 = vmatpush1.msra.mxu0 0.0
      %2696 = vmatprep.subr.mxu0 0.0
      %2697 = vmatpush1.msra.mxu0 0.0
      %2698 = vmatprep.subr.mxu0 0.0
      %2699 = vmatpush1.msra.mxu0 0.0
      %2700 = vmatprep.subr.mxu0 0.0
      %2701 = vmatpush1.msra.mxu0 0.0
      %2702 = vmatprep.subr.mxu0 0.0
      %2703 = vmatpush1.msra.mxu0 0.0
      %2704 = vmatprep.subr.mxu0 0.0
      %2705 = vmatpush1.msra.mxu0 0.0
      %2706 = vmatprep.subr.mxu0 0.0
      %2707 = vmatpush1.msra.mxu0 0.0
      %2708 = vmatprep.subr.mxu0 0.0
      %2709 = vmatpush1.msra.mxu0 0.0
      %2710 = vmatprep.subr.mxu0 0.0
      %2711 = vmatpush1.msra.mxu0 0.0
      %2712 = vmatprep.subr.mxu0 0.0
      %2713 = vmatpush1.msra.mxu0 0.0
      %2714 = vmatprep.subr.mxu0 0.0
      %2715 = vmatpush1.msra.mxu0 0.0
      %2716 = vmatprep.subr.mxu0 0.0
      %2717 = vmatpush1.msra.mxu0 0.0
      %2718 = vmatprep.subr.mxu0 0.0
      %2719 = vmatpush1.msra.mxu0 0.0
      %2720 = vmatprep.subr.mxu0 0.0
      %2721 = vmatpush1.msra.mxu0 0.0
      %2722 = vmatprep.subr.mxu0 0.0
      %2723 = vmatpush1.msra.mxu0 0.0
      %2724 = vmatprep.subr.mxu0 0.0
      %2725 = vmatpush1.msra.mxu0 0.0
      %2726 = vmatprep.subr.mxu0 0.0
      %2727 = vmatpush1.msra.mxu0 0.0
      %2728 = vmatprep.subr.mxu0 0.0
      %2729 = vmatpush1.msra.mxu0 0.0
      %2730 = vmatprep.subr.mxu0 0.0
      %2731 = vmatpush1.msra.mxu0 0.0
      %2732 = vmatprep.subr.mxu0 0.0
      %2733 = vmatpush1.msra.mxu0 0.0
      %2734 = vmatprep.mubr.f32.mxu0 0.0
      %2735 = vmatmul.mubr.f32.gmra.mrb[0].mxu0 %v2665
      %v2736 = vpop.f32.mrb[0].mxu0
      %v2737 = vadd.f32 0.0, %v2736
      %v2738 = vpop.f32.mrb[0].mxu0
      %2739 = vmatprep.mubr.f32.mxu0 0.0
      %2740 = vmatmul.mubr.f32.gmra.mrb[0].mxu0 %v2668
      %v2741 = vpop.f32.mrb[0].mxu0
      %v2742 = vadd.f32 0.0, %v2741
      %v2743 = vpop.f32.mrb[0].mxu0
      %2744 = vdwg.mxu0
      %s2745 = scalar_lea.vmem %s5, 176
      %v2746 = vld [vmem:[%s2745] sm:$0xff]
      %v2747 = vld [vmem:[%s2745 + $0x8] sm:$0xff]
      %v2749 = vsel %vm644, %v2737, 0
      %v2752 = vsel %vm644, %v2742, 0
      %2754 = vmatprep.subr.mxu0 0.0
      %2755 = vmatpush1.msra.mxu0 %v2746
      %2756 = vmatprep.subr.mxu0 0.0
      %2757 = vmatpush1.msra.mxu0 %v2747
      %2758 = vmatprep.subr.mxu0 0.0
      %2759 = vmatpush1.msra.mxu0 0.0
      %2760 = vmatprep.subr.mxu0 0.0
      %2761 = vmatpush1.msra.mxu0 0.0
      %2762 = vmatprep.subr.mxu0 0.0
      %2763 = vmatpush1.msra.mxu0 0.0
      %2764 = vmatprep.subr.mxu0 0.0
      %2765 = vmatpush1.msra.mxu0 0.0
      %2766 = vmatprep.subr.mxu0 0.0
      %2767 = vmatpush1.msra.mxu0 0.0
      %2768 = vmatprep.subr.mxu0 0.0
      %2769 = vmatpush1.msra.mxu0 0.0
      %2770 = vmatprep.subr.mxu0 0.0
      %2771 = vmatpush1.msra.mxu0 0.0
      %2772 = vmatprep.subr.mxu0 0.0
      %2773 = vmatpush1.msra.mxu0 0.0
      %2774 = vmatprep.subr.mxu0 0.0
      %2775 = vmatpush1.msra.mxu0 0.0
      %2776 = vmatprep.subr.mxu0 0.0
      %2777 = vmatpush1.msra.mxu0 0.0
      %2778 = vmatprep.subr.mxu0 0.0
      %2779 = vmatpush1.msra.mxu0 0.0
      %2780 = vmatprep.subr.mxu0 0.0
      %2781 = vmatpush1.msra.mxu0 0.0
      %2782 = vmatprep.subr.mxu0 0.0
      %2783 = vmatpush1.msra.mxu0 0.0
      %2784 = vmatprep.subr.mxu0 0.0
      %2785 = vmatpush1.msra.mxu0 0.0
      %2786 = vmatprep.subr.mxu0 0.0
      %2787 = vmatpush1.msra.mxu0 0.0
      %2788 = vmatprep.subr.mxu0 0.0
      %2789 = vmatpush1.msra.mxu0 0.0
      %2790 = vmatprep.subr.mxu0 0.0
      %2791 = vmatpush1.msra.mxu0 0.0
      %2792 = vmatprep.subr.mxu0 0.0
      %2793 = vmatpush1.msra.mxu0 0.0
      %2794 = vmatprep.subr.mxu0 0.0
      %2795 = vmatpush1.msra.mxu0 0.0
      %2796 = vmatprep.subr.mxu0 0.0
      %2797 = vmatpush1.msra.mxu0 0.0
      %2798 = vmatprep.subr.mxu0 0.0
      %2799 = vmatpush1.msra.mxu0 0.0
      %2800 = vmatprep.subr.mxu0 0.0
      %2801 = vmatpush1.msra.mxu0 0.0
      %2802 = vmatprep.subr.mxu0 0.0
      %2803 = vmatpush1.msra.mxu0 0.0
      %2804 = vmatprep.subr.mxu0 0.0
      %2805 = vmatpush1.msra.mxu0 0.0
      %2806 = vmatprep.subr.mxu0 0.0
      %2807 = vmatpush1.msra.mxu0 0.0
      %2808 = vmatprep.subr.mxu0 0.0
      %2809 = vmatpush1.msra.mxu0 0.0
      %2810 = vmatprep.subr.mxu0 0.0
      %2811 = vmatpush1.msra.mxu0 0.0
      %2812 = vmatprep.subr.mxu0 0.0
      %2813 = vmatpush1.msra.mxu0 0.0
      %2814 = vmatprep.subr.mxu0 0.0
      %2815 = vmatpush1.msra.mxu0 0.0
      %2816 = vmatprep.subr.mxu0 0.0
      %2817 = vmatpush1.msra.mxu0 0.0
      %2818 = vmatprep.mubr.f32.mxu0 0.0
      %2819 = vmatmul.mubr.f32.gmra.mrb[0].mxu0 %v2749
      %v2820 = vpop.f32.mrb[0].mxu0
      %v2821 = vadd.f32 0.0, %v2820
      %v2822 = vpop.f32.mrb[0].mxu0
      %2823 = vmatprep.mubr.f32.mxu0 0.0
      %2824 = vmatmul.mubr.f32.gmra.mrb[0].mxu0 %v2752
      %v2825 = vpop.f32.mrb[0].mxu0
      %v2826 = vadd.f32 0.0, %v2825
      %v2827 = vpop.f32.mrb[0].mxu0
      %2828 = vdwg.mxu0
      %v2829 = vadd.f32 %v2659, %v2821
      %v2830 = vadd.f32 %v2660, %v2826
      %s2831 = scalar_lea.vmem %s2, 192
      %v2832 = vld [vmem:[%s2831] sm:$0xff]
      %v2833 = vld [vmem:[%s2831 + $0x8] sm:$0x3]
      %v2835 = vsel %vm509, %v2832, 0
      %v2838 = vsel %vm509, %v2833, 0
      %2840 = vmatprep.subr.mxu0 0.0
      %2841 = vmatpush1.msra.mxu0 %v781
      %2842 = vmatprep.subr.mxu0 0.0
      %2843 = vmatpush1.msra.mxu0 %v783
      %2844 = vmatprep.subr.mxu0 0.0
      %2845 = vmatpush1.msra.mxu0 %v785
      %2846 = vmatprep.subr.mxu0 0.0
      %2847 = vmatpush1.msra.mxu0 %v787
      %2848 = vmatprep.subr.mxu0 0.0
      %2849 = vmatpush1.msra.mxu0 %v789
      %2850 = vmatprep.subr.mxu0 0.0
      %2851 = vmatpush1.msra.mxu0 %v791
      %2852 = vmatprep.subr.mxu0 0.0
      %2853 = vmatpush1.msra.mxu0 %v803
      %2854 = vmatprep.subr.mxu0 0.0
      %2855 = vmatpush1.msra.mxu0 0.0
      %2856 = vmatprep.subr.mxu0 0.0
      %2857 = vmatpush1.msra.mxu0 0.0
      %2858 = vmatprep.subr.mxu0 0.0
      %2859 = vmatpush1.msra.mxu0 0.0
      %2860 = vmatprep.subr.mxu0 0.0
      %2861 = vmatpush1.msra.mxu0 0.0
      %2862 = vmatprep.subr.mxu0 0.0
      %2863 = vmatpush1.msra.mxu0 0.0
      %2864 = vmatprep.subr.mxu0 0.0
      %2865 = vmatpush1.msra.mxu0 0.0
      %2866 = vmatprep.subr.mxu0 0.0
      %2867 = vmatpush1.msra.mxu0 0.0
      %2868 = vmatprep.subr.mxu0 0.0
      %2869 = vmatpush1.msra.mxu0 0.0
      %2870 = vmatprep.subr.mxu0 0.0
      %2871 = vmatpush1.msra.mxu0 0.0
      %2872 = vmatprep.subr.mxu0 0.0
      %2873 = vmatpush1.msra.mxu0 0.0
      %2874 = vmatprep.subr.mxu0 0.0
      %2875 = vmatpush1.msra.mxu0 0.0
      %2876 = vmatprep.subr.mxu0 0.0
      %2877 = vmatpush1.msra.mxu0 0.0
      %2878 = vmatprep.subr.mxu0 0.0
      %2879 = vmatpush1.msra.mxu0 0.0
      %2880 = vmatprep.subr.mxu0 0.0
      %2881 = vmatpush1.msra.mxu0 0.0
      %2882 = vmatprep.subr.mxu0 0.0
      %2883 = vmatpush1.msra.mxu0 0.0
      %2884 = vmatprep.subr.mxu0 0.0
      %2885 = vmatpush1.msra.mxu0 0.0
      %2886 = vmatprep.subr.mxu0 0.0
      %2887 = vmatpush1.msra.mxu0 0.0
      %2888 = vmatprep.subr.mxu0 0.0
      %2889 = vmatpush1.msra.mxu0 0.0
      %2890 = vmatprep.subr.mxu0 0.0
      %2891 = vmatpush1.msra.mxu0 0.0
      %2892 = vmatprep.subr.mxu0 0.0
      %2893 = vmatpush1.msra.mxu0 0.0
      %2894 = vmatprep.subr.mxu0 0.0
      %2895 = vmatpush1.msra.mxu0 0.0
      %2896 = vmatprep.subr.mxu0 0.0
      %2897 = vmatpush1.msra.mxu0 0.0
      %2898 = vmatprep.subr.mxu0 0.0
      %2899 = vmatpush1.msra.mxu0 0.0
      %2900 = vmatprep.subr.mxu0 0.0
      %2901 = vmatpush1.msra.mxu0 0.0
      %2902 = vmatprep.subr.mxu0 0.0
      %2903 = vmatpush1.msra.mxu0 0.0
      %2904 = vmatprep.mubr.f32.mxu0 0.0
      %2905 = vmatmul.mubr.f32.gmra.mrb[0].mxu0 %v2835
      %v2906 = vpop.f32.mrb[0].mxu0
      %v2907 = vadd.f32 0.0, %v2906
      %v2908 = vpop.f32.mrb[0].mxu0
      %2909 = vmatprep.mubr.f32.mxu0 0.0
      %2910 = vmatmul.mubr.f32.gmra.mrb[0].mxu0 %v2838
      %v2911 = vpop.f32.mrb[0].mxu0
      %v2912 = vadd.f32 0.0, %v2911
      %v2913 = vpop.f32.mrb[0].mxu0
      %2914 = vdwg.mxu0
      %s2915 = scalar_lea.vmem %s5, 192
      %v2916 = vld [vmem:[%s2915] sm:$0xff]
      %v2917 = vld [vmem:[%s2915 + $0x8] sm:$0xff]
      %v2919 = vsel %vm644, %v2907, 0
      %v2922 = vsel %vm644, %v2912, 0
      %2924 = vmatprep.subr.mxu0 0.0
      %2925 = vmatpush1.msra.mxu0 %v2916
      %2926 = vmatprep.subr.mxu0 0.0
      %2927 = vmatpush1.msra.mxu0 %v2917
      %2928 = vmatprep.subr.mxu0 0.0
      %2929 = vmatpush1.msra.mxu0 0.0
      %2930 = vmatprep.subr.mxu0 0.0
      %2931 = vmatpush1.msra.mxu0 0.0
      %2932 = vmatprep.subr.mxu0 0.0
      %2933 = vmatpush1.msra.mxu0 0.0
      %2934 = vmatprep.subr.mxu0 0.0
      %2935 = vmatpush1.msra.mxu0 0.0
      %2936 = vmatprep.subr.mxu0 0.0
      %2937 = vmatpush1.msra.mxu0 0.0
      %2938 = vmatprep.subr.mxu0 0.0
      %2939 = vmatpush1.msra.mxu0 0.0
      %2940 = vmatprep.subr.mxu0 0.0
      %2941 = vmatpush1.msra.mxu0 0.0
      %2942 = vmatprep.subr.mxu0 0.0
      %2943 = vmatpush1.msra.mxu0 0.0
      %2944 = vmatprep.subr.mxu0 0.0
      %2945 = vmatpush1.msra.mxu0 0.0
      %2946 = vmatprep.subr.mxu0 0.0
      %2947 = vmatpush1.msra.mxu0 0.0
      %2948 = vmatprep.subr.mxu0 0.0
      %2949 = vmatpush1.msra.mxu0 0.0
      %2950 = vmatprep.subr.mxu0 0.0
      %2951 = vmatpush1.msra.mxu0 0.0
      %2952 = vmatprep.subr.mxu0 0.0
      %2953 = vmatpush1.msra.mxu0 0.0
      %2954 = vmatprep.subr.mxu0 0.0
      %2955 = vmatpush1.msra.mxu0 0.0
      %2956 = vmatprep.subr.mxu0 0.0
      %2957 = vmatpush1.msra.mxu0 0.0
      %2958 = vmatprep.subr.mxu0 0.0
      %2959 = vmatpush1.msra.mxu0 0.0
      %2960 = vmatprep.subr.mxu0 0.0
      %2961 = vmatpush1.msra.mxu0 0.0
      %2962 = vmatprep.subr.mxu0 0.0
      %2963 = vmatpush1.msra.mxu0 0.0
      %2964 = vmatprep.subr.mxu0 0.0
      %2965 = vmatpush1.msra.mxu0 0.0
      %2966 = vmatprep.subr.mxu0 0.0
      %2967 = vmatpush1.msra.mxu0 0.0
      %2968 = vmatprep.subr.mxu0 0.0
      %2969 = vmatpush1.msra.mxu0 0.0
      %2970 = vmatprep.subr.mxu0 0.0
      %2971 = vmatpush1.msra.mxu0 0.0
      %2972 = vmatprep.subr.mxu0 0.0
      %2973 = vmatpush1.msra.mxu0 0.0
      %2974 = vmatprep.subr.mxu0 0.0
      %2975 = vmatpush1.msra.mxu0 0.0
      %2976 = vmatprep.subr.mxu0 0.0
      %2977 = vmatpush1.msra.mxu0 0.0
      %2978 = vmatprep.subr.mxu0 0.0
      %2979 = vmatpush1.msra.mxu0 0.0
      %2980 = vmatprep.subr.mxu0 0.0
      %2981 = vmatpush1.msra.mxu0 0.0
      %2982 = vmatprep.subr.mxu0 0.0
      %2983 = vmatpush1.msra.mxu0 0.0
      %2984 = vmatprep.subr.mxu0 0.0
      %2985 = vmatpush1.msra.mxu0 0.0
      %2986 = vmatprep.subr.mxu0 0.0
      %2987 = vmatpush1.msra.mxu0 0.0
      %2988 = vmatprep.mubr.f32.mxu0 0.0
      %2989 = vmatmul.mubr.f32.gmra.mrb[0].mxu0 %v2919
      %v2990 = vpop.f32.mrb[0].mxu0
      %v2991 = vadd.f32 0.0, %v2990
      %v2992 = vpop.f32.mrb[0].mxu0
      %2993 = vmatprep.mubr.f32.mxu0 0.0
      %2994 = vmatmul.mubr.f32.gmra.mrb[0].mxu0 %v2922
      %v2995 = vpop.f32.mrb[0].mxu0
      %v2996 = vadd.f32 0.0, %v2995
      %v2997 = vpop.f32.mrb[0].mxu0
      %2998 = vdwg.mxu0
      %v2999 = vadd.f32 %v2829, %v2991
      %v3000 = vadd.f32 %v2830, %v2996
      %s3001 = scalar_lea.vmem %s2, 208
      %v3002 = vld [vmem:[%s3001] sm:$0xff]
      %v3003 = vld [vmem:[%s3001 + $0x8] sm:$0x3]
      %v3005 = vsel %vm509, %v3002, 0
      %v3008 = vsel %vm509, %v3003, 0
      %3010 = vmatprep.subr.mxu0 0.0
      %3011 = vmatpush1.msra.mxu0 %v781
      %3012 = vmatprep.subr.mxu0 0.0
      %3013 = vmatpush1.msra.mxu0 %v783
      %3014 = vmatprep.subr.mxu0 0.0
      %3015 = vmatpush1.msra.mxu0 %v785
      %3016 = vmatprep.subr.mxu0 0.0
      %3017 = vmatpush1.msra.mxu0 %v787
      %3018 = vmatprep.subr.mxu0 0.0
      %3019 = vmatpush1.msra.mxu0 %v789
      %3020 = vmatprep.subr.mxu0 0.0
      %3021 = vmatpush1.msra.mxu0 %v791
      %3022 = vmatprep.subr.mxu0 0.0
      %3023 = vmatpush1.msra.mxu0 %v803
      %3024 = vmatprep.subr.mxu0 0.0
      %3025 = vmatpush1.msra.mxu0 0.0
      %3026 = vmatprep.subr.mxu0 0.0
      %3027 = vmatpush1.msra.mxu0 0.0
      %3028 = vmatprep.subr.mxu0 0.0
      %3029 = vmatpush1.msra.mxu0 0.0
      %3030 = vmatprep.subr.mxu0 0.0
      %3031 = vmatpush1.msra.mxu0 0.0
      %3032 = vmatprep.subr.mxu0 0.0
      %3033 = vmatpush1.msra.mxu0 0.0
      %3034 = vmatprep.subr.mxu0 0.0
      %3035 = vmatpush1.msra.mxu0 0.0
      %3036 = vmatprep.subr.mxu0 0.0
      %3037 = vmatpush1.msra.mxu0 0.0
      %3038 = vmatprep.subr.mxu0 0.0
      %3039 = vmatpush1.msra.mxu0 0.0
      %3040 = vmatprep.subr.mxu0 0.0
      %3041 = vmatpush1.msra.mxu0 0.0
      %3042 = vmatprep.subr.mxu0 0.0
      %3043 = vmatpush1.msra.mxu0 0.0
      %3044 = vmatprep.subr.mxu0 0.0
      %3045 = vmatpush1.msra.mxu0 0.0
      %3046 = vmatprep.subr.mxu0 0.0
      %3047 = vmatpush1.msra.mxu0 0.0
      %3048 = vmatprep.subr.mxu0 0.0
      %3049 = vmatpush1.msra.mxu0 0.0
      %3050 = vmatprep.subr.mxu0 0.0
      %3051 = vmatpush1.msra.mxu0 0.0
      %3052 = vmatprep.subr.mxu0 0.0
      %3053 = vmatpush1.msra.mxu0 0.0
      %3054 = vmatprep.subr.mxu0 0.0
      %3055 = vmatpush1.msra.mxu0 0.0
      %3056 = vmatprep.subr.mxu0 0.0
      %3057 = vmatpush1.msra.mxu0 0.0
      %3058 = vmatprep.subr.mxu0 0.0
      %3059 = vmatpush1.msra.mxu0 0.0
      %3060 = vmatprep.subr.mxu0 0.0
      %3061 = vmatpush1.msra.mxu0 0.0
      %3062 = vmatprep.subr.mxu0 0.0
      %3063 = vmatpush1.msra.mxu0 0.0
      %3064 = vmatprep.subr.mxu0 0.0
      %3065 = vmatpush1.msra.mxu0 0.0
      %3066 = vmatprep.subr.mxu0 0.0
      %3067 = vmatpush1.msra.mxu0 0.0
      %3068 = vmatprep.subr.mxu0 0.0
      %3069 = vmatpush1.msra.mxu0 0.0
      %3070 = vmatprep.subr.mxu0 0.0
      %3071 = vmatpush1.msra.mxu0 0.0
      %3072 = vmatprep.subr.mxu0 0.0
      %3073 = vmatpush1.msra.mxu0 0.0
      %3074 = vmatprep.mubr.f32.mxu0 0.0
      %3075 = vmatmul.mubr.f32.gmra.mrb[0].mxu0 %v3005
      %v3076 = vpop.f32.mrb[0].mxu0
      %v3077 = vadd.f32 0.0, %v3076
      %v3078 = vpop.f32.mrb[0].mxu0
      %3079 = vmatprep.mubr.f32.mxu0 0.0
      %3080 = vmatmul.mubr.f32.gmra.mrb[0].mxu0 %v3008
      %v3081 = vpop.f32.mrb[0].mxu0
      %v3082 = vadd.f32 0.0, %v3081
      %v3083 = vpop.f32.mrb[0].mxu0
      %3084 = vdwg.mxu0
      %s3085 = scalar_lea.vmem %s5, 208
      %v3086 = vld [vmem:[%s3085] sm:$0xff]
      %v3087 = vld [vmem:[%s3085 + $0x8] sm:$0xff]
      %v3089 = vsel %vm644, %v3077, 0
      %v3092 = vsel %vm644, %v3082, 0
      %3094 = vmatprep.subr.mxu0 0.0
      %3095 = vmatpush1.msra.mxu0 %v3086
      %3096 = vmatprep.subr.mxu0 0.0
      %3097 = vmatpush1.msra.mxu0 %v3087
      %3098 = vmatprep.subr.mxu0 0.0
      %3099 = vmatpush1.msra.mxu0 0.0
      %3100 = vmatprep.subr.mxu0 0.0
      %3101 = vmatpush1.msra.mxu0 0.0
      %3102 = vmatprep.subr.mxu0 0.0
      %3103 = vmatpush1.msra.mxu0 0.0
      %3104 = vmatprep.subr.mxu0 0.0
      %3105 = vmatpush1.msra.mxu0 0.0
      %3106 = vmatprep.subr.mxu0 0.0
      %3107 = vmatpush1.msra.mxu0 0.0
      %3108 = vmatprep.subr.mxu0 0.0
      %3109 = vmatpush1.msra.mxu0 0.0
      %3110 = vmatprep.subr.mxu0 0.0
      %3111 = vmatpush1.msra.mxu0 0.0
      %3112 = vmatprep.subr.mxu0 0.0
      %3113 = vmatpush1.msra.mxu0 0.0
      %3114 = vmatprep.subr.mxu0 0.0
      %3115 = vmatpush1.msra.mxu0 0.0
      %3116 = vmatprep.subr.mxu0 0.0
      %3117 = vmatpush1.msra.mxu0 0.0
      %3118 = vmatprep.subr.mxu0 0.0
      %3119 = vmatpush1.msra.mxu0 0.0
      %3120 = vmatprep.subr.mxu0 0.0
      %3121 = vmatpush1.msra.mxu0 0.0
      %3122 = vmatprep.subr.mxu0 0.0
      %3123 = vmatpush1.msra.mxu0 0.0
      %3124 = vmatprep.subr.mxu0 0.0
      %3125 = vmatpush1.msra.mxu0 0.0
      %3126 = vmatprep.subr.mxu0 0.0
      %3127 = vmatpush1.msra.mxu0 0.0
      %3128 = vmatprep.subr.mxu0 0.0
      %3129 = vmatpush1.msra.mxu0 0.0
      %3130 = vmatprep.subr.mxu0 0.0
      %3131 = vmatpush1.msra.mxu0 0.0
      %3132 = vmatprep.subr.mxu0 0.0
      %3133 = vmatpush1.msra.mxu0 0.0
      %3134 = vmatprep.subr.mxu0 0.0
      %3135 = vmatpush1.msra.mxu0 0.0
      %3136 = vmatprep.subr.mxu0 0.0
      %3137 = vmatpush1.msra.mxu0 0.0
      %3138 = vmatprep.subr.mxu0 0.0
      %3139 = vmatpush1.msra.mxu0 0.0
      %3140 = vmatprep.subr.mxu0 0.0
      %3141 = vmatpush1.msra.mxu0 0.0
      %3142 = vmatprep.subr.mxu0 0.0
      %3143 = vmatpush1.msra.mxu0 0.0
      %3144 = vmatprep.subr.mxu0 0.0
      %3145 = vmatpush1.msra.mxu0 0.0
      %3146 = vmatprep.subr.mxu0 0.0
      %3147 = vmatpush1.msra.mxu0 0.0
      %3148 = vmatprep.subr.mxu0 0.0
      %3149 = vmatpush1.msra.mxu0 0.0
      %3150 = vmatprep.subr.mxu0 0.0
      %3151 = vmatpush1.msra.mxu0 0.0
      %3152 = vmatprep.subr.mxu0 0.0
      %3153 = vmatpush1.msra.mxu0 0.0
      %3154 = vmatprep.subr.mxu0 0.0
      %3155 = vmatpush1.msra.mxu0 0.0
      %3156 = vmatprep.subr.mxu0 0.0
      %3157 = vmatpush1.msra.mxu0 0.0
      %3158 = vmatprep.mubr.f32.mxu0 0.0
      %3159 = vmatmul.mubr.f32.gmra.mrb[0].mxu0 %v3089
      %v3160 = vpop.f32.mrb[0].mxu0
      %v3161 = vadd.f32 0.0, %v3160
      %v3162 = vpop.f32.mrb[0].mxu0
      %3163 = vmatprep.mubr.f32.mxu0 0.0
      %3164 = vmatmul.mubr.f32.gmra.mrb[0].mxu0 %v3092
      %v3165 = vpop.f32.mrb[0].mxu0
      %v3166 = vadd.f32 0.0, %v3165
      %v3167 = vpop.f32.mrb[0].mxu0
      %3168 = vdwg.mxu0
      %v3169 = vadd.f32 %v2999, %v3161
      %v3170 = vadd.f32 %v3000, %v3166
      %v3171 = vld [vmem:[%s7] sm:$0x1]
      %v3173 = vlaneseq
      %v3174 = vshrl.u32 %v3173, 7
      %v3175 = vsub.s32 0, %v3174
      %v3176 = vrot.slane %v3171, %v3175
      %v3178 = vadd.f32 %v3169, %v3176
      %v3179 = vadd.f32 %v3170, %v3176
      %vm3180 = vcmask 785408
      %3181 = vst.msk [vmem:[#allocation2] sm:$0xff] %vm3180, %v3178
      %vm3182 = vcmask 779264
      %3183 = vst.msk [vmem:[#allocation2 + $0x8] sm:$0x3] %vm3182, %v3179
      %v3184 = vld [vmem:[%s6] sm:$0xff]
      %v3185 = vld [vmem:[%s6 + $0x8] sm:$0xff]
      %v3186 = vld [vmem:[%s6 + $0x10] sm:$0xff]
      %v3187 = vld [vmem:[%s6 + $0x18] sm:$0xff]
      %v3188 = vld [vmem:[%s8] sm:$0x1]
      %v3189 = vld [vmem:[#allocation2] sm:$0x1]
      %vm3190 = vcmask 261120
      %v3192 = vsel %vm3190, 0.0, 0
      %3194 = vmatprep.subr.mxu0 0.0
      %3195 = vmatpush1.msra.mxu0 %v3184
      %3196 = vmatprep.subr.mxu0 0.0
      %3197 = vmatpush1.msra.mxu0 %v3185
      %3198 = vmatprep.subr.mxu0 0.0
      %3199 = vmatpush1.msra.mxu0 %v3186
      %3200 = vmatprep.subr.mxu0 0.0
      %3201 = vmatpush1.msra.mxu0 %v3187
      %3202 = vmatprep.subr.mxu0 0.0
      %3203 = vmatpush1.msra.mxu0 0.0
      %3204 = vmatprep.subr.mxu0 0.0
      %3205 = vmatpush1.msra.mxu0 0.0
      %3206 = vmatprep.subr.mxu0 0.0
      %3207 = vmatpush1.msra.mxu0 0.0
      %3208 = vmatprep.subr.mxu0 0.0
      %3209 = vmatpush1.msra.mxu0 0.0
      %3210 = vmatprep.subr.mxu0 0.0
      %3211 = vmatpush1.msra.mxu0 0.0
      %3212 = vmatprep.subr.mxu0 0.0
      %3213 = vmatpush1.msra.mxu0 0.0
      %3214 = vmatprep.subr.mxu0 0.0
      %3215 = vmatpush1.msra.mxu0 0.0
      %3216 = vmatprep.subr.mxu0 0.0
      %3217 = vmatpush1.msra.mxu0 0.0
      %3218 = vmatprep.subr.mxu0 0.0
      %3219 = vmatpush1.msra.mxu0 0.0
      %3220 = vmatprep.subr.mxu0 0.0
      %3221 = vmatpush1.msra.mxu0 0.0
      %3222 = vmatprep.subr.mxu0 0.0
      %3223 = vmatpush1.msra.mxu0 0.0
      %3224 = vmatprep.subr.mxu0 0.0
      %3225 = vmatpush1.msra.mxu0 0.0
      %3226 = vmatprep.subr.mxu0 0.0
      %3227 = vmatpush1.msra.mxu0 0.0
      %3228 = vmatprep.subr.mxu0 0.0
      %3229 = vmatpush1.msra.mxu0 0.0
      %3230 = vmatprep.subr.mxu0 0.0
      %3231 = vmatpush1.msra.mxu0 0.0
      %3232 = vmatprep.subr.mxu0 0.0
      %3233 = vmatpush1.msra.mxu0 0.0
      %3234 = vmatprep.subr.mxu0 0.0
      %3235 = vmatpush1.msra.mxu0 0.0
      %3236 = vmatprep.subr.mxu0 0.0
      %3237 = vmatpush1.msra.mxu0 0.0
      %3238 = vmatprep.subr.mxu0 0.0
      %3239 = vmatpush1.msra.mxu0 0.0
      %3240 = vmatprep.subr.mxu0 0.0
      %3241 = vmatpush1.msra.mxu0 0.0
      %3242 = vmatprep.subr.mxu0 0.0
      %3243 = vmatpush1.msra.mxu0 0.0
      %3244 = vmatprep.subr.mxu0 0.0
      %3245 = vmatpush1.msra.mxu0 0.0
      %3246 = vmatprep.subr.mxu0 0.0
      %3247 = vmatpush1.msra.mxu0 0.0
      %3248 = vmatprep.subr.mxu0 0.0
      %3249 = vmatpush1.msra.mxu0 0.0
      %3250 = vmatprep.subr.mxu0 0.0
      %3251 = vmatpush1.msra.mxu0 0.0
      %3252 = vmatprep.subr.mxu0 0.0
      %3253 = vmatpush1.msra.mxu0 0.0
      %3254 = vmatprep.subr.mxu0 0.0
      %3255 = vmatpush1.msra.mxu0 0.0
      %3256 = vmatprep.subr.mxu0 0.0
      %3257 = vmatpush1.msra.mxu0 0.0
      %3258 = vmatprep.mubr.f32.mxu0 0.0
      %3259 = vmatmul.mubr.f32.gmra.mrb[0].mxu0 %v3192
      %v3260 = vpop.f32.mrb[0].mxu0
      %v3261 = vadd.f32 0.0, %v3260
      %v3262 = vpop.f32.mrb[0].mxu0
      %3263 = vdwg.mxu0
      %v3264 = vadd.f32 %v3189, %v3261
      %v3265 = vxor.u32 %v3264, 2147483648
      %v3266 = vmul.f32 %v3265, 1.442695
      %v3267 = vpow.pop %v3266
      %v3268 = vadd.f32 %v3267, 1.0
      %v3269 = vrcp.pop %v3268
      %v3270 = vmul.f32 1.0, %v3269
      %v3272 = vlaneseq
      %v3273 = vshrl.u32 %v3272, 7
      %v3274 = vsub.s32 0, %v3273
      %v3275 = vrot.slane %v3188, %v3274
      %3276 = vrot.lane.b32.xlu0 %v3275, 64
      %v3277 = vpop.permute.xlu0 %3276
      %v3279 = vadd.f32 %v3261, %v3277
      %3281 = vrot.lane.b32.xlu0 %v3279, 64
      %v3282 = vpop.permute.xlu0 %3281
      %v3284 = vmul.f32 %v3270, %v3282
      %3286 = vrot.lane.b32.xlu0 %v3284, 64
      %v3287 = vpop.permute.xlu0 %3286
      %v3289 = vadd.f32 %v3189, %v3287
      %v3290 = vtanh.pop %v3289
      %v3291 = vsub.f32 1.0, %v3270
      %3293 = vrot.lane.b32.xlu0 %v3290, 96
      %v3294 = vpop.permute.xlu0 %3293
      %v3296 = vmul.f32 %v3291, %v3294
      %v3297 = vmul.f32 %v3270, 0.0
      %v3298 = vadd.f32 %v3296, %v3297
      %3300 = vrot.lane.b32.xlu0 %v3298, 96
      %v3301 = vpop.permute.xlu0 %3300
      %vm3303 = vcmask 253952
      %3304 = vst.msk [vmem:[#allocation3] sm:$0x1] %vm3303, %v3301
      %v3305 = vld [vmem:[#allocation2 + $0x1] sm:$0x1]
      %v3306 = vsel %vm3190, %v3301, 0
      %3308 = vmatprep.subr.mxu0 0.0
      %3309 = vmatpush1.msra.mxu0 %v3184
      %3310 = vmatprep.subr.mxu0 0.0
      %3311 = vmatpush1.msra.mxu0 %v3185
      %3312 = vmatprep.subr.mxu0 0.0
      %3313 = vmatpush1.msra.mxu0 %v3186
      %3314 = vmatprep.subr.mxu0 0.0
      %3315 = vmatpush1.msra.mxu0 %v3187
      %3316 = vmatprep.subr.mxu0 0.0
      %3317 = vmatpush1.msra.mxu0 0.0
      %3318 = vmatprep.subr.mxu0 0.0
      %3319 = vmatpush1.msra.mxu0 0.0
      %3320 = vmatprep.subr.mxu0 0.0
      %3321 = vmatpush1.msra.mxu0 0.0
      %3322 = vmatprep.subr.mxu0 0.0
      %3323 = vmatpush1.msra.mxu0 0.0
      %3324 = vmatprep.subr.mxu0 0.0
      %3325 = vmatpush1.msra.mxu0 0.0
      %3326 = vmatprep.subr.mxu0 0.0
      %3327 = vmatpush1.msra.mxu0 0.0
      %3328 = vmatprep.subr.mxu0 0.0
      %3329 = vmatpush1.msra.mxu0 0.0
      %3330 = vmatprep.subr.mxu0 0.0
      %3331 = vmatpush1.msra.mxu0 0.0
      %3332 = vmatprep.subr.mxu0 0.0
      %3333 = vmatpush1.msra.mxu0 0.0
      %3334 = vmatprep.subr.mxu0 0.0
      %3335 = vmatpush1.msra.mxu0 0.0
      %3336 = vmatprep.subr.mxu0 0.0
      %3337 = vmatpush1.msra.mxu0 0.0
      %3338 = vmatprep.subr.mxu0 0.0
      %3339 = vmatpush1.msra.mxu0 0.0
      %3340 = vmatprep.subr.mxu0 0.0
      %3341 = vmatpush1.msra.mxu0 0.0
      %3342 = vmatprep.subr.mxu0 0.0
      %3343 = vmatpush1.msra.mxu0 0.0
      %3344 = vmatprep.subr.mxu0 0.0
      %3345 = vmatpush1.msra.mxu0 0.0
      %3346 = vmatprep.subr.mxu0 0.0
      %3347 = vmatpush1.msra.mxu0 0.0
      %3348 = vmatprep.subr.mxu0 0.0
      %3349 = vmatpush1.msra.mxu0 0.0
      %3350 = vmatprep.subr.mxu0 0.0
      %3351 = vmatpush1.msra.mxu0 0.0
      %3352 = vmatprep.subr.mxu0 0.0
      %3353 = vmatpush1.msra.mxu0 0.0
      %3354 = vmatprep.subr.mxu0 0.0
      %3355 = vmatpush1.msra.mxu0 0.0
      %3356 = vmatprep.subr.mxu0 0.0
      %3357 = vmatpush1.msra.mxu0 0.0
      %3358 = vmatprep.subr.mxu0 0.0
      %3359 = vmatpush1.msra.mxu0 0.0
      %3360 = vmatprep.subr.mxu0 0.0
      %3361 = vmatpush1.msra.mxu0 0.0
      %3362 = vmatprep.subr.mxu0 0.0
      %3363 = vmatpush1.msra.mxu0 0.0
      %3364 = vmatprep.subr.mxu0 0.0
      %3365 = vmatpush1.msra.mxu0 0.0
      %3366 = vmatprep.subr.mxu0 0.0
      %3367 = vmatpush1.msra.mxu0 0.0
      %3368 = vmatprep.subr.mxu0 0.0
      %3369 = vmatpush1.msra.mxu0 0.0
      %3370 = vmatprep.subr.mxu0 0.0
      %3371 = vmatpush1.msra.mxu0 0.0
      %3372 = vmatprep.mubr.f32.mxu0 0.0
      %3373 = vmatmul.mubr.f32.gmra.mrb[0].mxu0 %v3306
      %v3374 = vpop.f32.mrb[0].mxu0
      %v3375 = vadd.f32 0.0, %v3374
      %v3376 = vpop.f32.mrb[0].mxu0
      %3377 = vdwg.mxu0
      %v3378 = vadd.f32 %v3305, %v3375
      %v3379 = vxor.u32 %v3378, 2147483648
      %v3380 = vmul.f32 %v3379, 1.442695
      %v3381 = vpow.pop %v3380
      %v3382 = vadd.f32 %v3381, 1.0
      %v3383 = vrcp.pop %v3382
      %v3384 = vmul.f32 1.0, %v3383
      %v3385 = vadd.f32 %v3375, %v3277
      %3387 = vrot.lane.b32.xlu0 %v3385, 64
      %v3388 = vpop.permute.xlu0 %3387
      %v3390 = vmul.f32 %v3384, %v3388
      %3392 = vrot.lane.b32.xlu0 %v3390, 64
      %v3393 = vpop.permute.xlu0 %3392
      %v3395 = vadd.f32 %v3305, %v3393
      %v3396 = vtanh.pop %v3395
      %v3397 = vsub.f32 1.0, %v3384
      %3399 = vrot.lane.b32.xlu0 %v3396, 96
      %v3400 = vpop.permute.xlu0 %3399
      %v3402 = vmul.f32 %v3397, %v3400
      %v3403 = vmul.f32 %v3384, %v3298
      %v3404 = vadd.f32 %v3402, %v3403
      %3406 = vrot.lane.b32.xlu0 %v3404, 96
      %v3407 = vpop.permute.xlu0 %3406
      %3409 = vst.msk [vmem:[#allocation3 + $0x1] sm:$0x1] %vm3303, %v3407
      %v3410 = vld [vmem:[#allocation2 + $0x2] sm:$0x1]
      %v3411 = vsel %vm3190, %v3407, 0
      %3413 = vmatprep.subr.mxu0 0.0
      %3414 = vmatpush1.msra.mxu0 %v3184
      %3415 = vmatprep.subr.mxu0 0.0
      %3416 = vmatpush1.msra.mxu0 %v3185
      %3417 = vmatprep.subr.mxu0 0.0
      %3418 = vmatpush1.msra.mxu0 %v3186
      %3419 = vmatprep.subr.mxu0 0.0
      %3420 = vmatpush1.msra.mxu0 %v3187
      %3421 = vmatprep.subr.mxu0 0.0
      %3422 = vmatpush1.msra.mxu0 0.0
      %3423 = vmatprep.subr.mxu0 0.0
      %3424 = vmatpush1.msra.mxu0 0.0
      %3425 = vmatprep.subr.mxu0 0.0
      %3426 = vmatpush1.msra.mxu0 0.0
      %3427 = vmatprep.subr.mxu0 0.0
      %3428 = vmatpush1.msra.mxu0 0.0
      %3429 = vmatprep.subr.mxu0 0.0
      %3430 = vmatpush1.msra.mxu0 0.0
      %3431 = vmatprep.subr.mxu0 0.0
      %3432 = vmatpush1.msra.mxu0 0.0
      %3433 = vmatprep.subr.mxu0 0.0
      %3434 = vmatpush1.msra.mxu0 0.0
      %3435 = vmatprep.subr.mxu0 0.0
      %3436 = vmatpush1.msra.mxu0 0.0
      %3437 = vmatprep.subr.mxu0 0.0
      %3438 = vmatpush1.msra.mxu0 0.0
      %3439 = vmatprep.subr.mxu0 0.0
      %3440 = vmatpush1.msra.mxu0 0.0
      %3441 = vmatprep.subr.mxu0 0.0
      %3442 = vmatpush1.msra.mxu0 0.0
      %3443 = vmatprep.subr.mxu0 0.0
      %3444 = vmatpush1.msra.mxu0 0.0
      %3445 = vmatprep.subr.mxu0 0.0
      %3446 = vmatpush1.msra.mxu0 0.0
      %3447 = vmatprep.subr.mxu0 0.0
      %3448 = vmatpush1.msra.mxu0 0.0
      %3449 = vmatprep.subr.mxu0 0.0
      %3450 = vmatpush1.msra.mxu0 0.0
      %3451 = vmatprep.subr.mxu0 0.0
      %3452 = vmatpush1.msra.mxu0 0.0
      %3453 = vmatprep.subr.mxu0 0.0
      %3454 = vmatpush1.msra.mxu0 0.0
      %3455 = vmatprep.subr.mxu0 0.0
      %3456 = vmatpush1.msra.mxu0 0.0
      %3457 = vmatprep.subr.mxu0 0.0
      %3458 = vmatpush1.msra.mxu0 0.0
      %3459 = vmatprep.subr.mxu0 0.0
      %3460 = vmatpush1.msra.mxu0 0.0
      %3461 = vmatprep.subr.mxu0 0.0
      %3462 = vmatpush1.msra.mxu0 0.0
      %3463 = vmatprep.subr.mxu0 0.0
      %3464 = vmatpush1.msra.mxu0 0.0
      %3465 = vmatprep.subr.mxu0 0.0
      %3466 = vmatpush1.msra.mxu0 0.0
      %3467 = vmatprep.subr.mxu0 0.0
      %3468 = vmatpush1.msra.mxu0 0.0
      %3469 = vmatprep.subr.mxu0 0.0
      %3470 = vmatpush1.msra.mxu0 0.0
      %3471 = vmatprep.subr.mxu0 0.0
      %3472 = vmatpush1.msra.mxu0 0.0
      %3473 = vmatprep.subr.mxu0 0.0
      %3474 = vmatpush1.msra.mxu0 0.0
      %3475 = vmatprep.subr.mxu0 0.0
      %3476 = vmatpush1.msra.mxu0 0.0
      %3477 = vmatprep.mubr.f32.mxu0 0.0
      %3478 = vmatmul.mubr.f32.gmra.mrb[0].mxu0 %v3411
      %v3479 = vpop.f32.mrb[0].mxu0
      %v3480 = vadd.f32 0.0, %v3479
      %v3481 = vpop.f32.mrb[0].mxu0
      %3482 = vdwg.mxu0
      %v3483 = vadd.f32 %v3410, %v3480
      %v3484 = vxor.u32 %v3483, 2147483648
      %v3485 = vmul.f32 %v3484, 1.442695
      %v3486 = vpow.pop %v3485
      %v3487 = vadd.f32 %v3486, 1.0
      %v3488 = vrcp.pop %v3487
      %v3489 = vmul.f32 1.0, %v3488
      %v3490 = vadd.f32 %v3480, %v3277
      %3492 = vrot.lane.b32.xlu0 %v3490, 64
      %v3493 = vpop.permute.xlu0 %3492
      %v3495 = vmul.f32 %v3489, %v3493
      %3497 = vrot.lane.b32.xlu0 %v3495, 64
      %v3498 = vpop.permute.xlu0 %3497
      %v3500 = vadd.f32 %v3410, %v3498
      %v3501 = vtanh.pop %v3500
      %v3502 = vsub.f32 1.0, %v3489
      %3504 = vrot.lane.b32.xlu0 %v3501, 96
      %v3505 = vpop.permute.xlu0 %3504
      %v3507 = vmul.f32 %v3502, %v3505
      %v3508 = vmul.f32 %v3489, %v3404
      %v3509 = vadd.f32 %v3507, %v3508
      %3511 = vrot.lane.b32.xlu0 %v3509, 96
      %v3512 = vpop.permute.xlu0 %3511
      %3514 = vst.msk [vmem:[#allocation3 + $0x2] sm:$0x1] %vm3303, %v3512
      %v3515 = vld [vmem:[#allocation2 + $0x3] sm:$0x1]
      %v3516 = vsel %vm3190, %v3512, 0
      %3518 = vmatprep.subr.mxu0 0.0
      %3519 = vmatpush1.msra.mxu0 %v3184
      %3520 = vmatprep.subr.mxu0 0.0
      %3521 = vmatpush1.msra.mxu0 %v3185
      %3522 = vmatprep.subr.mxu0 0.0
      %3523 = vmatpush1.msra.mxu0 %v3186
      %3524 = vmatprep.subr.mxu0 0.0
      %3525 = vmatpush1.msra.mxu0 %v3187
      %3526 = vmatprep.subr.mxu0 0.0
      %3527 = vmatpush1.msra.mxu0 0.0
      %3528 = vmatprep.subr.mxu0 0.0
      %3529 = vmatpush1.msra.mxu0 0.0
      %3530 = vmatprep.subr.mxu0 0.0
      %3531 = vmatpush1.msra.mxu0 0.0
      %3532 = vmatprep.subr.mxu0 0.0
      %3533 = vmatpush1.msra.mxu0 0.0
      %3534 = vmatprep.subr.mxu0 0.0
      %3535 = vmatpush1.msra.mxu0 0.0
      %3536 = vmatprep.subr.mxu0 0.0
      %3537 = vmatpush1.msra.mxu0 0.0
      %3538 = vmatprep.subr.mxu0 0.0
      %3539 = vmatpush1.msra.mxu0 0.0
      %3540 = vmatprep.subr.mxu0 0.0
      %3541 = vmatpush1.msra.mxu0 0.0
      %3542 = vmatprep.subr.mxu0 0.0
      %3543 = vmatpush1.msra.mxu0 0.0
      %3544 = vmatprep.subr.mxu0 0.0
      %3545 = vmatpush1.msra.mxu0 0.0
      %3546 = vmatprep.subr.mxu0 0.0
      %3547 = vmatpush1.msra.mxu0 0.0
      %3548 = vmatprep.subr.mxu0 0.0
      %3549 = vmatpush1.msra.mxu0 0.0
      %3550 = vmatprep.subr.mxu0 0.0
      %3551 = vmatpush1.msra.mxu0 0.0
      %3552 = vmatprep.subr.mxu0 0.0
      %3553 = vmatpush1.msra.mxu0 0.0
      %3554 = vmatprep.subr.mxu0 0.0
      %3555 = vmatpush1.msra.mxu0 0.0
      %3556 = vmatprep.subr.mxu0 0.0
      %3557 = vmatpush1.msra.mxu0 0.0
      %3558 = vmatprep.subr.mxu0 0.0
      %3559 = vmatpush1.msra.mxu0 0.0
      %3560 = vmatprep.subr.mxu0 0.0
      %3561 = vmatpush1.msra.mxu0 0.0
      %3562 = vmatprep.subr.mxu0 0.0
      %3563 = vmatpush1.msra.mxu0 0.0
      %3564 = vmatprep.subr.mxu0 0.0
      %3565 = vmatpush1.msra.mxu0 0.0
      %3566 = vmatprep.subr.mxu0 0.0
      %3567 = vmatpush1.msra.mxu0 0.0
      %3568 = vmatprep.subr.mxu0 0.0
      %3569 = vmatpush1.msra.mxu0 0.0
      %3570 = vmatprep.subr.mxu0 0.0
      %3571 = vmatpush1.msra.mxu0 0.0
      %3572 = vmatprep.subr.mxu0 0.0
      %3573 = vmatpush1.msra.mxu0 0.0
      %3574 = vmatprep.subr.mxu0 0.0
      %3575 = vmatpush1.msra.mxu0 0.0
      %3576 = vmatprep.subr.mxu0 0.0
      %3577 = vmatpush1.msra.mxu0 0.0
      %3578 = vmatprep.subr.mxu0 0.0
      %3579 = vmatpush1.msra.mxu0 0.0
      %3580 = vmatprep.subr.mxu0 0.0
      %3581 = vmatpush1.msra.mxu0 0.0
      %3582 = vmatprep.mubr.f32.mxu0 0.0
      %3583 = vmatmul.mubr.f32.gmra.mrb[0].mxu0 %v3516
      %v3584 = vpop.f32.mrb[0].mxu0
      %v3585 = vadd.f32 0.0, %v3584
      %v3586 = vpop.f32.mrb[0].mxu0
      %3587 = vdwg.mxu0
      %v3588 = vadd.f32 %v3515, %v3585
      %v3589 = vxor.u32 %v3588, 2147483648
      %v3590 = vmul.f32 %v3589, 1.442695
      %v3591 = vpow.pop %v3590
      %v3592 = vadd.f32 %v3591, 1.0
      %v3593 = vrcp.pop %v3592
      %v3594 = vmul.f32 1.0, %v3593
      %v3595 = vadd.f32 %v3585, %v3277
      %3597 = vrot.lane.b32.xlu0 %v3595, 64
      %v3598 = vpop.permute.xlu0 %3597
      %v3600 = vmul.f32 %v3594, %v3598
      %3602 = vrot.lane.b32.xlu0 %v3600, 64
      %v3603 = vpop.permute.xlu0 %3602
      %v3605 = vadd.f32 %v3515, %v3603
      %v3606 = vtanh.pop %v3605
      %v3607 = vsub.f32 1.0, %v3594
      %3609 = vrot.lane.b32.xlu0 %v3606, 96
      %v3610 = vpop.permute.xlu0 %3609
      %v3612 = vmul.f32 %v3607, %v3610
      %v3613 = vmul.f32 %v3594, %v3509
      %v3614 = vadd.f32 %v3612, %v3613
      %3616 = vrot.lane.b32.xlu0 %v3614, 96
      %v3617 = vpop.permute.xlu0 %3616
      %3619 = vst.msk [vmem:[#allocation3 + $0x3] sm:$0x1] %vm3303, %v3617
      %v3620 = vld [vmem:[#allocation2 + $0x4] sm:$0x1]
      %v3621 = vsel %vm3190, %v3617, 0
      %3623 = vmatprep.subr.mxu0 0.0
      %3624 = vmatpush1.msra.mxu0 %v3184
      %3625 = vmatprep.subr.mxu0 0.0
      %3626 = vmatpush1.msra.mxu0 %v3185
      %3627 = vmatprep.subr.mxu0 0.0
      %3628 = vmatpush1.msra.mxu0 %v3186
      %3629 = vmatprep.subr.mxu0 0.0
      %3630 = vmatpush1.msra.mxu0 %v3187
      %3631 = vmatprep.subr.mxu0 0.0
      %3632 = vmatpush1.msra.mxu0 0.0
      %3633 = vmatprep.subr.mxu0 0.0
      %3634 = vmatpush1.msra.mxu0 0.0
      %3635 = vmatprep.subr.mxu0 0.0
      %3636 = vmatpush1.msra.mxu0 0.0
      %3637 = vmatprep.subr.mxu0 0.0
      %3638 = vmatpush1.msra.mxu0 0.0
      %3639 = vmatprep.subr.mxu0 0.0
      %3640 = vmatpush1.msra.mxu0 0.0
      %3641 = vmatprep.subr.mxu0 0.0
      %3642 = vmatpush1.msra.mxu0 0.0
      %3643 = vmatprep.subr.mxu0 0.0
      %3644 = vmatpush1.msra.mxu0 0.0
      %3645 = vmatprep.subr.mxu0 0.0
      %3646 = vmatpush1.msra.mxu0 0.0
      %3647 = vmatprep.subr.mxu0 0.0
      %3648 = vmatpush1.msra.mxu0 0.0
      %3649 = vmatprep.subr.mxu0 0.0
      %3650 = vmatpush1.msra.mxu0 0.0
      %3651 = vmatprep.subr.mxu0 0.0
      %3652 = vmatpush1.msra.mxu0 0.0
      %3653 = vmatprep.subr.mxu0 0.0
      %3654 = vmatpush1.msra.mxu0 0.0
      %3655 = vmatprep.subr.mxu0 0.0
      %3656 = vmatpush1.msra.mxu0 0.0
      %3657 = vmatprep.subr.mxu0 0.0
      %3658 = vmatpush1.msra.mxu0 0.0
      %3659 = vmatprep.subr.mxu0 0.0
      %3660 = vmatpush1.msra.mxu0 0.0
      %3661 = vmatprep.subr.mxu0 0.0
      %3662 = vmatpush1.msra.mxu0 0.0
      %3663 = vmatprep.subr.mxu0 0.0
      %3664 = vmatpush1.msra.mxu0 0.0
      %3665 = vmatprep.subr.mxu0 0.0
      %3666 = vmatpush1.msra.mxu0 0.0
      %3667 = vmatprep.subr.mxu0 0.0
      %3668 = vmatpush1.msra.mxu0 0.0
      %3669 = vmatprep.subr.mxu0 0.0
      %3670 = vmatpush1.msra.mxu0 0.0
      %3671 = vmatprep.subr.mxu0 0.0
      %3672 = vmatpush1.msra.mxu0 0.0
      %3673 = vmatprep.subr.mxu0 0.0
      %3674 = vmatpush1.msra.mxu0 0.0
      %3675 = vmatprep.subr.mxu0 0.0
      %3676 = vmatpush1.msra.mxu0 0.0
      %3677 = vmatprep.subr.mxu0 0.0
      %3678 = vmatpush1.msra.mxu0 0.0
      %3679 = vmatprep.subr.mxu0 0.0
      %3680 = vmatpush1.msra.mxu0 0.0
      %3681 = vmatprep.subr.mxu0 0.0
      %3682 = vmatpush1.msra.mxu0 0.0
      %3683 = vmatprep.subr.mxu0 0.0
      %3684 = vmatpush1.msra.mxu0 0.0
      %3685 = vmatprep.subr.mxu0 0.0
      %3686 = vmatpush1.msra.mxu0 0.0
      %3687 = vmatprep.mubr.f32.mxu0 0.0
      %3688 = vmatmul.mubr.f32.gmra.mrb[0].mxu0 %v3621
      %v3689 = vpop.f32.mrb[0].mxu0
      %v3690 = vadd.f32 0.0, %v3689
      %v3691 = vpop.f32.mrb[0].mxu0
      %3692 = vdwg.mxu0
      %v3693 = vadd.f32 %v3620, %v3690
      %v3694 = vxor.u32 %v3693, 2147483648
      %v3695 = vmul.f32 %v3694, 1.442695
      %v3696 = vpow.pop %v3695
      %v3697 = vadd.f32 %v3696, 1.0
      %v3698 = vrcp.pop %v3697
      %v3699 = vmul.f32 1.0, %v3698
      %v3700 = vadd.f32 %v3690, %v3277
      %3702 = vrot.lane.b32.xlu0 %v3700, 64
      %v3703 = vpop.permute.xlu0 %3702
      %v3705 = vmul.f32 %v3699, %v3703
      %3707 = vrot.lane.b32.xlu0 %v3705, 64
      %v3708 = vpop.permute.xlu0 %3707
      %v3710 = vadd.f32 %v3620, %v3708
      %v3711 = vtanh.pop %v3710
      %v3712 = vsub.f32 1.0, %v3699
      %3714 = vrot.lane.b32.xlu0 %v3711, 96
      %v3715 = vpop.permute.xlu0 %3714
      %v3717 = vmul.f32 %v3712, %v3715
      %v3718 = vmul.f32 %v3699, %v3614
      %v3719 = vadd.f32 %v3717, %v3718
      %3721 = vrot.lane.b32.xlu0 %v3719, 96
      %v3722 = vpop.permute.xlu0 %3721
      %3724 = vst.msk [vmem:[#allocation3 + $0x4] sm:$0x1] %vm3303, %v3722
      %v3725 = vld [vmem:[#allocation2 + $0x5] sm:$0x1]
      %v3726 = vsel %vm3190, %v3722, 0
      %3728 = vmatprep.subr.mxu0 0.0
      %3729 = vmatpush1.msra.mxu0 %v3184
      %3730 = vmatprep.subr.mxu0 0.0
      %3731 = vmatpush1.msra.mxu0 %v3185
      %3732 = vmatprep.subr.mxu0 0.0
      %3733 = vmatpush1.msra.mxu0 %v3186
      %3734 = vmatprep.subr.mxu0 0.0
      %3735 = vmatpush1.msra.mxu0 %v3187
      %3736 = vmatprep.subr.mxu0 0.0
      %3737 = vmatpush1.msra.mxu0 0.0
      %3738 = vmatprep.subr.mxu0 0.0
      %3739 = vmatpush1.msra.mxu0 0.0
      %3740 = vmatprep.subr.mxu0 0.0
      %3741 = vmatpush1.msra.mxu0 0.0
      %3742 = vmatprep.subr.mxu0 0.0
      %3743 = vmatpush1.msra.mxu0 0.0
      %3744 = vmatprep.subr.mxu0 0.0
      %3745 = vmatpush1.msra.mxu0 0.0
      %3746 = vmatprep.subr.mxu0 0.0
      %3747 = vmatpush1.msra.mxu0 0.0
      %3748 = vmatprep.subr.mxu0 0.0
      %3749 = vmatpush1.msra.mxu0 0.0
      %3750 = vmatprep.subr.mxu0 0.0
      %3751 = vmatpush1.msra.mxu0 0.0
      %3752 = vmatprep.subr.mxu0 0.0
      %3753 = vmatpush1.msra.mxu0 0.0
      %3754 = vmatprep.subr.mxu0 0.0
      %3755 = vmatpush1.msra.mxu0 0.0
      %3756 = vmatprep.subr.mxu0 0.0
      %3757 = vmatpush1.msra.mxu0 0.0
      %3758 = vmatprep.subr.mxu0 0.0
      %3759 = vmatpush1.msra.mxu0 0.0
      %3760 = vmatprep.subr.mxu0 0.0
      %3761 = vmatpush1.msra.mxu0 0.0
      %3762 = vmatprep.subr.mxu0 0.0
      %3763 = vmatpush1.msra.mxu0 0.0
      %3764 = vmatprep.subr.mxu0 0.0
      %3765 = vmatpush1.msra.mxu0 0.0
      %3766 = vmatprep.subr.mxu0 0.0
      %3767 = vmatpush1.msra.mxu0 0.0
      %3768 = vmatprep.subr.mxu0 0.0
      %3769 = vmatpush1.msra.mxu0 0.0
      %3770 = vmatprep.subr.mxu0 0.0
      %3771 = vmatpush1.msra.mxu0 0.0
      %3772 = vmatprep.subr.mxu0 0.0
      %3773 = vmatpush1.msra.mxu0 0.0
      %3774 = vmatprep.subr.mxu0 0.0
      %3775 = vmatpush1.msra.mxu0 0.0
      %3776 = vmatprep.subr.mxu0 0.0
      %3777 = vmatpush1.msra.mxu0 0.0
      %3778 = vmatprep.subr.mxu0 0.0
      %3779 = vmatpush1.msra.mxu0 0.0
      %3780 = vmatprep.subr.mxu0 0.0
      %3781 = vmatpush1.msra.mxu0 0.0
      %3782 = vmatprep.subr.mxu0 0.0
      %3783 = vmatpush1.msra.mxu0 0.0
      %3784 = vmatprep.subr.mxu0 0.0
      %3785 = vmatpush1.msra.mxu0 0.0
      %3786 = vmatprep.subr.mxu0 0.0
      %3787 = vmatpush1.msra.mxu0 0.0
      %3788 = vmatprep.subr.mxu0 0.0
      %3789 = vmatpush1.msra.mxu0 0.0
      %3790 = vmatprep.subr.mxu0 0.0
      %3791 = vmatpush1.msra.mxu0 0.0
      %3792 = vmatprep.mubr.f32.mxu0 0.0
      %3793 = vmatmul.mubr.f32.gmra.mrb[0].mxu0 %v3726
      %v3794 = vpop.f32.mrb[0].mxu0
      %v3795 = vadd.f32 0.0, %v3794
      %v3796 = vpop.f32.mrb[0].mxu0
      %3797 = vdwg.mxu0
      %v3798 = vadd.f32 %v3725, %v3795
      %v3799 = vxor.u32 %v3798, 2147483648
      %v3800 = vmul.f32 %v3799, 1.442695
      %v3801 = vpow.pop %v3800
      %v3802 = vadd.f32 %v3801, 1.0
      %v3803 = vrcp.pop %v3802
      %v3804 = vmul.f32 1.0, %v3803
      %v3805 = vadd.f32 %v3795, %v3277
      %3807 = vrot.lane.b32.xlu0 %v3805, 64
      %v3808 = vpop.permute.xlu0 %3807
      %v3810 = vmul.f32 %v3804, %v3808
      %3812 = vrot.lane.b32.xlu0 %v3810, 64
      %v3813 = vpop.permute.xlu0 %3812
      %v3815 = vadd.f32 %v3725, %v3813
      %v3816 = vtanh.pop %v3815
      %v3817 = vsub.f32 1.0, %v3804
      %3819 = vrot.lane.b32.xlu0 %v3816, 96
      %v3820 = vpop.permute.xlu0 %3819
      %v3822 = vmul.f32 %v3817, %v3820
      %v3823 = vmul.f32 %v3804, %v3719
      %v3824 = vadd.f32 %v3822, %v3823
      %3826 = vrot.lane.b32.xlu0 %v3824, 96
      %v3827 = vpop.permute.xlu0 %3826
      %3829 = vst.msk [vmem:[#allocation3 + $0x5] sm:$0x1] %vm3303, %v3827
      %v3830 = vld [vmem:[#allocation2 + $0x6] sm:$0x1]
      %v3831 = vsel %vm3190, %v3827, 0
      %3833 = vmatprep.subr.mxu0 0.0
      %3834 = vmatpush1.msra.mxu0 %v3184
      %3835 = vmatprep.subr.mxu0 0.0
      %3836 = vmatpush1.msra.mxu0 %v3185
      %3837 = vmatprep.subr.mxu0 0.0
      %3838 = vmatpush1.msra.mxu0 %v3186
      %3839 = vmatprep.subr.mxu0 0.0
      %3840 = vmatpush1.msra.mxu0 %v3187
      %3841 = vmatprep.subr.mxu0 0.0
      %3842 = vmatpush1.msra.mxu0 0.0
      %3843 = vmatprep.subr.mxu0 0.0
      %3844 = vmatpush1.msra.mxu0 0.0
      %3845 = vmatprep.subr.mxu0 0.0
      %3846 = vmatpush1.msra.mxu0 0.0
      %3847 = vmatprep.subr.mxu0 0.0
      %3848 = vmatpush1.msra.mxu0 0.0
      %3849 = vmatprep.subr.mxu0 0.0
      %3850 = vmatpush1.msra.mxu0 0.0
      %3851 = vmatprep.subr.mxu0 0.0
      %3852 = vmatpush1.msra.mxu0 0.0
      %3853 = vmatprep.subr.mxu0 0.0
      %3854 = vmatpush1.msra.mxu0 0.0
      %3855 = vmatprep.subr.mxu0 0.0
      %3856 = vmatpush1.msra.mxu0 0.0
      %3857 = vmatprep.subr.mxu0 0.0
      %3858 = vmatpush1.msra.mxu0 0.0
      %3859 = vmatprep.subr.mxu0 0.0
      %3860 = vmatpush1.msra.mxu0 0.0
      %3861 = vmatprep.subr.mxu0 0.0
      %3862 = vmatpush1.msra.mxu0 0.0
      %3863 = vmatprep.subr.mxu0 0.0
      %3864 = vmatpush1.msra.mxu0 0.0
      %3865 = vmatprep.subr.mxu0 0.0
      %3866 = vmatpush1.msra.mxu0 0.0
      %3867 = vmatprep.subr.mxu0 0.0
      %3868 = vmatpush1.msra.mxu0 0.0
      %3869 = vmatprep.subr.mxu0 0.0
      %3870 = vmatpush1.msra.mxu0 0.0
      %3871 = vmatprep.subr.mxu0 0.0
      %3872 = vmatpush1.msra.mxu0 0.0
      %3873 = vmatprep.subr.mxu0 0.0
      %3874 = vmatpush1.msra.mxu0 0.0
      %3875 = vmatprep.subr.mxu0 0.0
      %3876 = vmatpush1.msra.mxu0 0.0
      %3877 = vmatprep.subr.mxu0 0.0
      %3878 = vmatpush1.msra.mxu0 0.0
      %3879 = vmatprep.subr.mxu0 0.0
      %3880 = vmatpush1.msra.mxu0 0.0
      %3881 = vmatprep.subr.mxu0 0.0
      %3882 = vmatpush1.msra.mxu0 0.0
      %3883 = vmatprep.subr.mxu0 0.0
      %3884 = vmatpush1.msra.mxu0 0.0
      %3885 = vmatprep.subr.mxu0 0.0
      %3886 = vmatpush1.msra.mxu0 0.0
      %3887 = vmatprep.subr.mxu0 0.0
      %3888 = vmatpush1.msra.mxu0 0.0
      %3889 = vmatprep.subr.mxu0 0.0
      %3890 = vmatpush1.msra.mxu0 0.0
      %3891 = vmatprep.subr.mxu0 0.0
      %3892 = vmatpush1.msra.mxu0 0.0
      %3893 = vmatprep.subr.mxu0 0.0
      %3894 = vmatpush1.msra.mxu0 0.0
      %3895 = vmatprep.subr.mxu0 0.0
      %3896 = vmatpush1.msra.mxu0 0.0
      %3897 = vmatprep.mubr.f32.mxu0 0.0
      %3898 = vmatmul.mubr.f32.gmra.mrb[0].mxu0 %v3831
      %v3899 = vpop.f32.mrb[0].mxu0
      %v3900 = vadd.f32 0.0, %v3899
      %v3901 = vpop.f32.mrb[0].mxu0
      %3902 = vdwg.mxu0
      %v3903 = vadd.f32 %v3830, %v3900
      %v3904 = vxor.u32 %v3903, 2147483648
      %v3905 = vmul.f32 %v3904, 1.442695
      %v3906 = vpow.pop %v3905
      %v3907 = vadd.f32 %v3906, 1.0
      %v3908 = vrcp.pop %v3907
      %v3909 = vmul.f32 1.0, %v3908
      %v3910 = vadd.f32 %v3900, %v3277
      %3912 = vrot.lane.b32.xlu0 %v3910, 64
      %v3913 = vpop.permute.xlu0 %3912
      %v3915 = vmul.f32 %v3909, %v3913
      %3917 = vrot.lane.b32.xlu0 %v3915, 64
      %v3918 = vpop.permute.xlu0 %3917
      %v3920 = vadd.f32 %v3830, %v3918
      %v3921 = vtanh.pop %v3920
      %v3922 = vsub.f32 1.0, %v3909
      %3924 = vrot.lane.b32.xlu0 %v3921, 96
      %v3925 = vpop.permute.xlu0 %3924
      %v3927 = vmul.f32 %v3922, %v3925
      %v3928 = vmul.f32 %v3909, %v3824
      %v3929 = vadd.f32 %v3927, %v3928
      %3931 = vrot.lane.b32.xlu0 %v3929, 96
      %v3932 = vpop.permute.xlu0 %3931
      %3934 = vst.msk [vmem:[#allocation3 + $0x6] sm:$0x1] %vm3303, %v3932
      %v3935 = vld [vmem:[#allocation2 + $0x7] sm:$0x1]
      %v3936 = vsel %vm3190, %v3932, 0
      %3938 = vmatprep.subr.mxu0 0.0
      %3939 = vmatpush1.msra.mxu0 %v3184
      %3940 = vmatprep.subr.mxu0 0.0
      %3941 = vmatpush1.msra.mxu0 %v3185
      %3942 = vmatprep.subr.mxu0 0.0
      %3943 = vmatpush1.msra.mxu0 %v3186
      %3944 = vmatprep.subr.mxu0 0.0
      %3945 = vmatpush1.msra.mxu0 %v3187
      %3946 = vmatprep.subr.mxu0 0.0
      %3947 = vmatpush1.msra.mxu0 0.0
      %3948 = vmatprep.subr.mxu0 0.0
      %3949 = vmatpush1.msra.mxu0 0.0
      %3950 = vmatprep.subr.mxu0 0.0
      %3951 = vmatpush1.msra.mxu0 0.0
      %3952 = vmatprep.subr.mxu0 0.0
      %3953 = vmatpush1.msra.mxu0 0.0
      %3954 = vmatprep.subr.mxu0 0.0
      %3955 = vmatpush1.msra.mxu0 0.0
      %3956 = vmatprep.subr.mxu0 0.0
      %3957 = vmatpush1.msra.mxu0 0.0
      %3958 = vmatprep.subr.mxu0 0.0
      %3959 = vmatpush1.msra.mxu0 0.0
      %3960 = vmatprep.subr.mxu0 0.0
      %3961 = vmatpush1.msra.mxu0 0.0
      %3962 = vmatprep.subr.mxu0 0.0
      %3963 = vmatpush1.msra.mxu0 0.0
      %3964 = vmatprep.subr.mxu0 0.0
      %3965 = vmatpush1.msra.mxu0 0.0
      %3966 = vmatprep.subr.mxu0 0.0
      %3967 = vmatpush1.msra.mxu0 0.0
      %3968 = vmatprep.subr.mxu0 0.0
      %3969 = vmatpush1.msra.mxu0 0.0
      %3970 = vmatprep.subr.mxu0 0.0
      %3971 = vmatpush1.msra.mxu0 0.0
      %3972 = vmatprep.subr.mxu0 0.0
      %3973 = vmatpush1.msra.mxu0 0.0
      %3974 = vmatprep.subr.mxu0 0.0
      %3975 = vmatpush1.msra.mxu0 0.0
      %3976 = vmatprep.subr.mxu0 0.0
      %3977 = vmatpush1.msra.mxu0 0.0
      %3978 = vmatprep.subr.mxu0 0.0
      %3979 = vmatpush1.msra.mxu0 0.0
      %3980 = vmatprep.subr.mxu0 0.0
      %3981 = vmatpush1.msra.mxu0 0.0
      %3982 = vmatprep.subr.mxu0 0.0
      %3983 = vmatpush1.msra.mxu0 0.0
      %3984 = vmatprep.subr.mxu0 0.0
      %3985 = vmatpush1.msra.mxu0 0.0
      %3986 = vmatprep.subr.mxu0 0.0
      %3987 = vmatpush1.msra.mxu0 0.0
      %3988 = vmatprep.subr.mxu0 0.0
      %3989 = vmatpush1.msra.mxu0 0.0
      %3990 = vmatprep.subr.mxu0 0.0
      %3991 = vmatpush1.msra.mxu0 0.0
      %3992 = vmatprep.subr.mxu0 0.0
      %3993 = vmatpush1.msra.mxu0 0.0
      %3994 = vmatprep.subr.mxu0 0.0
      %3995 = vmatpush1.msra.mxu0 0.0
      %3996 = vmatprep.subr.mxu0 0.0
      %3997 = vmatpush1.msra.mxu0 0.0
      %3998 = vmatprep.subr.mxu0 0.0
      %3999 = vmatpush1.msra.mxu0 0.0
      %4000 = vmatprep.subr.mxu0 0.0
      %4001 = vmatpush1.msra.mxu0 0.0
      %4002 = vmatprep.mubr.f32.mxu0 0.0
      %4003 = vmatmul.mubr.f32.gmra.mrb[0].mxu0 %v3936
      %v4004 = vpop.f32.mrb[0].mxu0
      %v4005 = vadd.f32 0.0, %v4004
      %v4006 = vpop.f32.mrb[0].mxu0
      %4007 = vdwg.mxu0
      %v4008 = vadd.f32 %v3935, %v4005
      %v4009 = vxor.u32 %v4008, 2147483648
      %v4010 = vmul.f32 %v4009, 1.442695
      %v4011 = vpow.pop %v4010
      %v4012 = vadd.f32 %v4011, 1.0
      %v4013 = vrcp.pop %v4012
      %v4014 = vmul.f32 1.0, %v4013
      %v4015 = vadd.f32 %v4005, %v3277
      %4017 = vrot.lane.b32.xlu0 %v4015, 64
      %v4018 = vpop.permute.xlu0 %4017
      %v4020 = vmul.f32 %v4014, %v4018
      %4022 = vrot.lane.b32.xlu0 %v4020, 64
      %v4023 = vpop.permute.xlu0 %4022
      %v4025 = vadd.f32 %v3935, %v4023
      %v4026 = vtanh.pop %v4025
      %v4027 = vsub.f32 1.0, %v4014
      %4029 = vrot.lane.b32.xlu0 %v4026, 96
      %v4030 = vpop.permute.xlu0 %4029
      %v4032 = vmul.f32 %v4027, %v4030
      %v4033 = vmul.f32 %v4014, %v3929
      %v4034 = vadd.f32 %v4032, %v4033
      %4036 = vrot.lane.b32.xlu0 %v4034, 96
      %v4037 = vpop.permute.xlu0 %4036
      %4039 = vst.msk [vmem:[#allocation3 + $0x7] sm:$0x1] %vm3303, %v4037
      %v4040 = vld [vmem:[#allocation2 + $0x8] sm:$0x1]
      %v4041 = vsel %vm3190, %v4037, 0
      %4043 = vmatprep.subr.mxu0 0.0
      %4044 = vmatpush1.msra.mxu0 %v3184
      %4045 = vmatprep.subr.mxu0 0.0
      %4046 = vmatpush1.msra.mxu0 %v3185
      %4047 = vmatprep.subr.mxu0 0.0
      %4048 = vmatpush1.msra.mxu0 %v3186
      %4049 = vmatprep.subr.mxu0 0.0
      %4050 = vmatpush1.msra.mxu0 %v3187
      %4051 = vmatprep.subr.mxu0 0.0
      %4052 = vmatpush1.msra.mxu0 0.0
      %4053 = vmatprep.subr.mxu0 0.0
      %4054 = vmatpush1.msra.mxu0 0.0
      %4055 = vmatprep.subr.mxu0 0.0
      %4056 = vmatpush1.msra.mxu0 0.0
      %4057 = vmatprep.subr.mxu0 0.0
      %4058 = vmatpush1.msra.mxu0 0.0
      %4059 = vmatprep.subr.mxu0 0.0
      %4060 = vmatpush1.msra.mxu0 0.0
      %4061 = vmatprep.subr.mxu0 0.0
      %4062 = vmatpush1.msra.mxu0 0.0
      %4063 = vmatprep.subr.mxu0 0.0
      %4064 = vmatpush1.msra.mxu0 0.0
      %4065 = vmatprep.subr.mxu0 0.0
      %4066 = vmatpush1.msra.mxu0 0.0
      %4067 = vmatprep.subr.mxu0 0.0
      %4068 = vmatpush1.msra.mxu0 0.0
      %4069 = vmatprep.subr.mxu0 0.0
      %4070 = vmatpush1.msra.mxu0 0.0
      %4071 = vmatprep.subr.mxu0 0.0
      %4072 = vmatpush1.msra.mxu0 0.0
      %4073 = vmatprep.subr.mxu0 0.0
      %4074 = vmatpush1.msra.mxu0 0.0
      %4075 = vmatprep.subr.mxu0 0.0
      %4076 = vmatpush1.msra.mxu0 0.0
      %4077 = vmatprep.subr.mxu0 0.0
      %4078 = vmatpush1.msra.mxu0 0.0
      %4079 = vmatprep.subr.mxu0 0.0
      %4080 = vmatpush1.msra.mxu0 0.0
      %4081 = vmatprep.subr.mxu0 0.0
      %4082 = vmatpush1.msra.mxu0 0.0
      %4083 = vmatprep.subr.mxu0 0.0
      %4084 = vmatpush1.msra.mxu0 0.0
      %4085 = vmatprep.subr.mxu0 0.0
      %4086 = vmatpush1.msra.mxu0 0.0
      %4087 = vmatprep.subr.mxu0 0.0
      %4088 = vmatpush1.msra.mxu0 0.0
      %4089 = vmatprep.subr.mxu0 0.0
      %4090 = vmatpush1.msra.mxu0 0.0
      %4091 = vmatprep.subr.mxu0 0.0
      %4092 = vmatpush1.msra.mxu0 0.0
      %4093 = vmatprep.subr.mxu0 0.0
      %4094 = vmatpush1.msra.mxu0 0.0
      %4095 = vmatprep.subr.mxu0 0.0
      %4096 = vmatpush1.msra.mxu0 0.0
      %4097 = vmatprep.subr.mxu0 0.0
      %4098 = vmatpush1.msra.mxu0 0.0
      %4099 = vmatprep.subr.mxu0 0.0
      %4100 = vmatpush1.msra.mxu0 0.0
      %4101 = vmatprep.subr.mxu0 0.0
      %4102 = vmatpush1.msra.mxu0 0.0
      %4103 = vmatprep.subr.mxu0 0.0
      %4104 = vmatpush1.msra.mxu0 0.0
      %4105 = vmatprep.subr.mxu0 0.0
      %4106 = vmatpush1.msra.mxu0 0.0
      %4107 = vmatprep.mubr.f32.mxu0 0.0
      %4108 = vmatmul.mubr.f32.gmra.mrb[0].mxu0 %v4041
      %v4109 = vpop.f32.mrb[0].mxu0
      %v4110 = vadd.f32 0.0, %v4109
      %v4111 = vpop.f32.mrb[0].mxu0
      %4112 = vdwg.mxu0
      %v4113 = vadd.f32 %v4040, %v4110
      %v4114 = vxor.u32 %v4113, 2147483648
      %v4115 = vmul.f32 %v4114, 1.442695
      %v4116 = vpow.pop %v4115
      %v4117 = vadd.f32 %v4116, 1.0
      %v4118 = vrcp.pop %v4117
      %v4119 = vmul.f32 1.0, %v4118
      %v4120 = vadd.f32 %v4110, %v3277
      %4122 = vrot.lane.b32.xlu0 %v4120, 64
      %v4123 = vpop.permute.xlu0 %4122
      %v4125 = vmul.f32 %v4119, %v4123
      %4127 = vrot.lane.b32.xlu0 %v4125, 64
      %v4128 = vpop.permute.xlu0 %4127
      %v4130 = vadd.f32 %v4040, %v4128
      %v4131 = vtanh.pop %v4130
      %v4132 = vsub.f32 1.0, %v4119
      %4134 = vrot.lane.b32.xlu0 %v4131, 96
      %v4135 = vpop.permute.xlu0 %4134
      %v4137 = vmul.f32 %v4132, %v4135
      %v4138 = vmul.f32 %v4119, %v4034
      %v4139 = vadd.f32 %v4137, %v4138
      %4141 = vrot.lane.b32.xlu0 %v4139, 96
      %v4142 = vpop.permute.xlu0 %4141
      %4144 = vst.msk [vmem:[#allocation3 + $0x8] sm:$0x1] %vm3303, %v4142
      %v4145 = vld [vmem:[#allocation2 + $0x9] sm:$0x1]
      %v4146 = vsel %vm3190, %v4142, 0
      %4148 = vmatprep.subr.mxu0 0.0
      %4149 = vmatpush1.msra.mxu0 %v3184
      %4150 = vmatprep.subr.mxu0 0.0
      %4151 = vmatpush1.msra.mxu0 %v3185
      %4152 = vmatprep.subr.mxu0 0.0
      %4153 = vmatpush1.msra.mxu0 %v3186
      %4154 = vmatprep.subr.mxu0 0.0
      %4155 = vmatpush1.msra.mxu0 %v3187
      %4156 = vmatprep.subr.mxu0 0.0
      %4157 = vmatpush1.msra.mxu0 0.0
      %4158 = vmatprep.subr.mxu0 0.0
      %4159 = vmatpush1.msra.mxu0 0.0
      %4160 = vmatprep.subr.mxu0 0.0
      %4161 = vmatpush1.msra.mxu0 0.0
      %4162 = vmatprep.subr.mxu0 0.0
      %4163 = vmatpush1.msra.mxu0 0.0
      %4164 = vmatprep.subr.mxu0 0.0
      %4165 = vmatpush1.msra.mxu0 0.0
      %4166 = vmatprep.subr.mxu0 0.0
      %4167 = vmatpush1.msra.mxu0 0.0
      %4168 = vmatprep.subr.mxu0 0.0
      %4169 = vmatpush1.msra.mxu0 0.0
      %4170 = vmatprep.subr.mxu0 0.0
      %4171 = vmatpush1.msra.mxu0 0.0
      %4172 = vmatprep.subr.mxu0 0.0
      %4173 = vmatpush1.msra.mxu0 0.0
      %4174 = vmatprep.subr.mxu0 0.0
      %4175 = vmatpush1.msra.mxu0 0.0
      %4176 = vmatprep.subr.mxu0 0.0
      %4177 = vmatpush1.msra.mxu0 0.0
      %4178 = vmatprep.subr.mxu0 0.0
      %4179 = vmatpush1.msra.mxu0 0.0
      %4180 = vmatprep.subr.mxu0 0.0
      %4181 = vmatpush1.msra.mxu0 0.0
      %4182 = vmatprep.subr.mxu0 0.0
      %4183 = vmatpush1.msra.mxu0 0.0
      %4184 = vmatprep.subr.mxu0 0.0
      %4185 = vmatpush1.msra.mxu0 0.0
      %4186 = vmatprep.subr.mxu0 0.0
      %4187 = vmatpush1.msra.mxu0 0.0
      %4188 = vmatprep.subr.mxu0 0.0
      %4189 = vmatpush1.msra.mxu0 0.0
      %4190 = vmatprep.subr.mxu0 0.0
      %4191 = vmatpush1.msra.mxu0 0.0
      %4192 = vmatprep.subr.mxu0 0.0
      %4193 = vmatpush1.msra.mxu0 0.0
      %4194 = vmatprep.subr.mxu0 0.0
      %4195 = vmatpush1.msra.mxu0 0.0
      %4196 = vmatprep.subr.mxu0 0.0
      %4197 = vmatpush1.msra.mxu0 0.0
      %4198 = vmatprep.subr.mxu0 0.0
      %4199 = vmatpush1.msra.mxu0 0.0
      %4200 = vmatprep.subr.mxu0 0.0
      %4201 = vmatpush1.msra.mxu0 0.0
      %4202 = vmatprep.subr.mxu0 0.0
      %4203 = vmatpush1.msra.mxu0 0.0
      %4204 = vmatprep.subr.mxu0 0.0
      %4205 = vmatpush1.msra.mxu0 0.0
      %4206 = vmatprep.subr.mxu0 0.0
      %4207 = vmatpush1.msra.mxu0 0.0
      %4208 = vmatprep.subr.mxu0 0.0
      %4209 = vmatpush1.msra.mxu0 0.0
      %4210 = vmatprep.subr.mxu0 0.0
      %4211 = vmatpush1.msra.mxu0 0.0
      %4212 = vmatprep.mubr.f32.mxu0 0.0
      %4213 = vmatmul.mubr.f32.gmra.mrb[0].mxu0 %v4146
      %v4214 = vpop.f32.mrb[0].mxu0
      %v4215 = vadd.f32 0.0, %v4214
      %v4216 = vpop.f32.mrb[0].mxu0
      %4217 = vdwg.mxu0
      %v4218 = vadd.f32 %v4145, %v4215
      %v4219 = vxor.u32 %v4218, 2147483648
      %v4220 = vmul.f32 %v4219, 1.442695
      %v4221 = vpow.pop %v4220
      %v4222 = vadd.f32 %v4221, 1.0
      %v4223 = vrcp.pop %v4222
      %v4224 = vmul.f32 1.0, %v4223
      %v4225 = vadd.f32 %v4215, %v3277
      %4227 = vrot.lane.b32.xlu0 %v4225, 64
      %v4228 = vpop.permute.xlu0 %4227
      %v4230 = vmul.f32 %v4224, %v4228
      %4232 = vrot.lane.b32.xlu0 %v4230, 64
      %v4233 = vpop.permute.xlu0 %4232
      %v4235 = vadd.f32 %v4145, %v4233
      %v4236 = vtanh.pop %v4235
      %v4237 = vsub.f32 1.0, %v4224
      %4239 = vrot.lane.b32.xlu0 %v4236, 96
      %v4240 = vpop.permute.xlu0 %4239
      %v4242 = vmul.f32 %v4237, %v4240
      %v4243 = vmul.f32 %v4224, %v4139
      %v4244 = vadd.f32 %v4242, %v4243
      %4246 = vrot.lane.b32.xlu0 %v4244, 96
      %v4247 = vpop.permute.xlu0 %4246
      %4249 = vst.msk [vmem:[#allocation3 + $0x9] sm:$0x1] %vm3303, %v4247
      %v4250 = vld [vmem:[#allocation3] sm:$0xff]
      %v4251 = vld [vmem:[#allocation3 + $0x8] sm:$0x3]
      %v4252 = vld [vmem:[%s9] sm:$0xff]
      %v4253 = vld [vmem:[%s9 + $0x8] sm:$0xff]
      %v4254 = vld [vmem:[%s9 + $0x10] sm:$0xff]
      %v4255 = vld [vmem:[%s9 + $0x18] sm:$0xff]
      %v4256 = vld [vmem:[%s11] sm:$0x1]
      %v4258 = vlaneseq
      %v4259 = vshrl.u32 %v4258, 7
      %v4260 = vsub.s32 0, %v4259
      %v4261 = vrot.slane %v4256, %v4260
      %v4264 = vsel %vm3190, %v4250, 0
      %v4267 = vsel %vm3190, %v4251, 0
      %4269 = vmatprep.subr.mxu0 0.0
      %4270 = vmatpush1.msra.mxu0 %v4252
      %4271 = vmatprep.subr.mxu0 0.0
      %4272 = vmatpush1.msra.mxu0 %v4253
      %4273 = vmatprep.subr.mxu0 0.0
      %4274 = vmatpush1.msra.mxu0 %v4254
      %4275 = vmatprep.subr.mxu0 0.0
      %4276 = vmatpush1.msra.mxu0 %v4255
      %4277 = vmatprep.subr.mxu0 0.0
      %4278 = vmatpush1.msra.mxu0 0.0
      %4279 = vmatprep.subr.mxu0 0.0
      %4280 = vmatpush1.msra.mxu0 0.0
      %4281 = vmatprep.subr.mxu0 0.0
      %4282 = vmatpush1.msra.mxu0 0.0
      %4283 = vmatprep.subr.mxu0 0.0
      %4284 = vmatpush1.msra.mxu0 0.0
      %4285 = vmatprep.subr.mxu0 0.0
      %4286 = vmatpush1.msra.mxu0 0.0
      %4287 = vmatprep.subr.mxu0 0.0
      %4288 = vmatpush1.msra.mxu0 0.0
      %4289 = vmatprep.subr.mxu0 0.0
      %4290 = vmatpush1.msra.mxu0 0.0
      %4291 = vmatprep.subr.mxu0 0.0
      %4292 = vmatpush1.msra.mxu0 0.0
      %4293 = vmatprep.subr.mxu0 0.0
      %4294 = vmatpush1.msra.mxu0 0.0
      %4295 = vmatprep.subr.mxu0 0.0
      %4296 = vmatpush1.msra.mxu0 0.0
      %4297 = vmatprep.subr.mxu0 0.0
      %4298 = vmatpush1.msra.mxu0 0.0
      %4299 = vmatprep.subr.mxu0 0.0
      %4300 = vmatpush1.msra.mxu0 0.0
      %4301 = vmatprep.subr.mxu0 0.0
      %4302 = vmatpush1.msra.mxu0 0.0
      %4303 = vmatprep.subr.mxu0 0.0
      %4304 = vmatpush1.msra.mxu0 0.0
      %4305 = vmatprep.subr.mxu0 0.0
      %4306 = vmatpush1.msra.mxu0 0.0
      %4307 = vmatprep.subr.mxu0 0.0
      %4308 = vmatpush1.msra.mxu0 0.0
      %4309 = vmatprep.subr.mxu0 0.0
      %4310 = vmatpush1.msra.mxu0 0.0
      %4311 = vmatprep.subr.mxu0 0.0
      %4312 = vmatpush1.msra.mxu0 0.0
      %4313 = vmatprep.subr.mxu0 0.0
      %4314 = vmatpush1.msra.mxu0 0.0
      %4315 = vmatprep.subr.mxu0 0.0
      %4316 = vmatpush1.msra.mxu0 0.0
      %4317 = vmatprep.subr.mxu0 0.0
      %4318 = vmatpush1.msra.mxu0 0.0
      %4319 = vmatprep.subr.mxu0 0.0
      %4320 = vmatpush1.msra.mxu0 0.0
      %4321 = vmatprep.subr.mxu0 0.0
      %4322 = vmatpush1.msra.mxu0 0.0
      %4323 = vmatprep.subr.mxu0 0.0
      %4324 = vmatpush1.msra.mxu0 0.0
      %4325 = vmatprep.subr.mxu0 0.0
      %4326 = vmatpush1.msra.mxu0 0.0
      %4327 = vmatprep.subr.mxu0 0.0
      %4328 = vmatpush1.msra.mxu0 0.0
      %4329 = vmatprep.subr.mxu0 0.0
      %4330 = vmatpush1.msra.mxu0 0.0
      %4331 = vmatprep.subr.mxu0 0.0
      %4332 = vmatpush1.msra.mxu0 0.0
      %4333 = vmatprep.mubr.f32.mxu0 0.0
      %4334 = vmatmul.mubr.f32.gmra.mrb[0].mxu0 %v4264
      %v4335 = vpop.f32.mrb[0].mxu0
      %v4336 = vadd.f32 %v4261, %v4335
      %v4337 = vpop.f32.mrb[0].mxu0
      %4338 = vmatprep.mubr.f32.mxu0 0.0
      %4339 = vmatmul.mubr.f32.gmra.mrb[0].mxu0 %v4267
      %v4340 = vpop.f32.mrb[0].mxu0
      %v4341 = vadd.f32 %v4261, %v4340
      %v4342 = vpop.f32.mrb[0].mxu0
      %4343 = vdwg.mxu0
      %4344 = vst.msk [vmem:[#allocation2] sm:$0xff] %vm3180, %v4336
      %4345 = vst.msk [vmem:[#allocation2 + $0x8] sm:$0x3] %vm3182, %v4341
      %v4346 = vld [vmem:[%s10] sm:$0xff]
      %v4347 = vld [vmem:[%s10 + $0x8] sm:$0xff]
      %v4348 = vld [vmem:[%s10 + $0x10] sm:$0xff]
      %v4349 = vld [vmem:[%s10 + $0x18] sm:$0xff]
      %v4350 = vld [vmem:[%s12] sm:$0x1]
      %v4351 = vld [vmem:[#allocation2] sm:$0x1]
      %4352 = vmatprep.subr.mxu0 0.0
      %4353 = vmatpush1.msra.mxu0 %v4346
      %4354 = vmatprep.subr.mxu0 0.0
      %4355 = vmatpush1.msra.mxu0 %v4347
      %4356 = vmatprep.subr.mxu0 0.0
      %4357 = vmatpush1.msra.mxu0 %v4348
      %4358 = vmatprep.subr.mxu0 0.0
      %4359 = vmatpush1.msra.mxu0 %v4349
      %4360 = vmatprep.subr.mxu0 0.0
      %4361 = vmatpush1.msra.mxu0 0.0
      %4362 = vmatprep.subr.mxu0 0.0
      %4363 = vmatpush1.msra.mxu0 0.0
      %4364 = vmatprep.subr.mxu0 0.0
      %4365 = vmatpush1.msra.mxu0 0.0
      %4366 = vmatprep.subr.mxu0 0.0
      %4367 = vmatpush1.msra.mxu0 0.0
      %4368 = vmatprep.subr.mxu0 0.0
      %4369 = vmatpush1.msra.mxu0 0.0
      %4370 = vmatprep.subr.mxu0 0.0
      %4371 = vmatpush1.msra.mxu0 0.0
      %4372 = vmatprep.subr.mxu0 0.0
      %4373 = vmatpush1.msra.mxu0 0.0
      %4374 = vmatprep.subr.mxu0 0.0
      %4375 = vmatpush1.msra.mxu0 0.0
      %4376 = vmatprep.subr.mxu0 0.0
      %4377 = vmatpush1.msra.mxu0 0.0
      %4378 = vmatprep.subr.mxu0 0.0
      %4379 = vmatpush1.msra.mxu0 0.0
      %4380 = vmatprep.subr.mxu0 0.0
      %4381 = vmatpush1.msra.mxu0 0.0
      %4382 = vmatprep.subr.mxu0 0.0
      %4383 = vmatpush1.msra.mxu0 0.0
      %4384 = vmatprep.subr.mxu0 0.0
      %4385 = vmatpush1.msra.mxu0 0.0
      %4386 = vmatprep.subr.mxu0 0.0
      %4387 = vmatpush1.msra.mxu0 0.0
      %4388 = vmatprep.subr.mxu0 0.0
      %4389 = vmatpush1.msra.mxu0 0.0
      %4390 = vmatprep.subr.mxu0 0.0
      %4391 = vmatpush1.msra.mxu0 0.0
      %4392 = vmatprep.subr.mxu0 0.0
      %4393 = vmatpush1.msra.mxu0 0.0
      %4394 = vmatprep.subr.mxu0 0.0
      %4395 = vmatpush1.msra.mxu0 0.0
      %4396 = vmatprep.subr.mxu0 0.0
      %4397 = vmatpush1.msra.mxu0 0.0
      %4398 = vmatprep.subr.mxu0 0.0
      %4399 = vmatpush1.msra.mxu0 0.0
      %4400 = vmatprep.subr.mxu0 0.0
      %4401 = vmatpush1.msra.mxu0 0.0
      %4402 = vmatprep.subr.mxu0 0.0
      %4403 = vmatpush1.msra.mxu0 0.0
      %4404 = vmatprep.subr.mxu0 0.0
      %4405 = vmatpush1.msra.mxu0 0.0
      %4406 = vmatprep.subr.mxu0 0.0
      %4407 = vmatpush1.msra.mxu0 0.0
      %4408 = vmatprep.subr.mxu0 0.0
      %4409 = vmatpush1.msra.mxu0 0.0
      %4410 = vmatprep.subr.mxu0 0.0
      %4411 = vmatpush1.msra.mxu0 0.0
      %4412 = vmatprep.subr.mxu0 0.0
      %4413 = vmatpush1.msra.mxu0 0.0
      %4414 = vmatprep.subr.mxu0 0.0
      %4415 = vmatpush1.msra.mxu0 0.0
      %4416 = vmatprep.mubr.f32.mxu0 0.0
      %4417 = vmatmul.mubr.f32.gmra.mrb[0].mxu0 %v3192
      %v4418 = vpop.f32.mrb[0].mxu0
      %v4419 = vadd.f32 0.0, %v4418
      %v4420 = vpop.f32.mrb[0].mxu0
      %4421 = vdwg.mxu0
      %v4422 = vadd.f32 %v4351, %v4419
      %v4423 = vxor.u32 %v4422, 2147483648
      %v4424 = vmul.f32 %v4423, 1.442695
      %v4425 = vpow.pop %v4424
      %v4426 = vadd.f32 %v4425, 1.0
      %v4427 = vrcp.pop %v4426
      %v4428 = vmul.f32 1.0, %v4427
      %v4430 = vlaneseq
      %v4431 = vshrl.u32 %v4430, 7
      %v4432 = vsub.s32 0, %v4431
      %v4433 = vrot.slane %v4350, %v4432
      %4434 = vrot.lane.b32.xlu0 %v4433, 64
      %v4435 = vpop.permute.xlu0 %4434
      %v4437 = vadd.f32 %v4419, %v4435
      %4439 = vrot.lane.b32.xlu0 %v4437, 64
      %v4440 = vpop.permute.xlu0 %4439
      %v4442 = vmul.f32 %v4428, %v4440
      %4444 = vrot.lane.b32.xlu0 %v4442, 64
      %v4445 = vpop.permute.xlu0 %4444
      %v4447 = vadd.f32 %v4351, %v4445
      %v4448 = vtanh.pop %v4447
      %v4449 = vsub.f32 1.0, %v4428
      %4451 = vrot.lane.b32.xlu0 %v4448, 96
      %v4452 = vpop.permute.xlu0 %4451
      %v4454 = vmul.f32 %v4449, %v4452
      %v4455 = vmul.f32 %v4428, 0.0
      %v4456 = vadd.f32 %v4454, %v4455
      %4458 = vrot.lane.b32.xlu0 %v4456, 96
      %v4459 = vpop.permute.xlu0 %4458
      %4461 = vst.msk [vmem:[#allocation3] sm:$0x1] %vm3303, %v4459
      %v4462 = vld [vmem:[#allocation2 + $0x1] sm:$0x1]
      %v4463 = vsel %vm3190, %v4459, 0
      %4465 = vmatprep.subr.mxu0 0.0
      %4466 = vmatpush1.msra.mxu0 %v4346
      %4467 = vmatprep.subr.mxu0 0.0
      %4468 = vmatpush1.msra.mxu0 %v4347
      %4469 = vmatprep.subr.mxu0 0.0
      %4470 = vmatpush1.msra.mxu0 %v4348
      %4471 = vmatprep.subr.mxu0 0.0
      %4472 = vmatpush1.msra.mxu0 %v4349
      %4473 = vmatprep.subr.mxu0 0.0
      %4474 = vmatpush1.msra.mxu0 0.0
      %4475 = vmatprep.subr.mxu0 0.0
      %4476 = vmatpush1.msra.mxu0 0.0
      %4477 = vmatprep.subr.mxu0 0.0
      %4478 = vmatpush1.msra.mxu0 0.0
      %4479 = vmatprep.subr.mxu0 0.0
      %4480 = vmatpush1.msra.mxu0 0.0
      %4481 = vmatprep.subr.mxu0 0.0
      %4482 = vmatpush1.msra.mxu0 0.0
      %4483 = vmatprep.subr.mxu0 0.0
      %4484 = vmatpush1.msra.mxu0 0.0
      %4485 = vmatprep.subr.mxu0 0.0
      %4486 = vmatpush1.msra.mxu0 0.0
      %4487 = vmatprep.subr.mxu0 0.0
      %4488 = vmatpush1.msra.mxu0 0.0
      %4489 = vmatprep.subr.mxu0 0.0
      %4490 = vmatpush1.msra.mxu0 0.0
      %4491 = vmatprep.subr.mxu0 0.0
      %4492 = vmatpush1.msra.mxu0 0.0
      %4493 = vmatprep.subr.mxu0 0.0
      %4494 = vmatpush1.msra.mxu0 0.0
      %4495 = vmatprep.subr.mxu0 0.0
      %4496 = vmatpush1.msra.mxu0 0.0
      %4497 = vmatprep.subr.mxu0 0.0
      %4498 = vmatpush1.msra.mxu0 0.0
      %4499 = vmatprep.subr.mxu0 0.0
      %4500 = vmatpush1.msra.mxu0 0.0
      %4501 = vmatprep.subr.mxu0 0.0
      %4502 = vmatpush1.msra.mxu0 0.0
      %4503 = vmatprep.subr.mxu0 0.0
      %4504 = vmatpush1.msra.mxu0 0.0
      %4505 = vmatprep.subr.mxu0 0.0
      %4506 = vmatpush1.msra.mxu0 0.0
      %4507 = vmatprep.subr.mxu0 0.0
      %4508 = vmatpush1.msra.mxu0 0.0
      %4509 = vmatprep.subr.mxu0 0.0
      %4510 = vmatpush1.msra.mxu0 0.0
      %4511 = vmatprep.subr.mxu0 0.0
      %4512 = vmatpush1.msra.mxu0 0.0
      %4513 = vmatprep.subr.mxu0 0.0
      %4514 = vmatpush1.msra.mxu0 0.0
      %4515 = vmatprep.subr.mxu0 0.0
      %4516 = vmatpush1.msra.mxu0 0.0
      %4517 = vmatprep.subr.mxu0 0.0
      %4518 = vmatpush1.msra.mxu0 0.0
      %4519 = vmatprep.subr.mxu0 0.0
      %4520 = vmatpush1.msra.mxu0 0.0
      %4521 = vmatprep.subr.mxu0 0.0
      %4522 = vmatpush1.msra.mxu0 0.0
      %4523 = vmatprep.subr.mxu0 0.0
      %4524 = vmatpush1.msra.mxu0 0.0
      %4525 = vmatprep.subr.mxu0 0.0
      %4526 = vmatpush1.msra.mxu0 0.0
      %4527 = vmatprep.subr.mxu0 0.0
      %4528 = vmatpush1.msra.mxu0 0.0
      %4529 = vmatprep.mubr.f32.mxu0 0.0
      %4530 = vmatmul.mubr.f32.gmra.mrb[0].mxu0 %v4463
      %v4531 = vpop.f32.mrb[0].mxu0
      %v4532 = vadd.f32 0.0, %v4531
      %v4533 = vpop.f32.mrb[0].mxu0
      %4534 = vdwg.mxu0
      %v4535 = vadd.f32 %v4462, %v4532
      %v4536 = vxor.u32 %v4535, 2147483648
      %v4537 = vmul.f32 %v4536, 1.442695
      %v4538 = vpow.pop %v4537
      %v4539 = vadd.f32 %v4538, 1.0
      %v4540 = vrcp.pop %v4539
      %v4541 = vmul.f32 1.0, %v4540
      %v4542 = vadd.f32 %v4532, %v4435
      %4544 = vrot.lane.b32.xlu0 %v4542, 64
      %v4545 = vpop.permute.xlu0 %4544
      %v4547 = vmul.f32 %v4541, %v4545
      %4549 = vrot.lane.b32.xlu0 %v4547, 64
      %v4550 = vpop.permute.xlu0 %4549
      %v4552 = vadd.f32 %v4462, %v4550
      %v4553 = vtanh.pop %v4552
      %v4554 = vsub.f32 1.0, %v4541
      %4556 = vrot.lane.b32.xlu0 %v4553, 96
      %v4557 = vpop.permute.xlu0 %4556
      %v4559 = vmul.f32 %v4554, %v4557
      %v4560 = vmul.f32 %v4541, %v4456
      %v4561 = vadd.f32 %v4559, %v4560
      %4563 = vrot.lane.b32.xlu0 %v4561, 96
      %v4564 = vpop.permute.xlu0 %4563
      %4566 = vst.msk [vmem:[#allocation3 + $0x1] sm:$0x1] %vm3303, %v4564
      %v4567 = vld [vmem:[#allocation2 + $0x2] sm:$0x1]
      %v4568 = vsel %vm3190, %v4564, 0
      %4570 = vmatprep.subr.mxu0 0.0
      %4571 = vmatpush1.msra.mxu0 %v4346
      %4572 = vmatprep.subr.mxu0 0.0
      %4573 = vmatpush1.msra.mxu0 %v4347
      %4574 = vmatprep.subr.mxu0 0.0
      %4575 = vmatpush1.msra.mxu0 %v4348
      %4576 = vmatprep.subr.mxu0 0.0
      %4577 = vmatpush1.msra.mxu0 %v4349
      %4578 = vmatprep.subr.mxu0 0.0
      %4579 = vmatpush1.msra.mxu0 0.0
      %4580 = vmatprep.subr.mxu0 0.0
      %4581 = vmatpush1.msra.mxu0 0.0
      %4582 = vmatprep.subr.mxu0 0.0
      %4583 = vmatpush1.msra.mxu0 0.0
      %4584 = vmatprep.subr.mxu0 0.0
      %4585 = vmatpush1.msra.mxu0 0.0
      %4586 = vmatprep.subr.mxu0 0.0
      %4587 = vmatpush1.msra.mxu0 0.0
      %4588 = vmatprep.subr.mxu0 0.0
      %4589 = vmatpush1.msra.mxu0 0.0
      %4590 = vmatprep.subr.mxu0 0.0
      %4591 = vmatpush1.msra.mxu0 0.0
      %4592 = vmatprep.subr.mxu0 0.0
      %4593 = vmatpush1.msra.mxu0 0.0
      %4594 = vmatprep.subr.mxu0 0.0
      %4595 = vmatpush1.msra.mxu0 0.0
      %4596 = vmatprep.subr.mxu0 0.0
      %4597 = vmatpush1.msra.mxu0 0.0
      %4598 = vmatprep.subr.mxu0 0.0
      %4599 = vmatpush1.msra.mxu0 0.0
      %4600 = vmatprep.subr.mxu0 0.0
      %4601 = vmatpush1.msra.mxu0 0.0
      %4602 = vmatprep.subr.mxu0 0.0
      %4603 = vmatpush1.msra.mxu0 0.0
      %4604 = vmatprep.subr.mxu0 0.0
      %4605 = vmatpush1.msra.mxu0 0.0
      %4606 = vmatprep.subr.mxu0 0.0
      %4607 = vmatpush1.msra.mxu0 0.0
      %4608 = vmatprep.subr.mxu0 0.0
      %4609 = vmatpush1.msra.mxu0 0.0
      %4610 = vmatprep.subr.mxu0 0.0
      %4611 = vmatpush1.msra.mxu0 0.0
      %4612 = vmatprep.subr.mxu0 0.0
      %4613 = vmatpush1.msra.mxu0 0.0
      %4614 = vmatprep.subr.mxu0 0.0
      %4615 = vmatpush1.msra.mxu0 0.0
      %4616 = vmatprep.subr.mxu0 0.0
      %4617 = vmatpush1.msra.mxu0 0.0
      %4618 = vmatprep.subr.mxu0 0.0
      %4619 = vmatpush1.msra.mxu0 0.0
      %4620 = vmatprep.subr.mxu0 0.0
      %4621 = vmatpush1.msra.mxu0 0.0
      %4622 = vmatprep.subr.mxu0 0.0
      %4623 = vmatpush1.msra.mxu0 0.0
      %4624 = vmatprep.subr.mxu0 0.0
      %4625 = vmatpush1.msra.mxu0 0.0
      %4626 = vmatprep.subr.mxu0 0.0
      %4627 = vmatpush1.msra.mxu0 0.0
      %4628 = vmatprep.subr.mxu0 0.0
      %4629 = vmatpush1.msra.mxu0 0.0
      %4630 = vmatprep.subr.mxu0 0.0
      %4631 = vmatpush1.msra.mxu0 0.0
      %4632 = vmatprep.subr.mxu0 0.0
      %4633 = vmatpush1.msra.mxu0 0.0
      %4634 = vmatprep.mubr.f32.mxu0 0.0
      %4635 = vmatmul.mubr.f32.gmra.mrb[0].mxu0 %v4568
      %v4636 = vpop.f32.mrb[0].mxu0
      %v4637 = vadd.f32 0.0, %v4636
      %v4638 = vpop.f32.mrb[0].mxu0
      %4639 = vdwg.mxu0
      %v4640 = vadd.f32 %v4567, %v4637
      %v4641 = vxor.u32 %v4640, 2147483648
      %v4642 = vmul.f32 %v4641, 1.442695
      %v4643 = vpow.pop %v4642
      %v4644 = vadd.f32 %v4643, 1.0
      %v4645 = vrcp.pop %v4644
      %v4646 = vmul.f32 1.0, %v4645
      %v4647 = vadd.f32 %v4637, %v4435
      %4649 = vrot.lane.b32.xlu0 %v4647, 64
      %v4650 = vpop.permute.xlu0 %4649
      %v4652 = vmul.f32 %v4646, %v4650
      %4654 = vrot.lane.b32.xlu0 %v4652, 64
      %v4655 = vpop.permute.xlu0 %4654
      %v4657 = vadd.f32 %v4567, %v4655
      %v4658 = vtanh.pop %v4657
      %v4659 = vsub.f32 1.0, %v4646
      %4661 = vrot.lane.b32.xlu0 %v4658, 96
      %v4662 = vpop.permute.xlu0 %4661
      %v4664 = vmul.f32 %v4659, %v4662
      %v4665 = vmul.f32 %v4646, %v4561
      %v4666 = vadd.f32 %v4664, %v4665
      %4668 = vrot.lane.b32.xlu0 %v4666, 96
      %v4669 = vpop.permute.xlu0 %4668
      %4671 = vst.msk [vmem:[#allocation3 + $0x2] sm:$0x1] %vm3303, %v4669
      %v4672 = vld [vmem:[#allocation2 + $0x3] sm:$0x1]
      %v4673 = vsel %vm3190, %v4669, 0
      %4675 = vmatprep.subr.mxu0 0.0
      %4676 = vmatpush1.msra.mxu0 %v4346
      %4677 = vmatprep.subr.mxu0 0.0
      %4678 = vmatpush1.msra.mxu0 %v4347
      %4679 = vmatprep.subr.mxu0 0.0
      %4680 = vmatpush1.msra.mxu0 %v4348
      %4681 = vmatprep.subr.mxu0 0.0
      %4682 = vmatpush1.msra.mxu0 %v4349
      %4683 = vmatprep.subr.mxu0 0.0
      %4684 = vmatpush1.msra.mxu0 0.0
      %4685 = vmatprep.subr.mxu0 0.0
      %4686 = vmatpush1.msra.mxu0 0.0
      %4687 = vmatprep.subr.mxu0 0.0
      %4688 = vmatpush1.msra.mxu0 0.0
      %4689 = vmatprep.subr.mxu0 0.0
      %4690 = vmatpush1.msra.mxu0 0.0
      %4691 = vmatprep.subr.mxu0 0.0
      %4692 = vmatpush1.msra.mxu0 0.0
      %4693 = vmatprep.subr.mxu0 0.0
      %4694 = vmatpush1.msra.mxu0 0.0
      %4695 = vmatprep.subr.mxu0 0.0
      %4696 = vmatpush1.msra.mxu0 0.0
      %4697 = vmatprep.subr.mxu0 0.0
      %4698 = vmatpush1.msra.mxu0 0.0
      %4699 = vmatprep.subr.mxu0 0.0
      %4700 = vmatpush1.msra.mxu0 0.0
      %4701 = vmatprep.subr.mxu0 0.0
      %4702 = vmatpush1.msra.mxu0 0.0
      %4703 = vmatprep.subr.mxu0 0.0
      %4704 = vmatpush1.msra.mxu0 0.0
      %4705 = vmatprep.subr.mxu0 0.0
      %4706 = vmatpush1.msra.mxu0 0.0
      %4707 = vmatprep.subr.mxu0 0.0
      %4708 = vmatpush1.msra.mxu0 0.0
      %4709 = vmatprep.subr.mxu0 0.0
      %4710 = vmatpush1.msra.mxu0 0.0
      %4711 = vmatprep.subr.mxu0 0.0
      %4712 = vmatpush1.msra.mxu0 0.0
      %4713 = vmatprep.subr.mxu0 0.0
      %4714 = vmatpush1.msra.mxu0 0.0
      %4715 = vmatprep.subr.mxu0 0.0
      %4716 = vmatpush1.msra.mxu0 0.0
      %4717 = vmatprep.subr.mxu0 0.0
      %4718 = vmatpush1.msra.mxu0 0.0
      %4719 = vmatprep.subr.mxu0 0.0
      %4720 = vmatpush1.msra.mxu0 0.0
      %4721 = vmatprep.subr.mxu0 0.0
      %4722 = vmatpush1.msra.mxu0 0.0
      %4723 = vmatprep.subr.mxu0 0.0
      %4724 = vmatpush1.msra.mxu0 0.0
      %4725 = vmatprep.subr.mxu0 0.0
      %4726 = vmatpush1.msra.mxu0 0.0
      %4727 = vmatprep.subr.mxu0 0.0
      %4728 = vmatpush1.msra.mxu0 0.0
      %4729 = vmatprep.subr.mxu0 0.0
      %4730 = vmatpush1.msra.mxu0 0.0
      %4731 = vmatprep.subr.mxu0 0.0
      %4732 = vmatpush1.msra.mxu0 0.0
      %4733 = vmatprep.subr.mxu0 0.0
      %4734 = vmatpush1.msra.mxu0 0.0
      %4735 = vmatprep.subr.mxu0 0.0
      %4736 = vmatpush1.msra.mxu0 0.0
      %4737 = vmatprep.subr.mxu0 0.0
      %4738 = vmatpush1.msra.mxu0 0.0
      %4739 = vmatprep.mubr.f32.mxu0 0.0
      %4740 = vmatmul.mubr.f32.gmra.mrb[0].mxu0 %v4673
      %v4741 = vpop.f32.mrb[0].mxu0
      %v4742 = vadd.f32 0.0, %v4741
      %v4743 = vpop.f32.mrb[0].mxu0
      %4744 = vdwg.mxu0
      %v4745 = vadd.f32 %v4672, %v4742
      %v4746 = vxor.u32 %v4745, 2147483648
      %v4747 = vmul.f32 %v4746, 1.442695
      %v4748 = vpow.pop %v4747
      %v4749 = vadd.f32 %v4748, 1.0
      %v4750 = vrcp.pop %v4749
      %v4751 = vmul.f32 1.0, %v4750
      %v4752 = vadd.f32 %v4742, %v4435
      %4754 = vrot.lane.b32.xlu0 %v4752, 64
      %v4755 = vpop.permute.xlu0 %4754
      %v4757 = vmul.f32 %v4751, %v4755
      %4759 = vrot.lane.b32.xlu0 %v4757, 64
      %v4760 = vpop.permute.xlu0 %4759
      %v4762 = vadd.f32 %v4672, %v4760
      %v4763 = vtanh.pop %v4762
      %v4764 = vsub.f32 1.0, %v4751
      %4766 = vrot.lane.b32.xlu0 %v4763, 96
      %v4767 = vpop.permute.xlu0 %4766
      %v4769 = vmul.f32 %v4764, %v4767
      %v4770 = vmul.f32 %v4751, %v4666
      %v4771 = vadd.f32 %v4769, %v4770
      %4773 = vrot.lane.b32.xlu0 %v4771, 96
      %v4774 = vpop.permute.xlu0 %4773
      %4776 = vst.msk [vmem:[#allocation3 + $0x3] sm:$0x1] %vm3303, %v4774
      %v4777 = vld [vmem:[#allocation2 + $0x4] sm:$0x1]
      %v4778 = vsel %vm3190, %v4774, 0
      %4780 = vmatprep.subr.mxu0 0.0
      %4781 = vmatpush1.msra.mxu0 %v4346
      %4782 = vmatprep.subr.mxu0 0.0
      %4783 = vmatpush1.msra.mxu0 %v4347
      %4784 = vmatprep.subr.mxu0 0.0
      %4785 = vmatpush1.msra.mxu0 %v4348
      %4786 = vmatprep.subr.mxu0 0.0
      %4787 = vmatpush1.msra.mxu0 %v4349
      %4788 = vmatprep.subr.mxu0 0.0
      %4789 = vmatpush1.msra.mxu0 0.0
      %4790 = vmatprep.subr.mxu0 0.0
      %4791 = vmatpush1.msra.mxu0 0.0
      %4792 = vmatprep.subr.mxu0 0.0
      %4793 = vmatpush1.msra.mxu0 0.0
      %4794 = vmatprep.subr.mxu0 0.0
      %4795 = vmatpush1.msra.mxu0 0.0
      %4796 = vmatprep.subr.mxu0 0.0
      %4797 = vmatpush1.msra.mxu0 0.0
      %4798 = vmatprep.subr.mxu0 0.0
      %4799 = vmatpush1.msra.mxu0 0.0
      %4800 = vmatprep.subr.mxu0 0.0
      %4801 = vmatpush1.msra.mxu0 0.0
      %4802 = vmatprep.subr.mxu0 0.0
      %4803 = vmatpush1.msra.mxu0 0.0
      %4804 = vmatprep.subr.mxu0 0.0
      %4805 = vmatpush1.msra.mxu0 0.0
      %4806 = vmatprep.subr.mxu0 0.0
      %4807 = vmatpush1.msra.mxu0 0.0
      %4808 = vmatprep.subr.mxu0 0.0
      %4809 = vmatpush1.msra.mxu0 0.0
      %4810 = vmatprep.subr.mxu0 0.0
      %4811 = vmatpush1.msra.mxu0 0.0
      %4812 = vmatprep.subr.mxu0 0.0
      %4813 = vmatpush1.msra.mxu0 0.0
      %4814 = vmatprep.subr.mxu0 0.0
      %4815 = vmatpush1.msra.mxu0 0.0
      %4816 = vmatprep.subr.mxu0 0.0
      %4817 = vmatpush1.msra.mxu0 0.0
      %4818 = vmatprep.subr.mxu0 0.0
      %4819 = vmatpush1.msra.mxu0 0.0
      %4820 = vmatprep.subr.mxu0 0.0
      %4821 = vmatpush1.msra.mxu0 0.0
      %4822 = vmatprep.subr.mxu0 0.0
      %4823 = vmatpush1.msra.mxu0 0.0
      %4824 = vmatprep.subr.mxu0 0.0
      %4825 = vmatpush1.msra.mxu0 0.0
      %4826 = vmatprep.subr.mxu0 0.0
      %4827 = vmatpush1.msra.mxu0 0.0
      %4828 = vmatprep.subr.mxu0 0.0
      %4829 = vmatpush1.msra.mxu0 0.0
      %4830 = vmatprep.subr.mxu0 0.0
      %4831 = vmatpush1.msra.mxu0 0.0
      %4832 = vmatprep.subr.mxu0 0.0
      %4833 = vmatpush1.msra.mxu0 0.0
      %4834 = vmatprep.subr.mxu0 0.0
      %4835 = vmatpush1.msra.mxu0 0.0
      %4836 = vmatprep.subr.mxu0 0.0
      %4837 = vmatpush1.msra.mxu0 0.0
      %4838 = vmatprep.subr.mxu0 0.0
      %4839 = vmatpush1.msra.mxu0 0.0
      %4840 = vmatprep.subr.mxu0 0.0
      %4841 = vmatpush1.msra.mxu0 0.0
      %4842 = vmatprep.subr.mxu0 0.0
      %4843 = vmatpush1.msra.mxu0 0.0
      %4844 = vmatprep.mubr.f32.mxu0 0.0
      %4845 = vmatmul.mubr.f32.gmra.mrb[0].mxu0 %v4778
      %v4846 = vpop.f32.mrb[0].mxu0
      %v4847 = vadd.f32 0.0, %v4846
      %v4848 = vpop.f32.mrb[0].mxu0
      %4849 = vdwg.mxu0
      %v4850 = vadd.f32 %v4777, %v4847
      %v4851 = vxor.u32 %v4850, 2147483648
      %v4852 = vmul.f32 %v4851, 1.442695
      %v4853 = vpow.pop %v4852
      %v4854 = vadd.f32 %v4853, 1.0
      %v4855 = vrcp.pop %v4854
      %v4856 = vmul.f32 1.0, %v4855
      %v4857 = vadd.f32 %v4847, %v4435
      %4859 = vrot.lane.b32.xlu0 %v4857, 64
      %v4860 = vpop.permute.xlu0 %4859
      %v4862 = vmul.f32 %v4856, %v4860
      %4864 = vrot.lane.b32.xlu0 %v4862, 64
      %v4865 = vpop.permute.xlu0 %4864
      %v4867 = vadd.f32 %v4777, %v4865
      %v4868 = vtanh.pop %v4867
      %v4869 = vsub.f32 1.0, %v4856
      %4871 = vrot.lane.b32.xlu0 %v4868, 96
      %v4872 = vpop.permute.xlu0 %4871
      %v4874 = vmul.f32 %v4869, %v4872
      %v4875 = vmul.f32 %v4856, %v4771
      %v4876 = vadd.f32 %v4874, %v4875
      %4878 = vrot.lane.b32.xlu0 %v4876, 96
      %v4879 = vpop.permute.xlu0 %4878
      %4881 = vst.msk [vmem:[#allocation3 + $0x4] sm:$0x1] %vm3303, %v4879
      %v4882 = vld [vmem:[#allocation2 + $0x5] sm:$0x1]
      %v4883 = vsel %vm3190, %v4879, 0
      %4885 = vmatprep.subr.mxu0 0.0
      %4886 = vmatpush1.msra.mxu0 %v4346
      %4887 = vmatprep.subr.mxu0 0.0
      %4888 = vmatpush1.msra.mxu0 %v4347
      %4889 = vmatprep.subr.mxu0 0.0
      %4890 = vmatpush1.msra.mxu0 %v4348
      %4891 = vmatprep.subr.mxu0 0.0
      %4892 = vmatpush1.msra.mxu0 %v4349
      %4893 = vmatprep.subr.mxu0 0.0
      %4894 = vmatpush1.msra.mxu0 0.0
      %4895 = vmatprep.subr.mxu0 0.0
      %4896 = vmatpush1.msra.mxu0 0.0
      %4897 = vmatprep.subr.mxu0 0.0
      %4898 = vmatpush1.msra.mxu0 0.0
      %4899 = vmatprep.subr.mxu0 0.0
      %4900 = vmatpush1.msra.mxu0 0.0
      %4901 = vmatprep.subr.mxu0 0.0
      %4902 = vmatpush1.msra.mxu0 0.0
      %4903 = vmatprep.subr.mxu0 0.0
      %4904 = vmatpush1.msra.mxu0 0.0
      %4905 = vmatprep.subr.mxu0 0.0
      %4906 = vmatpush1.msra.mxu0 0.0
      %4907 = vmatprep.subr.mxu0 0.0
      %4908 = vmatpush1.msra.mxu0 0.0
      %4909 = vmatprep.subr.mxu0 0.0
      %4910 = vmatpush1.msra.mxu0 0.0
      %4911 = vmatprep.subr.mxu0 0.0
      %4912 = vmatpush1.msra.mxu0 0.0
      %4913 = vmatprep.subr.mxu0 0.0
      %4914 = vmatpush1.msra.mxu0 0.0
      %4915 = vmatprep.subr.mxu0 0.0
      %4916 = vmatpush1.msra.mxu0 0.0
      %4917 = vmatprep.subr.mxu0 0.0
      %4918 = vmatpush1.msra.mxu0 0.0
      %4919 = vmatprep.subr.mxu0 0.0
      %4920 = vmatpush1.msra.mxu0 0.0
      %4921 = vmatprep.subr.mxu0 0.0
      %4922 = vmatpush1.msra.mxu0 0.0
      %4923 = vmatprep.subr.mxu0 0.0
      %4924 = vmatpush1.msra.mxu0 0.0
      %4925 = vmatprep.subr.mxu0 0.0
      %4926 = vmatpush1.msra.mxu0 0.0
      %4927 = vmatprep.subr.mxu0 0.0
      %4928 = vmatpush1.msra.mxu0 0.0
      %4929 = vmatprep.subr.mxu0 0.0
      %4930 = vmatpush1.msra.mxu0 0.0
      %4931 = vmatprep.subr.mxu0 0.0
      %4932 = vmatpush1.msra.mxu0 0.0
      %4933 = vmatprep.subr.mxu0 0.0
      %4934 = vmatpush1.msra.mxu0 0.0
      %4935 = vmatprep.subr.mxu0 0.0
      %4936 = vmatpush1.msra.mxu0 0.0
      %4937 = vmatprep.subr.mxu0 0.0
      %4938 = vmatpush1.msra.mxu0 0.0
      %4939 = vmatprep.subr.mxu0 0.0
      %4940 = vmatpush1.msra.mxu0 0.0
      %4941 = vmatprep.subr.mxu0 0.0
      %4942 = vmatpush1.msra.mxu0 0.0
      %4943 = vmatprep.subr.mxu0 0.0
      %4944 = vmatpush1.msra.mxu0 0.0
      %4945 = vmatprep.subr.mxu0 0.0
      %4946 = vmatpush1.msra.mxu0 0.0
      %4947 = vmatprep.subr.mxu0 0.0
      %4948 = vmatpush1.msra.mxu0 0.0
      %4949 = vmatprep.mubr.f32.mxu0 0.0
      %4950 = vmatmul.mubr.f32.gmra.mrb[0].mxu0 %v4883
      %v4951 = vpop.f32.mrb[0].mxu0
      %v4952 = vadd.f32 0.0, %v4951
      %v4953 = vpop.f32.mrb[0].mxu0
      %4954 = vdwg.mxu0
      %v4955 = vadd.f32 %v4882, %v4952
      %v4956 = vxor.u32 %v4955, 2147483648
      %v4957 = vmul.f32 %v4956, 1.442695
      %v4958 = vpow.pop %v4957
      %v4959 = vadd.f32 %v4958, 1.0
      %v4960 = vrcp.pop %v4959
      %v4961 = vmul.f32 1.0, %v4960
      %v4962 = vadd.f32 %v4952, %v4435
      %4964 = vrot.lane.b32.xlu0 %v4962, 64
      %v4965 = vpop.permute.xlu0 %4964
      %v4967 = vmul.f32 %v4961, %v4965
      %4969 = vrot.lane.b32.xlu0 %v4967, 64
      %v4970 = vpop.permute.xlu0 %4969
      %v4972 = vadd.f32 %v4882, %v4970
      %v4973 = vtanh.pop %v4972
      %v4974 = vsub.f32 1.0, %v4961
      %4976 = vrot.lane.b32.xlu0 %v4973, 96
      %v4977 = vpop.permute.xlu0 %4976
      %v4979 = vmul.f32 %v4974, %v4977
      %v4980 = vmul.f32 %v4961, %v4876
      %v4981 = vadd.f32 %v4979, %v4980
      %4983 = vrot.lane.b32.xlu0 %v4981, 96
      %v4984 = vpop.permute.xlu0 %4983
      %4986 = vst.msk [vmem:[#allocation3 + $0x5] sm:$0x1] %vm3303, %v4984
      %v4987 = vld [vmem:[#allocation2 + $0x6] sm:$0x1]
      %v4988 = vsel %vm3190, %v4984, 0
      %4990 = vmatprep.subr.mxu0 0.0
      %4991 = vmatpush1.msra.mxu0 %v4346
      %4992 = vmatprep.subr.mxu0 0.0
      %4993 = vmatpush1.msra.mxu0 %v4347
      %4994 = vmatprep.subr.mxu0 0.0
      %4995 = vmatpush1.msra.mxu0 %v4348
      %4996 = vmatprep.subr.mxu0 0.0
      %4997 = vmatpush1.msra.mxu0 %v4349
      %4998 = vmatprep.subr.mxu0 0.0
      %4999 = vmatpush1.msra.mxu0 0.0
      %5000 = vmatprep.subr.mxu0 0.0
      %5001 = vmatpush1.msra.mxu0 0.0
      %5002 = vmatprep.subr.mxu0 0.0
      %5003 = vmatpush1.msra.mxu0 0.0
      %5004 = vmatprep.subr.mxu0 0.0
      %5005 = vmatpush1.msra.mxu0 0.0
      %5006 = vmatprep.subr.mxu0 0.0
      %5007 = vmatpush1.msra.mxu0 0.0
      %5008 = vmatprep.subr.mxu0 0.0
      %5009 = vmatpush1.msra.mxu0 0.0
      %5010 = vmatprep.subr.mxu0 0.0
      %5011 = vmatpush1.msra.mxu0 0.0
      %5012 = vmatprep.subr.mxu0 0.0
      %5013 = vmatpush1.msra.mxu0 0.0
      %5014 = vmatprep.subr.mxu0 0.0
      %5015 = vmatpush1.msra.mxu0 0.0
      %5016 = vmatprep.subr.mxu0 0.0
      %5017 = vmatpush1.msra.mxu0 0.0
      %5018 = vmatprep.subr.mxu0 0.0
      %5019 = vmatpush1.msra.mxu0 0.0
      %5020 = vmatprep.subr.mxu0 0.0
      %5021 = vmatpush1.msra.mxu0 0.0
      %5022 = vmatprep.subr.mxu0 0.0
      %5023 = vmatpush1.msra.mxu0 0.0
      %5024 = vmatprep.subr.mxu0 0.0
      %5025 = vmatpush1.msra.mxu0 0.0
      %5026 = vmatprep.subr.mxu0 0.0
      %5027 = vmatpush1.msra.mxu0 0.0
      %5028 = vmatprep.subr.mxu0 0.0
      %5029 = vmatpush1.msra.mxu0 0.0
      %5030 = vmatprep.subr.mxu0 0.0
      %5031 = vmatpush1.msra.mxu0 0.0
      %5032 = vmatprep.subr.mxu0 0.0
      %5033 = vmatpush1.msra.mxu0 0.0
      %5034 = vmatprep.subr.mxu0 0.0
      %5035 = vmatpush1.msra.mxu0 0.0
      %5036 = vmatprep.subr.mxu0 0.0
      %5037 = vmatpush1.msra.mxu0 0.0
      %5038 = vmatprep.subr.mxu0 0.0
      %5039 = vmatpush1.msra.mxu0 0.0
      %5040 = vmatprep.subr.mxu0 0.0
      %5041 = vmatpush1.msra.mxu0 0.0
      %5042 = vmatprep.subr.mxu0 0.0
      %5043 = vmatpush1.msra.mxu0 0.0
      %5044 = vmatprep.subr.mxu0 0.0
      %5045 = vmatpush1.msra.mxu0 0.0
      %5046 = vmatprep.subr.mxu0 0.0
      %5047 = vmatpush1.msra.mxu0 0.0
      %5048 = vmatprep.subr.mxu0 0.0
      %5049 = vmatpush1.msra.mxu0 0.0
      %5050 = vmatprep.subr.mxu0 0.0
      %5051 = vmatpush1.msra.mxu0 0.0
      %5052 = vmatprep.subr.mxu0 0.0
      %5053 = vmatpush1.msra.mxu0 0.0
      %5054 = vmatprep.mubr.f32.mxu0 0.0
      %5055 = vmatmul.mubr.f32.gmra.mrb[0].mxu0 %v4988
      %v5056 = vpop.f32.mrb[0].mxu0
      %v5057 = vadd.f32 0.0, %v5056
      %v5058 = vpop.f32.mrb[0].mxu0
      %5059 = vdwg.mxu0
      %v5060 = vadd.f32 %v4987, %v5057
      %v5061 = vxor.u32 %v5060, 2147483648
      %v5062 = vmul.f32 %v5061, 1.442695
      %v5063 = vpow.pop %v5062
      %v5064 = vadd.f32 %v5063, 1.0
      %v5065 = vrcp.pop %v5064
      %v5066 = vmul.f32 1.0, %v5065
      %v5067 = vadd.f32 %v5057, %v4435
      %5069 = vrot.lane.b32.xlu0 %v5067, 64
      %v5070 = vpop.permute.xlu0 %5069
      %v5072 = vmul.f32 %v5066, %v5070
      %5074 = vrot.lane.b32.xlu0 %v5072, 64
      %v5075 = vpop.permute.xlu0 %5074
      %v5077 = vadd.f32 %v4987, %v5075
      %v5078 = vtanh.pop %v5077
      %v5079 = vsub.f32 1.0, %v5066
      %5081 = vrot.lane.b32.xlu0 %v5078, 96
      %v5082 = vpop.permute.xlu0 %5081
      %v5084 = vmul.f32 %v5079, %v5082
      %v5085 = vmul.f32 %v5066, %v4981
      %v5086 = vadd.f32 %v5084, %v5085
      %5088 = vrot.lane.b32.xlu0 %v5086, 96
      %v5089 = vpop.permute.xlu0 %5088
      %5091 = vst.msk [vmem:[#allocation3 + $0x6] sm:$0x1] %vm3303, %v5089
      %v5092 = vld [vmem:[#allocation2 + $0x7] sm:$0x1]
      %v5093 = vsel %vm3190, %v5089, 0
      %5095 = vmatprep.subr.mxu0 0.0
      %5096 = vmatpush1.msra.mxu0 %v4346
      %5097 = vmatprep.subr.mxu0 0.0
      %5098 = vmatpush1.msra.mxu0 %v4347
      %5099 = vmatprep.subr.mxu0 0.0
      %5100 = vmatpush1.msra.mxu0 %v4348
      %5101 = vmatprep.subr.mxu0 0.0
      %5102 = vmatpush1.msra.mxu0 %v4349
      %5103 = vmatprep.subr.mxu0 0.0
      %5104 = vmatpush1.msra.mxu0 0.0
      %5105 = vmatprep.subr.mxu0 0.0
      %5106 = vmatpush1.msra.mxu0 0.0
      %5107 = vmatprep.subr.mxu0 0.0
      %5108 = vmatpush1.msra.mxu0 0.0
      %5109 = vmatprep.subr.mxu0 0.0
      %5110 = vmatpush1.msra.mxu0 0.0
      %5111 = vmatprep.subr.mxu0 0.0
      %5112 = vmatpush1.msra.mxu0 0.0
      %5113 = vmatprep.subr.mxu0 0.0
      %5114 = vmatpush1.msra.mxu0 0.0
      %5115 = vmatprep.subr.mxu0 0.0
      %5116 = vmatpush1.msra.mxu0 0.0
      %5117 = vmatprep.subr.mxu0 0.0
      %5118 = vmatpush1.msra.mxu0 0.0
      %5119 = vmatprep.subr.mxu0 0.0
      %5120 = vmatpush1.msra.mxu0 0.0
      %5121 = vmatprep.subr.mxu0 0.0
      %5122 = vmatpush1.msra.mxu0 0.0
      %5123 = vmatprep.subr.mxu0 0.0
      %5124 = vmatpush1.msra.mxu0 0.0
      %5125 = vmatprep.subr.mxu0 0.0
      %5126 = vmatpush1.msra.mxu0 0.0
      %5127 = vmatprep.subr.mxu0 0.0
      %5128 = vmatpush1.msra.mxu0 0.0
      %5129 = vmatprep.subr.mxu0 0.0
      %5130 = vmatpush1.msra.mxu0 0.0
      %5131 = vmatprep.subr.mxu0 0.0
      %5132 = vmatpush1.msra.mxu0 0.0
      %5133 = vmatprep.subr.mxu0 0.0
      %5134 = vmatpush1.msra.mxu0 0.0
      %5135 = vmatprep.subr.mxu0 0.0
      %5136 = vmatpush1.msra.mxu0 0.0
      %5137 = vmatprep.subr.mxu0 0.0
      %5138 = vmatpush1.msra.mxu0 0.0
      %5139 = vmatprep.subr.mxu0 0.0
      %5140 = vmatpush1.msra.mxu0 0.0
      %5141 = vmatprep.subr.mxu0 0.0
      %5142 = vmatpush1.msra.mxu0 0.0
      %5143 = vmatprep.subr.mxu0 0.0
      %5144 = vmatpush1.msra.mxu0 0.0
      %5145 = vmatprep.subr.mxu0 0.0
      %5146 = vmatpush1.msra.mxu0 0.0
      %5147 = vmatprep.subr.mxu0 0.0
      %5148 = vmatpush1.msra.mxu0 0.0
      %5149 = vmatprep.subr.mxu0 0.0
      %5150 = vmatpush1.msra.mxu0 0.0
      %5151 = vmatprep.subr.mxu0 0.0
      %5152 = vmatpush1.msra.mxu0 0.0
      %5153 = vmatprep.subr.mxu0 0.0
      %5154 = vmatpush1.msra.mxu0 0.0
      %5155 = vmatprep.subr.mxu0 0.0
      %5156 = vmatpush1.msra.mxu0 0.0
      %5157 = vmatprep.subr.mxu0 0.0
      %5158 = vmatpush1.msra.mxu0 0.0
      %5159 = vmatprep.mubr.f32.mxu0 0.0
      %5160 = vmatmul.mubr.f32.gmra.mrb[0].mxu0 %v5093
      %v5161 = vpop.f32.mrb[0].mxu0
      %v5162 = vadd.f32 0.0, %v5161
      %v5163 = vpop.f32.mrb[0].mxu0
      %5164 = vdwg.mxu0
      %v5165 = vadd.f32 %v5092, %v5162
      %v5166 = vxor.u32 %v5165, 2147483648
      %v5167 = vmul.f32 %v5166, 1.442695
      %v5168 = vpow.pop %v5167
      %v5169 = vadd.f32 %v5168, 1.0
      %v5170 = vrcp.pop %v5169
      %v5171 = vmul.f32 1.0, %v5170
      %v5172 = vadd.f32 %v5162, %v4435
      %5174 = vrot.lane.b32.xlu0 %v5172, 64
      %v5175 = vpop.permute.xlu0 %5174
      %v5177 = vmul.f32 %v5171, %v5175
      %5179 = vrot.lane.b32.xlu0 %v5177, 64
      %v5180 = vpop.permute.xlu0 %5179
      %v5182 = vadd.f32 %v5092, %v5180
      %v5183 = vtanh.pop %v5182
      %v5184 = vsub.f32 1.0, %v5171
      %5186 = vrot.lane.b32.xlu0 %v5183, 96
      %v5187 = vpop.permute.xlu0 %5186
      %v5189 = vmul.f32 %v5184, %v5187
      %v5190 = vmul.f32 %v5171, %v5086
      %v5191 = vadd.f32 %v5189, %v5190
      %5193 = vrot.lane.b32.xlu0 %v5191, 96
      %v5194 = vpop.permute.xlu0 %5193
      %5196 = vst.msk [vmem:[#allocation3 + $0x7] sm:$0x1] %vm3303, %v5194
      %v5197 = vld [vmem:[#allocation2 + $0x8] sm:$0x1]
      %v5198 = vsel %vm3190, %v5194, 0
      %5200 = vmatprep.subr.mxu0 0.0
      %5201 = vmatpush1.msra.mxu0 %v4346
      %5202 = vmatprep.subr.mxu0 0.0
      %5203 = vmatpush1.msra.mxu0 %v4347
      %5204 = vmatprep.subr.mxu0 0.0
      %5205 = vmatpush1.msra.mxu0 %v4348
      %5206 = vmatprep.subr.mxu0 0.0
      %5207 = vmatpush1.msra.mxu0 %v4349
      %5208 = vmatprep.subr.mxu0 0.0
      %5209 = vmatpush1.msra.mxu0 0.0
      %5210 = vmatprep.subr.mxu0 0.0
      %5211 = vmatpush1.msra.mxu0 0.0
      %5212 = vmatprep.subr.mxu0 0.0
      %5213 = vmatpush1.msra.mxu0 0.0
      %5214 = vmatprep.subr.mxu0 0.0
      %5215 = vmatpush1.msra.mxu0 0.0
      %5216 = vmatprep.subr.mxu0 0.0
      %5217 = vmatpush1.msra.mxu0 0.0
      %5218 = vmatprep.subr.mxu0 0.0
      %5219 = vmatpush1.msra.mxu0 0.0
      %5220 = vmatprep.subr.mxu0 0.0
      %5221 = vmatpush1.msra.mxu0 0.0
      %5222 = vmatprep.subr.mxu0 0.0
      %5223 = vmatpush1.msra.mxu0 0.0
      %5224 = vmatprep.subr.mxu0 0.0
      %5225 = vmatpush1.msra.mxu0 0.0
      %5226 = vmatprep.subr.mxu0 0.0
      %5227 = vmatpush1.msra.mxu0 0.0
      %5228 = vmatprep.subr.mxu0 0.0
      %5229 = vmatpush1.msra.mxu0 0.0
      %5230 = vmatprep.subr.mxu0 0.0
      %5231 = vmatpush1.msra.mxu0 0.0
      %5232 = vmatprep.subr.mxu0 0.0
      %5233 = vmatpush1.msra.mxu0 0.0
      %5234 = vmatprep.subr.mxu0 0.0
      %5235 = vmatpush1.msra.mxu0 0.0
      %5236 = vmatprep.subr.mxu0 0.0
      %5237 = vmatpush1.msra.mxu0 0.0
      %5238 = vmatprep.subr.mxu0 0.0
      %5239 = vmatpush1.msra.mxu0 0.0
      %5240 = vmatprep.subr.mxu0 0.0
      %5241 = vmatpush1.msra.mxu0 0.0
      %5242 = vmatprep.subr.mxu0 0.0
      %5243 = vmatpush1.msra.mxu0 0.0
      %5244 = vmatprep.subr.mxu0 0.0
      %5245 = vmatpush1.msra.mxu0 0.0
      %5246 = vmatprep.subr.mxu0 0.0
      %5247 = vmatpush1.msra.mxu0 0.0
      %5248 = vmatprep.subr.mxu0 0.0
      %5249 = vmatpush1.msra.mxu0 0.0
      %5250 = vmatprep.subr.mxu0 0.0
      %5251 = vmatpush1.msra.mxu0 0.0
      %5252 = vmatprep.subr.mxu0 0.0
      %5253 = vmatpush1.msra.mxu0 0.0
      %5254 = vmatprep.subr.mxu0 0.0
      %5255 = vmatpush1.msra.mxu0 0.0
      %5256 = vmatprep.subr.mxu0 0.0
      %5257 = vmatpush1.msra.mxu0 0.0
      %5258 = vmatprep.subr.mxu0 0.0
      %5259 = vmatpush1.msra.mxu0 0.0
      %5260 = vmatprep.subr.mxu0 0.0
      %5261 = vmatpush1.msra.mxu0 0.0
      %5262 = vmatprep.subr.mxu0 0.0
      %5263 = vmatpush1.msra.mxu0 0.0
      %5264 = vmatprep.mubr.f32.mxu0 0.0
      %5265 = vmatmul.mubr.f32.gmra.mrb[0].mxu0 %v5198
      %v5266 = vpop.f32.mrb[0].mxu0
      %v5267 = vadd.f32 0.0, %v5266
      %v5268 = vpop.f32.mrb[0].mxu0
      %5269 = vdwg.mxu0
      %v5270 = vadd.f32 %v5197, %v5267
      %v5271 = vxor.u32 %v5270, 2147483648
      %v5272 = vmul.f32 %v5271, 1.442695
      %v5273 = vpow.pop %v5272
      %v5274 = vadd.f32 %v5273, 1.0
      %v5275 = vrcp.pop %v5274
      %v5276 = vmul.f32 1.0, %v5275
      %v5277 = vadd.f32 %v5267, %v4435
      %5279 = vrot.lane.b32.xlu0 %v5277, 64
      %v5280 = vpop.permute.xlu0 %5279
      %v5282 = vmul.f32 %v5276, %v5280
      %5284 = vrot.lane.b32.xlu0 %v5282, 64
      %v5285 = vpop.permute.xlu0 %5284
      %v5287 = vadd.f32 %v5197, %v5285
      %v5288 = vtanh.pop %v5287
      %v5289 = vsub.f32 1.0, %v5276
      %5291 = vrot.lane.b32.xlu0 %v5288, 96
      %v5292 = vpop.permute.xlu0 %5291
      %v5294 = vmul.f32 %v5289, %v5292
      %v5295 = vmul.f32 %v5276, %v5191
      %v5296 = vadd.f32 %v5294, %v5295
      %5298 = vrot.lane.b32.xlu0 %v5296, 96
      %v5299 = vpop.permute.xlu0 %5298
      %5301 = vst.msk [vmem:[#allocation3 + $0x8] sm:$0x1] %vm3303, %v5299
      %v5302 = vld [vmem:[#allocation2 + $0x9] sm:$0x1]
      %v5303 = vsel %vm3190, %v5299, 0
      %5305 = vmatprep.subr.mxu0 0.0
      %5306 = vmatpush1.msra.mxu0 %v4346
      %5307 = vmatprep.subr.mxu0 0.0
      %5308 = vmatpush1.msra.mxu0 %v4347
      %5309 = vmatprep.subr.mxu0 0.0
      %5310 = vmatpush1.msra.mxu0 %v4348
      %5311 = vmatprep.subr.mxu0 0.0
      %5312 = vmatpush1.msra.mxu0 %v4349
      %5313 = vmatprep.subr.mxu0 0.0
      %5314 = vmatpush1.msra.mxu0 0.0
      %5315 = vmatprep.subr.mxu0 0.0
      %5316 = vmatpush1.msra.mxu0 0.0
      %5317 = vmatprep.subr.mxu0 0.0
      %5318 = vmatpush1.msra.mxu0 0.0
      %5319 = vmatprep.subr.mxu0 0.0
      %5320 = vmatpush1.msra.mxu0 0.0
      %5321 = vmatprep.subr.mxu0 0.0
      %5322 = vmatpush1.msra.mxu0 0.0
      %5323 = vmatprep.subr.mxu0 0.0
      %5324 = vmatpush1.msra.mxu0 0.0
      %5325 = vmatprep.subr.mxu0 0.0
      %5326 = vmatpush1.msra.mxu0 0.0
      %5327 = vmatprep.subr.mxu0 0.0
      %5328 = vmatpush1.msra.mxu0 0.0
      %5329 = vmatprep.subr.mxu0 0.0
      %5330 = vmatpush1.msra.mxu0 0.0
      %5331 = vmatprep.subr.mxu0 0.0
      %5332 = vmatpush1.msra.mxu0 0.0
      %5333 = vmatprep.subr.mxu0 0.0
      %5334 = vmatpush1.msra.mxu0 0.0
      %5335 = vmatprep.subr.mxu0 0.0
      %5336 = vmatpush1.msra.mxu0 0.0
      %5337 = vmatprep.subr.mxu0 0.0
      %5338 = vmatpush1.msra.mxu0 0.0
      %5339 = vmatprep.subr.mxu0 0.0
      %5340 = vmatpush1.msra.mxu0 0.0
      %5341 = vmatprep.subr.mxu0 0.0
      %5342 = vmatpush1.msra.mxu0 0.0
      %5343 = vmatprep.subr.mxu0 0.0
      %5344 = vmatpush1.msra.mxu0 0.0
      %5345 = vmatprep.subr.mxu0 0.0
      %5346 = vmatpush1.msra.mxu0 0.0
      %5347 = vmatprep.subr.mxu0 0.0
      %5348 = vmatpush1.msra.mxu0 0.0
      %5349 = vmatprep.subr.mxu0 0.0
      %5350 = vmatpush1.msra.mxu0 0.0
      %5351 = vmatprep.subr.mxu0 0.0
      %5352 = vmatpush1.msra.mxu0 0.0
      %5353 = vmatprep.subr.mxu0 0.0
      %5354 = vmatpush1.msra.mxu0 0.0
      %5355 = vmatprep.subr.mxu0 0.0
      %5356 = vmatpush1.msra.mxu0 0.0
      %5357 = vmatprep.subr.mxu0 0.0
      %5358 = vmatpush1.msra.mxu0 0.0
      %5359 = vmatprep.subr.mxu0 0.0
      %5360 = vmatpush1.msra.mxu0 0.0
      %5361 = vmatprep.subr.mxu0 0.0
      %5362 = vmatpush1.msra.mxu0 0.0
      %5363 = vmatprep.subr.mxu0 0.0
      %5364 = vmatpush1.msra.mxu0 0.0
      %5365 = vmatprep.subr.mxu0 0.0
      %5366 = vmatpush1.msra.mxu0 0.0
      %5367 = vmatprep.subr.mxu0 0.0
      %5368 = vmatpush1.msra.mxu0 0.0
      %5369 = vmatprep.mubr.f32.mxu0 0.0
      %5370 = vmatmul.mubr.f32.gmra.mrb[0].mxu0 %v5303
      %v5371 = vpop.f32.mrb[0].mxu0
      %v5372 = vadd.f32 0.0, %v5371
      %v5373 = vpop.f32.mrb[0].mxu0
      %5374 = vdwg.mxu0
      %v5375 = vadd.f32 %v5302, %v5372
      %v5376 = vxor.u32 %v5375, 2147483648
      %v5377 = vmul.f32 %v5376, 1.442695
      %v5378 = vpow.pop %v5377
      %v5379 = vadd.f32 %v5378, 1.0
      %v5380 = vrcp.pop %v5379
      %v5381 = vmul.f32 1.0, %v5380
      %v5382 = vadd.f32 %v5372, %v4435
      %5384 = vrot.lane.b32.xlu0 %v5382, 64
      %v5385 = vpop.permute.xlu0 %5384
      %v5387 = vmul.f32 %v5381, %v5385
      %5389 = vrot.lane.b32.xlu0 %v5387, 64
      %v5390 = vpop.permute.xlu0 %5389
      %v5392 = vadd.f32 %v5302, %v5390
      %v5393 = vtanh.pop %v5392
      %v5394 = vsub.f32 1.0, %v5381
      %5396 = vrot.lane.b32.xlu0 %v5393, 96
      %v5397 = vpop.permute.xlu0 %5396
      %v5399 = vmul.f32 %v5394, %v5397
      %v5400 = vmul.f32 %v5381, %v5296
      %v5401 = vadd.f32 %v5399, %v5400
      %5403 = vrot.lane.b32.xlu0 %v5401, 96
      %v5404 = vpop.permute.xlu0 %5403
      %5406 = vst.msk [vmem:[#allocation3 + $0x9] sm:$0x1] %vm3303, %v5404
      %v5407 = vld [vmem:[#allocation3] sm:$0xff]
      %v5408 = vld [vmem:[#allocation3 + $0x8] sm:$0x3]
      %v5409 = vld [vmem:[%s13] sm:$0xff]
      %v5410 = vld [vmem:[%s13 + $0x8] sm:$0xff]
      %v5411 = vld [vmem:[%s13 + $0x10] sm:$0xff]
      %v5412 = vld [vmem:[%s13 + $0x18] sm:$0xff]
      %v5413 = vld [vmem:[%s14] sm:$0x1]
      %v5415 = vlaneseq
      %v5416 = vshrl.u32 %v5415, 7
      %v5417 = vsub.s32 0, %v5416
      %v5418 = vrot.slane %v5413, %v5417
      %v5421 = vsel %vm3190, %v5407, 0
      %v5424 = vsel %vm3190, %v5408, 0
      %5426 = vmatprep.subr.mxu0 0.0
      %5427 = vmatpush1.msra.mxu0 %v5409
      %5428 = vmatprep.subr.mxu0 0.0
      %5429 = vmatpush1.msra.mxu0 %v5410
      %5430 = vmatprep.subr.mxu0 0.0
      %5431 = vmatpush1.msra.mxu0 %v5411
      %5432 = vmatprep.subr.mxu0 0.0
      %5433 = vmatpush1.msra.mxu0 %v5412
      %5434 = vmatprep.subr.mxu0 0.0
      %5435 = vmatpush1.msra.mxu0 0.0
      %5436 = vmatprep.subr.mxu0 0.0
      %5437 = vmatpush1.msra.mxu0 0.0
      %5438 = vmatprep.subr.mxu0 0.0
      %5439 = vmatpush1.msra.mxu0 0.0
      %5440 = vmatprep.subr.mxu0 0.0
      %5441 = vmatpush1.msra.mxu0 0.0
      %5442 = vmatprep.subr.mxu0 0.0
      %5443 = vmatpush1.msra.mxu0 0.0
      %5444 = vmatprep.subr.mxu0 0.0
      %5445 = vmatpush1.msra.mxu0 0.0
      %5446 = vmatprep.subr.mxu0 0.0
      %5447 = vmatpush1.msra.mxu0 0.0
      %5448 = vmatprep.subr.mxu0 0.0
      %5449 = vmatpush1.msra.mxu0 0.0
      %5450 = vmatprep.subr.mxu0 0.0
      %5451 = vmatpush1.msra.mxu0 0.0
      %5452 = vmatprep.subr.mxu0 0.0
      %5453 = vmatpush1.msra.mxu0 0.0
      %5454 = vmatprep.subr.mxu0 0.0
      %5455 = vmatpush1.msra.mxu0 0.0
      %5456 = vmatprep.subr.mxu0 0.0
      %5457 = vmatpush1.msra.mxu0 0.0
      %5458 = vmatprep.subr.mxu0 0.0
      %5459 = vmatpush1.msra.mxu0 0.0
      %5460 = vmatprep.subr.mxu0 0.0
      %5461 = vmatpush1.msra.mxu0 0.0
      %5462 = vmatprep.subr.mxu0 0.0
      %5463 = vmatpush1.msra.mxu0 0.0
      %5464 = vmatprep.subr.mxu0 0.0
      %5465 = vmatpush1.msra.mxu0 0.0
      %5466 = vmatprep.subr.mxu0 0.0
      %5467 = vmatpush1.msra.mxu0 0.0
      %5468 = vmatprep.subr.mxu0 0.0
      %5469 = vmatpush1.msra.mxu0 0.0
      %5470 = vmatprep.subr.mxu0 0.0
      %5471 = vmatpush1.msra.mxu0 0.0
      %5472 = vmatprep.subr.mxu0 0.0
      %5473 = vmatpush1.msra.mxu0 0.0
      %5474 = vmatprep.subr.mxu0 0.0
      %5475 = vmatpush1.msra.mxu0 0.0
      %5476 = vmatprep.subr.mxu0 0.0
      %5477 = vmatpush1.msra.mxu0 0.0
      %5478 = vmatprep.subr.mxu0 0.0
      %5479 = vmatpush1.msra.mxu0 0.0
      %5480 = vmatprep.subr.mxu0 0.0
      %5481 = vmatpush1.msra.mxu0 0.0
      %5482 = vmatprep.subr.mxu0 0.0
      %5483 = vmatpush1.msra.mxu0 0.0
      %5484 = vmatprep.subr.mxu0 0.0
      %5485 = vmatpush1.msra.mxu0 0.0
      %5486 = vmatprep.subr.mxu0 0.0
      %5487 = vmatpush1.msra.mxu0 0.0
      %5488 = vmatprep.subr.mxu0 0.0
      %5489 = vmatpush1.msra.mxu0 0.0
      %5490 = vmatprep.mubr.f32.mxu0 0.0
      %5491 = vmatmul.mubr.f32.gmra.mrb[0].mxu0 %v5421
      %v5492 = vpop.f32.mrb[0].mxu0
      %v5493 = vadd.f32 %v5418, %v5492
      %v5494 = vpop.f32.mrb[0].mxu0
      %5495 = vmatprep.mubr.f32.mxu0 0.0
      %5496 = vmatmul.mubr.f32.gmra.mrb[0].mxu0 %v5424
      %v5497 = vpop.f32.mrb[0].mxu0
      %v5498 = vadd.f32 %v5418, %v5497
      %v5499 = vpop.f32.mrb[0].mxu0
      %5500 = vdwg.mxu0
      %vm5501 = vcmask 64512
      %5502 = vst.msk [vmem:[%s494] sm:$0xff] %vm5501, %v5493
      %vm5503 = vcmask 58368
      %5504 = vst.msk [vmem:[%s494 + $0x8] sm:$0x3] %vm5503, %v5498
      %p5505 = scmp.lt.s32.totalorder %s26, 1
      %s5506 = scalar_select %p5505, %s26, 1
      %s5507 = smul.addr %s5506, 2
      %s5508 = smul.addr %s5507, 8
      %s5509 = scalar_lea.vmem %s15, %s5508
      // Predicated region
      $region81: #{tpu_custom_call.1} parent=79 // pred_check
        %p5510 = pneg %p364
      $region82: #{tpu_custom_call.1} parent=79 // pred_check_branch
        %5512 = sbr.rel (%p5510) target = $region84
      $region83: #{tpu_custom_call.1} parent=79 // pred_region
        _
      $region84: #{tpu_custom_call.1} parent=79 // pred_fallthru
        _
    $region80: #{tpu_custom_call.1} parent=5 // pred_fallthru
      _
    %p5513 = scmp.le.s32.totalorder 2, %s21
    // Predicated region
    $region85: #{tpu_custom_call.1} parent=5 // pred_check
      %p5514 = pneg %p5513
    $region86: #{tpu_custom_call.1} parent=5 // pred_check_branch
      %5516 = sbr.rel (%p5514) target = $region88
    $region87: #{tpu_custom_call.1} parent=5 // pred_region
      %s5517 = ssub.s32 %s21, 2
      // Predicated region
      $region89: #{tpu_custom_call.1} parent=87 // pred_check
        %p5518 = pneg %p370
      $region90: #{tpu_custom_call.1} parent=87 // pred_check_branch
        %5520 = sbr.rel (%p5518) target = $region92
      $region91: #{tpu_custom_call.1} parent=87 // pred_region
        %p5521 = scmp.lt.s32.totalorder %s27, 1
        %s5522 = scalar_select %p5521, %s27, 1
        %s5523 = smul.addr %s5522, 2
        %s5524 = smul.addr %s5523, 8
        %s5525 = scalar_lea.vmem %s15, %s5524
      $region92: #{tpu_custom_call.1} parent=87 // pred_fallthru
        _
    $region88: #{tpu_custom_call.1} parent=5 // pred_fallthru
      _
  $region6: #{tpu_custom_call.1} parent=0 // loop_footer
    %s25 = sadd.s32 1, %s21
  $region7: #{tpu_custom_call.1} parent=0 // loop_footer_branch
    %20 = sbr.rel target = $region3
  $region8: #{tpu_custom_call.1} parent=0 // loop_exit
    _

</llo_original>
